<compile_context>
chip_gen: v5e
topology: v5e:2x2
jax: 0.10.0
libtpu: 0.0.40
codegen_flags: <defaults>
</compile_context>

<pallas_src>
import numpy as np

import jax
import jax.numpy as jnp
from jax.experimental import pallas as pl
from jax.experimental.pallas import tpu as pltpu


IMG = 16                      # input spatial size (16x16)
CHANNELS = (3, 16, 32, 64)    # encoder channel progression


# ---------------------------------------------------------------------------
# Static planning: per-layer geometry + tiny per-row transition matrices
# ---------------------------------------------------------------------------
def _make_plan():
    """Per-layer geometry for the flat-grid, channel-major formulation.

    Every layer is a stride-1 conv over a flattened, zero-padded (Conv2d) or
    zero-dilated+padded (ConvTranspose2d) grid held in VMEM:
        tap (kh, kw) contributes  W_tap (Co,Ci) @ grid[:, kh*pitch+kw : +lf].
    """
    plan = []
    h = IMG
    for li in range(3):                              # Conv2d(k3, s2, p1)
        pitch = h + 2                                # zero-padded row pitch
        n_out = h // 2
        lf = 2 * (n_out - 1) * (pitch + 1) + 1       # cols covering valid outputs
        plan.append(dict(kind="enc", ci=CHANNELS[li], co=CHANNELS[li + 1],
                         pitch=pitch, sp=pitch * pitch, n_out=n_out, lf=lf,
                         act="relu"))
        h //= 2
    for li in range(3):                              # ConvTranspose2d(k3,s2,p1,op1)
        pitch = 2 * h + 2                            # zero-dilated+padded pitch
        n_out = 2 * h
        lf = (n_out - 1) * pitch + n_out
        plan.append(dict(kind="dec", ci=CHANNELS[3 - li], co=CHANNELS[2 - li],
                         pitch=pitch, sp=pitch * pitch, n_out=n_out, lf=lf,
                         act="relu" if li < 2 else "sigmoid"))
        h *= 2
    return plan


def _transition_mats(plan):
    """Tiny 0/1 matrices (<= 15x18, ~1.6KB total) applied per output row.

    Right-multiplying one source-row window (Co, src_w) by R both drops the
    stride/wrap junk columns and places the valid values at the padded
    (encoder target) or dilated+padded (decoder target) positions of the next
    layer's grid row; R's all-zero columns supply the padding/dilation zeros.
    """
    mats = []
    for li in range(len(plan) - 1):
        src, tgt = plan[li], plan[li + 1]
        n = src["n_out"]
        src_step = 2 if src["kind"] == "enc" else 1
        tgt_step = 1 if tgt["kind"] == "enc" else 2
        src_w = src_step * (n - 1) + 1
        r = np.zeros((src_w, tgt["pitch"]), np.float32)
        for j in range(n):
            r[src_step * j, tgt_step * j + 1] = 1.0
        mats.append(r)
    return mats


# ---------------------------------------------------------------------------
# Parameters (deterministic synthetic init, PyTorch layouts) + one-time pack
# ---------------------------------------------------------------------------
def init_params(key):
    def uconv(k, co, ci):
        bound = 1.0 / np.sqrt(ci * 9.0)
        kw_, kb_ = jax.random.split(k)
        w = jax.random.uniform(kw_, (co, ci, 3, 3), jnp.float32, -bound, bound)
        b = jax.random.uniform(kb_, (co,), jnp.float32, -bound, bound)
        return w, b

    def uconvt(k, ci, co):
        bound = 1.0 / np.sqrt(ci * 9.0)
        kw_, kb_ = jax.random.split(k)
        w = jax.random.uniform(kw_, (ci, co, 3, 3), jnp.float32, -bound, bound)
        b = jax.random.uniform(kb_, (co,), jnp.float32, -bound, bound)
        return w, b

    keys = jax.random.split(key, 6)
    return {
        "enc0": uconv(keys[0], 16, 3),
        "enc1": uconv(keys[1], 32, 16),
        "enc2": uconv(keys[2], 64, 32),
        "dec0": uconvt(keys[3], 64, 32),
        "dec1": uconvt(keys[4], 32, 16),
        "dec2": uconvt(keys[5], 16, 3),
    }


def pack_params(params):
    """One-time weight prep (hoisted out of the jitted forward).

    Conv2d        (Co,Ci,3,3) -> (9, Co, Ci), tap index kh*3+kw.
    ConvTranspose (Ci,Co,3,3) -> spatial flip (equivalent stride-1 conv over
                                 the zero-dilated grid) -> (9, Co, Ci).
    Biases -> (Co, 1) for channel-major broadcast over the lane (spatial) axis.
    """
    def pack_conv(w):                                       # (Co,Ci,3,3)
        return jnp.transpose(w, (2, 3, 0, 1)).reshape(9, w.shape[0], w.shape[1])

    def pack_convt(w):                                      # (Ci,Co,3,3)
        wf = w[:, :, ::-1, ::-1]
        return jnp.transpose(wf, (2, 3, 1, 0)).reshape(9, w.shape[1], w.shape[0])

    names = ("enc0", "enc1", "enc2", "dec0", "dec1", "dec2")
    packers = (pack_conv,) * 3 + (pack_convt,) * 3
    ws = [jnp.asarray(p(params[n][0]), jnp.float32) for n, p in zip(names, packers)]
    bs = [jnp.asarray(params[n][1], jnp.float32).reshape(-1, 1) for n in names]
    return ws, bs


# ---------------------------------------------------------------------------
# Fused Pallas kernel: one sample per grid step, whole autoencoder in VMEM
# ---------------------------------------------------------------------------
def _make_kernel(plan):
    nl = len(plan)          # 6 layers
    nt = nl - 1             # 5 transitions

    def kernel(*refs):
        x_ref = refs[0]
        w_refs = refs[1:1 + nl]
        b_refs = refs[1 + nl:1 + 2 * nl]
        r_refs = refs[1 + 2 * nl:1 + 2 * nl + nt]
        o_ref = refs[1 + 2 * nl + nt]
        grids = refs[2 + 2 * nl + nt:]          # nt VMEM layer-input grids

        # Zero the padded / dilated layer-input grids: every position that is
        # never written below is exactly a conv-padding / dilation zero.
        for g in grids:
            g[...] = jnp.zeros_like(g)

        def conv_layer(gval, cfg, w_ref, b_ref):
            pitch, lf, co = cfg["pitch"], cfg["lf"], cfg["co"]
            acc = jnp.zeros((co, lf), jnp.float32)
            for kh in range(3):
                for kw in range(3):
                    off = kh * pitch + kw
                    acc = acc + jnp.dot(
                        w_ref[kh * 3 + kw],                 # (Co, Ci) tap slab
                        gval[:, off:off + lf],              # (Ci, Lf) static slice
                        preferred_element_type=jnp.float32)
            acc = acc + b_ref[...]                          # (Co, 1) broadcast
            if cfg["act"] == "relu":
                return jnp.maximum(acc, 0.0)
            return 1.0 / (1.0 + jnp.exp(-acc))              # sigmoid (exp -> EUP)

        gval = x_ref[0]                                     # (3, 324) padded input
        for li, cfg in enumerate(plan):
            acc = conv_layer(gval, cfg, w_refs[li], b_refs[li])
            if li + 1 < nl:
                nxt = plan[li + 1]
                rmat = r_refs[li][...]                      # (src_w, nxt_pitch)
                src_step = 2 if cfg["kind"] == "enc" else 1
                src_w = src_step * (cfg["n_out"] - 1) + 1
                tgt_first = 1 if nxt["kind"] == "enc" else 1   # row offset factor below
                for r in range(cfg["n_out"]):
                    s0 = src_step * r * cfg["pitch"]
                    if nxt["kind"] == "enc":
                        t0 = (r + 1) * nxt["pitch"]
                    else:
                        t0 = (2 * r + 1) * nxt["pitch"]
                    grids[li][:, pl.ds(t0, nxt["pitch"])] = jnp.dot(
                        acc[:, s0:s0 + src_w], rmat,
                        preferred_element_type=jnp.float32)
                gval = grids[li][...]
            else:
                o_ref[0] = acc                              # lane-dense (3, 288) slab

    return kernel


def build_forward(batch):
    plan = _make_plan()
    # Final layer: emit complete 16-row slabs (16*18 = 288 lanes) so the HBM
    # store is one mostly-lane-dense block; wrapper slices off the 2 wrap cols.
    plan[-1]["lf"] = plan[-1]["n_out"] * plan[-1]["pitch"]
    out_w = plan[-1]["lf"]

    r_mats = [jnp.asarray(m) for m in _transition_mats(plan)]

    # Per-transition grid widths (next layer's flat grid, widened where the
    # final layer's 288-wide tap slices need a small zero tail).
    grid_ws = [max(plan[li + 1]["sp"],
                   2 * plan[li + 1]["pitch"] + 2 + plan[li + 1]["lf"])
               for li in range(len(plan) - 1)]

    def const_spec(shape):
        shape = tuple(shape)
        return pl.BlockSpec(shape, lambda i, _n=len(shape): (0,) * _n)

    in_specs = (
        [pl.BlockSpec((1, CHANNELS[0], plan[0]["sp"]), lambda i: (i, 0, 0))]
        + [const_spec((9, p["co"], p["ci"])) for p in plan]       # packed weights
        + [const_spec((p["co"], 1)) for p in plan]                # biases
        + [const_spec(m.shape) for m in r_mats])                  # tiny R matrices

    scratch = [pltpu.VMEM((plan[li + 1]["ci"], grid_ws[li]), jnp.float32)
               for li in range(len(plan) - 1)]

    fused = pl.pallas_call(
        _make_kernel(plan),
        out_shape=jax.ShapeDtypeStruct((batch, CHANNELS[0], out_w), jnp.float32),
        grid_spec=pltpu.PrefetchScalarGridSpec(
            num_scalar_prefetch=0,
            grid=(batch,),
            in_specs=in_specs,
            out_specs=pl.BlockSpec((1, CHANNELS[0], out_w), lambda i: (i, 0, 0)),
            scratch_shapes=scratch,
        ),
        compiler_params=pltpu.CompilerParams(
            dimension_semantics=("parallel",)),
    )

    @jax.jit
    def forward(x_nchw, ws, bs, rs):
        n = x_nchw.shape[0]
        xp = jnp.pad(x_nchw, ((0, 0), (0, 0), (1, 1), (1, 1)))      # (N,3,18,18)
        xp = xp.reshape(n, CHANNELS[0], plan[0]["sp"])              # (N,3,324)
        y = fused(xp, *ws, *bs, *rs)                                # (N,3,288)
        y = y.reshape(n, CHANNELS[0], plan[-1]["n_out"], plan[-1]["pitch"])
        return y[:, :, :, :IMG]                                     # NCHW (N,3,16,16)

    return forward, r_mats


# ---------------------------------------------------------------------------
# Pure-JAX reference (independent of the kernel's formulation)
# ---------------------------------------------------------------------------
@jax.jit
def reference_forward(x_nchw, params):
    x = jnp.transpose(x_nchw, (0, 2, 3, 1))

    def conv(x, w, b):                                  # w (Co,Ci,3,3)
        w_hwio = jnp.transpose(w, (2, 3, 1, 0))
        y = jax.lax.conv_general_dilated(
            x, w_hwio, window_strides=(2, 2), padding=((1, 1), (1, 1)),
            dimension_numbers=("NHWC", "HWIO", "NHWC"))
        return y + b

    def convt(x, w, b):                                 # w (Ci,Co,3,3)
        n, h, ww, _ = x.shape
        co = w.shape[1]
        out = jnp.zeros((n, 2 * h + 2, 2 * ww + 2, co), jnp.float32)
        for kh in range(3):
            for kw in range(3):
                contrib = jnp.einsum("nhwc,cd->nhwd", x, w[:, :, kh, kw])
                out = out.at[:, kh:kh + 2 * h:2, kw:kw + 2 * ww:2, :].add(contrib)
        return out[:, 1:1 + 2 * h, 1:1 + 2 * ww, :] + b

    relu = lambda t: jnp.maximum(t, 0.0)
    x = relu(conv(x, *params["enc0"]))
    x = relu(conv(x, *params["enc1"]))
    x = relu(conv(x, *params["enc2"]))
    x = relu(convt(x, *params["dec0"]))
    x = relu(convt(x, *params["dec1"]))
    x = jax.nn.sigmoid(convt(x, *params["dec2"]))
    return jnp.transpose(x, (0, 3, 1, 2))


if __name__ == "__main__":
    key = jax.random.PRNGKey(0)
    k_x, k_p = jax.random.split(key)
    batch = 2
    x = jax.random.normal(k_x, (batch, 3, IMG, IMG), jnp.float32)   # NCHW like PyTorch

    params = init_params(k_p)
    ws, bs = pack_params(params)                  # one-time weight prep (hoisted)
    forward, r_mats = build_forward(batch)        # one-time transition-matrix prep

    y = forward(x, ws, bs, r_mats)
    jax.block_until_ready(y)

    assert y.shape == (batch, 3, IMG, IMG), y.shape
    assert bool(jnp.all(jnp.isfinite(y)))
    assert bool(jnp.all((y >= 0.0) & (y <= 1.0)))   # sigmoid output range

    # Numerical check against an independent pure-JAX/XLA reference.
    y_ref = reference_forward(x, params)
    np.testing.assert_allclose(np.asarray(y), np.asarray(y_ref),
                               rtol=1e-4, atol=1e-4)

    print("KERNEL_OK")
</pallas_src>

<mosaic_0001>
module attributes {stable_mosaic.version = 11 : i64} {
  func.func @kernel(%arg0: i32, %arg1: memref<1x3x324xf32, #tpu.memory_space<vmem>>, %arg2: memref<9x16x3xf32, #tpu.memory_space<vmem>>, %arg3: memref<9x32x16xf32, #tpu.memory_space<vmem>>, %arg4: memref<9x64x32xf32, #tpu.memory_space<vmem>>, %arg5: memref<9x32x64xf32, #tpu.memory_space<vmem>>, %arg6: memref<9x16x32xf32, #tpu.memory_space<vmem>>, %arg7: memref<9x3x16xf32, #tpu.memory_space<vmem>>, %arg8: memref<16x1xf32, #tpu.memory_space<vmem>>, %arg9: memref<32x1xf32, #tpu.memory_space<vmem>>, %arg10: memref<64x1xf32, #tpu.memory_space<vmem>>, %arg11: memref<32x1xf32, #tpu.memory_space<vmem>>, %arg12: memref<16x1xf32, #tpu.memory_space<vmem>>, %arg13: memref<3x1xf32, #tpu.memory_space<vmem>>, %arg14: memref<15x10xf32, #tpu.memory_space<vmem>>, %arg15: memref<7x6xf32, #tpu.memory_space<vmem>>, %arg16: memref<3x6xf32, #tpu.memory_space<vmem>>, %arg17: memref<4x10xf32, #tpu.memory_space<vmem>>, %arg18: memref<8x18xf32, #tpu.memory_space<vmem>>, %arg19: memref<1x3x288xf32, #tpu.memory_space<vmem>>, %arg20: memref<16x100xf32, #tpu.memory_space<vmem>>, %arg21: memref<32x36xf32, #tpu.memory_space<vmem>>, %arg22: memref<64x36xf32, #tpu.memory_space<vmem>>, %arg23: memref<32x100xf32, #tpu.memory_space<vmem>>, %arg24: memref<16x326xf32, #tpu.memory_space<vmem>>) attributes {dimension_semantics = [#tpu.dimension_semantics<parallel>], iteration_bounds = array<i64: 2>, scalar_prefetch = 0 : i64, scratch_operands = 5 : i64, tpu.core_type = #tpu.core_type<tc>, window_params = [{transform_indices = @transform_0, window_bounds = array<i64: 1, 3, 324>}, {pipeline_mode = #tpu.pipeline_mode<synchronous>, transform_indices = @transform_1, window_bounds = array<i64: 9, 16, 3>}, {pipeline_mode = #tpu.pipeline_mode<synchronous>, transform_indices = @transform_2, window_bounds = array<i64: 9, 32, 16>}, {pipeline_mode = #tpu.pipeline_mode<synchronous>, transform_indices = @transform_3, window_bounds = array<i64: 9, 64, 32>}, {pipeline_mode = #tpu.pipeline_mode<synchronous>, transform_indices = @transform_4, window_bounds = array<i64: 9, 32, 64>}, {pipeline_mode = #tpu.pipeline_mode<synchronous>, transform_indices = @transform_5, window_bounds = array<i64: 9, 16, 32>}, {pipeline_mode = #tpu.pipeline_mode<synchronous>, transform_indices = @transform_6, window_bounds = array<i64: 9, 3, 16>}, {pipeline_mode = #tpu.pipeline_mode<synchronous>, transform_indices = @transform_7, window_bounds = array<i64: 16, 1>}, {pipeline_mode = #tpu.pipeline_mode<synchronous>, transform_indices = @transform_8, window_bounds = array<i64: 32, 1>}, {pipeline_mode = #tpu.pipeline_mode<synchronous>, transform_indices = @transform_9, window_bounds = array<i64: 64, 1>}, {pipeline_mode = #tpu.pipeline_mode<synchronous>, transform_indices = @transform_10, window_bounds = array<i64: 32, 1>}, {pipeline_mode = #tpu.pipeline_mode<synchronous>, transform_indices = @transform_11, window_bounds = array<i64: 16, 1>}, {pipeline_mode = #tpu.pipeline_mode<synchronous>, transform_indices = @transform_12, window_bounds = array<i64: 3, 1>}, {pipeline_mode = #tpu.pipeline_mode<synchronous>, transform_indices = @transform_13, window_bounds = array<i64: 15, 10>}, {pipeline_mode = #tpu.pipeline_mode<synchronous>, transform_indices = @transform_14, window_bounds = array<i64: 7, 6>}, {pipeline_mode = #tpu.pipeline_mode<synchronous>, transform_indices = @transform_15, window_bounds = array<i64: 3, 6>}, {pipeline_mode = #tpu.pipeline_mode<synchronous>, transform_indices = @transform_16, window_bounds = array<i64: 4, 10>}, {pipeline_mode = #tpu.pipeline_mode<synchronous>, transform_indices = @transform_17, window_bounds = array<i64: 8, 18>}, {transform_indices = @transform_18, window_bounds = array<i64: 1, 3, 288>}]} {
    %cst = arith.constant 0.000000e+00 : f32
    %0 = vector.broadcast %cst : f32 to vector<16x100xf32>
    %c0 = arith.constant 0 : index
    %c0_0 = arith.constant 0 : index
    %1 = vector.load %arg20[%c0, %c0_0] : memref<16x100xf32, #tpu.memory_space<vmem>>, vector<16x100xf32>
    tpu.vector_store %arg20[%c0, %c0_0], %0 {strides = array<i32>} : memref<16x100xf32, #tpu.memory_space<vmem>>, vector<16x100xf32>,
    %cst_1 = arith.constant 0.000000e+00 : f32
    %2 = vector.broadcast %cst_1 : f32 to vector<32x36xf32>
    %c0_2 = arith.constant 0 : index
    %c0_3 = arith.constant 0 : index
    %3 = vector.load %arg21[%c0_2, %c0_3] : memref<32x36xf32, #tpu.memory_space<vmem>>, vector<32x36xf32>
    tpu.vector_store %arg21[%c0_2, %c0_3], %2 {strides = array<i32>} : memref<32x36xf32, #tpu.memory_space<vmem>>, vector<32x36xf32>,
    %cst_4 = arith.constant 0.000000e+00 : f32
    %4 = vector.broadcast %cst_4 : f32 to vector<64x36xf32>
    %c0_5 = arith.constant 0 : index
    %c0_6 = arith.constant 0 : index
    %5 = vector.load %arg22[%c0_5, %c0_6] : memref<64x36xf32, #tpu.memory_space<vmem>>, vector<64x36xf32>
    tpu.vector_store %arg22[%c0_5, %c0_6], %4 {strides = array<i32>} : memref<64x36xf32, #tpu.memory_space<vmem>>, vector<64x36xf32>,
    %cst_7 = arith.constant 0.000000e+00 : f32
    %6 = vector.broadcast %cst_7 : f32 to vector<32x100xf32>
    %c0_8 = arith.constant 0 : index
    %c0_9 = arith.constant 0 : index
    %7 = vector.load %arg23[%c0_8, %c0_9] : memref<32x100xf32, #tpu.memory_space<vmem>>, vector<32x100xf32>
    tpu.vector_store %arg23[%c0_8, %c0_9], %6 {strides = array<i32>} : memref<32x100xf32, #tpu.memory_space<vmem>>, vector<32x100xf32>,
    %cst_10 = arith.constant 0.000000e+00 : f32
    %8 = vector.broadcast %cst_10 : f32 to vector<16x326xf32>
    %c0_11 = arith.constant 0 : index
    %c0_12 = arith.constant 0 : index
    %9 = vector.load %arg24[%c0_11, %c0_12] : memref<16x326xf32, #tpu.memory_space<vmem>>, vector<16x326xf32>
    tpu.vector_store %arg24[%c0_11, %c0_12], %8 {strides = array<i32>} : memref<16x326xf32, #tpu.memory_space<vmem>>, vector<16x326xf32>,
    %c0_13 = arith.constant 0 : index
    %c0_14 = arith.constant 0 : index
    %c0_15 = arith.constant 0 : index
    %10 = vector.load %arg1[%c0_13, %c0_14, %c0_15] : memref<1x3x324xf32, #tpu.memory_space<vmem>>, vector<1x3x324xf32>
    %11 = vector.shape_cast %10 : vector<1x3x324xf32> to vector<3x324xf32>
    %cst_16 = arith.constant 0.000000e+00 : f32
    %12 = vector.broadcast %cst_16 : f32 to vector<16x267xf32>
    %c0_17 = arith.constant 0 : index
    %c0_18 = arith.constant 0 : index
    %c0_19 = arith.constant 0 : index
    %13 = vector.load %arg2[%c0_17, %c0_18, %c0_19] : memref<9x16x3xf32, #tpu.memory_space<vmem>>, vector<1x16x3xf32>
    %14 = vector.shape_cast %13 : vector<1x16x3xf32> to vector<16x3xf32>
    %15 = vector.extract_strided_slice %11 {offsets = [0, 0], sizes = [3, 267], strides = [1, 1]} : vector<3x324xf32> to vector<3x267xf32>
    %cst_20 = arith.constant dense<0.000000e+00> : vector<16x267xf32>
    %16 = tpu.matmul %14, %15, %cst_20 {dimension_numbers = #tpu.dot_dimension_numbers<[1], [0], [0], [1], [0, 0, 1, 1], [], []>} : vector<16x3xf32>, vector<3x267xf32>, vector<16x267xf32> -> vector<16x267xf32>
    %17 = arith.addf %12, %16 : vector<16x267xf32>
    %c1 = arith.constant 1 : index
    %c0_21 = arith.constant 0 : index
    %c0_22 = arith.constant 0 : index
    %18 = vector.load %arg2[%c1, %c0_21, %c0_22] : memref<9x16x3xf32, #tpu.memory_space<vmem>>, vector<1x16x3xf32>
    %19 = vector.shape_cast %18 : vector<1x16x3xf32> to vector<16x3xf32>
    %20 = vector.extract_strided_slice %11 {offsets = [0, 1], sizes = [3, 267], strides = [1, 1]} : vector<3x324xf32> to vector<3x267xf32>
    %cst_23 = arith.constant dense<0.000000e+00> : vector<16x267xf32>
    %21 = tpu.matmul %19, %20, %cst_23 {dimension_numbers = #tpu.dot_dimension_numbers<[1], [0], [0], [1], [0, 0, 1, 1], [], []>} : vector<16x3xf32>, vector<3x267xf32>, vector<16x267xf32> -> vector<16x267xf32>
    %22 = arith.addf %17, %21 : vector<16x267xf32>
    %c2 = arith.constant 2 : index
    %c0_24 = arith.constant 0 : index
    %c0_25 = arith.constant 0 : index
    %23 = vector.load %arg2[%c2, %c0_24, %c0_25] : memref<9x16x3xf32, #tpu.memory_space<vmem>>, vector<1x16x3xf32>
    %24 = vector.shape_cast %23 : vector<1x16x3xf32> to vector<16x3xf32>
    %25 = vector.extract_strided_slice %11 {offsets = [0, 2], sizes = [3, 267], strides = [1, 1]} : vector<3x324xf32> to vector<3x267xf32>
    %cst_26 = arith.constant dense<0.000000e+00> : vector<16x267xf32>
    %26 = tpu.matmul %24, %25, %cst_26 {dimension_numbers = #tpu.dot_dimension_numbers<[1], [0], [0], [1], [0, 0, 1, 1], [], []>} : vector<16x3xf32>, vector<3x267xf32>, vector<16x267xf32> -> vector<16x267xf32>
    %27 = arith.addf %22, %26 : vector<16x267xf32>
    %c3 = arith.constant 3 : index
    %c0_27 = arith.constant 0 : index
    %c0_28 = arith.constant 0 : index
    %28 = vector.load %arg2[%c3, %c0_27, %c0_28] : memref<9x16x3xf32, #tpu.memory_space<vmem>>, vector<1x16x3xf32>
    %29 = vector.shape_cast %28 : vector<1x16x3xf32> to vector<16x3xf32>
    %30 = vector.extract_strided_slice %11 {offsets = [0, 18], sizes = [3, 267], strides = [1, 1]} : vector<3x324xf32> to vector<3x267xf32>
    %cst_29 = arith.constant dense<0.000000e+00> : vector<16x267xf32>
    %31 = tpu.matmul %29, %30, %cst_29 {dimension_numbers = #tpu.dot_dimension_numbers<[1], [0], [0], [1], [0, 0, 1, 1], [], []>} : vector<16x3xf32>, vector<3x267xf32>, vector<16x267xf32> -> vector<16x267xf32>
    %32 = arith.addf %27, %31 : vector<16x267xf32>
    %c4 = arith.constant 4 : index
    %c0_30 = arith.constant 0 : index
    %c0_31 = arith.constant 0 : index
    %33 = vector.load %arg2[%c4, %c0_30, %c0_31] : memref<9x16x3xf32, #tpu.memory_space<vmem>>, vector<1x16x3xf32>
    %34 = vector.shape_cast %33 : vector<1x16x3xf32> to vector<16x3xf32>
    %35 = vector.extract_strided_slice %11 {offsets = [0, 19], sizes = [3, 267], strides = [1, 1]} : vector<3x324xf32> to vector<3x267xf32>
    %cst_32 = arith.constant dense<0.000000e+00> : vector<16x267xf32>
    %36 = tpu.matmul %34, %35, %cst_32 {dimension_numbers = #tpu.dot_dimension_numbers<[1], [0], [0], [1], [0, 0, 1, 1], [], []>} : vector<16x3xf32>, vector<3x267xf32>, vector<16x267xf32> -> vector<16x267xf32>
    %37 = arith.addf %32, %36 : vector<16x267xf32>
    %c5 = arith.constant 5 : index
    %c0_33 = arith.constant 0 : index
    %c0_34 = arith.constant 0 : index
    %38 = vector.load %arg2[%c5, %c0_33, %c0_34] : memref<9x16x3xf32, #tpu.memory_space<vmem>>, vector<1x16x3xf32>
    %39 = vector.shape_cast %38 : vector<1x16x3xf32> to vector<16x3xf32>
    %40 = vector.extract_strided_slice %11 {offsets = [0, 20], sizes = [3, 267], strides = [1, 1]} : vector<3x324xf32> to vector<3x267xf32>
    %cst_35 = arith.constant dense<0.000000e+00> : vector<16x267xf32>
    %41 = tpu.matmul %39, %40, %cst_35 {dimension_numbers = #tpu.dot_dimension_numbers<[1], [0], [0], [1], [0, 0, 1, 1], [], []>} : vector<16x3xf32>, vector<3x267xf32>, vector<16x267xf32> -> vector<16x267xf32>
    %42 = arith.addf %37, %41 : vector<16x267xf32>
    %c6 = arith.constant 6 : index
    %c0_36 = arith.constant 0 : index
    %c0_37 = arith.constant 0 : index
    %43 = vector.load %arg2[%c6, %c0_36, %c0_37] : memref<9x16x3xf32, #tpu.memory_space<vmem>>, vector<1x16x3xf32>
    %44 = vector.shape_cast %43 : vector<1x16x3xf32> to vector<16x3xf32>
    %45 = vector.extract_strided_slice %11 {offsets = [0, 36], sizes = [3, 267], strides = [1, 1]} : vector<3x324xf32> to vector<3x267xf32>
    %cst_38 = arith.constant dense<0.000000e+00> : vector<16x267xf32>
    %46 = tpu.matmul %44, %45, %cst_38 {dimension_numbers = #tpu.dot_dimension_numbers<[1], [0], [0], [1], [0, 0, 1, 1], [], []>} : vector<16x3xf32>, vector<3x267xf32>, vector<16x267xf32> -> vector<16x267xf32>
    %47 = arith.addf %42, %46 : vector<16x267xf32>
    %c7 = arith.constant 7 : index
    %c0_39 = arith.constant 0 : index
    %c0_40 = arith.constant 0 : index
    %48 = vector.load %arg2[%c7, %c0_39, %c0_40] : memref<9x16x3xf32, #tpu.memory_space<vmem>>, vector<1x16x3xf32>
    %49 = vector.shape_cast %48 : vector<1x16x3xf32> to vector<16x3xf32>
    %50 = vector.extract_strided_slice %11 {offsets = [0, 37], sizes = [3, 267], strides = [1, 1]} : vector<3x324xf32> to vector<3x267xf32>
    %cst_41 = arith.constant dense<0.000000e+00> : vector<16x267xf32>
    %51 = tpu.matmul %49, %50, %cst_41 {dimension_numbers = #tpu.dot_dimension_numbers<[1], [0], [0], [1], [0, 0, 1, 1], [], []>} : vector<16x3xf32>, vector<3x267xf32>, vector<16x267xf32> -> vector<16x267xf32>
    %52 = arith.addf %47, %51 : vector<16x267xf32>
    %c8 = arith.constant 8 : index
    %c0_42 = arith.constant 0 : index
    %c0_43 = arith.constant 0 : index
    %53 = vector.load %arg2[%c8, %c0_42, %c0_43] : memref<9x16x3xf32, #tpu.memory_space<vmem>>, vector<1x16x3xf32>
    %54 = vector.shape_cast %53 : vector<1x16x3xf32> to vector<16x3xf32>
    %55 = vector.extract_strided_slice %11 {offsets = [0, 38], sizes = [3, 267], strides = [1, 1]} : vector<3x324xf32> to vector<3x267xf32>
    %cst_44 = arith.constant dense<0.000000e+00> : vector<16x267xf32>
    %56 = tpu.matmul %54, %55, %cst_44 {dimension_numbers = #tpu.dot_dimension_numbers<[1], [0], [0], [1], [0, 0, 1, 1], [], []>} : vector<16x3xf32>, vector<3x267xf32>, vector<16x267xf32> -> vector<16x267xf32>
    %57 = arith.addf %52, %56 : vector<16x267xf32>
    %c0_45 = arith.constant 0 : index
    %c0_46 = arith.constant 0 : index
    %58 = vector.load %arg8[%c0_45, %c0_46] : memref<16x1xf32, #tpu.memory_space<vmem>>, vector<16x1xf32>
    %59 = vector.broadcast %58 : vector<16x1xf32> to vector<16x267xf32>
    %60 = arith.addf %57, %59 : vector<16x267xf32>
    %cst_47 = arith.constant 0.000000e+00 : f32
    %61 = vector.broadcast %cst_47 : f32 to vector<16x267xf32>
    %62 = arith.maximumf %60, %61 : vector<16x267xf32>
    %c0_48 = arith.constant 0 : index
    %c0_49 = arith.constant 0 : index
    %63 = vector.load %arg14[%c0_48, %c0_49] : memref<15x10xf32, #tpu.memory_space<vmem>>, vector<15x10xf32>
    %64 = vector.extract_strided_slice %62 {offsets = [0, 0], sizes = [16, 15], strides = [1, 1]} : vector<16x267xf32> to vector<16x15xf32>
    %cst_50 = arith.constant dense<0.000000e+00> : vector<16x10xf32>
    %65 = tpu.matmul %64, %63, %cst_50 {dimension_numbers = #tpu.dot_dimension_numbers<[1], [0], [0], [1], [0, 0, 1, 1], [], []>} : vector<16x15xf32>, vector<15x10xf32>, vector<16x10xf32> -> vector<16x10xf32>
    %c0_51 = arith.constant 0 : index
    %c10 = arith.constant 10 : index
    %66 = vector.load %arg20[%c0_51, %c10] : memref<16x100xf32, #tpu.memory_space<vmem>>, vector<16x10xf32>
    tpu.vector_store %arg20[%c0_51, %c10], %65 {strides = array<i32>} : memref<16x100xf32, #tpu.memory_space<vmem>>, vector<16x10xf32>,
    %67 = vector.extract_strided_slice %62 {offsets = [0, 36], sizes = [16, 15], strides = [1, 1]} : vector<16x267xf32> to vector<16x15xf32>
    %cst_52 = arith.constant dense<0.000000e+00> : vector<16x10xf32>
    %68 = tpu.matmul %67, %63, %cst_52 {dimension_numbers = #tpu.dot_dimension_numbers<[1], [0], [0], [1], [0, 0, 1, 1], [], []>} : vector<16x15xf32>, vector<15x10xf32>, vector<16x10xf32> -> vector<16x10xf32>
    %c0_53 = arith.constant 0 : index
    %c20 = arith.constant 20 : index
    %69 = vector.load %arg20[%c0_53, %c20] : memref<16x100xf32, #tpu.memory_space<vmem>>, vector<16x10xf32>
    tpu.vector_store %arg20[%c0_53, %c20], %68 {strides = array<i32>} : memref<16x100xf32, #tpu.memory_space<vmem>>, vector<16x10xf32>,
    %70 = vector.extract_strided_slice %62 {offsets = [0, 72], sizes = [16, 15], strides = [1, 1]} : vector<16x267xf32> to vector<16x15xf32>
    %cst_54 = arith.constant dense<0.000000e+00> : vector<16x10xf32>
    %71 = tpu.matmul %70, %63, %cst_54 {dimension_numbers = #tpu.dot_dimension_numbers<[1], [0], [0], [1], [0, 0, 1, 1], [], []>} : vector<16x15xf32>, vector<15x10xf32>, vector<16x10xf32> -> vector<16x10xf32>
    %c0_55 = arith.constant 0 : index
    %c30 = arith.constant 30 : index
    %72 = vector.load %arg20[%c0_55, %c30] : memref<16x100xf32, #tpu.memory_space<vmem>>, vector<16x10xf32>
    tpu.vector_store %arg20[%c0_55, %c30], %71 {strides = array<i32>} : memref<16x100xf32, #tpu.memory_space<vmem>>, vector<16x10xf32>,
    %73 = vector.extract_strided_slice %62 {offsets = [0, 108], sizes = [16, 15], strides = [1, 1]} : vector<16x267xf32> to vector<16x15xf32>
    %cst_56 = arith.constant dense<0.000000e+00> : vector<16x10xf32>
    %74 = tpu.matmul %73, %63, %cst_56 {dimension_numbers = #tpu.dot_dimension_numbers<[1], [0], [0], [1], [0, 0, 1, 1], [], []>} : vector<16x15xf32>, vector<15x10xf32>, vector<16x10xf32> -> vector<16x10xf32>
    %c0_57 = arith.constant 0 : index
    %c40 = arith.constant 40 : index
    %75 = vector.load %arg20[%c0_57, %c40] : memref<16x100xf32, #tpu.memory_space<vmem>>, vector<16x10xf32>
    tpu.vector_store %arg20[%c0_57, %c40], %74 {strides = array<i32>} : memref<16x100xf32, #tpu.memory_space<vmem>>, vector<16x10xf32>,
    %76 = vector.extract_strided_slice %62 {offsets = [0, 144], sizes = [16, 15], strides = [1, 1]} : vector<16x267xf32> to vector<16x15xf32>
    %cst_58 = arith.constant dense<0.000000e+00> : vector<16x10xf32>
    %77 = tpu.matmul %76, %63, %cst_58 {dimension_numbers = #tpu.dot_dimension_numbers<[1], [0], [0], [1], [0, 0, 1, 1], [], []>} : vector<16x15xf32>, vector<15x10xf32>, vector<16x10xf32> -> vector<16x10xf32>
    %c0_59 = arith.constant 0 : index
    %c50 = arith.constant 50 : index
    %78 = vector.load %arg20[%c0_59, %c50] : memref<16x100xf32, #tpu.memory_space<vmem>>, vector<16x10xf32>
    tpu.vector_store %arg20[%c0_59, %c50], %77 {strides = array<i32>} : memref<16x100xf32, #tpu.memory_space<vmem>>, vector<16x10xf32>,
    %79 = vector.extract_strided_slice %62 {offsets = [0, 180], sizes = [16, 15], strides = [1, 1]} : vector<16x267xf32> to vector<16x15xf32>
    %cst_60 = arith.constant dense<0.000000e+00> : vector<16x10xf32>
    %80 = tpu.matmul %79, %63, %cst_60 {dimension_numbers = #tpu.dot_dimension_numbers<[1], [0], [0], [1], [0, 0, 1, 1], [], []>} : vector<16x15xf32>, vector<15x10xf32>, vector<16x10xf32> -> vector<16x10xf32>
    %c0_61 = arith.constant 0 : index
    %c60 = arith.constant 60 : index
    %81 = vector.load %arg20[%c0_61, %c60] : memref<16x100xf32, #tpu.memory_space<vmem>>, vector<16x10xf32>
    tpu.vector_store %arg20[%c0_61, %c60], %80 {strides = array<i32>} : memref<16x100xf32, #tpu.memory_space<vmem>>, vector<16x10xf32>,
    %82 = vector.extract_strided_slice %62 {offsets = [0, 216], sizes = [16, 15], strides = [1, 1]} : vector<16x267xf32> to vector<16x15xf32>
    %cst_62 = arith.constant dense<0.000000e+00> : vector<16x10xf32>
    %83 = tpu.matmul %82, %63, %cst_62 {dimension_numbers = #tpu.dot_dimension_numbers<[1], [0], [0], [1], [0, 0, 1, 1], [], []>} : vector<16x15xf32>, vector<15x10xf32>, vector<16x10xf32> -> vector<16x10xf32>
    %c0_63 = arith.constant 0 : index
    %c70 = arith.constant 70 : index
    %84 = vector.load %arg20[%c0_63, %c70] : memref<16x100xf32, #tpu.memory_space<vmem>>, vector<16x10xf32>
    tpu.vector_store %arg20[%c0_63, %c70], %83 {strides = array<i32>} : memref<16x100xf32, #tpu.memory_space<vmem>>, vector<16x10xf32>,
    %85 = vector.extract_strided_slice %62 {offsets = [0, 252], sizes = [16, 15], strides = [1, 1]} : vector<16x267xf32> to vector<16x15xf32>
    %cst_64 = arith.constant dense<0.000000e+00> : vector<16x10xf32>
    %86 = tpu.matmul %85, %63, %cst_64 {dimension_numbers = #tpu.dot_dimension_numbers<[1], [0], [0], [1], [0, 0, 1, 1], [], []>} : vector<16x15xf32>, vector<15x10xf32>, vector<16x10xf32> -> vector<16x10xf32>
    %c0_65 = arith.constant 0 : index
    %c80 = arith.constant 80 : index
    %87 = vector.load %arg20[%c0_65, %c80] : memref<16x100xf32, #tpu.memory_space<vmem>>, vector<16x10xf32>
    tpu.vector_store %arg20[%c0_65, %c80], %86 {strides = array<i32>} : memref<16x100xf32, #tpu.memory_space<vmem>>, vector<16x10xf32>,
    %c0_66 = arith.constant 0 : index
    %c0_67 = arith.constant 0 : index
    %88 = vector.load %arg20[%c0_66, %c0_67] : memref<16x100xf32, #tpu.memory_space<vmem>>, vector<16x100xf32>
    %cst_68 = arith.constant 0.000000e+00 : f32
    %89 = vector.broadcast %cst_68 : f32 to vector<32x67xf32>
    %c0_69 = arith.constant 0 : index
    %c0_70 = arith.constant 0 : index
    %c0_71 = arith.constant 0 : index
    %90 = vector.load %arg3[%c0_69, %c0_70, %c0_71] : memref<9x32x16xf32, #tpu.memory_space<vmem>>, vector<1x32x16xf32>
    %91 = vector.shape_cast %90 : vector<1x32x16xf32> to vector<32x16xf32>
    %92 = vector.extract_strided_slice %88 {offsets = [0, 0], sizes = [16, 67], strides = [1, 1]} : vector<16x100xf32> to vector<16x67xf32>
    %cst_72 = arith.constant dense<0.000000e+00> : vector<32x67xf32>
    %93 = tpu.matmul %91, %92, %cst_72 {dimension_numbers = #tpu.dot_dimension_numbers<[1], [0], [0], [1], [0, 0, 1, 1], [], []>} : vector<32x16xf32>, vector<16x67xf32>, vector<32x67xf32> -> vector<32x67xf32>
    %94 = arith.addf %89, %93 : vector<32x67xf32>
    %c1_73 = arith.constant 1 : index
    %c0_74 = arith.constant 0 : index
    %c0_75 = arith.constant 0 : index
    %95 = vector.load %arg3[%c1_73, %c0_74, %c0_75] : memref<9x32x16xf32, #tpu.memory_space<vmem>>, vector<1x32x16xf32>
    %96 = vector.shape_cast %95 : vector<1x32x16xf32> to vector<32x16xf32>
    %97 = vector.extract_strided_slice %88 {offsets = [0, 1], sizes = [16, 67], strides = [1, 1]} : vector<16x100xf32> to vector<16x67xf32>
    %cst_76 = arith.constant dense<0.000000e+00> : vector<32x67xf32>
    %98 = tpu.matmul %96, %97, %cst_76 {dimension_numbers = #tpu.dot_dimension_numbers<[1], [0], [0], [1], [0, 0, 1, 1], [], []>} : vector<32x16xf32>, vector<16x67xf32>, vector<32x67xf32> -> vector<32x67xf32>
    %99 = arith.addf %94, %98 : vector<32x67xf32>
    %c2_77 = arith.constant 2 : index
    %c0_78 = arith.constant 0 : index
    %c0_79 = arith.constant 0 : index
    %100 = vector.load %arg3[%c2_77, %c0_78, %c0_79] : memref<9x32x16xf32, #tpu.memory_space<vmem>>, vector<1x32x16xf32>
    %101 = vector.shape_cast %100 : vector<1x32x16xf32> to vector<32x16xf32>
    %102 = vector.extract_strided_slice %88 {offsets = [0, 2], sizes = [16, 67], strides = [1, 1]} : vector<16x100xf32> to vector<16x67xf32>
    %cst_80 = arith.constant dense<0.000000e+00> : vector<32x67xf32>
    %103 = tpu.matmul %101, %102, %cst_80 {dimension_numbers = #tpu.dot_dimension_numbers<[1], [0], [0], [1], [0, 0, 1, 1], [], []>} : vector<32x16xf32>, vector<16x67xf32>, vector<32x67xf32> -> vector<32x67xf32>
    %104 = arith.addf %99, %103 : vector<32x67xf32>
    %c3_81 = arith.constant 3 : index
    %c0_82 = arith.constant 0 : index
    %c0_83 = arith.constant 0 : index
    %105 = vector.load %arg3[%c3_81, %c0_82, %c0_83] : memref<9x32x16xf32, #tpu.memory_space<vmem>>, vector<1x32x16xf32>
    %106 = vector.shape_cast %105 : vector<1x32x16xf32> to vector<32x16xf32>
    %107 = vector.extract_strided_slice %88 {offsets = [0, 10], sizes = [16, 67], strides = [1, 1]} : vector<16x100xf32> to vector<16x67xf32>
    %cst_84 = arith.constant dense<0.000000e+00> : vector<32x67xf32>
    %108 = tpu.matmul %106, %107, %cst_84 {dimension_numbers = #tpu.dot_dimension_numbers<[1], [0], [0], [1], [0, 0, 1, 1], [], []>} : vector<32x16xf32>, vector<16x67xf32>, vector<32x67xf32> -> vector<32x67xf32>
    %109 = arith.addf %104, %108 : vector<32x67xf32>
    %c4_85 = arith.constant 4 : index
    %c0_86 = arith.constant 0 : index
    %c0_87 = arith.constant 0 : index
    %110 = vector.load %arg3[%c4_85, %c0_86, %c0_87] : memref<9x32x16xf32, #tpu.memory_space<vmem>>, vector<1x32x16xf32>
    %111 = vector.shape_cast %110 : vector<1x32x16xf32> to vector<32x16xf32>
    %112 = vector.extract_strided_slice %88 {offsets = [0, 11], sizes = [16, 67], strides = [1, 1]} : vector<16x100xf32> to vector<16x67xf32>
    %cst_88 = arith.constant dense<0.000000e+00> : vector<32x67xf32>
    %113 = tpu.matmul %111, %112, %cst_88 {dimension_numbers = #tpu.dot_dimension_numbers<[1], [0], [0], [1], [0, 0, 1, 1], [], []>} : vector<32x16xf32>, vector<16x67xf32>, vector<32x67xf32> -> vector<32x67xf32>
    %114 = arith.addf %109, %113 : vector<32x67xf32>
    %c5_89 = arith.constant 5 : index
    %c0_90 = arith.constant 0 : index
    %c0_91 = arith.constant 0 : index
    %115 = vector.load %arg3[%c5_89, %c0_90, %c0_91] : memref<9x32x16xf32, #tpu.memory_space<vmem>>, vector<1x32x16xf32>
    %116 = vector.shape_cast %115 : vector<1x32x16xf32> to vector<32x16xf32>
    %117 = vector.extract_strided_slice %88 {offsets = [0, 12], sizes = [16, 67], strides = [1, 1]} : vector<16x100xf32> to vector<16x67xf32>
    %cst_92 = arith.constant dense<0.000000e+00> : vector<32x67xf32>
    %118 = tpu.matmul %116, %117, %cst_92 {dimension_numbers = #tpu.dot_dimension_numbers<[1], [0], [0], [1], [0, 0, 1, 1], [], []>} : vector<32x16xf32>, vector<16x67xf32>, vector<32x67xf32> -> vector<32x67xf32>
    %119 = arith.addf %114, %118 : vector<32x67xf32>
    %c6_93 = arith.constant 6 : index
    %c0_94 = arith.constant 0 : index
    %c0_95 = arith.constant 0 : index
    %120 = vector.load %arg3[%c6_93, %c0_94, %c0_95] : memref<9x32x16xf32, #tpu.memory_space<vmem>>, vector<1x32x16xf32>
    %121 = vector.shape_cast %120 : vector<1x32x16xf32> to vector<32x16xf32>
    %122 = vector.extract_strided_slice %88 {offsets = [0, 20], sizes = [16, 67], strides = [1, 1]} : vector<16x100xf32> to vector<16x67xf32>
    %cst_96 = arith.constant dense<0.000000e+00> : vector<32x67xf32>
    %123 = tpu.matmul %121, %122, %cst_96 {dimension_numbers = #tpu.dot_dimension_numbers<[1], [0], [0], [1], [0, 0, 1, 1], [], []>} : vector<32x16xf32>, vector<16x67xf32>, vector<32x67xf32> -> vector<32x67xf32>
    %124 = arith.addf %119, %123 : vector<32x67xf32>
    %c7_97 = arith.constant 7 : index
    %c0_98 = arith.constant 0 : index
    %c0_99 = arith.constant 0 : index
    %125 = vector.load %arg3[%c7_97, %c0_98, %c0_99] : memref<9x32x16xf32, #tpu.memory_space<vmem>>, vector<1x32x16xf32>
    %126 = vector.shape_cast %125 : vector<1x32x16xf32> to vector<32x16xf32>
    %127 = vector.extract_strided_slice %88 {offsets = [0, 21], sizes = [16, 67], strides = [1, 1]} : vector<16x100xf32> to vector<16x67xf32>
    %cst_100 = arith.constant dense<0.000000e+00> : vector<32x67xf32>
    %128 = tpu.matmul %126, %127, %cst_100 {dimension_numbers = #tpu.dot_dimension_numbers<[1], [0], [0], [1], [0, 0, 1, 1], [], []>} : vector<32x16xf32>, vector<16x67xf32>, vector<32x67xf32> -> vector<32x67xf32>
    %129 = arith.addf %124, %128 : vector<32x67xf32>
    %c8_101 = arith.constant 8 : index
    %c0_102 = arith.constant 0 : index
    %c0_103 = arith.constant 0 : index
    %130 = vector.load %arg3[%c8_101, %c0_102, %c0_103] : memref<9x32x16xf32, #tpu.memory_space<vmem>>, vector<1x32x16xf32>
    %131 = vector.shape_cast %130 : vector<1x32x16xf32> to vector<32x16xf32>
    %132 = vector.extract_strided_slice %88 {offsets = [0, 22], sizes = [16, 67], strides = [1, 1]} : vector<16x100xf32> to vector<16x67xf32>
    %cst_104 = arith.constant dense<0.000000e+00> : vector<32x67xf32>
    %133 = tpu.matmul %131, %132, %cst_104 {dimension_numbers = #tpu.dot_dimension_numbers<[1], [0], [0], [1], [0, 0, 1, 1], [], []>} : vector<32x16xf32>, vector<16x67xf32>, vector<32x67xf32> -> vector<32x67xf32>
    %134 = arith.addf %129, %133 : vector<32x67xf32>
    %c0_105 = arith.constant 0 : index
    %c0_106 = arith.constant 0 : index
    %135 = vector.load %arg9[%c0_105, %c0_106] : memref<32x1xf32, #tpu.memory_space<vmem>>, vector<32x1xf32>
    %136 = vector.broadcast %135 : vector<32x1xf32> to vector<32x67xf32>
    %137 = arith.addf %134, %136 : vector<32x67xf32>
    %cst_107 = arith.constant 0.000000e+00 : f32
    %138 = vector.broadcast %cst_107 : f32 to vector<32x67xf32>
    %139 = arith.maximumf %137, %138 : vector<32x67xf32>
    %c0_108 = arith.constant 0 : index
    %c0_109 = arith.constant 0 : index
    %140 = vector.load %arg15[%c0_108, %c0_109] : memref<7x6xf32, #tpu.memory_space<vmem>>, vector<7x6xf32>
    %141 = vector.extract_strided_slice %139 {offsets = [0, 0], sizes = [32, 7], strides = [1, 1]} : vector<32x67xf32> to vector<32x7xf32>
    %cst_110 = arith.constant dense<0.000000e+00> : vector<32x6xf32>
    %142 = tpu.matmul %141, %140, %cst_110 {dimension_numbers = #tpu.dot_dimension_numbers<[1], [0], [0], [1], [0, 0, 1, 1], [], []>} : vector<32x7xf32>, vector<7x6xf32>, vector<32x6xf32> -> vector<32x6xf32>
    %c0_111 = arith.constant 0 : index
    %c6_112 = arith.constant 6 : index
    %143 = vector.load %arg21[%c0_111, %c6_112] : memref<32x36xf32, #tpu.memory_space<vmem>>, vector<32x6xf32>
    tpu.vector_store %arg21[%c0_111, %c6_112], %142 {strides = array<i32>} : memref<32x36xf32, #tpu.memory_space<vmem>>, vector<32x6xf32>,
    %144 = vector.extract_strided_slice %139 {offsets = [0, 20], sizes = [32, 7], strides = [1, 1]} : vector<32x67xf32> to vector<32x7xf32>
    %cst_113 = arith.constant dense<0.000000e+00> : vector<32x6xf32>
    %145 = tpu.matmul %144, %140, %cst_113 {dimension_numbers = #tpu.dot_dimension_numbers<[1], [0], [0], [1], [0, 0, 1, 1], [], []>} : vector<32x7xf32>, vector<7x6xf32>, vector<32x6xf32> -> vector<32x6xf32>
    %c0_114 = arith.constant 0 : index
    %c12 = arith.constant 12 : index
    %146 = vector.load %arg21[%c0_114, %c12] : memref<32x36xf32, #tpu.memory_space<vmem>>, vector<32x6xf32>
    tpu.vector_store %arg21[%c0_114, %c12], %145 {strides = array<i32>} : memref<32x36xf32, #tpu.memory_space<vmem>>, vector<32x6xf32>,
    %147 = vector.extract_strided_slice %139 {offsets = [0, 40], sizes = [32, 7], strides = [1, 1]} : vector<32x67xf32> to vector<32x7xf32>
    %cst_115 = arith.constant dense<0.000000e+00> : vector<32x6xf32>
    %148 = tpu.matmul %147, %140, %cst_115 {dimension_numbers = #tpu.dot_dimension_numbers<[1], [0], [0], [1], [0, 0, 1, 1], [], []>} : vector<32x7xf32>, vector<7x6xf32>, vector<32x6xf32> -> vector<32x6xf32>
    %c0_116 = arith.constant 0 : index
    %c18 = arith.constant 18 : index
    %149 = vector.load %arg21[%c0_116, %c18] : memref<32x36xf32, #tpu.memory_space<vmem>>, vector<32x6xf32>
    tpu.vector_store %arg21[%c0_116, %c18], %148 {strides = array<i32>} : memref<32x36xf32, #tpu.memory_space<vmem>>, vector<32x6xf32>,
    %150 = vector.extract_strided_slice %139 {offsets = [0, 60], sizes = [32, 7], strides = [1, 1]} : vector<32x67xf32> to vector<32x7xf32>
    %cst_117 = arith.constant dense<0.000000e+00> : vector<32x6xf32>
    %151 = tpu.matmul %150, %140, %cst_117 {dimension_numbers = #tpu.dot_dimension_numbers<[1], [0], [0], [1], [0, 0, 1, 1], [], []>} : vector<32x7xf32>, vector<7x6xf32>, vector<32x6xf32> -> vector<32x6xf32>
    %c0_118 = arith.constant 0 : index
    %c24 = arith.constant 24 : index
    %152 = vector.load %arg21[%c0_118, %c24] : memref<32x36xf32, #tpu.memory_space<vmem>>, vector<32x6xf32>
    tpu.vector_store %arg21[%c0_118, %c24], %151 {strides = array<i32>} : memref<32x36xf32, #tpu.memory_space<vmem>>, vector<32x6xf32>,
    %c0_119 = arith.constant 0 : index
    %c0_120 = arith.constant 0 : index
    %153 = vector.load %arg21[%c0_119, %c0_120] : memref<32x36xf32, #tpu.memory_space<vmem>>, vector<32x36xf32>
    %cst_121 = arith.constant 0.000000e+00 : f32
    %154 = vector.broadcast %cst_121 : f32 to vector<64x15xf32>
    %c0_122 = arith.constant 0 : index
    %c0_123 = arith.constant 0 : index
    %c0_124 = arith.constant 0 : index
    %155 = vector.load %arg4[%c0_122, %c0_123, %c0_124] : memref<9x64x32xf32, #tpu.memory_space<vmem>>, vector<1x64x32xf32>
    %156 = vector.shape_cast %155 : vector<1x64x32xf32> to vector<64x32xf32>
    %157 = vector.extract_strided_slice %153 {offsets = [0, 0], sizes = [32, 15], strides = [1, 1]} : vector<32x36xf32> to vector<32x15xf32>
    %cst_125 = arith.constant dense<0.000000e+00> : vector<64x15xf32>
    %158 = tpu.matmul %156, %157, %cst_125 {dimension_numbers = #tpu.dot_dimension_numbers<[1], [0], [0], [1], [0, 0, 1, 1], [], []>} : vector<64x32xf32>, vector<32x15xf32>, vector<64x15xf32> -> vector<64x15xf32>
    %159 = arith.addf %154, %158 : vector<64x15xf32>
    %c1_126 = arith.constant 1 : index
    %c0_127 = arith.constant 0 : index
    %c0_128 = arith.constant 0 : index
    %160 = vector.load %arg4[%c1_126, %c0_127, %c0_128] : memref<9x64x32xf32, #tpu.memory_space<vmem>>, vector<1x64x32xf32>
    %161 = vector.shape_cast %160 : vector<1x64x32xf32> to vector<64x32xf32>
    %162 = vector.extract_strided_slice %153 {offsets = [0, 1], sizes = [32, 15], strides = [1, 1]} : vector<32x36xf32> to vector<32x15xf32>
    %cst_129 = arith.constant dense<0.000000e+00> : vector<64x15xf32>
    %163 = tpu.matmul %161, %162, %cst_129 {dimension_numbers = #tpu.dot_dimension_numbers<[1], [0], [0], [1], [0, 0, 1, 1], [], []>} : vector<64x32xf32>, vector<32x15xf32>, vector<64x15xf32> -> vector<64x15xf32>
    %164 = arith.addf %159, %163 : vector<64x15xf32>
    %c2_130 = arith.constant 2 : index
    %c0_131 = arith.constant 0 : index
    %c0_132 = arith.constant 0 : index
    %165 = vector.load %arg4[%c2_130, %c0_131, %c0_132] : memref<9x64x32xf32, #tpu.memory_space<vmem>>, vector<1x64x32xf32>
    %166 = vector.shape_cast %165 : vector<1x64x32xf32> to vector<64x32xf32>
    %167 = vector.extract_strided_slice %153 {offsets = [0, 2], sizes = [32, 15], strides = [1, 1]} : vector<32x36xf32> to vector<32x15xf32>
    %cst_133 = arith.constant dense<0.000000e+00> : vector<64x15xf32>
    %168 = tpu.matmul %166, %167, %cst_133 {dimension_numbers = #tpu.dot_dimension_numbers<[1], [0], [0], [1], [0, 0, 1, 1], [], []>} : vector<64x32xf32>, vector<32x15xf32>, vector<64x15xf32> -> vector<64x15xf32>
    %169 = arith.addf %164, %168 : vector<64x15xf32>
    %c3_134 = arith.constant 3 : index
    %c0_135 = arith.constant 0 : index
    %c0_136 = arith.constant 0 : index
    %170 = vector.load %arg4[%c3_134, %c0_135, %c0_136] : memref<9x64x32xf32, #tpu.memory_space<vmem>>, vector<1x64x32xf32>
    %171 = vector.shape_cast %170 : vector<1x64x32xf32> to vector<64x32xf32>
    %172 = vector.extract_strided_slice %153 {offsets = [0, 6], sizes = [32, 15], strides = [1, 1]} : vector<32x36xf32> to vector<32x15xf32>
    %cst_137 = arith.constant dense<0.000000e+00> : vector<64x15xf32>
    %173 = tpu.matmul %171, %172, %cst_137 {dimension_numbers = #tpu.dot_dimension_numbers<[1], [0], [0], [1], [0, 0, 1, 1], [], []>} : vector<64x32xf32>, vector<32x15xf32>, vector<64x15xf32> -> vector<64x15xf32>
    %174 = arith.addf %169, %173 : vector<64x15xf32>
    %c4_138 = arith.constant 4 : index
    %c0_139 = arith.constant 0 : index
    %c0_140 = arith.constant 0 : index
    %175 = vector.load %arg4[%c4_138, %c0_139, %c0_140] : memref<9x64x32xf32, #tpu.memory_space<vmem>>, vector<1x64x32xf32>
    %176 = vector.shape_cast %175 : vector<1x64x32xf32> to vector<64x32xf32>
    %177 = vector.extract_strided_slice %153 {offsets = [0, 7], sizes = [32, 15], strides = [1, 1]} : vector<32x36xf32> to vector<32x15xf32>
    %cst_141 = arith.constant dense<0.000000e+00> : vector<64x15xf32>
    %178 = tpu.matmul %176, %177, %cst_141 {dimension_numbers = #tpu.dot_dimension_numbers<[1], [0], [0], [1], [0, 0, 1, 1], [], []>} : vector<64x32xf32>, vector<32x15xf32>, vector<64x15xf32> -> vector<64x15xf32>
    %179 = arith.addf %174, %178 : vector<64x15xf32>
    %c5_142 = arith.constant 5 : index
    %c0_143 = arith.constant 0 : index
    %c0_144 = arith.constant 0 : index
    %180 = vector.load %arg4[%c5_142, %c0_143, %c0_144] : memref<9x64x32xf32, #tpu.memory_space<vmem>>, vector<1x64x32xf32>
    %181 = vector.shape_cast %180 : vector<1x64x32xf32> to vector<64x32xf32>
    %182 = vector.extract_strided_slice %153 {offsets = [0, 8], sizes = [32, 15], strides = [1, 1]} : vector<32x36xf32> to vector<32x15xf32>
    %cst_145 = arith.constant dense<0.000000e+00> : vector<64x15xf32>
    %183 = tpu.matmul %181, %182, %cst_145 {dimension_numbers = #tpu.dot_dimension_numbers<[1], [0], [0], [1], [0, 0, 1, 1], [], []>} : vector<64x32xf32>, vector<32x15xf32>, vector<64x15xf32> -> vector<64x15xf32>
    %184 = arith.addf %179, %183 : vector<64x15xf32>
    %c6_146 = arith.constant 6 : index
    %c0_147 = arith.constant 0 : index
    %c0_148 = arith.constant 0 : index
    %185 = vector.load %arg4[%c6_146, %c0_147, %c0_148] : memref<9x64x32xf32, #tpu.memory_space<vmem>>, vector<1x64x32xf32>
    %186 = vector.shape_cast %185 : vector<1x64x32xf32> to vector<64x32xf32>
    %187 = vector.extract_strided_slice %153 {offsets = [0, 12], sizes = [32, 15], strides = [1, 1]} : vector<32x36xf32> to vector<32x15xf32>
    %cst_149 = arith.constant dense<0.000000e+00> : vector<64x15xf32>
    %188 = tpu.matmul %186, %187, %cst_149 {dimension_numbers = #tpu.dot_dimension_numbers<[1], [0], [0], [1], [0, 0, 1, 1], [], []>} : vector<64x32xf32>, vector<32x15xf32>, vector<64x15xf32> -> vector<64x15xf32>
    %189 = arith.addf %184, %188 : vector<64x15xf32>
    %c7_150 = arith.constant 7 : index
    %c0_151 = arith.constant 0 : index
    %c0_152 = arith.constant 0 : index
    %190 = vector.load %arg4[%c7_150, %c0_151, %c0_152] : memref<9x64x32xf32, #tpu.memory_space<vmem>>, vector<1x64x32xf32>
    %191 = vector.shape_cast %190 : vector<1x64x32xf32> to vector<64x32xf32>
    %192 = vector.extract_strided_slice %153 {offsets = [0, 13], sizes = [32, 15], strides = [1, 1]} : vector<32x36xf32> to vector<32x15xf32>
    %cst_153 = arith.constant dense<0.000000e+00> : vector<64x15xf32>
    %193 = tpu.matmul %191, %192, %cst_153 {dimension_numbers = #tpu.dot_dimension_numbers<[1], [0], [0], [1], [0, 0, 1, 1], [], []>} : vector<64x32xf32>, vector<32x15xf32>, vector<64x15xf32> -> vector<64x15xf32>
    %194 = arith.addf %189, %193 : vector<64x15xf32>
    %c8_154 = arith.constant 8 : index
    %c0_155 = arith.constant 0 : index
    %c0_156 = arith.constant 0 : index
    %195 = vector.load %arg4[%c8_154, %c0_155, %c0_156] : memref<9x64x32xf32, #tpu.memory_space<vmem>>, vector<1x64x32xf32>
    %196 = vector.shape_cast %195 : vector<1x64x32xf32> to vector<64x32xf32>
    %197 = vector.extract_strided_slice %153 {offsets = [0, 14], sizes = [32, 15], strides = [1, 1]} : vector<32x36xf32> to vector<32x15xf32>
    %cst_157 = arith.constant dense<0.000000e+00> : vector<64x15xf32>
    %198 = tpu.matmul %196, %197, %cst_157 {dimension_numbers = #tpu.dot_dimension_numbers<[1], [0], [0], [1], [0, 0, 1, 1], [], []>} : vector<64x32xf32>, vector<32x15xf32>, vector<64x15xf32> -> vector<64x15xf32>
    %199 = arith.addf %194, %198 : vector<64x15xf32>
    %c0_158 = arith.constant 0 : index
    %c0_159 = arith.constant 0 : index
    %200 = vector.load %arg10[%c0_158, %c0_159] : memref<64x1xf32, #tpu.memory_space<vmem>>, vector<64x1xf32>
    %201 = vector.broadcast %200 : vector<64x1xf32> to vector<64x15xf32>
    %202 = arith.addf %199, %201 : vector<64x15xf32>
    %cst_160 = arith.constant 0.000000e+00 : f32
    %203 = vector.broadcast %cst_160 : f32 to vector<64x15xf32>
    %204 = arith.maximumf %202, %203 : vector<64x15xf32>
    %c0_161 = arith.constant 0 : index
    %c0_162 = arith.constant 0 : index
    %205 = vector.load %arg16[%c0_161, %c0_162] : memref<3x6xf32, #tpu.memory_space<vmem>>, vector<3x6xf32>
    %206 = vector.extract_strided_slice %204 {offsets = [0, 0], sizes = [64, 3], strides = [1, 1]} : vector<64x15xf32> to vector<64x3xf32>
    %cst_163 = arith.constant dense<0.000000e+00> : vector<64x6xf32>
    %207 = tpu.matmul %206, %205, %cst_163 {dimension_numbers = #tpu.dot_dimension_numbers<[1], [0], [0], [1], [0, 0, 1, 1], [], []>} : vector<64x3xf32>, vector<3x6xf32>, vector<64x6xf32> -> vector<64x6xf32>
    %c0_164 = arith.constant 0 : index
    %c6_165 = arith.constant 6 : index
    %208 = vector.load %arg22[%c0_164, %c6_165] : memref<64x36xf32, #tpu.memory_space<vmem>>, vector<64x6xf32>
    tpu.vector_store %arg22[%c0_164, %c6_165], %207 {strides = array<i32>} : memref<64x36xf32, #tpu.memory_space<vmem>>, vector<64x6xf32>,
    %209 = vector.extract_strided_slice %204 {offsets = [0, 12], sizes = [64, 3], strides = [1, 1]} : vector<64x15xf32> to vector<64x3xf32>
    %cst_166 = arith.constant dense<0.000000e+00> : vector<64x6xf32>
    %210 = tpu.matmul %209, %205, %cst_166 {dimension_numbers = #tpu.dot_dimension_numbers<[1], [0], [0], [1], [0, 0, 1, 1], [], []>} : vector<64x3xf32>, vector<3x6xf32>, vector<64x6xf32> -> vector<64x6xf32>
    %c0_167 = arith.constant 0 : index
    %c18_168 = arith.constant 18 : index
    %211 = vector.load %arg22[%c0_167, %c18_168] : memref<64x36xf32, #tpu.memory_space<vmem>>, vector<64x6xf32>
    tpu.vector_store %arg22[%c0_167, %c18_168], %210 {strides = array<i32>} : memref<64x36xf32, #tpu.memory_space<vmem>>, vector<64x6xf32>,
    %c0_169 = arith.constant 0 : index
    %c0_170 = arith.constant 0 : index
    %212 = vector.load %arg22[%c0_169, %c0_170] : memref<64x36xf32, #tpu.memory_space<vmem>>, vector<64x36xf32>
    %cst_171 = arith.constant 0.000000e+00 : f32
    %213 = vector.broadcast %cst_171 : f32 to vector<32x22xf32>
    %c0_172 = arith.constant 0 : index
    %c0_173 = arith.constant 0 : index
    %c0_174 = arith.constant 0 : index
    %214 = vector.load %arg5[%c0_172, %c0_173, %c0_174] : memref<9x32x64xf32, #tpu.memory_space<vmem>>, vector<1x32x64xf32>
    %215 = vector.shape_cast %214 : vector<1x32x64xf32> to vector<32x64xf32>
    %216 = vector.extract_strided_slice %212 {offsets = [0, 0], sizes = [64, 22], strides = [1, 1]} : vector<64x36xf32> to vector<64x22xf32>
    %cst_175 = arith.constant dense<0.000000e+00> : vector<32x22xf32>
    %217 = tpu.matmul %215, %216, %cst_175 {dimension_numbers = #tpu.dot_dimension_numbers<[1], [0], [0], [1], [0, 0, 1, 1], [], []>} : vector<32x64xf32>, vector<64x22xf32>, vector<32x22xf32> -> vector<32x22xf32>
    %218 = arith.addf %213, %217 : vector<32x22xf32>
    %c1_176 = arith.constant 1 : index
    %c0_177 = arith.constant 0 : index
    %c0_178 = arith.constant 0 : index
    %219 = vector.load %arg5[%c1_176, %c0_177, %c0_178] : memref<9x32x64xf32, #tpu.memory_space<vmem>>, vector<1x32x64xf32>
    %220 = vector.shape_cast %219 : vector<1x32x64xf32> to vector<32x64xf32>
    %221 = vector.extract_strided_slice %212 {offsets = [0, 1], sizes = [64, 22], strides = [1, 1]} : vector<64x36xf32> to vector<64x22xf32>
    %cst_179 = arith.constant dense<0.000000e+00> : vector<32x22xf32>
    %222 = tpu.matmul %220, %221, %cst_179 {dimension_numbers = #tpu.dot_dimension_numbers<[1], [0], [0], [1], [0, 0, 1, 1], [], []>} : vector<32x64xf32>, vector<64x22xf32>, vector<32x22xf32> -> vector<32x22xf32>
    %223 = arith.addf %218, %222 : vector<32x22xf32>
    %c2_180 = arith.constant 2 : index
    %c0_181 = arith.constant 0 : index
    %c0_182 = arith.constant 0 : index
    %224 = vector.load %arg5[%c2_180, %c0_181, %c0_182] : memref<9x32x64xf32, #tpu.memory_space<vmem>>, vector<1x32x64xf32>
    %225 = vector.shape_cast %224 : vector<1x32x64xf32> to vector<32x64xf32>
    %226 = vector.extract_strided_slice %212 {offsets = [0, 2], sizes = [64, 22], strides = [1, 1]} : vector<64x36xf32> to vector<64x22xf32>
    %cst_183 = arith.constant dense<0.000000e+00> : vector<32x22xf32>
    %227 = tpu.matmul %225, %226, %cst_183 {dimension_numbers = #tpu.dot_dimension_numbers<[1], [0], [0], [1], [0, 0, 1, 1], [], []>} : vector<32x64xf32>, vector<64x22xf32>, vector<32x22xf32> -> vector<32x22xf32>
    %228 = arith.addf %223, %227 : vector<32x22xf32>
    %c3_184 = arith.constant 3 : index
    %c0_185 = arith.constant 0 : index
    %c0_186 = arith.constant 0 : index
    %229 = vector.load %arg5[%c3_184, %c0_185, %c0_186] : memref<9x32x64xf32, #tpu.memory_space<vmem>>, vector<1x32x64xf32>
    %230 = vector.shape_cast %229 : vector<1x32x64xf32> to vector<32x64xf32>
    %231 = vector.extract_strided_slice %212 {offsets = [0, 6], sizes = [64, 22], strides = [1, 1]} : vector<64x36xf32> to vector<64x22xf32>
    %cst_187 = arith.constant dense<0.000000e+00> : vector<32x22xf32>
    %232 = tpu.matmul %230, %231, %cst_187 {dimension_numbers = #tpu.dot_dimension_numbers<[1], [0], [0], [1], [0, 0, 1, 1], [], []>} : vector<32x64xf32>, vector<64x22xf32>, vector<32x22xf32> -> vector<32x22xf32>
    %233 = arith.addf %228, %232 : vector<32x22xf32>
    %c4_188 = arith.constant 4 : index
    %c0_189 = arith.constant 0 : index
    %c0_190 = arith.constant 0 : index
    %234 = vector.load %arg5[%c4_188, %c0_189, %c0_190] : memref<9x32x64xf32, #tpu.memory_space<vmem>>, vector<1x32x64xf32>
    %235 = vector.shape_cast %234 : vector<1x32x64xf32> to vector<32x64xf32>
    %236 = vector.extract_strided_slice %212 {offsets = [0, 7], sizes = [64, 22], strides = [1, 1]} : vector<64x36xf32> to vector<64x22xf32>
    %cst_191 = arith.constant dense<0.000000e+00> : vector<32x22xf32>
    %237 = tpu.matmul %235, %236, %cst_191 {dimension_numbers = #tpu.dot_dimension_numbers<[1], [0], [0], [1], [0, 0, 1, 1], [], []>} : vector<32x64xf32>, vector<64x22xf32>, vector<32x22xf32> -> vector<32x22xf32>
    %238 = arith.addf %233, %237 : vector<32x22xf32>
    %c5_192 = arith.constant 5 : index
    %c0_193 = arith.constant 0 : index
    %c0_194 = arith.constant 0 : index
    %239 = vector.load %arg5[%c5_192, %c0_193, %c0_194] : memref<9x32x64xf32, #tpu.memory_space<vmem>>, vector<1x32x64xf32>
    %240 = vector.shape_cast %239 : vector<1x32x64xf32> to vector<32x64xf32>
    %241 = vector.extract_strided_slice %212 {offsets = [0, 8], sizes = [64, 22], strides = [1, 1]} : vector<64x36xf32> to vector<64x22xf32>
    %cst_195 = arith.constant dense<0.000000e+00> : vector<32x22xf32>
    %242 = tpu.matmul %240, %241, %cst_195 {dimension_numbers = #tpu.dot_dimension_numbers<[1], [0], [0], [1], [0, 0, 1, 1], [], []>} : vector<32x64xf32>, vector<64x22xf32>, vector<32x22xf32> -> vector<32x22xf32>
    %243 = arith.addf %238, %242 : vector<32x22xf32>
    %c6_196 = arith.constant 6 : index
    %c0_197 = arith.constant 0 : index
    %c0_198 = arith.constant 0 : index
    %244 = vector.load %arg5[%c6_196, %c0_197, %c0_198] : memref<9x32x64xf32, #tpu.memory_space<vmem>>, vector<1x32x64xf32>
    %245 = vector.shape_cast %244 : vector<1x32x64xf32> to vector<32x64xf32>
    %246 = vector.extract_strided_slice %212 {offsets = [0, 12], sizes = [64, 22], strides = [1, 1]} : vector<64x36xf32> to vector<64x22xf32>
    %cst_199 = arith.constant dense<0.000000e+00> : vector<32x22xf32>
    %247 = tpu.matmul %245, %246, %cst_199 {dimension_numbers = #tpu.dot_dimension_numbers<[1], [0], [0], [1], [0, 0, 1, 1], [], []>} : vector<32x64xf32>, vector<64x22xf32>, vector<32x22xf32> -> vector<32x22xf32>
    %248 = arith.addf %243, %247 : vector<32x22xf32>
    %c7_200 = arith.constant 7 : index
    %c0_201 = arith.constant 0 : index
    %c0_202 = arith.constant 0 : index
    %249 = vector.load %arg5[%c7_200, %c0_201, %c0_202] : memref<9x32x64xf32, #tpu.memory_space<vmem>>, vector<1x32x64xf32>
    %250 = vector.shape_cast %249 : vector<1x32x64xf32> to vector<32x64xf32>
    %251 = vector.extract_strided_slice %212 {offsets = [0, 13], sizes = [64, 22], strides = [1, 1]} : vector<64x36xf32> to vector<64x22xf32>
    %cst_203 = arith.constant dense<0.000000e+00> : vector<32x22xf32>
    %252 = tpu.matmul %250, %251, %cst_203 {dimension_numbers = #tpu.dot_dimension_numbers<[1], [0], [0], [1], [0, 0, 1, 1], [], []>} : vector<32x64xf32>, vector<64x22xf32>, vector<32x22xf32> -> vector<32x22xf32>
    %253 = arith.addf %248, %252 : vector<32x22xf32>
    %c8_204 = arith.constant 8 : index
    %c0_205 = arith.constant 0 : index
    %c0_206 = arith.constant 0 : index
    %254 = vector.load %arg5[%c8_204, %c0_205, %c0_206] : memref<9x32x64xf32, #tpu.memory_space<vmem>>, vector<1x32x64xf32>
    %255 = vector.shape_cast %254 : vector<1x32x64xf32> to vector<32x64xf32>
    %256 = vector.extract_strided_slice %212 {offsets = [0, 14], sizes = [64, 22], strides = [1, 1]} : vector<64x36xf32> to vector<64x22xf32>
    %cst_207 = arith.constant dense<0.000000e+00> : vector<32x22xf32>
    %257 = tpu.matmul %255, %256, %cst_207 {dimension_numbers = #tpu.dot_dimension_numbers<[1], [0], [0], [1], [0, 0, 1, 1], [], []>} : vector<32x64xf32>, vector<64x22xf32>, vector<32x22xf32> -> vector<32x22xf32>
    %258 = arith.addf %253, %257 : vector<32x22xf32>
    %c0_208 = arith.constant 0 : index
    %c0_209 = arith.constant 0 : index
    %259 = vector.load %arg11[%c0_208, %c0_209] : memref<32x1xf32, #tpu.memory_space<vmem>>, vector<32x1xf32>
    %260 = vector.broadcast %259 : vector<32x1xf32> to vector<32x22xf32>
    %261 = arith.addf %258, %260 : vector<32x22xf32>
    %cst_210 = arith.constant 0.000000e+00 : f32
    %262 = vector.broadcast %cst_210 : f32 to vector<32x22xf32>
    %263 = arith.maximumf %261, %262 : vector<32x22xf32>
    %c0_211 = arith.constant 0 : index
    %c0_212 = arith.constant 0 : index
    %264 = vector.load %arg17[%c0_211, %c0_212] : memref<4x10xf32, #tpu.memory_space<vmem>>, vector<4x10xf32>
    %265 = vector.extract_strided_slice %263 {offsets = [0, 0], sizes = [32, 4], strides = [1, 1]} : vector<32x22xf32> to vector<32x4xf32>
    %cst_213 = arith.constant dense<0.000000e+00> : vector<32x10xf32>
    %266 = tpu.matmul %265, %264, %cst_213 {dimension_numbers = #tpu.dot_dimension_numbers<[1], [0], [0], [1], [0, 0, 1, 1], [], []>} : vector<32x4xf32>, vector<4x10xf32>, vector<32x10xf32> -> vector<32x10xf32>
    %c0_214 = arith.constant 0 : index
    %c10_215 = arith.constant 10 : index
    %267 = vector.load %arg23[%c0_214, %c10_215] : memref<32x100xf32, #tpu.memory_space<vmem>>, vector<32x10xf32>
    tpu.vector_store %arg23[%c0_214, %c10_215], %266 {strides = array<i32>} : memref<32x100xf32, #tpu.memory_space<vmem>>, vector<32x10xf32>,
    %268 = vector.extract_strided_slice %263 {offsets = [0, 6], sizes = [32, 4], strides = [1, 1]} : vector<32x22xf32> to vector<32x4xf32>
    %cst_216 = arith.constant dense<0.000000e+00> : vector<32x10xf32>
    %269 = tpu.matmul %268, %264, %cst_216 {dimension_numbers = #tpu.dot_dimension_numbers<[1], [0], [0], [1], [0, 0, 1, 1], [], []>} : vector<32x4xf32>, vector<4x10xf32>, vector<32x10xf32> -> vector<32x10xf32>
    %c0_217 = arith.constant 0 : index
    %c30_218 = arith.constant 30 : index
    %270 = vector.load %arg23[%c0_217, %c30_218] : memref<32x100xf32, #tpu.memory_space<vmem>>, vector<32x10xf32>
    tpu.vector_store %arg23[%c0_217, %c30_218], %269 {strides = array<i32>} : memref<32x100xf32, #tpu.memory_space<vmem>>, vector<32x10xf32>,
    %271 = vector.extract_strided_slice %263 {offsets = [0, 12], sizes = [32, 4], strides = [1, 1]} : vector<32x22xf32> to vector<32x4xf32>
    %cst_219 = arith.constant dense<0.000000e+00> : vector<32x10xf32>
    %272 = tpu.matmul %271, %264, %cst_219 {dimension_numbers = #tpu.dot_dimension_numbers<[1], [0], [0], [1], [0, 0, 1, 1], [], []>} : vector<32x4xf32>, vector<4x10xf32>, vector<32x10xf32> -> vector<32x10xf32>
    %c0_220 = arith.constant 0 : index
    %c50_221 = arith.constant 50 : index
    %273 = vector.load %arg23[%c0_220, %c50_221] : memref<32x100xf32, #tpu.memory_space<vmem>>, vector<32x10xf32>
    tpu.vector_store %arg23[%c0_220, %c50_221], %272 {strides = array<i32>} : memref<32x100xf32, #tpu.memory_space<vmem>>, vector<32x10xf32>,
    %274 = vector.extract_strided_slice %263 {offsets = [0, 18], sizes = [32, 4], strides = [1, 1]} : vector<32x22xf32> to vector<32x4xf32>
    %cst_222 = arith.constant dense<0.000000e+00> : vector<32x10xf32>
    %275 = tpu.matmul %274, %264, %cst_222 {dimension_numbers = #tpu.dot_dimension_numbers<[1], [0], [0], [1], [0, 0, 1, 1], [], []>} : vector<32x4xf32>, vector<4x10xf32>, vector<32x10xf32> -> vector<32x10xf32>
    %c0_223 = arith.constant 0 : index
    %c70_224 = arith.constant 70 : index
    %276 = vector.load %arg23[%c0_223, %c70_224] : memref<32x100xf32, #tpu.memory_space<vmem>>, vector<32x10xf32>
    tpu.vector_store %arg23[%c0_223, %c70_224], %275 {strides = array<i32>} : memref<32x100xf32, #tpu.memory_space<vmem>>, vector<32x10xf32>,
    %c0_225 = arith.constant 0 : index
    %c0_226 = arith.constant 0 : index
    %277 = vector.load %arg23[%c0_225, %c0_226] : memref<32x100xf32, #tpu.memory_space<vmem>>, vector<32x100xf32>
    %cst_227 = arith.constant 0.000000e+00 : f32
    %278 = vector.broadcast %cst_227 : f32 to vector<16x78xf32>
    %c0_228 = arith.constant 0 : index
    %c0_229 = arith.constant 0 : index
    %c0_230 = arith.constant 0 : index
    %279 = vector.load %arg6[%c0_228, %c0_229, %c0_230] : memref<9x16x32xf32, #tpu.memory_space<vmem>>, vector<1x16x32xf32>
    %280 = vector.shape_cast %279 : vector<1x16x32xf32> to vector<16x32xf32>
    %281 = vector.extract_strided_slice %277 {offsets = [0, 0], sizes = [32, 78], strides = [1, 1]} : vector<32x100xf32> to vector<32x78xf32>
    %cst_231 = arith.constant dense<0.000000e+00> : vector<16x78xf32>
    %282 = tpu.matmul %280, %281, %cst_231 {dimension_numbers = #tpu.dot_dimension_numbers<[1], [0], [0], [1], [0, 0, 1, 1], [], []>} : vector<16x32xf32>, vector<32x78xf32>, vector<16x78xf32> -> vector<16x78xf32>
    %283 = arith.addf %278, %282 : vector<16x78xf32>
    %c1_232 = arith.constant 1 : index
    %c0_233 = arith.constant 0 : index
    %c0_234 = arith.constant 0 : index
    %284 = vector.load %arg6[%c1_232, %c0_233, %c0_234] : memref<9x16x32xf32, #tpu.memory_space<vmem>>, vector<1x16x32xf32>
    %285 = vector.shape_cast %284 : vector<1x16x32xf32> to vector<16x32xf32>
    %286 = vector.extract_strided_slice %277 {offsets = [0, 1], sizes = [32, 78], strides = [1, 1]} : vector<32x100xf32> to vector<32x78xf32>
    %cst_235 = arith.constant dense<0.000000e+00> : vector<16x78xf32>
    %287 = tpu.matmul %285, %286, %cst_235 {dimension_numbers = #tpu.dot_dimension_numbers<[1], [0], [0], [1], [0, 0, 1, 1], [], []>} : vector<16x32xf32>, vector<32x78xf32>, vector<16x78xf32> -> vector<16x78xf32>
    %288 = arith.addf %283, %287 : vector<16x78xf32>
    %c2_236 = arith.constant 2 : index
    %c0_237 = arith.constant 0 : index
    %c0_238 = arith.constant 0 : index
    %289 = vector.load %arg6[%c2_236, %c0_237, %c0_238] : memref<9x16x32xf32, #tpu.memory_space<vmem>>, vector<1x16x32xf32>
    %290 = vector.shape_cast %289 : vector<1x16x32xf32> to vector<16x32xf32>
    %291 = vector.extract_strided_slice %277 {offsets = [0, 2], sizes = [32, 78], strides = [1, 1]} : vector<32x100xf32> to vector<32x78xf32>
    %cst_239 = arith.constant dense<0.000000e+00> : vector<16x78xf32>
    %292 = tpu.matmul %290, %291, %cst_239 {dimension_numbers = #tpu.dot_dimension_numbers<[1], [0], [0], [1], [0, 0, 1, 1], [], []>} : vector<16x32xf32>, vector<32x78xf32>, vector<16x78xf32> -> vector<16x78xf32>
    %293 = arith.addf %288, %292 : vector<16x78xf32>
    %c3_240 = arith.constant 3 : index
    %c0_241 = arith.constant 0 : index
    %c0_242 = arith.constant 0 : index
    %294 = vector.load %arg6[%c3_240, %c0_241, %c0_242] : memref<9x16x32xf32, #tpu.memory_space<vmem>>, vector<1x16x32xf32>
    %295 = vector.shape_cast %294 : vector<1x16x32xf32> to vector<16x32xf32>
    %296 = vector.extract_strided_slice %277 {offsets = [0, 10], sizes = [32, 78], strides = [1, 1]} : vector<32x100xf32> to vector<32x78xf32>
    %cst_243 = arith.constant dense<0.000000e+00> : vector<16x78xf32>
    %297 = tpu.matmul %295, %296, %cst_243 {dimension_numbers = #tpu.dot_dimension_numbers<[1], [0], [0], [1], [0, 0, 1, 1], [], []>} : vector<16x32xf32>, vector<32x78xf32>, vector<16x78xf32> -> vector<16x78xf32>
    %298 = arith.addf %293, %297 : vector<16x78xf32>
    %c4_244 = arith.constant 4 : index
    %c0_245 = arith.constant 0 : index
    %c0_246 = arith.constant 0 : index
    %299 = vector.load %arg6[%c4_244, %c0_245, %c0_246] : memref<9x16x32xf32, #tpu.memory_space<vmem>>, vector<1x16x32xf32>
    %300 = vector.shape_cast %299 : vector<1x16x32xf32> to vector<16x32xf32>
    %301 = vector.extract_strided_slice %277 {offsets = [0, 11], sizes = [32, 78], strides = [1, 1]} : vector<32x100xf32> to vector<32x78xf32>
    %cst_247 = arith.constant dense<0.000000e+00> : vector<16x78xf32>
    %302 = tpu.matmul %300, %301, %cst_247 {dimension_numbers = #tpu.dot_dimension_numbers<[1], [0], [0], [1], [0, 0, 1, 1], [], []>} : vector<16x32xf32>, vector<32x78xf32>, vector<16x78xf32> -> vector<16x78xf32>
    %303 = arith.addf %298, %302 : vector<16x78xf32>
    %c5_248 = arith.constant 5 : index
    %c0_249 = arith.constant 0 : index
    %c0_250 = arith.constant 0 : index
    %304 = vector.load %arg6[%c5_248, %c0_249, %c0_250] : memref<9x16x32xf32, #tpu.memory_space<vmem>>, vector<1x16x32xf32>
    %305 = vector.shape_cast %304 : vector<1x16x32xf32> to vector<16x32xf32>
    %306 = vector.extract_strided_slice %277 {offsets = [0, 12], sizes = [32, 78], strides = [1, 1]} : vector<32x100xf32> to vector<32x78xf32>
    %cst_251 = arith.constant dense<0.000000e+00> : vector<16x78xf32>
    %307 = tpu.matmul %305, %306, %cst_251 {dimension_numbers = #tpu.dot_dimension_numbers<[1], [0], [0], [1], [0, 0, 1, 1], [], []>} : vector<16x32xf32>, vector<32x78xf32>, vector<16x78xf32> -> vector<16x78xf32>
    %308 = arith.addf %303, %307 : vector<16x78xf32>
    %c6_252 = arith.constant 6 : index
    %c0_253 = arith.constant 0 : index
    %c0_254 = arith.constant 0 : index
    %309 = vector.load %arg6[%c6_252, %c0_253, %c0_254] : memref<9x16x32xf32, #tpu.memory_space<vmem>>, vector<1x16x32xf32>
    %310 = vector.shape_cast %309 : vector<1x16x32xf32> to vector<16x32xf32>
    %311 = vector.extract_strided_slice %277 {offsets = [0, 20], sizes = [32, 78], strides = [1, 1]} : vector<32x100xf32> to vector<32x78xf32>
    %cst_255 = arith.constant dense<0.000000e+00> : vector<16x78xf32>
    %312 = tpu.matmul %310, %311, %cst_255 {dimension_numbers = #tpu.dot_dimension_numbers<[1], [0], [0], [1], [0, 0, 1, 1], [], []>} : vector<16x32xf32>, vector<32x78xf32>, vector<16x78xf32> -> vector<16x78xf32>
    %313 = arith.addf %308, %312 : vector<16x78xf32>
    %c7_256 = arith.constant 7 : index
    %c0_257 = arith.constant 0 : index
    %c0_258 = arith.constant 0 : index
    %314 = vector.load %arg6[%c7_256, %c0_257, %c0_258] : memref<9x16x32xf32, #tpu.memory_space<vmem>>, vector<1x16x32xf32>
    %315 = vector.shape_cast %314 : vector<1x16x32xf32> to vector<16x32xf32>
    %316 = vector.extract_strided_slice %277 {offsets = [0, 21], sizes = [32, 78], strides = [1, 1]} : vector<32x100xf32> to vector<32x78xf32>
    %cst_259 = arith.constant dense<0.000000e+00> : vector<16x78xf32>
    %317 = tpu.matmul %315, %316, %cst_259 {dimension_numbers = #tpu.dot_dimension_numbers<[1], [0], [0], [1], [0, 0, 1, 1], [], []>} : vector<16x32xf32>, vector<32x78xf32>, vector<16x78xf32> -> vector<16x78xf32>
    %318 = arith.addf %313, %317 : vector<16x78xf32>
    %c8_260 = arith.constant 8 : index
    %c0_261 = arith.constant 0 : index
    %c0_262 = arith.constant 0 : index
    %319 = vector.load %arg6[%c8_260, %c0_261, %c0_262] : memref<9x16x32xf32, #tpu.memory_space<vmem>>, vector<1x16x32xf32>
    %320 = vector.shape_cast %319 : vector<1x16x32xf32> to vector<16x32xf32>
    %321 = vector.extract_strided_slice %277 {offsets = [0, 22], sizes = [32, 78], strides = [1, 1]} : vector<32x100xf32> to vector<32x78xf32>
    %cst_263 = arith.constant dense<0.000000e+00> : vector<16x78xf32>
    %322 = tpu.matmul %320, %321, %cst_263 {dimension_numbers = #tpu.dot_dimension_numbers<[1], [0], [0], [1], [0, 0, 1, 1], [], []>} : vector<16x32xf32>, vector<32x78xf32>, vector<16x78xf32> -> vector<16x78xf32>
    %323 = arith.addf %318, %322 : vector<16x78xf32>
    %c0_264 = arith.constant 0 : index
    %c0_265 = arith.constant 0 : index
    %324 = vector.load %arg12[%c0_264, %c0_265] : memref<16x1xf32, #tpu.memory_space<vmem>>, vector<16x1xf32>
    %325 = vector.broadcast %324 : vector<16x1xf32> to vector<16x78xf32>
    %326 = arith.addf %323, %325 : vector<16x78xf32>
    %cst_266 = arith.constant 0.000000e+00 : f32
    %327 = vector.broadcast %cst_266 : f32 to vector<16x78xf32>
    %328 = arith.maximumf %326, %327 : vector<16x78xf32>
    %c0_267 = arith.constant 0 : index
    %c0_268 = arith.constant 0 : index
    %329 = vector.load %arg18[%c0_267, %c0_268] : memref<8x18xf32, #tpu.memory_space<vmem>>, vector<8x18xf32>
    %330 = vector.extract_strided_slice %328 {offsets = [0, 0], sizes = [16, 8], strides = [1, 1]} : vector<16x78xf32> to vector<16x8xf32>
    %cst_269 = arith.constant dense<0.000000e+00> : vector<16x18xf32>
    %331 = tpu.matmul %330, %329, %cst_269 {dimension_numbers = #tpu.dot_dimension_numbers<[1], [0], [0], [1], [0, 0, 1, 1], [], []>} : vector<16x8xf32>, vector<8x18xf32>, vector<16x18xf32> -> vector<16x18xf32>
    %c0_270 = arith.constant 0 : index
    %c18_271 = arith.constant 18 : index
    %332 = vector.load %arg24[%c0_270, %c18_271] : memref<16x326xf32, #tpu.memory_space<vmem>>, vector<16x18xf32>
    tpu.vector_store %arg24[%c0_270, %c18_271], %331 {strides = array<i32>} : memref<16x326xf32, #tpu.memory_space<vmem>>, vector<16x18xf32>,
    %333 = vector.extract_strided_slice %328 {offsets = [0, 10], sizes = [16, 8], strides = [1, 1]} : vector<16x78xf32> to vector<16x8xf32>
    %cst_272 = arith.constant dense<0.000000e+00> : vector<16x18xf32>
    %334 = tpu.matmul %333, %329, %cst_272 {dimension_numbers = #tpu.dot_dimension_numbers<[1], [0], [0], [1], [0, 0, 1, 1], [], []>} : vector<16x8xf32>, vector<8x18xf32>, vector<16x18xf32> -> vector<16x18xf32>
    %c0_273 = arith.constant 0 : index
    %c54 = arith.constant 54 : index
    %335 = vector.load %arg24[%c0_273, %c54] : memref<16x326xf32, #tpu.memory_space<vmem>>, vector<16x18xf32>
    tpu.vector_store %arg24[%c0_273, %c54], %334 {strides = array<i32>} : memref<16x326xf32, #tpu.memory_space<vmem>>, vector<16x18xf32>,
    %336 = vector.extract_strided_slice %328 {offsets = [0, 20], sizes = [16, 8], strides = [1, 1]} : vector<16x78xf32> to vector<16x8xf32>
    %cst_274 = arith.constant dense<0.000000e+00> : vector<16x18xf32>
    %337 = tpu.matmul %336, %329, %cst_274 {dimension_numbers = #tpu.dot_dimension_numbers<[1], [0], [0], [1], [0, 0, 1, 1], [], []>} : vector<16x8xf32>, vector<8x18xf32>, vector<16x18xf32> -> vector<16x18xf32>
    %c0_275 = arith.constant 0 : index
    %c90 = arith.constant 90 : index
    %338 = vector.load %arg24[%c0_275, %c90] : memref<16x326xf32, #tpu.memory_space<vmem>>, vector<16x18xf32>
    tpu.vector_store %arg24[%c0_275, %c90], %337 {strides = array<i32>} : memref<16x326xf32, #tpu.memory_space<vmem>>, vector<16x18xf32>,
    %339 = vector.extract_strided_slice %328 {offsets = [0, 30], sizes = [16, 8], strides = [1, 1]} : vector<16x78xf32> to vector<16x8xf32>
    %cst_276 = arith.constant dense<0.000000e+00> : vector<16x18xf32>
    %340 = tpu.matmul %339, %329, %cst_276 {dimension_numbers = #tpu.dot_dimension_numbers<[1], [0], [0], [1], [0, 0, 1, 1], [], []>} : vector<16x8xf32>, vector<8x18xf32>, vector<16x18xf32> -> vector<16x18xf32>
    %c0_277 = arith.constant 0 : index
    %c126 = arith.constant 126 : index
    %341 = vector.load %arg24[%c0_277, %c126] : memref<16x326xf32, #tpu.memory_space<vmem>>, vector<16x18xf32>
    tpu.vector_store %arg24[%c0_277, %c126], %340 {strides = array<i32>} : memref<16x326xf32, #tpu.memory_space<vmem>>, vector<16x18xf32>,
    %342 = vector.extract_strided_slice %328 {offsets = [0, 40], sizes = [16, 8], strides = [1, 1]} : vector<16x78xf32> to vector<16x8xf32>
    %cst_278 = arith.constant dense<0.000000e+00> : vector<16x18xf32>
    %343 = tpu.matmul %342, %329, %cst_278 {dimension_numbers = #tpu.dot_dimension_numbers<[1], [0], [0], [1], [0, 0, 1, 1], [], []>} : vector<16x8xf32>, vector<8x18xf32>, vector<16x18xf32> -> vector<16x18xf32>
    %c0_279 = arith.constant 0 : index
    %c162 = arith.constant 162 : index
    %344 = vector.load %arg24[%c0_279, %c162] : memref<16x326xf32, #tpu.memory_space<vmem>>, vector<16x18xf32>
    tpu.vector_store %arg24[%c0_279, %c162], %343 {strides = array<i32>} : memref<16x326xf32, #tpu.memory_space<vmem>>, vector<16x18xf32>,
    %345 = vector.extract_strided_slice %328 {offsets = [0, 50], sizes = [16, 8], strides = [1, 1]} : vector<16x78xf32> to vector<16x8xf32>
    %cst_280 = arith.constant dense<0.000000e+00> : vector<16x18xf32>
    %346 = tpu.matmul %345, %329, %cst_280 {dimension_numbers = #tpu.dot_dimension_numbers<[1], [0], [0], [1], [0, 0, 1, 1], [], []>} : vector<16x8xf32>, vector<8x18xf32>, vector<16x18xf32> -> vector<16x18xf32>
    %c0_281 = arith.constant 0 : index
    %c198 = arith.constant 198 : index
    %347 = vector.load %arg24[%c0_281, %c198] : memref<16x326xf32, #tpu.memory_space<vmem>>, vector<16x18xf32>
    tpu.vector_store %arg24[%c0_281, %c198], %346 {strides = array<i32>} : memref<16x326xf32, #tpu.memory_space<vmem>>, vector<16x18xf32>,
    %348 = vector.extract_strided_slice %328 {offsets = [0, 60], sizes = [16, 8], strides = [1, 1]} : vector<16x78xf32> to vector<16x8xf32>
    %cst_282 = arith.constant dense<0.000000e+00> : vector<16x18xf32>
    %349 = tpu.matmul %348, %329, %cst_282 {dimension_numbers = #tpu.dot_dimension_numbers<[1], [0], [0], [1], [0, 0, 1, 1], [], []>} : vector<16x8xf32>, vector<8x18xf32>, vector<16x18xf32> -> vector<16x18xf32>
    %c0_283 = arith.constant 0 : index
    %c234 = arith.constant 234 : index
    %350 = vector.load %arg24[%c0_283, %c234] : memref<16x326xf32, #tpu.memory_space<vmem>>, vector<16x18xf32>
    tpu.vector_store %arg24[%c0_283, %c234], %349 {strides = array<i32>} : memref<16x326xf32, #tpu.memory_space<vmem>>, vector<16x18xf32>,
    %351 = vector.extract_strided_slice %328 {offsets = [0, 70], sizes = [16, 8], strides = [1, 1]} : vector<16x78xf32> to vector<16x8xf32>
    %cst_284 = arith.constant dense<0.000000e+00> : vector<16x18xf32>
    %352 = tpu.matmul %351, %329, %cst_284 {dimension_numbers = #tpu.dot_dimension_numbers<[1], [0], [0], [1], [0, 0, 1, 1], [], []>} : vector<16x8xf32>, vector<8x18xf32>, vector<16x18xf32> -> vector<16x18xf32>
    %c0_285 = arith.constant 0 : index
    %c270 = arith.constant 270 : index
    %353 = vector.load %arg24[%c0_285, %c270] : memref<16x326xf32, #tpu.memory_space<vmem>>, vector<16x18xf32>
    tpu.vector_store %arg24[%c0_285, %c270], %352 {strides = array<i32>} : memref<16x326xf32, #tpu.memory_space<vmem>>, vector<16x18xf32>,
    %c0_286 = arith.constant 0 : index
    %c0_287 = arith.constant 0 : index
    %354 = vector.load %arg24[%c0_286, %c0_287] : memref<16x326xf32, #tpu.memory_space<vmem>>, vector<16x326xf32>
    %cst_288 = arith.constant 0.000000e+00 : f32
    %355 = vector.broadcast %cst_288 : f32 to vector<3x288xf32>
    %c0_289 = arith.constant 0 : index
    %c0_290 = arith.constant 0 : index
    %c0_291 = arith.constant 0 : index
    %356 = vector.load %arg7[%c0_289, %c0_290, %c0_291] : memref<9x3x16xf32, #tpu.memory_space<vmem>>, vector<1x3x16xf32>
    %357 = vector.shape_cast %356 : vector<1x3x16xf32> to vector<3x16xf32>
    %358 = vector.extract_strided_slice %354 {offsets = [0, 0], sizes = [16, 288], strides = [1, 1]} : vector<16x326xf32> to vector<16x288xf32>
    %cst_292 = arith.constant dense<0.000000e+00> : vector<3x288xf32>
    %359 = tpu.matmul %357, %358, %cst_292 {dimension_numbers = #tpu.dot_dimension_numbers<[1], [0], [0], [1], [0, 0, 1, 1], [], []>} : vector<3x16xf32>, vector<16x288xf32>, vector<3x288xf32> -> vector<3x288xf32>
    %360 = arith.addf %355, %359 : vector<3x288xf32>
    %c1_293 = arith.constant 1 : index
    %c0_294 = arith.constant 0 : index
    %c0_295 = arith.constant 0 : index
    %361 = vector.load %arg7[%c1_293, %c0_294, %c0_295] : memref<9x3x16xf32, #tpu.memory_space<vmem>>, vector<1x3x16xf32>
    %362 = vector.shape_cast %361 : vector<1x3x16xf32> to vector<3x16xf32>
    %363 = vector.extract_strided_slice %354 {offsets = [0, 1], sizes = [16, 288], strides = [1, 1]} : vector<16x326xf32> to vector<16x288xf32>
    %cst_296 = arith.constant dense<0.000000e+00> : vector<3x288xf32>
    %364 = tpu.matmul %362, %363, %cst_296 {dimension_numbers = #tpu.dot_dimension_numbers<[1], [0], [0], [1], [0, 0, 1, 1], [], []>} : vector<3x16xf32>, vector<16x288xf32>, vector<3x288xf32> -> vector<3x288xf32>
    %365 = arith.addf %360, %364 : vector<3x288xf32>
    %c2_297 = arith.constant 2 : index
    %c0_298 = arith.constant 0 : index
    %c0_299 = arith.constant 0 : index
    %366 = vector.load %arg7[%c2_297, %c0_298, %c0_299] : memref<9x3x16xf32, #tpu.memory_space<vmem>>, vector<1x3x16xf32>
    %367 = vector.shape_cast %366 : vector<1x3x16xf32> to vector<3x16xf32>
    %368 = vector.extract_strided_slice %354 {offsets = [0, 2], sizes = [16, 288], strides = [1, 1]} : vector<16x326xf32> to vector<16x288xf32>
    %cst_300 = arith.constant dense<0.000000e+00> : vector<3x288xf32>
    %369 = tpu.matmul %367, %368, %cst_300 {dimension_numbers = #tpu.dot_dimension_numbers<[1], [0], [0], [1], [0, 0, 1, 1], [], []>} : vector<3x16xf32>, vector<16x288xf32>, vector<3x288xf32> -> vector<3x288xf32>
    %370 = arith.addf %365, %369 : vector<3x288xf32>
    %c3_301 = arith.constant 3 : index
    %c0_302 = arith.constant 0 : index
    %c0_303 = arith.constant 0 : index
    %371 = vector.load %arg7[%c3_301, %c0_302, %c0_303] : memref<9x3x16xf32, #tpu.memory_space<vmem>>, vector<1x3x16xf32>
    %372 = vector.shape_cast %371 : vector<1x3x16xf32> to vector<3x16xf32>
    %373 = vector.extract_strided_slice %354 {offsets = [0, 18], sizes = [16, 288], strides = [1, 1]} : vector<16x326xf32> to vector<16x288xf32>
    %cst_304 = arith.constant dense<0.000000e+00> : vector<3x288xf32>
    %374 = tpu.matmul %372, %373, %cst_304 {dimension_numbers = #tpu.dot_dimension_numbers<[1], [0], [0], [1], [0, 0, 1, 1], [], []>} : vector<3x16xf32>, vector<16x288xf32>, vector<3x288xf32> -> vector<3x288xf32>
    %375 = arith.addf %370, %374 : vector<3x288xf32>
    %c4_305 = arith.constant 4 : index
    %c0_306 = arith.constant 0 : index
    %c0_307 = arith.constant 0 : index
    %376 = vector.load %arg7[%c4_305, %c0_306, %c0_307] : memref<9x3x16xf32, #tpu.memory_space<vmem>>, vector<1x3x16xf32>
    %377 = vector.shape_cast %376 : vector<1x3x16xf32> to vector<3x16xf32>
    %378 = vector.extract_strided_slice %354 {offsets = [0, 19], sizes = [16, 288], strides = [1, 1]} : vector<16x326xf32> to vector<16x288xf32>
    %cst_308 = arith.constant dense<0.000000e+00> : vector<3x288xf32>
    %379 = tpu.matmul %377, %378, %cst_308 {dimension_numbers = #tpu.dot_dimension_numbers<[1], [0], [0], [1], [0, 0, 1, 1], [], []>} : vector<3x16xf32>, vector<16x288xf32>, vector<3x288xf32> -> vector<3x288xf32>
    %380 = arith.addf %375, %379 : vector<3x288xf32>
    %c5_309 = arith.constant 5 : index
    %c0_310 = arith.constant 0 : index
    %c0_311 = arith.constant 0 : index
    %381 = vector.load %arg7[%c5_309, %c0_310, %c0_311] : memref<9x3x16xf32, #tpu.memory_space<vmem>>, vector<1x3x16xf32>
    %382 = vector.shape_cast %381 : vector<1x3x16xf32> to vector<3x16xf32>
    %383 = vector.extract_strided_slice %354 {offsets = [0, 20], sizes = [16, 288], strides = [1, 1]} : vector<16x326xf32> to vector<16x288xf32>
    %cst_312 = arith.constant dense<0.000000e+00> : vector<3x288xf32>
    %384 = tpu.matmul %382, %383, %cst_312 {dimension_numbers = #tpu.dot_dimension_numbers<[1], [0], [0], [1], [0, 0, 1, 1], [], []>} : vector<3x16xf32>, vector<16x288xf32>, vector<3x288xf32> -> vector<3x288xf32>
    %385 = arith.addf %380, %384 : vector<3x288xf32>
    %c6_313 = arith.constant 6 : index
    %c0_314 = arith.constant 0 : index
    %c0_315 = arith.constant 0 : index
    %386 = vector.load %arg7[%c6_313, %c0_314, %c0_315] : memref<9x3x16xf32, #tpu.memory_space<vmem>>, vector<1x3x16xf32>
    %387 = vector.shape_cast %386 : vector<1x3x16xf32> to vector<3x16xf32>
    %388 = vector.extract_strided_slice %354 {offsets = [0, 36], sizes = [16, 288], strides = [1, 1]} : vector<16x326xf32> to vector<16x288xf32>
    %cst_316 = arith.constant dense<0.000000e+00> : vector<3x288xf32>
    %389 = tpu.matmul %387, %388, %cst_316 {dimension_numbers = #tpu.dot_dimension_numbers<[1], [0], [0], [1], [0, 0, 1, 1], [], []>} : vector<3x16xf32>, vector<16x288xf32>, vector<3x288xf32> -> vector<3x288xf32>
    %390 = arith.addf %385, %389 : vector<3x288xf32>
    %c7_317 = arith.constant 7 : index
    %c0_318 = arith.constant 0 : index
    %c0_319 = arith.constant 0 : index
    %391 = vector.load %arg7[%c7_317, %c0_318, %c0_319] : memref<9x3x16xf32, #tpu.memory_space<vmem>>, vector<1x3x16xf32>
    %392 = vector.shape_cast %391 : vector<1x3x16xf32> to vector<3x16xf32>
    %393 = vector.extract_strided_slice %354 {offsets = [0, 37], sizes = [16, 288], strides = [1, 1]} : vector<16x326xf32> to vector<16x288xf32>
    %cst_320 = arith.constant dense<0.000000e+00> : vector<3x288xf32>
    %394 = tpu.matmul %392, %393, %cst_320 {dimension_numbers = #tpu.dot_dimension_numbers<[1], [0], [0], [1], [0, 0, 1, 1], [], []>} : vector<3x16xf32>, vector<16x288xf32>, vector<3x288xf32> -> vector<3x288xf32>
    %395 = arith.addf %390, %394 : vector<3x288xf32>
    %c8_321 = arith.constant 8 : index
    %c0_322 = arith.constant 0 : index
    %c0_323 = arith.constant 0 : index
    %396 = vector.load %arg7[%c8_321, %c0_322, %c0_323] : memref<9x3x16xf32, #tpu.memory_space<vmem>>, vector<1x3x16xf32>
    %397 = vector.shape_cast %396 : vector<1x3x16xf32> to vector<3x16xf32>
    %398 = vector.extract_strided_slice %354 {offsets = [0, 38], sizes = [16, 288], strides = [1, 1]} : vector<16x326xf32> to vector<16x288xf32>
    %cst_324 = arith.constant dense<0.000000e+00> : vector<3x288xf32>
    %399 = tpu.matmul %397, %398, %cst_324 {dimension_numbers = #tpu.dot_dimension_numbers<[1], [0], [0], [1], [0, 0, 1, 1], [], []>} : vector<3x16xf32>, vector<16x288xf32>, vector<3x288xf32> -> vector<3x288xf32>
    %400 = arith.addf %395, %399 : vector<3x288xf32>
    %c0_325 = arith.constant 0 : index
    %c0_326 = arith.constant 0 : index
    %401 = vector.load %arg13[%c0_325, %c0_326] : memref<3x1xf32, #tpu.memory_space<vmem>>, vector<3x1xf32>
    %402 = vector.broadcast %401 : vector<3x1xf32> to vector<3x288xf32>
    %403 = arith.addf %400, %402 : vector<3x288xf32>
    %cst_327 = arith.constant 0.000000e+00 : f32
    %404 = vector.broadcast %cst_327 : f32 to vector<3x288xf32>
    %405 = arith.subf %404, %403 : vector<3x288xf32>
    %406 = math.exp %405 : vector<3x288xf32>
    %cst_328 = arith.constant 1.000000e+00 : f32
    %407 = vector.broadcast %cst_328 : f32 to vector<3x288xf32>
    %408 = arith.addf %407, %406 : vector<3x288xf32>
    %cst_329 = arith.constant 1.000000e+00 : f32
    %409 = vector.broadcast %cst_329 : f32 to vector<3x288xf32>
    %410 = arith.divf %409, %408 : vector<3x288xf32>
    %c0_330 = arith.constant 0 : index
    %c0_331 = arith.constant 0 : index
    %c0_332 = arith.constant 0 : index
    %411 = vector.load %arg19[%c0_330, %c0_331, %c0_332] : memref<1x3x288xf32, #tpu.memory_space<vmem>>, vector<1x3x288xf32>
    %412 = vector.shape_cast %411 : vector<1x3x288xf32> to vector<3x288xf32>
    %413 = vector.shape_cast %410 : vector<3x288xf32> to vector<1x3x288xf32>
    tpu.vector_store %arg19[%c0_330, %c0_331, %c0_332], %413 {strides = array<i32>} : memref<1x3x288xf32, #tpu.memory_space<vmem>>, vector<1x3x288xf32>,
    return
  }
  func.func @transform_0(%arg0: i32) -> (i32, i32, i32) {
    %c0_i32 = arith.constant 0 : i32
    %c0_i32_0 = arith.constant 0 : i32
    %c0_i32_1 = arith.constant 0 : i32
    return %arg0, %c0_i32, %c0_i32_0 : i32, i32, i32
  }
  func.func @transform_1(%arg0: i32) -> (i32, i32, i32) {
    %c0_i32 = arith.constant 0 : i32
    %c0_i32_0 = arith.constant 0 : i32
    %c0_i32_1 = arith.constant 0 : i32
    %c0_i32_2 = arith.constant 0 : i32
    return %c0_i32, %c0_i32_0, %c0_i32_1 : i32, i32, i32
  }
  func.func @transform_2(%arg0: i32) -> (i32, i32, i32) {
    %c0_i32 = arith.constant 0 : i32
    %c0_i32_0 = arith.constant 0 : i32
    %c0_i32_1 = arith.constant 0 : i32
    %c0_i32_2 = arith.constant 0 : i32
    return %c0_i32, %c0_i32_0, %c0_i32_1 : i32, i32, i32
  }
  func.func @transform_3(%arg0: i32) -> (i32, i32, i32) {
    %c0_i32 = arith.constant 0 : i32
    %c0_i32_0 = arith.constant 0 : i32
    %c0_i32_1 = arith.constant 0 : i32
    %c0_i32_2 = arith.constant 0 : i32
    return %c0_i32, %c0_i32_0, %c0_i32_1 : i32, i32, i32
  }
  func.func @transform_4(%arg0: i32) -> (i32, i32, i32) {
    %c0_i32 = arith.constant 0 : i32
    %c0_i32_0 = arith.constant 0 : i32
    %c0_i32_1 = arith.constant 0 : i32
    %c0_i32_2 = arith.constant 0 : i32
    return %c0_i32, %c0_i32_0, %c0_i32_1 : i32, i32, i32
  }
  func.func @transform_5(%arg0: i32) -> (i32, i32, i32) {
    %c0_i32 = arith.constant 0 : i32
    %c0_i32_0 = arith.constant 0 : i32
    %c0_i32_1 = arith.constant 0 : i32
    %c0_i32_2 = arith.constant 0 : i32
    return %c0_i32, %c0_i32_0, %c0_i32_1 : i32, i32, i32
  }
  func.func @transform_6(%arg0: i32) -> (i32, i32, i32) {
    %c0_i32 = arith.constant 0 : i32
    %c0_i32_0 = arith.constant 0 : i32
    %c0_i32_1 = arith.constant 0 : i32
    %c0_i32_2 = arith.constant 0 : i32
    return %c0_i32, %c0_i32_0, %c0_i32_1 : i32, i32, i32
  }
  func.func @transform_7(%arg0: i32) -> (i32, i32) {
    %c0_i32 = arith.constant 0 : i32
    %c0_i32_0 = arith.constant 0 : i32
    %c0_i32_1 = arith.constant 0 : i32
    return %c0_i32, %c0_i32_0 : i32, i32
  }
  func.func @transform_8(%arg0: i32) -> (i32, i32) {
    %c0_i32 = arith.constant 0 : i32
    %c0_i32_0 = arith.constant 0 : i32
    %c0_i32_1 = arith.constant 0 : i32
    return %c0_i32, %c0_i32_0 : i32, i32
  }
  func.func @transform_9(%arg0: i32) -> (i32, i32) {
    %c0_i32 = arith.constant 0 : i32
    %c0_i32_0 = arith.constant 0 : i32
    %c0_i32_1 = arith.constant 0 : i32
    return %c0_i32, %c0_i32_0 : i32, i32
  }
  func.func @transform_10(%arg0: i32) -> (i32, i32) {
    %c0_i32 = arith.constant 0 : i32
    %c0_i32_0 = arith.constant 0 : i32
    %c0_i32_1 = arith.constant 0 : i32
    return %c0_i32, %c0_i32_0 : i32, i32
  }
  func.func @transform_11(%arg0: i32) -> (i32, i32) {
    %c0_i32 = arith.constant 0 : i32
    %c0_i32_0 = arith.constant 0 : i32
    %c0_i32_1 = arith.constant 0 : i32
    return %c0_i32, %c0_i32_0 : i32, i32
  }
  func.func @transform_12(%arg0: i32) -> (i32, i32) {
    %c0_i32 = arith.constant 0 : i32
    %c0_i32_0 = arith.constant 0 : i32
    %c0_i32_1 = arith.constant 0 : i32
    return %c0_i32, %c0_i32_0 : i32, i32
  }
  func.func @transform_13(%arg0: i32) -> (i32, i32) {
    %c0_i32 = arith.constant 0 : i32
    %c0_i32_0 = arith.constant 0 : i32
    %c0_i32_1 = arith.constant 0 : i32
    return %c0_i32, %c0_i32_0 : i32, i32
  }
  func.func @transform_14(%arg0: i32) -> (i32, i32) {
    %c0_i32 = arith.constant 0 : i32
    %c0_i32_0 = arith.constant 0 : i32
    %c0_i32_1 = arith.constant 0 : i32
    return %c0_i32, %c0_i32_0 : i32, i32
  }
  func.func @transform_15(%arg0: i32) -> (i32, i32) {
    %c0_i32 = arith.constant 0 : i32
    %c0_i32_0 = arith.constant 0 : i32
    %c0_i32_1 = arith.constant 0 : i32
    return %c0_i32, %c0_i32_0 : i32, i32
  }
  func.func @transform_16(%arg0: i32) -> (i32, i32) {
    %c0_i32 = arith.constant 0 : i32
    %c0_i32_0 = arith.constant 0 : i32
    %c0_i32_1 = arith.constant 0 : i32
    return %c0_i32, %c0_i32_0 : i32, i32
  }
  func.func @transform_17(%arg0: i32) -> (i32, i32) {
    %c0_i32 = arith.constant 0 : i32
    %c0_i32_0 = arith.constant 0 : i32
    %c0_i32_1 = arith.constant 0 : i32
    return %c0_i32, %c0_i32_0 : i32, i32
  }
  func.func @transform_18(%arg0: i32) -> (i32, i32, i32) {
    %c0_i32 = arith.constant 0 : i32
    %c0_i32_0 = arith.constant 0 : i32
    %c0_i32_1 = arith.constant 0 : i32
    return %arg0, %c0_i32, %c0_i32_0 : i32, i32, i32
  }
}

</mosaic_0001>

<llo_original>
// kernel: forward.1
$region0: #{forward.1}
  #allocation0 [shape = 'u32[]', space=smem, size = 0x4, offset = 0x4, fixed_abs, tag = 'smem constant byte address 0x4 - core index']
  #allocation1 [shape = 'u32[72,128]{1,0:T(1,128)}', space=vmem, size = 0x9000, scoped, tag = 'internal scratch']
  #allocation2 [shape = 'f32[16,100]{1,0:T(8,128)}', space=vmem, size = 0x2000, scoped, tag = 'scratch operand']
  #allocation3 [shape = 'f32[32,36]{1,0:T(8,128)}', space=vmem, size = 0x4000, scoped, tag = 'scratch operand']
  #allocation4 [shape = 'f32[64,36]{1,0:T(8,128)}', space=vmem, size = 0x8000, scoped, tag = 'scratch operand']
  #allocation5 [shape = 'f32[32,100]{1,0:T(8,128)}', space=vmem, size = 0x4000, scoped, tag = 'scratch operand']
  #allocation6 [shape = 'f32[16,326]{1,0:T(8,128)}', space=vmem, size = 0x6000, scoped, tag = 'scratch operand']
  %s0 = inlined_call_operand.vmem [shape: f32[2,3,324], index: 0, kind: input, shape index: {}]
  %s1 = inlined_call_operand.vmem [shape: f32[9,16,3], index: 1, kind: input, shape index: {}]
  %s2 = inlined_call_operand.vmem [shape: f32[9,32,16], index: 2, kind: input, shape index: {}]
  %s3 = inlined_call_operand.vmem [shape: f32[9,64,32], index: 3, kind: input, shape index: {}]
  %s4 = inlined_call_operand.vmem [shape: f32[9,32,64], index: 4, kind: input, shape index: {}]
  %s5 = inlined_call_operand.vmem [shape: f32[9,16,32], index: 5, kind: input, shape index: {}]
  %s6 = inlined_call_operand.vmem [shape: f32[9,3,16], index: 6, kind: input, shape index: {}]
  %s7 = inlined_call_operand.vmem [shape: f32[16,1], index: 7, kind: input, shape index: {}]
  %s8 = inlined_call_operand.vmem [shape: f32[32,1], index: 8, kind: input, shape index: {}]
  %s9 = inlined_call_operand.vmem [shape: f32[64,1], index: 9, kind: input, shape index: {}]
  %s10 = inlined_call_operand.vmem [shape: f32[32,1], index: 10, kind: input, shape index: {}]
  %s11 = inlined_call_operand.vmem [shape: f32[16,1], index: 11, kind: input, shape index: {}]
  %s12 = inlined_call_operand.vmem [shape: f32[3,1], index: 12, kind: input, shape index: {}]
  %s13 = inlined_call_operand.vmem [shape: f32[15,10], index: 13, kind: input, shape index: {}]
  %s14 = inlined_call_operand.vmem [shape: f32[7,6], index: 14, kind: input, shape index: {}]
  %s15 = inlined_call_operand.vmem [shape: f32[3,6], index: 15, kind: input, shape index: {}]
  %s16 = inlined_call_operand.vmem [shape: f32[4,10], index: 16, kind: input, shape index: {}]
  %s17 = inlined_call_operand.vmem [shape: f32[8,18], index: 17, kind: input, shape index: {}]
  %s18 = inlined_call_operand.vmem [shape: f32[2,3,288], index: 18, kind: output, shape index: {}]
  %s19 = sld [smem:[#allocation0]]
  $region105: #{forward.1} parent=0
    _
  %s21 = ssub.s32 1, %s19
  %s22 = scalar_select 0, %s21, %s19
  loop: start=0, step=1, limit=4
  $region2: #{forward.1} parent=0 // loop_pre_header
    _
  $region3: #{forward.1} parent=0 // loop_header
    %s24 = sphi 0, %s28
    %p25 = scmp.ge.s32.totalorder %s24, 4
    %s34 = sphi 0, %s36
    %s37 = sphi 0, %s34
    %s38 = sphi 0, %s37
    %s54 = sphi 0, %s38
    %s58 = sphi 0, %s58
    %s60 = sphi 0, %s58
    %s61 = sphi 0, %s60
    %s75 = sphi 0, %s61
    %s79 = sphi 0, %s79
    %s81 = sphi 0, %s79
    %s82 = sphi 0, %s81
    %s96 = sphi 0, %s82
    %s100 = sphi 0, %s100
    %s102 = sphi 0, %s100
    %s103 = sphi 0, %s102
    %s117 = sphi 0, %s103
    %s121 = sphi 0, %s121
    %s123 = sphi 0, %s121
    %s124 = sphi 0, %s123
    %s138 = sphi 0, %s124
    %s142 = sphi 0, %s142
    %s144 = sphi 0, %s142
    %s145 = sphi 0, %s144
    %s159 = sphi 0, %s145
    %s163 = sphi 0, %s163
    %s165 = sphi 0, %s163
    %s166 = sphi 0, %s165
    %s180 = sphi 0, %s166
    %s184 = sphi 0, %s184
    %s186 = sphi 0, %s184
    %s187 = sphi 0, %s186
    %s201 = sphi 0, %s187
    %s205 = sphi 0, %s205
    %s207 = sphi 0, %s205
    %s208 = sphi 0, %s207
    %s222 = sphi 0, %s208
    %s226 = sphi 0, %s226
    %s228 = sphi 0, %s226
    %s229 = sphi 0, %s228
    %s243 = sphi 0, %s229
    %s247 = sphi 0, %s247
    %s249 = sphi 0, %s247
    %s250 = sphi 0, %s249
    %s264 = sphi 0, %s250
    %s268 = sphi 0, %s268
    %s270 = sphi 0, %s268
    %s271 = sphi 0, %s270
    %s285 = sphi 0, %s271
    %s289 = sphi 0, %s289
    %s291 = sphi 0, %s289
    %s292 = sphi 0, %s291
    %s306 = sphi 0, %s292
    %s310 = sphi 0, %s310
    %s312 = sphi 0, %s310
    %s313 = sphi 0, %s312
    %s327 = sphi 0, %s313
    %s331 = sphi 0, %s331
    %s333 = sphi 0, %s331
    %s334 = sphi 0, %s333
    %s348 = sphi 0, %s334
    %s352 = sphi 0, %s352
    %s354 = sphi 0, %s352
    %s355 = sphi 0, %s354
    %s369 = sphi 0, %s355
    %s373 = sphi 0, %s373
    %s375 = sphi 0, %s373
    %s376 = sphi 0, %s375
    %s390 = sphi 0, %s376
    %s394 = sphi 0, %s394
    %s396 = sphi 0, %s394
    %s397 = sphi 0, %s396
    %s411 = sphi 0, %s397
    %s417 = sphi 0, %s419
    %s420 = sphi 0, %s417
    %s421 = sphi 0, %s420
    %s437 = sphi 0, %s421
  $region4: #{forward.1} parent=0 // loop_header_branch
    %27 = sbr.rel (%p25) target = $region8
  $region5: #{forward.1} parent=0 // loop_body
    %s29 = ssub.s32 %s24, 1
    %s30 = ssub.s32 %s24, 2
    %s31 = sadd.s32 %s24, 1
    %s32 = ssub.s32 %s24, %s31
    %p33 = scmp.eq.s32.totalorder %s32, 0
    %s35 = sadd.s32 %s34, 1
    %s36 = scalar_select %p33, %s34, %s35
    %p39 = pneg %p33
    %p40 = scmp.eq.s32.totalorder %s24, 1
    %p41 = por %p39, %p40
    %p42 = scmp.ne.s32.totalorder %s34, %s37
    %p43 = scmp.eq.s32.totalorder %s24, 0
    %p44 = por %p42, %p43
    %p45 = scmp.ne.s32.totalorder %s34, %s37
    %p46 = scmp.eq.s32.totalorder %s29, 1
    %p47 = por %p45, %p46
    %p48 = scmp.ne.s32.totalorder %s37, %s38
    %p49 = scmp.eq.s32.totalorder %s29, 0
    %p50 = por %p48, %p49
    %p51 = scmp.ne.s32.totalorder %s37, %s38
    %p52 = scmp.eq.s32.totalorder %s30, 1
    %p53 = por %p51, %p52
    %p55 = scmp.ne.s32.totalorder %s38, %s54
    %p56 = scmp.eq.s32.totalorder %s30, 0
    %p57 = por %p55, %p56
    %s59 = sadd.s32 %s58, 1
    %p62 = scmp.eq.s32.totalorder %s24, 1
    %p63 = scmp.ne.s32.totalorder %s58, %s60
    %p64 = scmp.eq.s32.totalorder %s24, 0
    %p65 = por %p63, %p64
    %p66 = scmp.ne.s32.totalorder %s58, %s60
    %p67 = scmp.eq.s32.totalorder %s29, 1
    %p68 = por %p66, %p67
    %p69 = scmp.ne.s32.totalorder %s60, %s61
    %p70 = scmp.eq.s32.totalorder %s29, 0
    %p71 = por %p69, %p70
    %p72 = scmp.ne.s32.totalorder %s60, %s61
    %p73 = scmp.eq.s32.totalorder %s30, 1
    %p74 = por %p72, %p73
    %p76 = scmp.ne.s32.totalorder %s61, %s75
    %p77 = scmp.eq.s32.totalorder %s30, 0
    %p78 = por %p76, %p77
    %s80 = sadd.s32 %s79, 1
    %p83 = scmp.eq.s32.totalorder %s24, 1
    %p84 = scmp.ne.s32.totalorder %s79, %s81
    %p85 = scmp.eq.s32.totalorder %s24, 0
    %p86 = por %p84, %p85
    %p87 = scmp.ne.s32.totalorder %s79, %s81
    %p88 = scmp.eq.s32.totalorder %s29, 1
    %p89 = por %p87, %p88
    %p90 = scmp.ne.s32.totalorder %s81, %s82
    %p91 = scmp.eq.s32.totalorder %s29, 0
    %p92 = por %p90, %p91
    %p93 = scmp.ne.s32.totalorder %s81, %s82
    %p94 = scmp.eq.s32.totalorder %s30, 1
    %p95 = por %p93, %p94
    %p97 = scmp.ne.s32.totalorder %s82, %s96
    %p98 = scmp.eq.s32.totalorder %s30, 0
    %p99 = por %p97, %p98
    %s101 = sadd.s32 %s100, 1
    %p104 = scmp.eq.s32.totalorder %s24, 1
    %p105 = scmp.ne.s32.totalorder %s100, %s102
    %p106 = scmp.eq.s32.totalorder %s24, 0
    %p107 = por %p105, %p106
    %p108 = scmp.ne.s32.totalorder %s100, %s102
    %p109 = scmp.eq.s32.totalorder %s29, 1
    %p110 = por %p108, %p109
    %p111 = scmp.ne.s32.totalorder %s102, %s103
    %p112 = scmp.eq.s32.totalorder %s29, 0
    %p113 = por %p111, %p112
    %p114 = scmp.ne.s32.totalorder %s102, %s103
    %p115 = scmp.eq.s32.totalorder %s30, 1
    %p116 = por %p114, %p115
    %p118 = scmp.ne.s32.totalorder %s103, %s117
    %p119 = scmp.eq.s32.totalorder %s30, 0
    %p120 = por %p118, %p119
    %s122 = sadd.s32 %s121, 1
    %p125 = scmp.eq.s32.totalorder %s24, 1
    %p126 = scmp.ne.s32.totalorder %s121, %s123
    %p127 = scmp.eq.s32.totalorder %s24, 0
    %p128 = por %p126, %p127
    %p129 = scmp.ne.s32.totalorder %s121, %s123
    %p130 = scmp.eq.s32.totalorder %s29, 1
    %p131 = por %p129, %p130
    %p132 = scmp.ne.s32.totalorder %s123, %s124
    %p133 = scmp.eq.s32.totalorder %s29, 0
    %p134 = por %p132, %p133
    %p135 = scmp.ne.s32.totalorder %s123, %s124
    %p136 = scmp.eq.s32.totalorder %s30, 1
    %p137 = por %p135, %p136
    %p139 = scmp.ne.s32.totalorder %s124, %s138
    %p140 = scmp.eq.s32.totalorder %s30, 0
    %p141 = por %p139, %p140
    %s143 = sadd.s32 %s142, 1
    %p146 = scmp.eq.s32.totalorder %s24, 1
    %p147 = scmp.ne.s32.totalorder %s142, %s144
    %p148 = scmp.eq.s32.totalorder %s24, 0
    %p149 = por %p147, %p148
    %p150 = scmp.ne.s32.totalorder %s142, %s144
    %p151 = scmp.eq.s32.totalorder %s29, 1
    %p152 = por %p150, %p151
    %p153 = scmp.ne.s32.totalorder %s144, %s145
    %p154 = scmp.eq.s32.totalorder %s29, 0
    %p155 = por %p153, %p154
    %p156 = scmp.ne.s32.totalorder %s144, %s145
    %p157 = scmp.eq.s32.totalorder %s30, 1
    %p158 = por %p156, %p157
    %p160 = scmp.ne.s32.totalorder %s145, %s159
    %p161 = scmp.eq.s32.totalorder %s30, 0
    %p162 = por %p160, %p161
    %s164 = sadd.s32 %s163, 1
    %p167 = scmp.eq.s32.totalorder %s24, 1
    %p168 = scmp.ne.s32.totalorder %s163, %s165
    %p169 = scmp.eq.s32.totalorder %s24, 0
    %p170 = por %p168, %p169
    %p171 = scmp.ne.s32.totalorder %s163, %s165
    %p172 = scmp.eq.s32.totalorder %s29, 1
    %p173 = por %p171, %p172
    %p174 = scmp.ne.s32.totalorder %s165, %s166
    %p175 = scmp.eq.s32.totalorder %s29, 0
    %p176 = por %p174, %p175
    %p177 = scmp.ne.s32.totalorder %s165, %s166
    %p178 = scmp.eq.s32.totalorder %s30, 1
    %p179 = por %p177, %p178
    %p181 = scmp.ne.s32.totalorder %s166, %s180
    %p182 = scmp.eq.s32.totalorder %s30, 0
    %p183 = por %p181, %p182
    %s185 = sadd.s32 %s184, 1
    %p188 = scmp.eq.s32.totalorder %s24, 1
    %p189 = scmp.ne.s32.totalorder %s184, %s186
    %p190 = scmp.eq.s32.totalorder %s24, 0
    %p191 = por %p189, %p190
    %p192 = scmp.ne.s32.totalorder %s184, %s186
    %p193 = scmp.eq.s32.totalorder %s29, 1
    %p194 = por %p192, %p193
    %p195 = scmp.ne.s32.totalorder %s186, %s187
    %p196 = scmp.eq.s32.totalorder %s29, 0
    %p197 = por %p195, %p196
    %p198 = scmp.ne.s32.totalorder %s186, %s187
    %p199 = scmp.eq.s32.totalorder %s30, 1
    %p200 = por %p198, %p199
    %p202 = scmp.ne.s32.totalorder %s187, %s201
    %p203 = scmp.eq.s32.totalorder %s30, 0
    %p204 = por %p202, %p203
    %s206 = sadd.s32 %s205, 1
    %p209 = scmp.eq.s32.totalorder %s24, 1
    %p210 = scmp.ne.s32.totalorder %s205, %s207
    %p211 = scmp.eq.s32.totalorder %s24, 0
    %p212 = por %p210, %p211
    %p213 = scmp.ne.s32.totalorder %s205, %s207
    %p214 = scmp.eq.s32.totalorder %s29, 1
    %p215 = por %p213, %p214
    %p216 = scmp.ne.s32.totalorder %s207, %s208
    %p217 = scmp.eq.s32.totalorder %s29, 0
    %p218 = por %p216, %p217
    %p219 = scmp.ne.s32.totalorder %s207, %s208
    %p220 = scmp.eq.s32.totalorder %s30, 1
    %p221 = por %p219, %p220
    %p223 = scmp.ne.s32.totalorder %s208, %s222
    %p224 = scmp.eq.s32.totalorder %s30, 0
    %p225 = por %p223, %p224
    %s227 = sadd.s32 %s226, 1
    %p230 = scmp.eq.s32.totalorder %s24, 1
    %p231 = scmp.ne.s32.totalorder %s226, %s228
    %p232 = scmp.eq.s32.totalorder %s24, 0
    %p233 = por %p231, %p232
    %p234 = scmp.ne.s32.totalorder %s226, %s228
    %p235 = scmp.eq.s32.totalorder %s29, 1
    %p236 = por %p234, %p235
    %p237 = scmp.ne.s32.totalorder %s228, %s229
    %p238 = scmp.eq.s32.totalorder %s29, 0
    %p239 = por %p237, %p238
    %p240 = scmp.ne.s32.totalorder %s228, %s229
    %p241 = scmp.eq.s32.totalorder %s30, 1
    %p242 = por %p240, %p241
    %p244 = scmp.ne.s32.totalorder %s229, %s243
    %p245 = scmp.eq.s32.totalorder %s30, 0
    %p246 = por %p244, %p245
    %s248 = sadd.s32 %s247, 1
    %p251 = scmp.eq.s32.totalorder %s24, 1
    %p252 = scmp.ne.s32.totalorder %s247, %s249
    %p253 = scmp.eq.s32.totalorder %s24, 0
    %p254 = por %p252, %p253
    %p255 = scmp.ne.s32.totalorder %s247, %s249
    %p256 = scmp.eq.s32.totalorder %s29, 1
    %p257 = por %p255, %p256
    %p258 = scmp.ne.s32.totalorder %s249, %s250
    %p259 = scmp.eq.s32.totalorder %s29, 0
    %p260 = por %p258, %p259
    %p261 = scmp.ne.s32.totalorder %s249, %s250
    %p262 = scmp.eq.s32.totalorder %s30, 1
    %p263 = por %p261, %p262
    %p265 = scmp.ne.s32.totalorder %s250, %s264
    %p266 = scmp.eq.s32.totalorder %s30, 0
    %p267 = por %p265, %p266
    %s269 = sadd.s32 %s268, 1
    %p272 = scmp.eq.s32.totalorder %s24, 1
    %p273 = scmp.ne.s32.totalorder %s268, %s270
    %p274 = scmp.eq.s32.totalorder %s24, 0
    %p275 = por %p273, %p274
    %p276 = scmp.ne.s32.totalorder %s268, %s270
    %p277 = scmp.eq.s32.totalorder %s29, 1
    %p278 = por %p276, %p277
    %p279 = scmp.ne.s32.totalorder %s270, %s271
    %p280 = scmp.eq.s32.totalorder %s29, 0
    %p281 = por %p279, %p280
    %p282 = scmp.ne.s32.totalorder %s270, %s271
    %p283 = scmp.eq.s32.totalorder %s30, 1
    %p284 = por %p282, %p283
    %p286 = scmp.ne.s32.totalorder %s271, %s285
    %p287 = scmp.eq.s32.totalorder %s30, 0
    %p288 = por %p286, %p287
    %s290 = sadd.s32 %s289, 1
    %p293 = scmp.eq.s32.totalorder %s24, 1
    %p294 = scmp.ne.s32.totalorder %s289, %s291
    %p295 = scmp.eq.s32.totalorder %s24, 0
    %p296 = por %p294, %p295
    %p297 = scmp.ne.s32.totalorder %s289, %s291
    %p298 = scmp.eq.s32.totalorder %s29, 1
    %p299 = por %p297, %p298
    %p300 = scmp.ne.s32.totalorder %s291, %s292
    %p301 = scmp.eq.s32.totalorder %s29, 0
    %p302 = por %p300, %p301
    %p303 = scmp.ne.s32.totalorder %s291, %s292
    %p304 = scmp.eq.s32.totalorder %s30, 1
    %p305 = por %p303, %p304
    %p307 = scmp.ne.s32.totalorder %s292, %s306
    %p308 = scmp.eq.s32.totalorder %s30, 0
    %p309 = por %p307, %p308
    %s311 = sadd.s32 %s310, 1
    %p314 = scmp.eq.s32.totalorder %s24, 1
    %p315 = scmp.ne.s32.totalorder %s310, %s312
    %p316 = scmp.eq.s32.totalorder %s24, 0
    %p317 = por %p315, %p316
    %p318 = scmp.ne.s32.totalorder %s310, %s312
    %p319 = scmp.eq.s32.totalorder %s29, 1
    %p320 = por %p318, %p319
    %p321 = scmp.ne.s32.totalorder %s312, %s313
    %p322 = scmp.eq.s32.totalorder %s29, 0
    %p323 = por %p321, %p322
    %p324 = scmp.ne.s32.totalorder %s312, %s313
    %p325 = scmp.eq.s32.totalorder %s30, 1
    %p326 = por %p324, %p325
    %p328 = scmp.ne.s32.totalorder %s313, %s327
    %p329 = scmp.eq.s32.totalorder %s30, 0
    %p330 = por %p328, %p329
    %s332 = sadd.s32 %s331, 1
    %p335 = scmp.eq.s32.totalorder %s24, 1
    %p336 = scmp.ne.s32.totalorder %s331, %s333
    %p337 = scmp.eq.s32.totalorder %s24, 0
    %p338 = por %p336, %p337
    %p339 = scmp.ne.s32.totalorder %s331, %s333
    %p340 = scmp.eq.s32.totalorder %s29, 1
    %p341 = por %p339, %p340
    %p342 = scmp.ne.s32.totalorder %s333, %s334
    %p343 = scmp.eq.s32.totalorder %s29, 0
    %p344 = por %p342, %p343
    %p345 = scmp.ne.s32.totalorder %s333, %s334
    %p346 = scmp.eq.s32.totalorder %s30, 1
    %p347 = por %p345, %p346
    %p349 = scmp.ne.s32.totalorder %s334, %s348
    %p350 = scmp.eq.s32.totalorder %s30, 0
    %p351 = por %p349, %p350
    %s353 = sadd.s32 %s352, 1
    %p356 = scmp.eq.s32.totalorder %s24, 1
    %p357 = scmp.ne.s32.totalorder %s352, %s354
    %p358 = scmp.eq.s32.totalorder %s24, 0
    %p359 = por %p357, %p358
    %p360 = scmp.ne.s32.totalorder %s352, %s354
    %p361 = scmp.eq.s32.totalorder %s29, 1
    %p362 = por %p360, %p361
    %p363 = scmp.ne.s32.totalorder %s354, %s355
    %p364 = scmp.eq.s32.totalorder %s29, 0
    %p365 = por %p363, %p364
    %p366 = scmp.ne.s32.totalorder %s354, %s355
    %p367 = scmp.eq.s32.totalorder %s30, 1
    %p368 = por %p366, %p367
    %p370 = scmp.ne.s32.totalorder %s355, %s369
    %p371 = scmp.eq.s32.totalorder %s30, 0
    %p372 = por %p370, %p371
    %s374 = sadd.s32 %s373, 1
    %p377 = scmp.eq.s32.totalorder %s24, 1
    %p378 = scmp.ne.s32.totalorder %s373, %s375
    %p379 = scmp.eq.s32.totalorder %s24, 0
    %p380 = por %p378, %p379
    %p381 = scmp.ne.s32.totalorder %s373, %s375
    %p382 = scmp.eq.s32.totalorder %s29, 1
    %p383 = por %p381, %p382
    %p384 = scmp.ne.s32.totalorder %s375, %s376
    %p385 = scmp.eq.s32.totalorder %s29, 0
    %p386 = por %p384, %p385
    %p387 = scmp.ne.s32.totalorder %s375, %s376
    %p388 = scmp.eq.s32.totalorder %s30, 1
    %p389 = por %p387, %p388
    %p391 = scmp.ne.s32.totalorder %s376, %s390
    %p392 = scmp.eq.s32.totalorder %s30, 0
    %p393 = por %p391, %p392
    %s395 = sadd.s32 %s394, 1
    %p398 = scmp.eq.s32.totalorder %s24, 1
    %p399 = scmp.ne.s32.totalorder %s394, %s396
    %p400 = scmp.eq.s32.totalorder %s24, 0
    %p401 = por %p399, %p400
    %p402 = scmp.ne.s32.totalorder %s394, %s396
    %p403 = scmp.eq.s32.totalorder %s29, 1
    %p404 = por %p402, %p403
    %p405 = scmp.ne.s32.totalorder %s396, %s397
    %p406 = scmp.eq.s32.totalorder %s29, 0
    %p407 = por %p405, %p406
    %p408 = scmp.ne.s32.totalorder %s396, %s397
    %p409 = scmp.eq.s32.totalorder %s30, 1
    %p410 = por %p408, %p409
    %p412 = scmp.ne.s32.totalorder %s397, %s411
    %p413 = scmp.eq.s32.totalorder %s30, 0
    %p414 = por %p412, %p413
    %s415 = ssub.s32 %s24, %s31
    %p416 = scmp.eq.s32.totalorder %s415, 0
    %s418 = sadd.s32 %s417, 1
    %s419 = scalar_select %p416, %s417, %s418
    %p422 = pneg %p416
    %p423 = scmp.eq.s32.totalorder %s24, 1
    %p424 = por %p422, %p423
    %p425 = scmp.ne.s32.totalorder %s417, %s420
    %p426 = scmp.eq.s32.totalorder %s24, 0
    %p427 = por %p425, %p426
    %p428 = scmp.ne.s32.totalorder %s417, %s420
    %p429 = scmp.eq.s32.totalorder %s29, 1
    %p430 = por %p428, %p429
    %p431 = scmp.ne.s32.totalorder %s420, %s421
    %p432 = scmp.eq.s32.totalorder %s29, 0
    %p433 = por %p431, %p432
    %p434 = scmp.ne.s32.totalorder %s420, %s421
    %p435 = scmp.eq.s32.totalorder %s30, 1
    %p436 = por %p434, %p435
    %p438 = scmp.ne.s32.totalorder %s421, %s437
    %p439 = scmp.eq.s32.totalorder %s30, 0
    %p440 = por %p438, %p439
    %p441 = scmp.le.s32.totalorder 1, %s24
    %p442 = scmp.lt.s32.totalorder %s24, 3
    %p443 = pnand %p441, %p442
    %p444 = pneg %p443
    // Predicated region
    $region9: #{forward.1} parent=5 // pred_check
      _
    $region10: #{forward.1} parent=5 // pred_check_branch
      %446 = sbr.rel (%p443) target = $region12
    $region11: #{forward.1} parent=5 // pred_region
      %s447 = ssub.s32 %s24, 1
      // Predicated region
      $region13: #{forward.1} parent=11 // pred_check
        %p448 = pneg %p71
      $region14: #{forward.1} parent=11 // pred_check_branch
        %450 = sbr.rel (%p448) target = $region16
      $region15: #{forward.1} parent=11 // pred_region
        _
      $region16: #{forward.1} parent=11 // pred_fallthru
        _
      // Predicated region
      $region17: #{forward.1} parent=11 // pred_check
        %p451 = pneg %p92
      $region18: #{forward.1} parent=11 // pred_check_branch
        %453 = sbr.rel (%p451) target = $region20
      $region19: #{forward.1} parent=11 // pred_region
        _
      $region20: #{forward.1} parent=11 // pred_fallthru
        _
      // Predicated region
      $region21: #{forward.1} parent=11 // pred_check
        %p454 = pneg %p113
      $region22: #{forward.1} parent=11 // pred_check_branch
        %456 = sbr.rel (%p454) target = $region24
      $region23: #{forward.1} parent=11 // pred_region
        _
      $region24: #{forward.1} parent=11 // pred_fallthru
        _
      // Predicated region
      $region25: #{forward.1} parent=11 // pred_check
        %p457 = pneg %p134
      $region26: #{forward.1} parent=11 // pred_check_branch
        %459 = sbr.rel (%p457) target = $region28
      $region27: #{forward.1} parent=11 // pred_region
        _
      $region28: #{forward.1} parent=11 // pred_fallthru
        _
      // Predicated region
      $region29: #{forward.1} parent=11 // pred_check
        %p460 = pneg %p155
      $region30: #{forward.1} parent=11 // pred_check_branch
        %462 = sbr.rel (%p460) target = $region32
      $region31: #{forward.1} parent=11 // pred_region
        _
      $region32: #{forward.1} parent=11 // pred_fallthru
        _
      // Predicated region
      $region33: #{forward.1} parent=11 // pred_check
        %p463 = pneg %p176
      $region34: #{forward.1} parent=11 // pred_check_branch
        %465 = sbr.rel (%p463) target = $region36
      $region35: #{forward.1} parent=11 // pred_region
        _
      $region36: #{forward.1} parent=11 // pred_fallthru
        _
      // Predicated region
      $region37: #{forward.1} parent=11 // pred_check
        %p466 = pneg %p197
      $region38: #{forward.1} parent=11 // pred_check_branch
        %468 = sbr.rel (%p466) target = $region40
      $region39: #{forward.1} parent=11 // pred_region
        _
      $region40: #{forward.1} parent=11 // pred_fallthru
        _
      // Predicated region
      $region41: #{forward.1} parent=11 // pred_check
        %p469 = pneg %p218
      $region42: #{forward.1} parent=11 // pred_check_branch
        %471 = sbr.rel (%p469) target = $region44
      $region43: #{forward.1} parent=11 // pred_region
        _
      $region44: #{forward.1} parent=11 // pred_fallthru
        _
      // Predicated region
      $region45: #{forward.1} parent=11 // pred_check
        %p472 = pneg %p239
      $region46: #{forward.1} parent=11 // pred_check_branch
        %474 = sbr.rel (%p472) target = $region48
      $region47: #{forward.1} parent=11 // pred_region
        _
      $region48: #{forward.1} parent=11 // pred_fallthru
        _
      // Predicated region
      $region49: #{forward.1} parent=11 // pred_check
        %p475 = pneg %p260
      $region50: #{forward.1} parent=11 // pred_check_branch
        %477 = sbr.rel (%p475) target = $region52
      $region51: #{forward.1} parent=11 // pred_region
        _
      $region52: #{forward.1} parent=11 // pred_fallthru
        _
      // Predicated region
      $region53: #{forward.1} parent=11 // pred_check
        %p478 = pneg %p281
      $region54: #{forward.1} parent=11 // pred_check_branch
        %480 = sbr.rel (%p478) target = $region56
      $region55: #{forward.1} parent=11 // pred_region
        _
      $region56: #{forward.1} parent=11 // pred_fallthru
        _
      // Predicated region
      $region57: #{forward.1} parent=11 // pred_check
        %p481 = pneg %p302
      $region58: #{forward.1} parent=11 // pred_check_branch
        %483 = sbr.rel (%p481) target = $region60
      $region59: #{forward.1} parent=11 // pred_region
        _
      $region60: #{forward.1} parent=11 // pred_fallthru
        _
      // Predicated region
      $region61: #{forward.1} parent=11 // pred_check
        %p484 = pneg %p323
      $region62: #{forward.1} parent=11 // pred_check_branch
        %486 = sbr.rel (%p484) target = $region64
      $region63: #{forward.1} parent=11 // pred_region
        _
      $region64: #{forward.1} parent=11 // pred_fallthru
        _
      // Predicated region
      $region65: #{forward.1} parent=11 // pred_check
        %p487 = pneg %p344
      $region66: #{forward.1} parent=11 // pred_check_branch
        %489 = sbr.rel (%p487) target = $region68
      $region67: #{forward.1} parent=11 // pred_region
        _
      $region68: #{forward.1} parent=11 // pred_fallthru
        _
      // Predicated region
      $region69: #{forward.1} parent=11 // pred_check
        %p490 = pneg %p365
      $region70: #{forward.1} parent=11 // pred_check_branch
        %492 = sbr.rel (%p490) target = $region72
      $region71: #{forward.1} parent=11 // pred_region
        _
      $region72: #{forward.1} parent=11 // pred_fallthru
        _
      // Predicated region
      $region73: #{forward.1} parent=11 // pred_check
        %p493 = pneg %p386
      $region74: #{forward.1} parent=11 // pred_check_branch
        %495 = sbr.rel (%p493) target = $region76
      $region75: #{forward.1} parent=11 // pred_region
        _
      $region76: #{forward.1} parent=11 // pred_fallthru
        _
      // Predicated region
      $region77: #{forward.1} parent=11 // pred_check
        %p496 = pneg %p407
      $region78: #{forward.1} parent=11 // pred_check_branch
        %498 = sbr.rel (%p496) target = $region80
      $region79: #{forward.1} parent=11 // pred_region
        _
      $region80: #{forward.1} parent=11 // pred_fallthru
        _
    $region12: #{forward.1} parent=5 // pred_fallthru
      _
    %p499 = scmp.lt.s32.totalorder %s24, 2
    // Predicated region
    $region81: #{forward.1} parent=5 // pred_check
      %p500 = pneg %p499
    $region82: #{forward.1} parent=5 // pred_check_branch
      %502 = sbr.rel (%p500) target = $region84
    $region83: #{forward.1} parent=5 // pred_region
      // Predicated region
      $region85: #{forward.1} parent=83 // pred_check
        %p503 = pneg %p44
      $region86: #{forward.1} parent=83 // pred_check_branch
        %505 = sbr.rel (%p503) target = $region88
      $region87: #{forward.1} parent=83 // pred_region
        %p506 = scmp.lt.s32.totalorder %s24, 1
        %s507 = scalar_select %p506, %s24, 1
        %s508 = smul.addr %s507, 3
        %s509 = smul.addr %s508, 4
        %s510 = scalar_lea.vmem %s0, %s509
      $region88: #{forward.1} parent=83 // pred_fallthru
        _
    $region84: #{forward.1} parent=5 // pred_fallthru
      _
    %p511 = scmp.le.s32.totalorder 1, %s24
    %p512 = scmp.lt.s32.totalorder %s24, 3
    %p513 = pnand %p511, %p512
    %p514 = pneg %p513
    // Predicated region
    $region89: #{forward.1} parent=5 // pred_check
      _
    $region90: #{forward.1} parent=5 // pred_check_branch
      %516 = sbr.rel (%p513) target = $region92
    $region91: #{forward.1} parent=5 // pred_region
      %s517 = ssub.s32 %s24, 1
      %p518 = scmp.lt.s32.totalorder %s29, 1
      %s519 = scalar_select %p518, %s29, 1
      %s520 = smul.addr %s519, 3
      %s521 = smul.addr %s520, 4
      %s522 = scalar_lea.vmem %s0, %s521
      %p523 = pneg %p50
      %p524 = pneg %p47
      %p525 = pneg %p71
      %p526 = pneg %p68
      %p527 = pneg %p92
      %p528 = pneg %p89
      %p529 = pneg %p113
      %p530 = pneg %p110
      %p531 = pneg %p134
      %p532 = pneg %p131
      %p533 = pneg %p155
      %p534 = pneg %p152
      %p535 = pneg %p176
      %p536 = pneg %p173
      %p537 = pneg %p197
      %p538 = pneg %p194
      %p539 = pneg %p218
      %p540 = pneg %p215
      %p541 = pneg %p239
      %p542 = pneg %p236
      %p543 = pneg %p260
      %p544 = pneg %p257
      %p545 = pneg %p281
      %p546 = pneg %p278
      %p547 = pneg %p302
      %p548 = pneg %p299
      %p549 = pneg %p323
      %p550 = pneg %p320
      %p551 = pneg %p344
      %p552 = pneg %p341
      %p553 = pneg %p365
      %p554 = pneg %p362
      %p555 = pneg %p386
      %p556 = pneg %p383
      %p557 = pneg %p407
      %p558 = pneg %p404
      %p559 = pneg %p433
      %p560 = pneg %p430
      %p561 = scmp.lt.s32.totalorder %s29, 1
      %s562 = scalar_select %p561, %s29, 1
      %s563 = smul.addr %s562, 3
      %s564 = smul.addr %s563, 4
      %s565 = scalar_lea.vmem %s18, %s564
      %p566 = scmp.lt.s32.totalorder %s29, 1
      %s567 = scalar_select %p566, %s29, 1
      %s568 = smul.addr %s567, 3
      %s569 = smul.addr %s568, 4
      %s570 = scalar_lea.vmem %s0, %s569
      %p571 = scmp.lt.s32.totalorder %s29, 1
      %s572 = scalar_select %p571, %s29, 1
      %s573 = smul.addr %s572, 3
      %s574 = smul.addr %s573, 4
      %s575 = scalar_lea.vmem %s18, %s574
      %vm576 = vcmask 818176
      %577 = vst.msk [vmem:[#allocation2] sm:$0xff] %vm576, 0.0
      %578 = vst.msk [vmem:[#allocation2 + $0x8] sm:$0xff] %vm576, 0.0
      %vm579 = vcmask 293888
      %580 = vst.msk [vmem:[#allocation3] sm:$0xff] %vm579, 0.0
      %581 = vst.msk [vmem:[#allocation3 + $0x8] sm:$0xff] %vm579, 0.0
      %582 = vst.msk [vmem:[#allocation3 + $0x10] sm:$0xff] %vm579, 0.0
      %583 = vst.msk [vmem:[#allocation3 + $0x18] sm:$0xff] %vm579, 0.0
      %584 = vst.msk [vmem:[#allocation4] sm:$0xff] %vm579, 0.0
      %585 = vst.msk [vmem:[#allocation4 + $0x8] sm:$0xff] %vm579, 0.0
      %586 = vst.msk [vmem:[#allocation4 + $0x10] sm:$0xff] %vm579, 0.0
      %587 = vst.msk [vmem:[#allocation4 + $0x18] sm:$0xff] %vm579, 0.0
      %588 = vst.msk [vmem:[#allocation4 + $0x20] sm:$0xff] %vm579, 0.0
      %589 = vst.msk [vmem:[#allocation4 + $0x28] sm:$0xff] %vm579, 0.0
      %590 = vst.msk [vmem:[#allocation4 + $0x30] sm:$0xff] %vm579, 0.0
      %591 = vst.msk [vmem:[#allocation4 + $0x38] sm:$0xff] %vm579, 0.0
      %592 = vst.msk [vmem:[#allocation5] sm:$0xff] %vm576, 0.0
      %593 = vst.msk [vmem:[#allocation5 + $0x8] sm:$0xff] %vm576, 0.0
      %594 = vst.msk [vmem:[#allocation5 + $0x10] sm:$0xff] %vm576, 0.0
      %595 = vst.msk [vmem:[#allocation5 + $0x18] sm:$0xff] %vm576, 0.0
      %596 = vst [vmem:[#allocation6] sm:$0xff] 0.0
      %597 = vst [vmem:[#allocation6 + $0x8] sm:$0xff] 0.0
      %vm598 = vcmask 572416
      %599 = vst.msk [vmem:[#allocation6 + $0x10] sm:$0xff] %vm598, 0.0
      %600 = vst [vmem:[#allocation6 + $0x18] sm:$0xff] 0.0
      %601 = vst [vmem:[#allocation6 + $0x20] sm:$0xff] 0.0
      %602 = vst.msk [vmem:[#allocation6 + $0x28] sm:$0xff] %vm598, 0.0
      %v603 = vld [vmem:[%s570] sm:$0x77]
      %v604 = vld [vmem:[%s570 + $0x8] sm:$0x7]
      %v605 = vld [vmem:[%s1] sm:$0xff]
      %v606 = vld [vmem:[%s1 + $0x8] sm:$0xff]
      %s607 = scalar_lea.vmem %s1, 16
      %v608 = vld [vmem:[%s607] sm:$0xff]
      %v609 = vld [vmem:[%s607 + $0x8] sm:$0xff]
      %612 = vst [vmem:[#allocation1] ss:$2 sm:$0xff] %v603
      %s613 = scalar_lea.vmem [#allocation1], 16
      %614 = vst [vmem:[%s613] ss:$2 sm:$0xff] %v604
      %v615 = vld.sshfl [vmem:[#allocation1] sm:$0xff pattern:$0x75316420]
      %v616 = vld.sshfl [vmem:[#allocation1 + $0x8] sm:$0xff pattern:$0x75316420]
      %v617 = vld.sshfl [vmem:[#allocation1 + $0x10] sm:$0xff pattern:$0x75316420]
      %618 = vrot.lane.b32.xlu0 %v615, 127
      %v619 = vpop.permute.xlu0 %618
      %620 = vrot.lane.b32.xlu0 %v616, 127
      %v621 = vpop.permute.xlu0 %620
      %622 = vrot.lane.b32.xlu0 %v617, 127
      %v623 = vpop.permute.xlu0 %622
      %vm624 = vcmask 1039360
      %v625 = vsel %vm624, %v619, %v621
      %v626 = vsel %vm624, %v621, %v623
      %vm627 = vcmask 23552
      %v629 = vsel %vm627, %v608, 0
      %v632 = vsel %vm627, %v609, 0
      %vm634 = vcmask 1042432
      %v635 = vsel %vm634, %v625, 0
      %v637 = vsel %vm634, %v626, 0
      %v639 = vsel %vm634, %v623, 0
      %641 = vmatpush.msra.mxu0 0.0
      %642 = vmatpush.msra.mxu0 0.0
      %643 = vmatpush.msra.mxu0 0.0
      %644 = vmatpush.msra.mxu0 0.0
      %645 = vmatpush.msra.mxu0 0.0
      %646 = vmatpush.msra.mxu0 0.0
      %647 = vmatpush.msra.mxu0 0.0
      %648 = vmatpush.msra.mxu0 0.0
      %649 = vmatpush.msra.mxu0 0.0
      %650 = vmatpush.msra.mxu0 0.0
      %651 = vmatpush.msra.mxu0 0.0
      %652 = vmatpush.msra.mxu0 0.0
      %653 = vmatpush.msra.mxu0 0.0
      %654 = vmatpush.msra.mxu0 0.0
      %655 = vmatpush.msra.mxu0 0.0
      %656 = vmatpush.msra.mxu0 %v635
      %657 = vmatmul.f32.gmra.mxu0 %v629
      %v658 = vpop.f32.mrf.mxu0
      %v659 = vadd.f32 0.0, %v658
      %660 = vmatmul.f32.gmra.mxu0 %v632
      %v661 = vpop.f32.mrf.mxu0
      %v662 = vadd.f32 0.0, %v661
      %663 = vdwg.mxu0
      %664 = vmatpush.msra.mxu0 0.0
      %665 = vmatpush.msra.mxu0 0.0
      %666 = vmatpush.msra.mxu0 0.0
      %667 = vmatpush.msra.mxu0 0.0
      %668 = vmatpush.msra.mxu0 0.0
      %669 = vmatpush.msra.mxu0 0.0
      %670 = vmatpush.msra.mxu0 0.0
      %671 = vmatpush.msra.mxu0 0.0
      %672 = vmatpush.msra.mxu0 0.0
      %673 = vmatpush.msra.mxu0 0.0
      %674 = vmatpush.msra.mxu0 0.0
      %675 = vmatpush.msra.mxu0 0.0
      %676 = vmatpush.msra.mxu0 0.0
      %677 = vmatpush.msra.mxu0 0.0
      %678 = vmatpush.msra.mxu0 0.0
      %679 = vmatpush.msra.mxu0 %v637
      %680 = vmatmul.f32.gmra.mxu0 %v629
      %v681 = vpop.f32.mrf.mxu0
      %v682 = vadd.f32 0.0, %v681
      %683 = vmatmul.f32.gmra.mxu0 %v632
      %v684 = vpop.f32.mrf.mxu0
      %v685 = vadd.f32 0.0, %v684
      %686 = vdwg.mxu0
      %687 = vmatpush.msra.mxu0 0.0
      %688 = vmatpush.msra.mxu0 0.0
      %689 = vmatpush.msra.mxu0 0.0
      %690 = vmatpush.msra.mxu0 0.0
      %691 = vmatpush.msra.mxu0 0.0
      %692 = vmatpush.msra.mxu0 0.0
      %693 = vmatpush.msra.mxu0 0.0
      %694 = vmatpush.msra.mxu0 0.0
      %695 = vmatpush.msra.mxu0 0.0
      %696 = vmatpush.msra.mxu0 0.0
      %697 = vmatpush.msra.mxu0 0.0
      %698 = vmatpush.msra.mxu0 0.0
      %699 = vmatpush.msra.mxu0 0.0
      %700 = vmatpush.msra.mxu0 0.0
      %701 = vmatpush.msra.mxu0 0.0
      %702 = vmatpush.msra.mxu0 %v639
      %703 = vmatmul.f32.gmra.mxu0 %v629
      %v704 = vpop.f32.mrf.mxu0
      %v705 = vadd.f32 0.0, %v704
      %706 = vmatmul.f32.gmra.mxu0 %v632
      %v707 = vpop.f32.mrf.mxu0
      %v708 = vadd.f32 0.0, %v707
      %709 = vdwg.mxu0
      %710 = vst [vmem:[#allocation1] ss:$2 sm:$0xff] %v603
      %s711 = scalar_lea.vmem [#allocation1], 16
      %712 = vst [vmem:[%s711] ss:$2 sm:$0xff] %v604
      %v713 = vld.sshfl [vmem:[#allocation1] sm:$0xff pattern:$0x75316420]
      %v714 = vld.sshfl [vmem:[#allocation1 + $0x8] sm:$0xff pattern:$0x75316420]
      %v715 = vld.sshfl [vmem:[#allocation1 + $0x10] sm:$0xff pattern:$0x75316420]
      %v717 = vsel %vm627, %v605, 0
      %v720 = vsel %vm627, %v606, 0
      %v722 = vsel %vm634, %v713, 0
      %v724 = vsel %vm634, %v714, 0
      %v726 = vsel %vm634, %v715, 0
      %728 = vmatpush.msra.mxu0 0.0
      %729 = vmatpush.msra.mxu0 0.0
      %730 = vmatpush.msra.mxu0 0.0
      %731 = vmatpush.msra.mxu0 0.0
      %732 = vmatpush.msra.mxu0 0.0
      %733 = vmatpush.msra.mxu0 0.0
      %734 = vmatpush.msra.mxu0 0.0
      %735 = vmatpush.msra.mxu0 0.0
      %736 = vmatpush.msra.mxu0 0.0
      %737 = vmatpush.msra.mxu0 0.0
      %738 = vmatpush.msra.mxu0 0.0
      %739 = vmatpush.msra.mxu0 0.0
      %740 = vmatpush.msra.mxu0 0.0
      %741 = vmatpush.msra.mxu0 0.0
      %742 = vmatpush.msra.mxu0 0.0
      %743 = vmatpush.msra.mxu0 %v722
      %744 = vmatmul.f32.gmra.mxu0 %v717
      %v745 = vpop.f32.mrf.mxu0
      %v746 = vadd.f32 %v659, %v745
      %747 = vmatmul.f32.gmra.mxu0 %v720
      %v748 = vpop.f32.mrf.mxu0
      %v749 = vadd.f32 %v662, %v748
      %750 = vdwg.mxu0
      %751 = vmatpush.msra.mxu0 0.0
      %752 = vmatpush.msra.mxu0 0.0
      %753 = vmatpush.msra.mxu0 0.0
      %754 = vmatpush.msra.mxu0 0.0
      %755 = vmatpush.msra.mxu0 0.0
      %756 = vmatpush.msra.mxu0 0.0
      %757 = vmatpush.msra.mxu0 0.0
      %758 = vmatpush.msra.mxu0 0.0
      %759 = vmatpush.msra.mxu0 0.0
      %760 = vmatpush.msra.mxu0 0.0
      %761 = vmatpush.msra.mxu0 0.0
      %762 = vmatpush.msra.mxu0 0.0
      %763 = vmatpush.msra.mxu0 0.0
      %764 = vmatpush.msra.mxu0 0.0
      %765 = vmatpush.msra.mxu0 0.0
      %766 = vmatpush.msra.mxu0 %v724
      %767 = vmatmul.f32.gmra.mxu0 %v717
      %v768 = vpop.f32.mrf.mxu0
      %v769 = vadd.f32 %v682, %v768
      %770 = vmatmul.f32.gmra.mxu0 %v720
      %v771 = vpop.f32.mrf.mxu0
      %v772 = vadd.f32 %v685, %v771
      %773 = vdwg.mxu0
      %774 = vmatpush.msra.mxu0 0.0
      %775 = vmatpush.msra.mxu0 0.0
      %776 = vmatpush.msra.mxu0 0.0
      %777 = vmatpush.msra.mxu0 0.0
      %778 = vmatpush.msra.mxu0 0.0
      %779 = vmatpush.msra.mxu0 0.0
      %780 = vmatpush.msra.mxu0 0.0
      %781 = vmatpush.msra.mxu0 0.0
      %782 = vmatpush.msra.mxu0 0.0
      %783 = vmatpush.msra.mxu0 0.0
      %784 = vmatpush.msra.mxu0 0.0
      %785 = vmatpush.msra.mxu0 0.0
      %786 = vmatpush.msra.mxu0 0.0
      %787 = vmatpush.msra.mxu0 0.0
      %788 = vmatpush.msra.mxu0 0.0
      %789 = vmatpush.msra.mxu0 %v726
      %790 = vmatmul.f32.gmra.mxu0 %v717
      %v791 = vpop.f32.mrf.mxu0
      %v792 = vadd.f32 %v705, %v791
      %793 = vmatmul.f32.gmra.mxu0 %v720
      %v794 = vpop.f32.mrf.mxu0
      %v795 = vadd.f32 %v708, %v794
      %796 = vdwg.mxu0
      %s797 = scalar_lea.vmem %s1, 32
      %v798 = vld [vmem:[%s797] sm:$0xff]
      %v799 = vld [vmem:[%s797 + $0x8] sm:$0xff]
      %800 = vst [vmem:[#allocation1] ss:$2 sm:$0xff] %v603
      %s801 = scalar_lea.vmem [#allocation1], 16
      %802 = vst [vmem:[%s801] ss:$2 sm:$0xff] %v604
      %v803 = vld.sshfl [vmem:[#allocation1] sm:$0xff pattern:$0x75316420]
      %v804 = vld.sshfl [vmem:[#allocation1 + $0x8] sm:$0xff pattern:$0x75316420]
      %v805 = vld.sshfl [vmem:[#allocation1 + $0x10] sm:$0xff pattern:$0x75316420]
      %806 = vrot.lane.b32.xlu0 %v803, 126
      %v807 = vpop.permute.xlu0 %806
      %808 = vrot.lane.b32.xlu0 %v804, 126
      %v809 = vpop.permute.xlu0 %808
      %810 = vrot.lane.b32.xlu0 %v805, 126
      %v811 = vpop.permute.xlu0 %810
      %vm812 = vcmask 1031168
      %v813 = vsel %vm812, %v807, %v809
      %v814 = vsel %vm812, %v809, %v811
      %v816 = vsel %vm627, %v798, 0
      %v819 = vsel %vm627, %v799, 0
      %v821 = vsel %vm634, %v813, 0
      %v823 = vsel %vm634, %v814, 0
      %v825 = vsel %vm634, %v811, 0
      %827 = vmatpush.msra.mxu0 0.0
      %828 = vmatpush.msra.mxu0 0.0
      %829 = vmatpush.msra.mxu0 0.0
      %830 = vmatpush.msra.mxu0 0.0
      %831 = vmatpush.msra.mxu0 0.0
      %832 = vmatpush.msra.mxu0 0.0
      %833 = vmatpush.msra.mxu0 0.0
      %834 = vmatpush.msra.mxu0 0.0
      %835 = vmatpush.msra.mxu0 0.0
      %836 = vmatpush.msra.mxu0 0.0
      %837 = vmatpush.msra.mxu0 0.0
      %838 = vmatpush.msra.mxu0 0.0
      %839 = vmatpush.msra.mxu0 0.0
      %840 = vmatpush.msra.mxu0 0.0
      %841 = vmatpush.msra.mxu0 0.0
      %842 = vmatpush.msra.mxu0 %v821
      %843 = vmatmul.f32.gmra.mxu0 %v816
      %v844 = vpop.f32.mrf.mxu0
      %v845 = vadd.f32 0.0, %v844
      %846 = vmatmul.f32.gmra.mxu0 %v819
      %v847 = vpop.f32.mrf.mxu0
      %v848 = vadd.f32 0.0, %v847
      %849 = vdwg.mxu0
      %850 = vmatpush.msra.mxu0 0.0
      %851 = vmatpush.msra.mxu0 0.0
      %852 = vmatpush.msra.mxu0 0.0
      %853 = vmatpush.msra.mxu0 0.0
      %854 = vmatpush.msra.mxu0 0.0
      %855 = vmatpush.msra.mxu0 0.0
      %856 = vmatpush.msra.mxu0 0.0
      %857 = vmatpush.msra.mxu0 0.0
      %858 = vmatpush.msra.mxu0 0.0
      %859 = vmatpush.msra.mxu0 0.0
      %860 = vmatpush.msra.mxu0 0.0
      %861 = vmatpush.msra.mxu0 0.0
      %862 = vmatpush.msra.mxu0 0.0
      %863 = vmatpush.msra.mxu0 0.0
      %864 = vmatpush.msra.mxu0 0.0
      %865 = vmatpush.msra.mxu0 %v823
      %866 = vmatmul.f32.gmra.mxu0 %v816
      %v867 = vpop.f32.mrf.mxu0
      %v868 = vadd.f32 0.0, %v867
      %869 = vmatmul.f32.gmra.mxu0 %v819
      %v870 = vpop.f32.mrf.mxu0
      %v871 = vadd.f32 0.0, %v870
      %872 = vdwg.mxu0
      %873 = vmatpush.msra.mxu0 0.0
      %874 = vmatpush.msra.mxu0 0.0
      %875 = vmatpush.msra.mxu0 0.0
      %876 = vmatpush.msra.mxu0 0.0
      %877 = vmatpush.msra.mxu0 0.0
      %878 = vmatpush.msra.mxu0 0.0
      %879 = vmatpush.msra.mxu0 0.0
      %880 = vmatpush.msra.mxu0 0.0
      %881 = vmatpush.msra.mxu0 0.0
      %882 = vmatpush.msra.mxu0 0.0
      %883 = vmatpush.msra.mxu0 0.0
      %884 = vmatpush.msra.mxu0 0.0
      %885 = vmatpush.msra.mxu0 0.0
      %886 = vmatpush.msra.mxu0 0.0
      %887 = vmatpush.msra.mxu0 0.0
      %888 = vmatpush.msra.mxu0 %v825
      %889 = vmatmul.f32.gmra.mxu0 %v816
      %v890 = vpop.f32.mrf.mxu0
      %v891 = vadd.f32 0.0, %v890
      %892 = vmatmul.f32.gmra.mxu0 %v819
      %v893 = vpop.f32.mrf.mxu0
      %v894 = vadd.f32 0.0, %v893
      %895 = vdwg.mxu0
      %v896 = vadd.f32 %v746, %v845
      %v897 = vadd.f32 %v769, %v868
      %v898 = vadd.f32 %v792, %v891
      %v899 = vadd.f32 %v749, %v848
      %v900 = vadd.f32 %v772, %v871
      %v901 = vadd.f32 %v795, %v894
      %s902 = scalar_lea.vmem %s1, 48
      %v903 = vld [vmem:[%s902] sm:$0xff]
      %v904 = vld [vmem:[%s902 + $0x8] sm:$0xff]
      %905 = vst [vmem:[#allocation1] ss:$2 sm:$0xff] %v603
      %s906 = scalar_lea.vmem [#allocation1], 16
      %907 = vst [vmem:[%s906] ss:$2 sm:$0xff] %v604
      %v908 = vld.sshfl [vmem:[#allocation1] sm:$0xff pattern:$0x75316420]
      %v909 = vld.sshfl [vmem:[#allocation1 + $0x8] sm:$0xff pattern:$0x75316420]
      %v910 = vld.sshfl [vmem:[#allocation1 + $0x10] sm:$0xff pattern:$0x75316420]
      %911 = vrot.lane.b32.xlu0 %v908, 110
      %v912 = vpop.permute.xlu0 %911
      %913 = vrot.lane.b32.xlu0 %v909, 110
      %v914 = vpop.permute.xlu0 %913
      %915 = vrot.lane.b32.xlu0 %v910, 110
      %v916 = vpop.permute.xlu0 %915
      %vm917 = vcmask 900096
      %v918 = vsel %vm917, %v912, %v914
      %v919 = vsel %vm917, %v914, %v916
      %v921 = vsel %vm627, %v903, 0
      %v924 = vsel %vm627, %v904, 0
      %v926 = vsel %vm634, %v918, 0
      %v928 = vsel %vm634, %v919, 0
      %v930 = vsel %vm634, %v916, 0
      %932 = vmatpush.msra.mxu0 0.0
      %933 = vmatpush.msra.mxu0 0.0
      %934 = vmatpush.msra.mxu0 0.0
      %935 = vmatpush.msra.mxu0 0.0
      %936 = vmatpush.msra.mxu0 0.0
      %937 = vmatpush.msra.mxu0 0.0
      %938 = vmatpush.msra.mxu0 0.0
      %939 = vmatpush.msra.mxu0 0.0
      %940 = vmatpush.msra.mxu0 0.0
      %941 = vmatpush.msra.mxu0 0.0
      %942 = vmatpush.msra.mxu0 0.0
      %943 = vmatpush.msra.mxu0 0.0
      %944 = vmatpush.msra.mxu0 0.0
      %945 = vmatpush.msra.mxu0 0.0
      %946 = vmatpush.msra.mxu0 0.0
      %947 = vmatpush.msra.mxu0 %v926
      %948 = vmatmul.f32.gmra.mxu0 %v921
      %v949 = vpop.f32.mrf.mxu0
      %v950 = vadd.f32 0.0, %v949
      %951 = vmatmul.f32.gmra.mxu0 %v924
      %v952 = vpop.f32.mrf.mxu0
      %v953 = vadd.f32 0.0, %v952
      %954 = vdwg.mxu0
      %955 = vmatpush.msra.mxu0 0.0
      %956 = vmatpush.msra.mxu0 0.0
      %957 = vmatpush.msra.mxu0 0.0
      %958 = vmatpush.msra.mxu0 0.0
      %959 = vmatpush.msra.mxu0 0.0
      %960 = vmatpush.msra.mxu0 0.0
      %961 = vmatpush.msra.mxu0 0.0
      %962 = vmatpush.msra.mxu0 0.0
      %963 = vmatpush.msra.mxu0 0.0
      %964 = vmatpush.msra.mxu0 0.0
      %965 = vmatpush.msra.mxu0 0.0
      %966 = vmatpush.msra.mxu0 0.0
      %967 = vmatpush.msra.mxu0 0.0
      %968 = vmatpush.msra.mxu0 0.0
      %969 = vmatpush.msra.mxu0 0.0
      %970 = vmatpush.msra.mxu0 %v928
      %971 = vmatmul.f32.gmra.mxu0 %v921
      %v972 = vpop.f32.mrf.mxu0
      %v973 = vadd.f32 0.0, %v972
      %974 = vmatmul.f32.gmra.mxu0 %v924
      %v975 = vpop.f32.mrf.mxu0
      %v976 = vadd.f32 0.0, %v975
      %977 = vdwg.mxu0
      %978 = vmatpush.msra.mxu0 0.0
      %979 = vmatpush.msra.mxu0 0.0
      %980 = vmatpush.msra.mxu0 0.0
      %981 = vmatpush.msra.mxu0 0.0
      %982 = vmatpush.msra.mxu0 0.0
      %983 = vmatpush.msra.mxu0 0.0
      %984 = vmatpush.msra.mxu0 0.0
      %985 = vmatpush.msra.mxu0 0.0
      %986 = vmatpush.msra.mxu0 0.0
      %987 = vmatpush.msra.mxu0 0.0
      %988 = vmatpush.msra.mxu0 0.0
      %989 = vmatpush.msra.mxu0 0.0
      %990 = vmatpush.msra.mxu0 0.0
      %991 = vmatpush.msra.mxu0 0.0
      %992 = vmatpush.msra.mxu0 0.0
      %993 = vmatpush.msra.mxu0 %v930
      %994 = vmatmul.f32.gmra.mxu0 %v921
      %v995 = vpop.f32.mrf.mxu0
      %v996 = vadd.f32 0.0, %v995
      %997 = vmatmul.f32.gmra.mxu0 %v924
      %v998 = vpop.f32.mrf.mxu0
      %v999 = vadd.f32 0.0, %v998
      %1000 = vdwg.mxu0
      %v1001 = vadd.f32 %v896, %v950
      %v1002 = vadd.f32 %v897, %v973
      %v1003 = vadd.f32 %v898, %v996
      %v1004 = vadd.f32 %v899, %v953
      %v1005 = vadd.f32 %v900, %v976
      %v1006 = vadd.f32 %v901, %v999
      %s1007 = scalar_lea.vmem %s1, 64
      %v1008 = vld [vmem:[%s1007] sm:$0xff]
      %v1009 = vld [vmem:[%s1007 + $0x8] sm:$0xff]
      %1010 = vst [vmem:[#allocation1] ss:$2 sm:$0xff] %v603
      %s1011 = scalar_lea.vmem [#allocation1], 16
      %1012 = vst [vmem:[%s1011] ss:$2 sm:$0xff] %v604
      %v1013 = vld.sshfl [vmem:[#allocation1] sm:$0xff pattern:$0x75316420]
      %v1014 = vld.sshfl [vmem:[#allocation1 + $0x8] sm:$0xff pattern:$0x75316420]
      %v1015 = vld.sshfl [vmem:[#allocation1 + $0x10] sm:$0xff pattern:$0x75316420]
      %1016 = vrot.lane.b32.xlu0 %v1013, 109
      %v1017 = vpop.permute.xlu0 %1016
      %1018 = vrot.lane.b32.xlu0 %v1014, 109
      %v1019 = vpop.permute.xlu0 %1018
      %1020 = vrot.lane.b32.xlu0 %v1015, 109
      %v1021 = vpop.permute.xlu0 %1020
      %vm1022 = vcmask 891904
      %v1023 = vsel %vm1022, %v1017, %v1019
      %v1024 = vsel %vm1022, %v1019, %v1021
      %v1026 = vsel %vm627, %v1008, 0
      %v1029 = vsel %vm627, %v1009, 0
      %v1031 = vsel %vm634, %v1023, 0
      %v1033 = vsel %vm634, %v1024, 0
      %v1035 = vsel %vm634, %v1021, 0
      %1037 = vmatpush.msra.mxu0 0.0
      %1038 = vmatpush.msra.mxu0 0.0
      %1039 = vmatpush.msra.mxu0 0.0
      %1040 = vmatpush.msra.mxu0 0.0
      %1041 = vmatpush.msra.mxu0 0.0
      %1042 = vmatpush.msra.mxu0 0.0
      %1043 = vmatpush.msra.mxu0 0.0
      %1044 = vmatpush.msra.mxu0 0.0
      %1045 = vmatpush.msra.mxu0 0.0
      %1046 = vmatpush.msra.mxu0 0.0
      %1047 = vmatpush.msra.mxu0 0.0
      %1048 = vmatpush.msra.mxu0 0.0
      %1049 = vmatpush.msra.mxu0 0.0
      %1050 = vmatpush.msra.mxu0 0.0
      %1051 = vmatpush.msra.mxu0 0.0
      %1052 = vmatpush.msra.mxu0 %v1031
      %1053 = vmatmul.f32.gmra.mxu0 %v1026
      %v1054 = vpop.f32.mrf.mxu0
      %v1055 = vadd.f32 0.0, %v1054
      %1056 = vmatmul.f32.gmra.mxu0 %v1029
      %v1057 = vpop.f32.mrf.mxu0
      %v1058 = vadd.f32 0.0, %v1057
      %1059 = vdwg.mxu0
      %1060 = vmatpush.msra.mxu0 0.0
      %1061 = vmatpush.msra.mxu0 0.0
      %1062 = vmatpush.msra.mxu0 0.0
      %1063 = vmatpush.msra.mxu0 0.0
      %1064 = vmatpush.msra.mxu0 0.0
      %1065 = vmatpush.msra.mxu0 0.0
      %1066 = vmatpush.msra.mxu0 0.0
      %1067 = vmatpush.msra.mxu0 0.0
      %1068 = vmatpush.msra.mxu0 0.0
      %1069 = vmatpush.msra.mxu0 0.0
      %1070 = vmatpush.msra.mxu0 0.0
      %1071 = vmatpush.msra.mxu0 0.0
      %1072 = vmatpush.msra.mxu0 0.0
      %1073 = vmatpush.msra.mxu0 0.0
      %1074 = vmatpush.msra.mxu0 0.0
      %1075 = vmatpush.msra.mxu0 %v1033
      %1076 = vmatmul.f32.gmra.mxu0 %v1026
      %v1077 = vpop.f32.mrf.mxu0
      %v1078 = vadd.f32 0.0, %v1077
      %1079 = vmatmul.f32.gmra.mxu0 %v1029
      %v1080 = vpop.f32.mrf.mxu0
      %v1081 = vadd.f32 0.0, %v1080
      %1082 = vdwg.mxu0
      %1083 = vmatpush.msra.mxu0 0.0
      %1084 = vmatpush.msra.mxu0 0.0
      %1085 = vmatpush.msra.mxu0 0.0
      %1086 = vmatpush.msra.mxu0 0.0
      %1087 = vmatpush.msra.mxu0 0.0
      %1088 = vmatpush.msra.mxu0 0.0
      %1089 = vmatpush.msra.mxu0 0.0
      %1090 = vmatpush.msra.mxu0 0.0
      %1091 = vmatpush.msra.mxu0 0.0
      %1092 = vmatpush.msra.mxu0 0.0
      %1093 = vmatpush.msra.mxu0 0.0
      %1094 = vmatpush.msra.mxu0 0.0
      %1095 = vmatpush.msra.mxu0 0.0
      %1096 = vmatpush.msra.mxu0 0.0
      %1097 = vmatpush.msra.mxu0 0.0
      %1098 = vmatpush.msra.mxu0 %v1035
      %1099 = vmatmul.f32.gmra.mxu0 %v1026
      %v1100 = vpop.f32.mrf.mxu0
      %v1101 = vadd.f32 0.0, %v1100
      %1102 = vmatmul.f32.gmra.mxu0 %v1029
      %v1103 = vpop.f32.mrf.mxu0
      %v1104 = vadd.f32 0.0, %v1103
      %1105 = vdwg.mxu0
      %v1106 = vadd.f32 %v1001, %v1055
      %v1107 = vadd.f32 %v1002, %v1078
      %v1108 = vadd.f32 %v1003, %v1101
      %v1109 = vadd.f32 %v1004, %v1058
      %v1110 = vadd.f32 %v1005, %v1081
      %v1111 = vadd.f32 %v1006, %v1104
      %s1112 = scalar_lea.vmem %s1, 80
      %v1113 = vld [vmem:[%s1112] sm:$0xff]
      %v1114 = vld [vmem:[%s1112 + $0x8] sm:$0xff]
      %1115 = vst [vmem:[#allocation1] ss:$2 sm:$0xff] %v603
      %s1116 = scalar_lea.vmem [#allocation1], 16
      %1117 = vst [vmem:[%s1116] ss:$2 sm:$0xff] %v604
      %v1118 = vld.sshfl [vmem:[#allocation1] sm:$0xff pattern:$0x75316420]
      %v1119 = vld.sshfl [vmem:[#allocation1 + $0x8] sm:$0xff pattern:$0x75316420]
      %v1120 = vld.sshfl [vmem:[#allocation1 + $0x10] sm:$0xff pattern:$0x75316420]
      %1121 = vrot.lane.b32.xlu0 %v1118, 108
      %v1122 = vpop.permute.xlu0 %1121
      %1123 = vrot.lane.b32.xlu0 %v1119, 108
      %v1124 = vpop.permute.xlu0 %1123
      %1125 = vrot.lane.b32.xlu0 %v1120, 108
      %v1126 = vpop.permute.xlu0 %1125
      %vm1127 = vcmask 883712
      %v1128 = vsel %vm1127, %v1122, %v1124
      %v1129 = vsel %vm1127, %v1124, %v1126
      %v1131 = vsel %vm627, %v1113, 0
      %v1134 = vsel %vm627, %v1114, 0
      %v1136 = vsel %vm634, %v1128, 0
      %v1138 = vsel %vm634, %v1129, 0
      %v1140 = vsel %vm634, %v1126, 0
      %1142 = vmatpush.msra.mxu0 0.0
      %1143 = vmatpush.msra.mxu0 0.0
      %1144 = vmatpush.msra.mxu0 0.0
      %1145 = vmatpush.msra.mxu0 0.0
      %1146 = vmatpush.msra.mxu0 0.0
      %1147 = vmatpush.msra.mxu0 0.0
      %1148 = vmatpush.msra.mxu0 0.0
      %1149 = vmatpush.msra.mxu0 0.0
      %1150 = vmatpush.msra.mxu0 0.0
      %1151 = vmatpush.msra.mxu0 0.0
      %1152 = vmatpush.msra.mxu0 0.0
      %1153 = vmatpush.msra.mxu0 0.0
      %1154 = vmatpush.msra.mxu0 0.0
      %1155 = vmatpush.msra.mxu0 0.0
      %1156 = vmatpush.msra.mxu0 0.0
      %1157 = vmatpush.msra.mxu0 %v1136
      %1158 = vmatmul.f32.gmra.mxu0 %v1131
      %v1159 = vpop.f32.mrf.mxu0
      %v1160 = vadd.f32 0.0, %v1159
      %1161 = vmatmul.f32.gmra.mxu0 %v1134
      %v1162 = vpop.f32.mrf.mxu0
      %v1163 = vadd.f32 0.0, %v1162
      %1164 = vdwg.mxu0
      %1165 = vmatpush.msra.mxu0 0.0
      %1166 = vmatpush.msra.mxu0 0.0
      %1167 = vmatpush.msra.mxu0 0.0
      %1168 = vmatpush.msra.mxu0 0.0
      %1169 = vmatpush.msra.mxu0 0.0
      %1170 = vmatpush.msra.mxu0 0.0
      %1171 = vmatpush.msra.mxu0 0.0
      %1172 = vmatpush.msra.mxu0 0.0
      %1173 = vmatpush.msra.mxu0 0.0
      %1174 = vmatpush.msra.mxu0 0.0
      %1175 = vmatpush.msra.mxu0 0.0
      %1176 = vmatpush.msra.mxu0 0.0
      %1177 = vmatpush.msra.mxu0 0.0
      %1178 = vmatpush.msra.mxu0 0.0
      %1179 = vmatpush.msra.mxu0 0.0
      %1180 = vmatpush.msra.mxu0 %v1138
      %1181 = vmatmul.f32.gmra.mxu0 %v1131
      %v1182 = vpop.f32.mrf.mxu0
      %v1183 = vadd.f32 0.0, %v1182
      %1184 = vmatmul.f32.gmra.mxu0 %v1134
      %v1185 = vpop.f32.mrf.mxu0
      %v1186 = vadd.f32 0.0, %v1185
      %1187 = vdwg.mxu0
      %1188 = vmatpush.msra.mxu0 0.0
      %1189 = vmatpush.msra.mxu0 0.0
      %1190 = vmatpush.msra.mxu0 0.0
      %1191 = vmatpush.msra.mxu0 0.0
      %1192 = vmatpush.msra.mxu0 0.0
      %1193 = vmatpush.msra.mxu0 0.0
      %1194 = vmatpush.msra.mxu0 0.0
      %1195 = vmatpush.msra.mxu0 0.0
      %1196 = vmatpush.msra.mxu0 0.0
      %1197 = vmatpush.msra.mxu0 0.0
      %1198 = vmatpush.msra.mxu0 0.0
      %1199 = vmatpush.msra.mxu0 0.0
      %1200 = vmatpush.msra.mxu0 0.0
      %1201 = vmatpush.msra.mxu0 0.0
      %1202 = vmatpush.msra.mxu0 0.0
      %1203 = vmatpush.msra.mxu0 %v1140
      %1204 = vmatmul.f32.gmra.mxu0 %v1131
      %v1205 = vpop.f32.mrf.mxu0
      %v1206 = vadd.f32 0.0, %v1205
      %1207 = vmatmul.f32.gmra.mxu0 %v1134
      %v1208 = vpop.f32.mrf.mxu0
      %v1209 = vadd.f32 0.0, %v1208
      %1210 = vdwg.mxu0
      %v1211 = vadd.f32 %v1106, %v1160
      %v1212 = vadd.f32 %v1107, %v1183
      %v1213 = vadd.f32 %v1108, %v1206
      %v1214 = vadd.f32 %v1109, %v1163
      %v1215 = vadd.f32 %v1110, %v1186
      %v1216 = vadd.f32 %v1111, %v1209
      %s1217 = scalar_lea.vmem %s1, 96
      %v1218 = vld [vmem:[%s1217] sm:$0xff]
      %v1219 = vld [vmem:[%s1217 + $0x8] sm:$0xff]
      %1220 = vst [vmem:[#allocation1] ss:$2 sm:$0xff] %v603
      %s1221 = scalar_lea.vmem [#allocation1], 16
      %1222 = vst [vmem:[%s1221] ss:$2 sm:$0xff] %v604
      %v1223 = vld.sshfl [vmem:[#allocation1] sm:$0xff pattern:$0x75316420]
      %v1224 = vld.sshfl [vmem:[#allocation1 + $0x8] sm:$0xff pattern:$0x75316420]
      %v1225 = vld.sshfl [vmem:[#allocation1 + $0x10] sm:$0xff pattern:$0x75316420]
      %1226 = vrot.lane.b32.xlu0 %v1223, 92
      %v1227 = vpop.permute.xlu0 %1226
      %1228 = vrot.lane.b32.xlu0 %v1224, 92
      %v1229 = vpop.permute.xlu0 %1228
      %1230 = vrot.lane.b32.xlu0 %v1225, 92
      %v1231 = vpop.permute.xlu0 %1230
      %vm1232 = vcmask 752640
      %v1233 = vsel %vm1232, %v1227, %v1229
      %v1234 = vsel %vm1232, %v1229, %v1231
      %v1236 = vsel %vm627, %v1218, 0
      %v1239 = vsel %vm627, %v1219, 0
      %v1241 = vsel %vm634, %v1233, 0
      %v1243 = vsel %vm634, %v1234, 0
      %v1245 = vsel %vm634, %v1231, 0
      %1247 = vmatpush.msra.mxu0 0.0
      %1248 = vmatpush.msra.mxu0 0.0
      %1249 = vmatpush.msra.mxu0 0.0
      %1250 = vmatpush.msra.mxu0 0.0
      %1251 = vmatpush.msra.mxu0 0.0
      %1252 = vmatpush.msra.mxu0 0.0
      %1253 = vmatpush.msra.mxu0 0.0
      %1254 = vmatpush.msra.mxu0 0.0
      %1255 = vmatpush.msra.mxu0 0.0
      %1256 = vmatpush.msra.mxu0 0.0
      %1257 = vmatpush.msra.mxu0 0.0
      %1258 = vmatpush.msra.mxu0 0.0
      %1259 = vmatpush.msra.mxu0 0.0
      %1260 = vmatpush.msra.mxu0 0.0
      %1261 = vmatpush.msra.mxu0 0.0
      %1262 = vmatpush.msra.mxu0 %v1241
      %1263 = vmatmul.f32.gmra.mxu0 %v1236
      %v1264 = vpop.f32.mrf.mxu0
      %v1265 = vadd.f32 0.0, %v1264
      %1266 = vmatmul.f32.gmra.mxu0 %v1239
      %v1267 = vpop.f32.mrf.mxu0
      %v1268 = vadd.f32 0.0, %v1267
      %1269 = vdwg.mxu0
      %1270 = vmatpush.msra.mxu0 0.0
      %1271 = vmatpush.msra.mxu0 0.0
      %1272 = vmatpush.msra.mxu0 0.0
      %1273 = vmatpush.msra.mxu0 0.0
      %1274 = vmatpush.msra.mxu0 0.0
      %1275 = vmatpush.msra.mxu0 0.0
      %1276 = vmatpush.msra.mxu0 0.0
      %1277 = vmatpush.msra.mxu0 0.0
      %1278 = vmatpush.msra.mxu0 0.0
      %1279 = vmatpush.msra.mxu0 0.0
      %1280 = vmatpush.msra.mxu0 0.0
      %1281 = vmatpush.msra.mxu0 0.0
      %1282 = vmatpush.msra.mxu0 0.0
      %1283 = vmatpush.msra.mxu0 0.0
      %1284 = vmatpush.msra.mxu0 0.0
      %1285 = vmatpush.msra.mxu0 %v1243
      %1286 = vmatmul.f32.gmra.mxu0 %v1236
      %v1287 = vpop.f32.mrf.mxu0
      %v1288 = vadd.f32 0.0, %v1287
      %1289 = vmatmul.f32.gmra.mxu0 %v1239
      %v1290 = vpop.f32.mrf.mxu0
      %v1291 = vadd.f32 0.0, %v1290
      %1292 = vdwg.mxu0
      %1293 = vmatpush.msra.mxu0 0.0
      %1294 = vmatpush.msra.mxu0 0.0
      %1295 = vmatpush.msra.mxu0 0.0
      %1296 = vmatpush.msra.mxu0 0.0
      %1297 = vmatpush.msra.mxu0 0.0
      %1298 = vmatpush.msra.mxu0 0.0
      %1299 = vmatpush.msra.mxu0 0.0
      %1300 = vmatpush.msra.mxu0 0.0
      %1301 = vmatpush.msra.mxu0 0.0
      %1302 = vmatpush.msra.mxu0 0.0
      %1303 = vmatpush.msra.mxu0 0.0
      %1304 = vmatpush.msra.mxu0 0.0
      %1305 = vmatpush.msra.mxu0 0.0
      %1306 = vmatpush.msra.mxu0 0.0
      %1307 = vmatpush.msra.mxu0 0.0
      %1308 = vmatpush.msra.mxu0 %v1245
      %1309 = vmatmul.f32.gmra.mxu0 %v1236
      %v1310 = vpop.f32.mrf.mxu0
      %v1311 = vadd.f32 0.0, %v1310
      %1312 = vmatmul.f32.gmra.mxu0 %v1239
      %v1313 = vpop.f32.mrf.mxu0
      %v1314 = vadd.f32 0.0, %v1313
      %1315 = vdwg.mxu0
      %v1316 = vadd.f32 %v1211, %v1265
      %v1317 = vadd.f32 %v1212, %v1288
      %v1318 = vadd.f32 %v1213, %v1311
      %v1319 = vadd.f32 %v1214, %v1268
      %v1320 = vadd.f32 %v1215, %v1291
      %v1321 = vadd.f32 %v1216, %v1314
      %s1322 = scalar_lea.vmem %s1, 112
      %v1323 = vld [vmem:[%s1322] sm:$0xff]
      %v1324 = vld [vmem:[%s1322 + $0x8] sm:$0xff]
      %1325 = vst [vmem:[#allocation1] ss:$2 sm:$0xff] %v603
      %s1326 = scalar_lea.vmem [#allocation1], 16
      %1327 = vst [vmem:[%s1326] ss:$2 sm:$0xff] %v604
      %v1328 = vld.sshfl [vmem:[#allocation1] sm:$0xff pattern:$0x75316420]
      %v1329 = vld.sshfl [vmem:[#allocation1 + $0x8] sm:$0xff pattern:$0x75316420]
      %v1330 = vld.sshfl [vmem:[#allocation1 + $0x10] sm:$0xff pattern:$0x75316420]
      %1331 = vrot.lane.b32.xlu0 %v1328, 91
      %v1332 = vpop.permute.xlu0 %1331
      %1333 = vrot.lane.b32.xlu0 %v1329, 91
      %v1334 = vpop.permute.xlu0 %1333
      %1335 = vrot.lane.b32.xlu0 %v1330, 91
      %v1336 = vpop.permute.xlu0 %1335
      %vm1337 = vcmask 744448
      %v1338 = vsel %vm1337, %v1332, %v1334
      %v1339 = vsel %vm1337, %v1334, %v1336
      %v1341 = vsel %vm627, %v1323, 0
      %v1344 = vsel %vm627, %v1324, 0
      %v1346 = vsel %vm634, %v1338, 0
      %v1348 = vsel %vm634, %v1339, 0
      %v1350 = vsel %vm634, %v1336, 0
      %1352 = vmatpush.msra.mxu0 0.0
      %1353 = vmatpush.msra.mxu0 0.0
      %1354 = vmatpush.msra.mxu0 0.0
      %1355 = vmatpush.msra.mxu0 0.0
      %1356 = vmatpush.msra.mxu0 0.0
      %1357 = vmatpush.msra.mxu0 0.0
      %1358 = vmatpush.msra.mxu0 0.0
      %1359 = vmatpush.msra.mxu0 0.0
      %1360 = vmatpush.msra.mxu0 0.0
      %1361 = vmatpush.msra.mxu0 0.0
      %1362 = vmatpush.msra.mxu0 0.0
      %1363 = vmatpush.msra.mxu0 0.0
      %1364 = vmatpush.msra.mxu0 0.0
      %1365 = vmatpush.msra.mxu0 0.0
      %1366 = vmatpush.msra.mxu0 0.0
      %1367 = vmatpush.msra.mxu0 %v1346
      %1368 = vmatmul.f32.gmra.mxu0 %v1341
      %v1369 = vpop.f32.mrf.mxu0
      %v1370 = vadd.f32 0.0, %v1369
      %1371 = vmatmul.f32.gmra.mxu0 %v1344
      %v1372 = vpop.f32.mrf.mxu0
      %v1373 = vadd.f32 0.0, %v1372
      %1374 = vdwg.mxu0
      %1375 = vmatpush.msra.mxu0 0.0
      %1376 = vmatpush.msra.mxu0 0.0
      %1377 = vmatpush.msra.mxu0 0.0
      %1378 = vmatpush.msra.mxu0 0.0
      %1379 = vmatpush.msra.mxu0 0.0
      %1380 = vmatpush.msra.mxu0 0.0
      %1381 = vmatpush.msra.mxu0 0.0
      %1382 = vmatpush.msra.mxu0 0.0
      %1383 = vmatpush.msra.mxu0 0.0
      %1384 = vmatpush.msra.mxu0 0.0
      %1385 = vmatpush.msra.mxu0 0.0
      %1386 = vmatpush.msra.mxu0 0.0
      %1387 = vmatpush.msra.mxu0 0.0
      %1388 = vmatpush.msra.mxu0 0.0
      %1389 = vmatpush.msra.mxu0 0.0
      %1390 = vmatpush.msra.mxu0 %v1348
      %1391 = vmatmul.f32.gmra.mxu0 %v1341
      %v1392 = vpop.f32.mrf.mxu0
      %v1393 = vadd.f32 0.0, %v1392
      %1394 = vmatmul.f32.gmra.mxu0 %v1344
      %v1395 = vpop.f32.mrf.mxu0
      %v1396 = vadd.f32 0.0, %v1395
      %1397 = vdwg.mxu0
      %1398 = vmatpush.msra.mxu0 0.0
      %1399 = vmatpush.msra.mxu0 0.0
      %1400 = vmatpush.msra.mxu0 0.0
      %1401 = vmatpush.msra.mxu0 0.0
      %1402 = vmatpush.msra.mxu0 0.0
      %1403 = vmatpush.msra.mxu0 0.0
      %1404 = vmatpush.msra.mxu0 0.0
      %1405 = vmatpush.msra.mxu0 0.0
      %1406 = vmatpush.msra.mxu0 0.0
      %1407 = vmatpush.msra.mxu0 0.0
      %1408 = vmatpush.msra.mxu0 0.0
      %1409 = vmatpush.msra.mxu0 0.0
      %1410 = vmatpush.msra.mxu0 0.0
      %1411 = vmatpush.msra.mxu0 0.0
      %1412 = vmatpush.msra.mxu0 0.0
      %1413 = vmatpush.msra.mxu0 %v1350
      %1414 = vmatmul.f32.gmra.mxu0 %v1341
      %v1415 = vpop.f32.mrf.mxu0
      %v1416 = vadd.f32 0.0, %v1415
      %1417 = vmatmul.f32.gmra.mxu0 %v1344
      %v1418 = vpop.f32.mrf.mxu0
      %v1419 = vadd.f32 0.0, %v1418
      %1420 = vdwg.mxu0
      %v1421 = vadd.f32 %v1316, %v1370
      %v1422 = vadd.f32 %v1317, %v1393
      %v1423 = vadd.f32 %v1318, %v1416
      %v1424 = vadd.f32 %v1319, %v1373
      %v1425 = vadd.f32 %v1320, %v1396
      %v1426 = vadd.f32 %v1321, %v1419
      %s1427 = scalar_lea.vmem %s1, 128
      %v1428 = vld [vmem:[%s1427] sm:$0xff]
      %v1429 = vld [vmem:[%s1427 + $0x8] sm:$0xff]
      %1430 = vst [vmem:[#allocation1] ss:$2 sm:$0xff] %v603
      %s1431 = scalar_lea.vmem [#allocation1], 16
      %1432 = vst [vmem:[%s1431] ss:$2 sm:$0xff] %v604
      %v1433 = vld.sshfl [vmem:[#allocation1] sm:$0xff pattern:$0x75316420]
      %v1434 = vld.sshfl [vmem:[#allocation1 + $0x8] sm:$0xff pattern:$0x75316420]
      %v1435 = vld.sshfl [vmem:[#allocation1 + $0x10] sm:$0xff pattern:$0x75316420]
      %1436 = vrot.lane.b32.xlu0 %v1433, 90
      %v1437 = vpop.permute.xlu0 %1436
      %1438 = vrot.lane.b32.xlu0 %v1434, 90
      %v1439 = vpop.permute.xlu0 %1438
      %1440 = vrot.lane.b32.xlu0 %v1435, 90
      %v1441 = vpop.permute.xlu0 %1440
      %vm1442 = vcmask 736256
      %v1443 = vsel %vm1442, %v1437, %v1439
      %v1444 = vsel %vm1442, %v1439, %v1441
      %v1446 = vsel %vm627, %v1428, 0
      %v1449 = vsel %vm627, %v1429, 0
      %v1451 = vsel %vm634, %v1443, 0
      %v1453 = vsel %vm634, %v1444, 0
      %v1455 = vsel %vm634, %v1441, 0
      %1457 = vmatpush.msra.mxu0 0.0
      %1458 = vmatpush.msra.mxu0 0.0
      %1459 = vmatpush.msra.mxu0 0.0
      %1460 = vmatpush.msra.mxu0 0.0
      %1461 = vmatpush.msra.mxu0 0.0
      %1462 = vmatpush.msra.mxu0 0.0
      %1463 = vmatpush.msra.mxu0 0.0
      %1464 = vmatpush.msra.mxu0 0.0
      %1465 = vmatpush.msra.mxu0 0.0
      %1466 = vmatpush.msra.mxu0 0.0
      %1467 = vmatpush.msra.mxu0 0.0
      %1468 = vmatpush.msra.mxu0 0.0
      %1469 = vmatpush.msra.mxu0 0.0
      %1470 = vmatpush.msra.mxu0 0.0
      %1471 = vmatpush.msra.mxu0 0.0
      %1472 = vmatpush.msra.mxu0 %v1451
      %1473 = vmatmul.f32.gmra.mxu0 %v1446
      %v1474 = vpop.f32.mrf.mxu0
      %v1475 = vadd.f32 0.0, %v1474
      %1476 = vmatmul.f32.gmra.mxu0 %v1449
      %v1477 = vpop.f32.mrf.mxu0
      %v1478 = vadd.f32 0.0, %v1477
      %1479 = vdwg.mxu0
      %1480 = vmatpush.msra.mxu0 0.0
      %1481 = vmatpush.msra.mxu0 0.0
      %1482 = vmatpush.msra.mxu0 0.0
      %1483 = vmatpush.msra.mxu0 0.0
      %1484 = vmatpush.msra.mxu0 0.0
      %1485 = vmatpush.msra.mxu0 0.0
      %1486 = vmatpush.msra.mxu0 0.0
      %1487 = vmatpush.msra.mxu0 0.0
      %1488 = vmatpush.msra.mxu0 0.0
      %1489 = vmatpush.msra.mxu0 0.0
      %1490 = vmatpush.msra.mxu0 0.0
      %1491 = vmatpush.msra.mxu0 0.0
      %1492 = vmatpush.msra.mxu0 0.0
      %1493 = vmatpush.msra.mxu0 0.0
      %1494 = vmatpush.msra.mxu0 0.0
      %1495 = vmatpush.msra.mxu0 %v1453
      %1496 = vmatmul.f32.gmra.mxu0 %v1446
      %v1497 = vpop.f32.mrf.mxu0
      %v1498 = vadd.f32 0.0, %v1497
      %1499 = vmatmul.f32.gmra.mxu0 %v1449
      %v1500 = vpop.f32.mrf.mxu0
      %v1501 = vadd.f32 0.0, %v1500
      %1502 = vdwg.mxu0
      %1503 = vmatpush.msra.mxu0 0.0
      %1504 = vmatpush.msra.mxu0 0.0
      %1505 = vmatpush.msra.mxu0 0.0
      %1506 = vmatpush.msra.mxu0 0.0
      %1507 = vmatpush.msra.mxu0 0.0
      %1508 = vmatpush.msra.mxu0 0.0
      %1509 = vmatpush.msra.mxu0 0.0
      %1510 = vmatpush.msra.mxu0 0.0
      %1511 = vmatpush.msra.mxu0 0.0
      %1512 = vmatpush.msra.mxu0 0.0
      %1513 = vmatpush.msra.mxu0 0.0
      %1514 = vmatpush.msra.mxu0 0.0
      %1515 = vmatpush.msra.mxu0 0.0
      %1516 = vmatpush.msra.mxu0 0.0
      %1517 = vmatpush.msra.mxu0 0.0
      %1518 = vmatpush.msra.mxu0 %v1455
      %1519 = vmatmul.f32.gmra.mxu0 %v1446
      %v1520 = vpop.f32.mrf.mxu0
      %v1521 = vadd.f32 0.0, %v1520
      %1522 = vmatmul.f32.gmra.mxu0 %v1449
      %v1523 = vpop.f32.mrf.mxu0
      %v1524 = vadd.f32 0.0, %v1523
      %1525 = vdwg.mxu0
      %v1526 = vadd.f32 %v1421, %v1475
      %v1527 = vadd.f32 %v1422, %v1498
      %v1528 = vadd.f32 %v1423, %v1521
      %v1529 = vadd.f32 %v1424, %v1478
      %v1530 = vadd.f32 %v1425, %v1501
      %v1531 = vadd.f32 %v1426, %v1524
      %v1532 = vld [vmem:[%s7] sm:$0xff]
      %v1533 = vld [vmem:[%s7 + $0x8] sm:$0xff]
      %1535 = vset.pattern.permute.xlu0 0
      %1536 = vperm.xlu0 %1535, %v1532
      %v1537 = vpop.permute.xlu0 %1536
      %1540 = vset.pattern.permute.xlu0 0
      %1541 = vperm.xlu0 %1540, %v1533
      %v1542 = vpop.permute.xlu0 %1541
      %v1544 = vadd.f32 %v1526, %v1537
      %v1545 = vadd.f32 %v1527, %v1537
      %v1546 = vadd.f32 %v1528, %v1537
      %v1547 = vadd.f32 %v1529, %v1542
      %v1548 = vadd.f32 %v1530, %v1542
      %v1549 = vadd.f32 %v1531, %v1542
      %v1550 = vmax.f32 %v1544, 0.0
      %v1551 = vmax.f32 %v1545, 0.0
      %v1552 = vmax.f32 %v1546, 0.0
      %v1553 = vmax.f32 %v1547, 0.0
      %v1554 = vmax.f32 %v1548, 0.0
      %v1555 = vmax.f32 %v1549, 0.0
      %v1556 = vld [vmem:[%s13] sm:$0xff]
      %v1557 = vld [vmem:[%s13 + $0x8] sm:$0x7f]
      %vm1558 = vcmask 121856
      %v1560 = vsel %vm1558, %v1550, 0
      %v1563 = vsel %vm1558, %v1553, 0
      %vm1565 = vcmask 1046528
      %v1567 = vsel %vm1565, %v1557, 0
      %1569 = vmatpush.msra.mxu0 0.0
      %1570 = vmatpush.msra.mxu0 0.0
      %1571 = vmatpush.msra.mxu0 0.0
      %1572 = vmatpush.msra.mxu0 0.0
      %1573 = vmatpush.msra.mxu0 0.0
      %1574 = vmatpush.msra.mxu0 0.0
      %1575 = vmatpush.msra.mxu0 0.0
      %1576 = vmatpush.msra.mxu0 0.0
      %1577 = vmatpush.msra.mxu0 0.0
      %1578 = vmatpush.msra.mxu0 0.0
      %1579 = vmatpush.msra.mxu0 0.0
      %1580 = vmatpush.msra.mxu0 0.0
      %1581 = vmatpush.msra.mxu0 0.0
      %1582 = vmatpush.msra.mxu0 0.0
      %1583 = vmatpush.msra.mxu0 %v1567
      %1584 = vmatpush.msra.mxu0 %v1556
      %1585 = vmatmul.f32.gmra.mxu0 %v1560
      %v1586 = vpop.f32.mrf.mxu0
      %v1587 = vadd.f32 0.0, %v1586
      %1588 = vmatmul.f32.gmra.mxu0 %v1563
      %v1589 = vpop.f32.mrf.mxu0
      %v1590 = vadd.f32 0.0, %v1589
      %1591 = vdwg.mxu0
      %1594 = vrot.lane.b32.xlu0 %v1587, 10
      %v1595 = vpop.permute.xlu0 %1594
      %1596 = vrot.lane.b32.xlu0 %v1590, 10
      %v1597 = vpop.permute.xlu0 %1596
      %vm1600 = vcmask 162896
      %1601 = vst.msk [vmem:[#allocation2] sm:$0xff] %vm1600, %v1595
      %1602 = vst.msk [vmem:[#allocation2 + $0x8] sm:$0xff] %vm1600, %v1597
      %1603 = vrot.lane.b32.xlu0 %v1550, 92
      %v1604 = vpop.permute.xlu0 %1603
      %1605 = vrot.lane.b32.xlu0 %v1553, 92
      %v1606 = vpop.permute.xlu0 %1605
      %v1607 = vsel %vm1558, %v1604, 0
      %v1609 = vsel %vm1558, %v1606, 0
      %1611 = vmatpush.msra.mxu0 0.0
      %1612 = vmatpush.msra.mxu0 0.0
      %1613 = vmatpush.msra.mxu0 0.0
      %1614 = vmatpush.msra.mxu0 0.0
      %1615 = vmatpush.msra.mxu0 0.0
      %1616 = vmatpush.msra.mxu0 0.0
      %1617 = vmatpush.msra.mxu0 0.0
      %1618 = vmatpush.msra.mxu0 0.0
      %1619 = vmatpush.msra.mxu0 0.0
      %1620 = vmatpush.msra.mxu0 0.0
      %1621 = vmatpush.msra.mxu0 0.0
      %1622 = vmatpush.msra.mxu0 0.0
      %1623 = vmatpush.msra.mxu0 0.0
      %1624 = vmatpush.msra.mxu0 0.0
      %1625 = vmatpush.msra.mxu0 %v1567
      %1626 = vmatpush.msra.mxu0 %v1556
      %1627 = vmatmul.f32.gmra.mxu0 %v1607
      %v1628 = vpop.f32.mrf.mxu0
      %v1629 = vadd.f32 0.0, %v1628
      %1630 = vmatmul.f32.gmra.mxu0 %v1609
      %v1631 = vpop.f32.mrf.mxu0
      %v1632 = vadd.f32 0.0, %v1631
      %1633 = vdwg.mxu0
      %1636 = vrot.lane.b32.xlu0 %v1629, 20
      %v1637 = vpop.permute.xlu0 %1636
      %1638 = vrot.lane.b32.xlu0 %v1632, 20
      %v1639 = vpop.permute.xlu0 %1638
      %vm1642 = vcmask 244896
      %1643 = vst.msk [vmem:[#allocation2] sm:$0xff] %vm1642, %v1637
      %1644 = vst.msk [vmem:[#allocation2 + $0x8] sm:$0xff] %vm1642, %v1639
      %1645 = vrot.lane.b32.xlu0 %v1550, 56
      %v1646 = vpop.permute.xlu0 %1645
      %1647 = vrot.lane.b32.xlu0 %v1553, 56
      %v1648 = vpop.permute.xlu0 %1647
      %v1649 = vsel %vm1558, %v1646, 0
      %v1651 = vsel %vm1558, %v1648, 0
      %1653 = vmatpush.msra.mxu0 0.0
      %1654 = vmatpush.msra.mxu0 0.0
      %1655 = vmatpush.msra.mxu0 0.0
      %1656 = vmatpush.msra.mxu0 0.0
      %1657 = vmatpush.msra.mxu0 0.0
      %1658 = vmatpush.msra.mxu0 0.0
      %1659 = vmatpush.msra.mxu0 0.0
      %1660 = vmatpush.msra.mxu0 0.0
      %1661 = vmatpush.msra.mxu0 0.0
      %1662 = vmatpush.msra.mxu0 0.0
      %1663 = vmatpush.msra.mxu0 0.0
      %1664 = vmatpush.msra.mxu0 0.0
      %1665 = vmatpush.msra.mxu0 0.0
      %1666 = vmatpush.msra.mxu0 0.0
      %1667 = vmatpush.msra.mxu0 %v1567
      %1668 = vmatpush.msra.mxu0 %v1556
      %1669 = vmatmul.f32.gmra.mxu0 %v1649
      %v1670 = vpop.f32.mrf.mxu0
      %v1671 = vadd.f32 0.0, %v1670
      %1672 = vmatmul.f32.gmra.mxu0 %v1651
      %v1673 = vpop.f32.mrf.mxu0
      %v1674 = vadd.f32 0.0, %v1673
      %1675 = vdwg.mxu0
      %1678 = vrot.lane.b32.xlu0 %v1671, 30
      %v1679 = vpop.permute.xlu0 %1678
      %1680 = vrot.lane.b32.xlu0 %v1674, 30
      %v1681 = vpop.permute.xlu0 %1680
      %vm1684 = vcmask 326896
      %1685 = vst.msk [vmem:[#allocation2] sm:$0xff] %vm1684, %v1679
      %1686 = vst.msk [vmem:[#allocation2 + $0x8] sm:$0xff] %vm1684, %v1681
      %1687 = vrot.lane.b32.xlu0 %v1550, 20
      %v1688 = vpop.permute.xlu0 %1687
      %1689 = vrot.lane.b32.xlu0 %v1553, 20
      %v1690 = vpop.permute.xlu0 %1689
      %v1691 = vsel %vm1558, %v1688, 0
      %v1693 = vsel %vm1558, %v1690, 0
      %1695 = vmatpush.msra.mxu0 0.0
      %1696 = vmatpush.msra.mxu0 0.0
      %1697 = vmatpush.msra.mxu0 0.0
      %1698 = vmatpush.msra.mxu0 0.0
      %1699 = vmatpush.msra.mxu0 0.0
      %1700 = vmatpush.msra.mxu0 0.0
      %1701 = vmatpush.msra.mxu0 0.0
      %1702 = vmatpush.msra.mxu0 0.0
      %1703 = vmatpush.msra.mxu0 0.0
      %1704 = vmatpush.msra.mxu0 0.0
      %1705 = vmatpush.msra.mxu0 0.0
      %1706 = vmatpush.msra.mxu0 0.0
      %1707 = vmatpush.msra.mxu0 0.0
      %1708 = vmatpush.msra.mxu0 0.0
      %1709 = vmatpush.msra.mxu0 %v1567
      %1710 = vmatpush.msra.mxu0 %v1556
      %1711 = vmatmul.f32.gmra.mxu0 %v1691
      %v1712 = vpop.f32.mrf.mxu0
      %v1713 = vadd.f32 0.0, %v1712
      %1714 = vmatmul.f32.gmra.mxu0 %v1693
      %v1715 = vpop.f32.mrf.mxu0
      %v1716 = vadd.f32 0.0, %v1715
      %1717 = vdwg.mxu0
      %1720 = vrot.lane.b32.xlu0 %v1713, 40
      %v1721 = vpop.permute.xlu0 %1720
      %1722 = vrot.lane.b32.xlu0 %v1716, 40
      %v1723 = vpop.permute.xlu0 %1722
      %vm1726 = vcmask 408896
      %1727 = vst.msk [vmem:[#allocation2] sm:$0xff] %vm1726, %v1721
      %1728 = vst.msk [vmem:[#allocation2 + $0x8] sm:$0xff] %vm1726, %v1723
      %1731 = vrot.lane.b32.xlu0 %v1551, 112
      %v1732 = vpop.permute.xlu0 %1731
      %1733 = vrot.lane.b32.xlu0 %v1554, 112
      %v1734 = vpop.permute.xlu0 %1733
      %v1735 = vsel %vm1558, %v1732, 0
      %v1737 = vsel %vm1558, %v1734, 0
      %1739 = vmatpush.msra.mxu0 0.0
      %1740 = vmatpush.msra.mxu0 0.0
      %1741 = vmatpush.msra.mxu0 0.0
      %1742 = vmatpush.msra.mxu0 0.0
      %1743 = vmatpush.msra.mxu0 0.0
      %1744 = vmatpush.msra.mxu0 0.0
      %1745 = vmatpush.msra.mxu0 0.0
      %1746 = vmatpush.msra.mxu0 0.0
      %1747 = vmatpush.msra.mxu0 0.0
      %1748 = vmatpush.msra.mxu0 0.0
      %1749 = vmatpush.msra.mxu0 0.0
      %1750 = vmatpush.msra.mxu0 0.0
      %1751 = vmatpush.msra.mxu0 0.0
      %1752 = vmatpush.msra.mxu0 0.0
      %1753 = vmatpush.msra.mxu0 %v1567
      %1754 = vmatpush.msra.mxu0 %v1556
      %1755 = vmatmul.f32.gmra.mxu0 %v1735
      %v1756 = vpop.f32.mrf.mxu0
      %v1757 = vadd.f32 0.0, %v1756
      %1758 = vmatmul.f32.gmra.mxu0 %v1737
      %v1759 = vpop.f32.mrf.mxu0
      %v1760 = vadd.f32 0.0, %v1759
      %1761 = vdwg.mxu0
      %1764 = vrot.lane.b32.xlu0 %v1757, 50
      %v1765 = vpop.permute.xlu0 %1764
      %1766 = vrot.lane.b32.xlu0 %v1760, 50
      %v1767 = vpop.permute.xlu0 %1766
      %vm1770 = vcmask 490896
      %1771 = vst.msk [vmem:[#allocation2] sm:$0xff] %vm1770, %v1765
      %1772 = vst.msk [vmem:[#allocation2 + $0x8] sm:$0xff] %vm1770, %v1767
      %1773 = vrot.lane.b32.xlu0 %v1551, 76
      %v1774 = vpop.permute.xlu0 %1773
      %1775 = vrot.lane.b32.xlu0 %v1554, 76
      %v1776 = vpop.permute.xlu0 %1775
      %v1777 = vsel %vm1558, %v1774, 0
      %v1779 = vsel %vm1558, %v1776, 0
      %1781 = vmatpush.msra.mxu0 0.0
      %1782 = vmatpush.msra.mxu0 0.0
      %1783 = vmatpush.msra.mxu0 0.0
      %1784 = vmatpush.msra.mxu0 0.0
      %1785 = vmatpush.msra.mxu0 0.0
      %1786 = vmatpush.msra.mxu0 0.0
      %1787 = vmatpush.msra.mxu0 0.0
      %1788 = vmatpush.msra.mxu0 0.0
      %1789 = vmatpush.msra.mxu0 0.0
      %1790 = vmatpush.msra.mxu0 0.0
      %1791 = vmatpush.msra.mxu0 0.0
      %1792 = vmatpush.msra.mxu0 0.0
      %1793 = vmatpush.msra.mxu0 0.0
      %1794 = vmatpush.msra.mxu0 0.0
      %1795 = vmatpush.msra.mxu0 %v1567
      %1796 = vmatpush.msra.mxu0 %v1556
      %1797 = vmatmul.f32.gmra.mxu0 %v1777
      %v1798 = vpop.f32.mrf.mxu0
      %v1799 = vadd.f32 0.0, %v1798
      %1800 = vmatmul.f32.gmra.mxu0 %v1779
      %v1801 = vpop.f32.mrf.mxu0
      %v1802 = vadd.f32 0.0, %v1801
      %1803 = vdwg.mxu0
      %1806 = vrot.lane.b32.xlu0 %v1799, 60
      %v1807 = vpop.permute.xlu0 %1806
      %1808 = vrot.lane.b32.xlu0 %v1802, 60
      %v1809 = vpop.permute.xlu0 %1808
      %vm1812 = vcmask 572896
      %1813 = vst.msk [vmem:[#allocation2] sm:$0xff] %vm1812, %v1807
      %1814 = vst.msk [vmem:[#allocation2 + $0x8] sm:$0xff] %vm1812, %v1809
      %1815 = vrot.lane.b32.xlu0 %v1551, 40
      %v1816 = vpop.permute.xlu0 %1815
      %1817 = vrot.lane.b32.xlu0 %v1554, 40
      %v1818 = vpop.permute.xlu0 %1817
      %v1819 = vsel %vm1558, %v1816, 0
      %v1821 = vsel %vm1558, %v1818, 0
      %1823 = vmatpush.msra.mxu0 0.0
      %1824 = vmatpush.msra.mxu0 0.0
      %1825 = vmatpush.msra.mxu0 0.0
      %1826 = vmatpush.msra.mxu0 0.0
      %1827 = vmatpush.msra.mxu0 0.0
      %1828 = vmatpush.msra.mxu0 0.0
      %1829 = vmatpush.msra.mxu0 0.0
      %1830 = vmatpush.msra.mxu0 0.0
      %1831 = vmatpush.msra.mxu0 0.0
      %1832 = vmatpush.msra.mxu0 0.0
      %1833 = vmatpush.msra.mxu0 0.0
      %1834 = vmatpush.msra.mxu0 0.0
      %1835 = vmatpush.msra.mxu0 0.0
      %1836 = vmatpush.msra.mxu0 0.0
      %1837 = vmatpush.msra.mxu0 %v1567
      %1838 = vmatpush.msra.mxu0 %v1556
      %1839 = vmatmul.f32.gmra.mxu0 %v1819
      %v1840 = vpop.f32.mrf.mxu0
      %v1841 = vadd.f32 0.0, %v1840
      %1842 = vmatmul.f32.gmra.mxu0 %v1821
      %v1843 = vpop.f32.mrf.mxu0
      %v1844 = vadd.f32 0.0, %v1843
      %1845 = vdwg.mxu0
      %1848 = vrot.lane.b32.xlu0 %v1841, 70
      %v1849 = vpop.permute.xlu0 %1848
      %1850 = vrot.lane.b32.xlu0 %v1844, 70
      %v1851 = vpop.permute.xlu0 %1850
      %vm1854 = vcmask 654896
      %1855 = vst.msk [vmem:[#allocation2] sm:$0xff] %vm1854, %v1849
      %1856 = vst.msk [vmem:[#allocation2 + $0x8] sm:$0xff] %vm1854, %v1851
      %1859 = vrot.lane.b32.xlu0 %v1551, 4
      %v1860 = vpop.permute.xlu0 %1859
      %1861 = vrot.lane.b32.xlu0 %v1552, 4
      %v1862 = vpop.permute.xlu0 %1861
      %1863 = vrot.lane.b32.xlu0 %v1554, 4
      %v1864 = vpop.permute.xlu0 %1863
      %1865 = vrot.lane.b32.xlu0 %v1555, 4
      %v1866 = vpop.permute.xlu0 %1865
      %vm1867 = vcmask 31744
      %v1868 = vsel %vm1867, %v1860, %v1862
      %v1869 = vsel %vm1867, %v1864, %v1866
      %v1870 = vsel %vm1558, %v1868, 0
      %v1872 = vsel %vm1558, %v1869, 0
      %1874 = vmatpush.msra.mxu0 0.0
      %1875 = vmatpush.msra.mxu0 0.0
      %1876 = vmatpush.msra.mxu0 0.0
      %1877 = vmatpush.msra.mxu0 0.0
      %1878 = vmatpush.msra.mxu0 0.0
      %1879 = vmatpush.msra.mxu0 0.0
      %1880 = vmatpush.msra.mxu0 0.0
      %1881 = vmatpush.msra.mxu0 0.0
      %1882 = vmatpush.msra.mxu0 0.0
      %1883 = vmatpush.msra.mxu0 0.0
      %1884 = vmatpush.msra.mxu0 0.0
      %1885 = vmatpush.msra.mxu0 0.0
      %1886 = vmatpush.msra.mxu0 0.0
      %1887 = vmatpush.msra.mxu0 0.0
      %1888 = vmatpush.msra.mxu0 %v1567
      %1889 = vmatpush.msra.mxu0 %v1556
      %1890 = vmatmul.f32.gmra.mxu0 %v1870
      %v1891 = vpop.f32.mrf.mxu0
      %v1892 = vadd.f32 0.0, %v1891
      %1893 = vmatmul.f32.gmra.mxu0 %v1872
      %v1894 = vpop.f32.mrf.mxu0
      %v1895 = vadd.f32 0.0, %v1894
      %1896 = vdwg.mxu0
      %1899 = vrot.lane.b32.xlu0 %v1892, 80
      %v1900 = vpop.permute.xlu0 %1899
      %1901 = vrot.lane.b32.xlu0 %v1895, 80
      %v1902 = vpop.permute.xlu0 %1901
      %vm1905 = vcmask 736896
      %1906 = vst.msk [vmem:[#allocation2] sm:$0xff] %vm1905, %v1900
      %1907 = vst.msk [vmem:[#allocation2 + $0x8] sm:$0xff] %vm1905, %v1902
      %v1908 = vld [vmem:[#allocation2] sm:$0xff]
      %v1909 = vld [vmem:[#allocation2 + $0x8] sm:$0xff]
      %v1910 = vld [vmem:[%s2] sm:$0xff]
      %v1911 = vld [vmem:[%s2 + $0x8] sm:$0xff]
      %v1912 = vld [vmem:[%s2 + $0x10] sm:$0xff]
      %v1913 = vld [vmem:[%s2 + $0x18] sm:$0xff]
      %s1914 = scalar_lea.vmem %s2, 32
      %v1915 = vld [vmem:[%s1914] sm:$0xff]
      %v1916 = vld [vmem:[%s1914 + $0x8] sm:$0xff]
      %v1917 = vld [vmem:[%s1914 + $0x10] sm:$0xff]
      %v1918 = vld [vmem:[%s1914 + $0x18] sm:$0xff]
      %1921 = vrot.lane.b32.xlu0 %v1908, 127
      %v1922 = vpop.permute.xlu0 %1921
      %1923 = vrot.lane.b32.xlu0 %v1909, 127
      %v1924 = vpop.permute.xlu0 %1923
      %vm1927 = vcmask 130048
      %v1929 = vsel %vm1927, %v1915, 0
      %v1932 = vsel %vm1927, %v1916, 0
      %v1935 = vsel %vm1927, %v1917, 0
      %v1938 = vsel %vm1927, %v1918, 0
      %1940 = vmatpush.msra.mxu0 0.0
      %1941 = vmatpush.msra.mxu0 0.0
      %1942 = vmatpush.msra.mxu0 0.0
      %1943 = vmatpush.msra.mxu0 0.0
      %1944 = vmatpush.msra.mxu0 0.0
      %1945 = vmatpush.msra.mxu0 0.0
      %1946 = vmatpush.msra.mxu0 0.0
      %1947 = vmatpush.msra.mxu0 0.0
      %1948 = vmatpush.msra.mxu0 0.0
      %1949 = vmatpush.msra.mxu0 0.0
      %1950 = vmatpush.msra.mxu0 0.0
      %1951 = vmatpush.msra.mxu0 0.0
      %1952 = vmatpush.msra.mxu0 0.0
      %1953 = vmatpush.msra.mxu0 0.0
      %1954 = vmatpush.msra.mxu0 %v1924
      %1955 = vmatpush.msra.mxu0 %v1922
      %1956 = vmatmul.f32.gmra.mxu0 %v1929
      %v1957 = vpop.f32.mrf.mxu0
      %v1958 = vadd.f32 0.0, %v1957
      %1959 = vmatmul.f32.gmra.mxu0 %v1932
      %v1960 = vpop.f32.mrf.mxu0
      %v1961 = vadd.f32 0.0, %v1960
      %1962 = vmatmul.f32.gmra.mxu0 %v1935
      %v1963 = vpop.f32.mrf.mxu0
      %v1964 = vadd.f32 0.0, %v1963
      %1965 = vmatmul.f32.gmra.mxu0 %v1938
      %v1966 = vpop.f32.mrf.mxu0
      %v1967 = vadd.f32 0.0, %v1966
      %1968 = vdwg.mxu0
      %v1970 = vsel %vm1927, %v1910, 0
      %v1973 = vsel %vm1927, %v1911, 0
      %v1976 = vsel %vm1927, %v1912, 0
      %v1979 = vsel %vm1927, %v1913, 0
      %1981 = vmatpush.msra.mxu0 0.0
      %1982 = vmatpush.msra.mxu0 0.0
      %1983 = vmatpush.msra.mxu0 0.0
      %1984 = vmatpush.msra.mxu0 0.0
      %1985 = vmatpush.msra.mxu0 0.0
      %1986 = vmatpush.msra.mxu0 0.0
      %1987 = vmatpush.msra.mxu0 0.0
      %1988 = vmatpush.msra.mxu0 0.0
      %1989 = vmatpush.msra.mxu0 0.0
      %1990 = vmatpush.msra.mxu0 0.0
      %1991 = vmatpush.msra.mxu0 0.0
      %1992 = vmatpush.msra.mxu0 0.0
      %1993 = vmatpush.msra.mxu0 0.0
      %1994 = vmatpush.msra.mxu0 0.0
      %1995 = vmatpush.msra.mxu0 %v1909
      %1996 = vmatpush.msra.mxu0 %v1908
      %1997 = vmatmul.f32.gmra.mxu0 %v1970
      %v1998 = vpop.f32.mrf.mxu0
      %v1999 = vadd.f32 %v1958, %v1998
      %2000 = vmatmul.f32.gmra.mxu0 %v1973
      %v2001 = vpop.f32.mrf.mxu0
      %v2002 = vadd.f32 %v1961, %v2001
      %2003 = vmatmul.f32.gmra.mxu0 %v1976
      %v2004 = vpop.f32.mrf.mxu0
      %v2005 = vadd.f32 %v1964, %v2004
      %2006 = vmatmul.f32.gmra.mxu0 %v1979
      %v2007 = vpop.f32.mrf.mxu0
      %v2008 = vadd.f32 %v1967, %v2007
      %2009 = vdwg.mxu0
      %s2010 = scalar_lea.vmem %s2, 64
      %v2011 = vld [vmem:[%s2010] sm:$0xff]
      %v2012 = vld [vmem:[%s2010 + $0x8] sm:$0xff]
      %v2013 = vld [vmem:[%s2010 + $0x10] sm:$0xff]
      %v2014 = vld [vmem:[%s2010 + $0x18] sm:$0xff]
      %2015 = vrot.lane.b32.xlu0 %v1908, 126
      %v2016 = vpop.permute.xlu0 %2015
      %2017 = vrot.lane.b32.xlu0 %v1909, 126
      %v2018 = vpop.permute.xlu0 %2017
      %v2022 = vsel %vm1927, %v2011, 0
      %v2025 = vsel %vm1927, %v2012, 0
      %v2028 = vsel %vm1927, %v2013, 0
      %v2031 = vsel %vm1927, %v2014, 0
      %2033 = vmatpush.msra.mxu0 0.0
      %2034 = vmatpush.msra.mxu0 0.0
      %2035 = vmatpush.msra.mxu0 0.0
      %2036 = vmatpush.msra.mxu0 0.0
      %2037 = vmatpush.msra.mxu0 0.0
      %2038 = vmatpush.msra.mxu0 0.0
      %2039 = vmatpush.msra.mxu0 0.0
      %2040 = vmatpush.msra.mxu0 0.0
      %2041 = vmatpush.msra.mxu0 0.0
      %2042 = vmatpush.msra.mxu0 0.0
      %2043 = vmatpush.msra.mxu0 0.0
      %2044 = vmatpush.msra.mxu0 0.0
      %2045 = vmatpush.msra.mxu0 0.0
      %2046 = vmatpush.msra.mxu0 0.0
      %2047 = vmatpush.msra.mxu0 %v2018
      %2048 = vmatpush.msra.mxu0 %v2016
      %2049 = vmatmul.f32.gmra.mxu0 %v2022
      %v2050 = vpop.f32.mrf.mxu0
      %v2051 = vadd.f32 0.0, %v2050
      %2052 = vmatmul.f32.gmra.mxu0 %v2025
      %v2053 = vpop.f32.mrf.mxu0
      %v2054 = vadd.f32 0.0, %v2053
      %2055 = vmatmul.f32.gmra.mxu0 %v2028
      %v2056 = vpop.f32.mrf.mxu0
      %v2057 = vadd.f32 0.0, %v2056
      %2058 = vmatmul.f32.gmra.mxu0 %v2031
      %v2059 = vpop.f32.mrf.mxu0
      %v2060 = vadd.f32 0.0, %v2059
      %2061 = vdwg.mxu0
      %v2062 = vadd.f32 %v1999, %v2051
      %v2063 = vadd.f32 %v2002, %v2054
      %v2064 = vadd.f32 %v2005, %v2057
      %v2065 = vadd.f32 %v2008, %v2060
      %s2066 = scalar_lea.vmem %s2, 96
      %v2067 = vld [vmem:[%s2066] sm:$0xff]
      %v2068 = vld [vmem:[%s2066 + $0x8] sm:$0xff]
      %v2069 = vld [vmem:[%s2066 + $0x10] sm:$0xff]
      %v2070 = vld [vmem:[%s2066 + $0x18] sm:$0xff]
      %2071 = vrot.lane.b32.xlu0 %v1908, 118
      %v2072 = vpop.permute.xlu0 %2071
      %2073 = vrot.lane.b32.xlu0 %v1909, 118
      %v2074 = vpop.permute.xlu0 %2073
      %v2078 = vsel %vm1927, %v2067, 0
      %v2081 = vsel %vm1927, %v2068, 0
      %v2084 = vsel %vm1927, %v2069, 0
      %v2087 = vsel %vm1927, %v2070, 0
      %2089 = vmatpush.msra.mxu0 0.0
      %2090 = vmatpush.msra.mxu0 0.0
      %2091 = vmatpush.msra.mxu0 0.0
      %2092 = vmatpush.msra.mxu0 0.0
      %2093 = vmatpush.msra.mxu0 0.0
      %2094 = vmatpush.msra.mxu0 0.0
      %2095 = vmatpush.msra.mxu0 0.0
      %2096 = vmatpush.msra.mxu0 0.0
      %2097 = vmatpush.msra.mxu0 0.0
      %2098 = vmatpush.msra.mxu0 0.0
      %2099 = vmatpush.msra.mxu0 0.0
      %2100 = vmatpush.msra.mxu0 0.0
      %2101 = vmatpush.msra.mxu0 0.0
      %2102 = vmatpush.msra.mxu0 0.0
      %2103 = vmatpush.msra.mxu0 %v2074
      %2104 = vmatpush.msra.mxu0 %v2072
      %2105 = vmatmul.f32.gmra.mxu0 %v2078
      %v2106 = vpop.f32.mrf.mxu0
      %v2107 = vadd.f32 0.0, %v2106
      %2108 = vmatmul.f32.gmra.mxu0 %v2081
      %v2109 = vpop.f32.mrf.mxu0
      %v2110 = vadd.f32 0.0, %v2109
      %2111 = vmatmul.f32.gmra.mxu0 %v2084
      %v2112 = vpop.f32.mrf.mxu0
      %v2113 = vadd.f32 0.0, %v2112
      %2114 = vmatmul.f32.gmra.mxu0 %v2087
      %v2115 = vpop.f32.mrf.mxu0
      %v2116 = vadd.f32 0.0, %v2115
      %2117 = vdwg.mxu0
      %v2118 = vadd.f32 %v2062, %v2107
      %v2119 = vadd.f32 %v2063, %v2110
      %v2120 = vadd.f32 %v2064, %v2113
      %v2121 = vadd.f32 %v2065, %v2116
      %s2122 = scalar_lea.vmem %s2, 128
      %v2123 = vld [vmem:[%s2122] sm:$0xff]
      %v2124 = vld [vmem:[%s2122 + $0x8] sm:$0xff]
      %v2125 = vld [vmem:[%s2122 + $0x10] sm:$0xff]
      %v2126 = vld [vmem:[%s2122 + $0x18] sm:$0xff]
      %2127 = vrot.lane.b32.xlu0 %v1908, 117
      %v2128 = vpop.permute.xlu0 %2127
      %2129 = vrot.lane.b32.xlu0 %v1909, 117
      %v2130 = vpop.permute.xlu0 %2129
      %v2134 = vsel %vm1927, %v2123, 0
      %v2137 = vsel %vm1927, %v2124, 0
      %v2140 = vsel %vm1927, %v2125, 0
      %v2143 = vsel %vm1927, %v2126, 0
      %2145 = vmatpush.msra.mxu0 0.0
      %2146 = vmatpush.msra.mxu0 0.0
      %2147 = vmatpush.msra.mxu0 0.0
      %2148 = vmatpush.msra.mxu0 0.0
      %2149 = vmatpush.msra.mxu0 0.0
      %2150 = vmatpush.msra.mxu0 0.0
      %2151 = vmatpush.msra.mxu0 0.0
      %2152 = vmatpush.msra.mxu0 0.0
      %2153 = vmatpush.msra.mxu0 0.0
      %2154 = vmatpush.msra.mxu0 0.0
      %2155 = vmatpush.msra.mxu0 0.0
      %2156 = vmatpush.msra.mxu0 0.0
      %2157 = vmatpush.msra.mxu0 0.0
      %2158 = vmatpush.msra.mxu0 0.0
      %2159 = vmatpush.msra.mxu0 %v2130
      %2160 = vmatpush.msra.mxu0 %v2128
      %2161 = vmatmul.f32.gmra.mxu0 %v2134
      %v2162 = vpop.f32.mrf.mxu0
      %v2163 = vadd.f32 0.0, %v2162
      %2164 = vmatmul.f32.gmra.mxu0 %v2137
      %v2165 = vpop.f32.mrf.mxu0
      %v2166 = vadd.f32 0.0, %v2165
      %2167 = vmatmul.f32.gmra.mxu0 %v2140
      %v2168 = vpop.f32.mrf.mxu0
      %v2169 = vadd.f32 0.0, %v2168
      %2170 = vmatmul.f32.gmra.mxu0 %v2143
      %v2171 = vpop.f32.mrf.mxu0
      %v2172 = vadd.f32 0.0, %v2171
      %2173 = vdwg.mxu0
      %v2174 = vadd.f32 %v2118, %v2163
      %v2175 = vadd.f32 %v2119, %v2166
      %v2176 = vadd.f32 %v2120, %v2169
      %v2177 = vadd.f32 %v2121, %v2172
      %s2178 = scalar_lea.vmem %s2, 160
      %v2179 = vld [vmem:[%s2178] sm:$0xff]
      %v2180 = vld [vmem:[%s2178 + $0x8] sm:$0xff]
      %v2181 = vld [vmem:[%s2178 + $0x10] sm:$0xff]
      %v2182 = vld [vmem:[%s2178 + $0x18] sm:$0xff]
      %2183 = vrot.lane.b32.xlu0 %v1908, 116
      %v2184 = vpop.permute.xlu0 %2183
      %2185 = vrot.lane.b32.xlu0 %v1909, 116
      %v2186 = vpop.permute.xlu0 %2185
      %v2190 = vsel %vm1927, %v2179, 0
      %v2193 = vsel %vm1927, %v2180, 0
      %v2196 = vsel %vm1927, %v2181, 0
      %v2199 = vsel %vm1927, %v2182, 0
      %2201 = vmatpush.msra.mxu0 0.0
      %2202 = vmatpush.msra.mxu0 0.0
      %2203 = vmatpush.msra.mxu0 0.0
      %2204 = vmatpush.msra.mxu0 0.0
      %2205 = vmatpush.msra.mxu0 0.0
      %2206 = vmatpush.msra.mxu0 0.0
      %2207 = vmatpush.msra.mxu0 0.0
      %2208 = vmatpush.msra.mxu0 0.0
      %2209 = vmatpush.msra.mxu0 0.0
      %2210 = vmatpush.msra.mxu0 0.0
      %2211 = vmatpush.msra.mxu0 0.0
      %2212 = vmatpush.msra.mxu0 0.0
      %2213 = vmatpush.msra.mxu0 0.0
      %2214 = vmatpush.msra.mxu0 0.0
      %2215 = vmatpush.msra.mxu0 %v2186
      %2216 = vmatpush.msra.mxu0 %v2184
      %2217 = vmatmul.f32.gmra.mxu0 %v2190
      %v2218 = vpop.f32.mrf.mxu0
      %v2219 = vadd.f32 0.0, %v2218
      %2220 = vmatmul.f32.gmra.mxu0 %v2193
      %v2221 = vpop.f32.mrf.mxu0
      %v2222 = vadd.f32 0.0, %v2221
      %2223 = vmatmul.f32.gmra.mxu0 %v2196
      %v2224 = vpop.f32.mrf.mxu0
      %v2225 = vadd.f32 0.0, %v2224
      %2226 = vmatmul.f32.gmra.mxu0 %v2199
      %v2227 = vpop.f32.mrf.mxu0
      %v2228 = vadd.f32 0.0, %v2227
      %2229 = vdwg.mxu0
      %v2230 = vadd.f32 %v2174, %v2219
      %v2231 = vadd.f32 %v2175, %v2222
      %v2232 = vadd.f32 %v2176, %v2225
      %v2233 = vadd.f32 %v2177, %v2228
      %s2234 = scalar_lea.vmem %s2, 192
      %v2235 = vld [vmem:[%s2234] sm:$0xff]
      %v2236 = vld [vmem:[%s2234 + $0x8] sm:$0xff]
      %v2237 = vld [vmem:[%s2234 + $0x10] sm:$0xff]
      %v2238 = vld [vmem:[%s2234 + $0x18] sm:$0xff]
      %2239 = vrot.lane.b32.xlu0 %v1908, 108
      %v2240 = vpop.permute.xlu0 %2239
      %2241 = vrot.lane.b32.xlu0 %v1909, 108
      %v2242 = vpop.permute.xlu0 %2241
      %v2246 = vsel %vm1927, %v2235, 0
      %v2249 = vsel %vm1927, %v2236, 0
      %v2252 = vsel %vm1927, %v2237, 0
      %v2255 = vsel %vm1927, %v2238, 0
      %2257 = vmatpush.msra.mxu0 0.0
      %2258 = vmatpush.msra.mxu0 0.0
      %2259 = vmatpush.msra.mxu0 0.0
      %2260 = vmatpush.msra.mxu0 0.0
      %2261 = vmatpush.msra.mxu0 0.0
      %2262 = vmatpush.msra.mxu0 0.0
      %2263 = vmatpush.msra.mxu0 0.0
      %2264 = vmatpush.msra.mxu0 0.0
      %2265 = vmatpush.msra.mxu0 0.0
      %2266 = vmatpush.msra.mxu0 0.0
      %2267 = vmatpush.msra.mxu0 0.0
      %2268 = vmatpush.msra.mxu0 0.0
      %2269 = vmatpush.msra.mxu0 0.0
      %2270 = vmatpush.msra.mxu0 0.0
      %2271 = vmatpush.msra.mxu0 %v2242
      %2272 = vmatpush.msra.mxu0 %v2240
      %2273 = vmatmul.f32.gmra.mxu0 %v2246
      %v2274 = vpop.f32.mrf.mxu0
      %v2275 = vadd.f32 0.0, %v2274
      %2276 = vmatmul.f32.gmra.mxu0 %v2249
      %v2277 = vpop.f32.mrf.mxu0
      %v2278 = vadd.f32 0.0, %v2277
      %2279 = vmatmul.f32.gmra.mxu0 %v2252
      %v2280 = vpop.f32.mrf.mxu0
      %v2281 = vadd.f32 0.0, %v2280
      %2282 = vmatmul.f32.gmra.mxu0 %v2255
      %v2283 = vpop.f32.mrf.mxu0
      %v2284 = vadd.f32 0.0, %v2283
      %2285 = vdwg.mxu0
      %v2286 = vadd.f32 %v2230, %v2275
      %v2287 = vadd.f32 %v2231, %v2278
      %v2288 = vadd.f32 %v2232, %v2281
      %v2289 = vadd.f32 %v2233, %v2284
      %s2290 = scalar_lea.vmem %s2, 224
      %v2291 = vld [vmem:[%s2290] sm:$0xff]
      %v2292 = vld [vmem:[%s2290 + $0x8] sm:$0xff]
      %v2293 = vld [vmem:[%s2290 + $0x10] sm:$0xff]
      %v2294 = vld [vmem:[%s2290 + $0x18] sm:$0xff]
      %2295 = vrot.lane.b32.xlu0 %v1908, 107
      %v2296 = vpop.permute.xlu0 %2295
      %2297 = vrot.lane.b32.xlu0 %v1909, 107
      %v2298 = vpop.permute.xlu0 %2297
      %v2302 = vsel %vm1927, %v2291, 0
      %v2305 = vsel %vm1927, %v2292, 0
      %v2308 = vsel %vm1927, %v2293, 0
      %v2311 = vsel %vm1927, %v2294, 0
      %2313 = vmatpush.msra.mxu0 0.0
      %2314 = vmatpush.msra.mxu0 0.0
      %2315 = vmatpush.msra.mxu0 0.0
      %2316 = vmatpush.msra.mxu0 0.0
      %2317 = vmatpush.msra.mxu0 0.0
      %2318 = vmatpush.msra.mxu0 0.0
      %2319 = vmatpush.msra.mxu0 0.0
      %2320 = vmatpush.msra.mxu0 0.0
      %2321 = vmatpush.msra.mxu0 0.0
      %2322 = vmatpush.msra.mxu0 0.0
      %2323 = vmatpush.msra.mxu0 0.0
      %2324 = vmatpush.msra.mxu0 0.0
      %2325 = vmatpush.msra.mxu0 0.0
      %2326 = vmatpush.msra.mxu0 0.0
      %2327 = vmatpush.msra.mxu0 %v2298
      %2328 = vmatpush.msra.mxu0 %v2296
      %2329 = vmatmul.f32.gmra.mxu0 %v2302
      %v2330 = vpop.f32.mrf.mxu0
      %v2331 = vadd.f32 0.0, %v2330
      %2332 = vmatmul.f32.gmra.mxu0 %v2305
      %v2333 = vpop.f32.mrf.mxu0
      %v2334 = vadd.f32 0.0, %v2333
      %2335 = vmatmul.f32.gmra.mxu0 %v2308
      %v2336 = vpop.f32.mrf.mxu0
      %v2337 = vadd.f32 0.0, %v2336
      %2338 = vmatmul.f32.gmra.mxu0 %v2311
      %v2339 = vpop.f32.mrf.mxu0
      %v2340 = vadd.f32 0.0, %v2339
      %2341 = vdwg.mxu0
      %v2342 = vadd.f32 %v2286, %v2331
      %v2343 = vadd.f32 %v2287, %v2334
      %v2344 = vadd.f32 %v2288, %v2337
      %v2345 = vadd.f32 %v2289, %v2340
      %s2346 = scalar_lea.vmem %s2, 256
      %v2347 = vld [vmem:[%s2346] sm:$0xff]
      %v2348 = vld [vmem:[%s2346 + $0x8] sm:$0xff]
      %v2349 = vld [vmem:[%s2346 + $0x10] sm:$0xff]
      %v2350 = vld [vmem:[%s2346 + $0x18] sm:$0xff]
      %2351 = vrot.lane.b32.xlu0 %v1908, 106
      %v2352 = vpop.permute.xlu0 %2351
      %2353 = vrot.lane.b32.xlu0 %v1909, 106
      %v2354 = vpop.permute.xlu0 %2353
      %v2358 = vsel %vm1927, %v2347, 0
      %v2361 = vsel %vm1927, %v2348, 0
      %v2364 = vsel %vm1927, %v2349, 0
      %v2367 = vsel %vm1927, %v2350, 0
      %2369 = vmatpush.msra.mxu0 0.0
      %2370 = vmatpush.msra.mxu0 0.0
      %2371 = vmatpush.msra.mxu0 0.0
      %2372 = vmatpush.msra.mxu0 0.0
      %2373 = vmatpush.msra.mxu0 0.0
      %2374 = vmatpush.msra.mxu0 0.0
      %2375 = vmatpush.msra.mxu0 0.0
      %2376 = vmatpush.msra.mxu0 0.0
      %2377 = vmatpush.msra.mxu0 0.0
      %2378 = vmatpush.msra.mxu0 0.0
      %2379 = vmatpush.msra.mxu0 0.0
      %2380 = vmatpush.msra.mxu0 0.0
      %2381 = vmatpush.msra.mxu0 0.0
      %2382 = vmatpush.msra.mxu0 0.0
      %2383 = vmatpush.msra.mxu0 %v2354
      %2384 = vmatpush.msra.mxu0 %v2352
      %2385 = vmatmul.f32.gmra.mxu0 %v2358
      %v2386 = vpop.f32.mrf.mxu0
      %v2387 = vadd.f32 0.0, %v2386
      %2388 = vmatmul.f32.gmra.mxu0 %v2361
      %v2389 = vpop.f32.mrf.mxu0
      %v2390 = vadd.f32 0.0, %v2389
      %2391 = vmatmul.f32.gmra.mxu0 %v2364
      %v2392 = vpop.f32.mrf.mxu0
      %v2393 = vadd.f32 0.0, %v2392
      %2394 = vmatmul.f32.gmra.mxu0 %v2367
      %v2395 = vpop.f32.mrf.mxu0
      %v2396 = vadd.f32 0.0, %v2395
      %2397 = vdwg.mxu0
      %v2398 = vadd.f32 %v2342, %v2387
      %v2399 = vadd.f32 %v2343, %v2390
      %v2400 = vadd.f32 %v2344, %v2393
      %v2401 = vadd.f32 %v2345, %v2396
      %v2402 = vld [vmem:[%s8] sm:$0xff]
      %v2403 = vld [vmem:[%s8 + $0x8] sm:$0xff]
      %v2404 = vld [vmem:[%s8 + $0x10] sm:$0xff]
      %v2405 = vld [vmem:[%s8 + $0x18] sm:$0xff]
      %2407 = vset.pattern.permute.xlu0 0
      %2408 = vperm.xlu0 %2407, %v2402
      %v2409 = vpop.permute.xlu0 %2408
      %2412 = vset.pattern.permute.xlu0 0
      %2413 = vperm.xlu0 %2412, %v2403
      %v2414 = vpop.permute.xlu0 %2413
      %2417 = vset.pattern.permute.xlu0 0
      %2418 = vperm.xlu0 %2417, %v2404
      %v2419 = vpop.permute.xlu0 %2418
      %2422 = vset.pattern.permute.xlu0 0
      %2423 = vperm.xlu0 %2422, %v2405
      %v2424 = vpop.permute.xlu0 %2423
      %v2426 = vadd.f32 %v2398, %v2409
      %v2427 = vadd.f32 %v2399, %v2414
      %v2428 = vadd.f32 %v2400, %v2419
      %v2429 = vadd.f32 %v2401, %v2424
      %v2430 = vmax.f32 %v2426, 0.0
      %v2431 = vmax.f32 %v2427, 0.0
      %v2432 = vmax.f32 %v2428, 0.0
      %v2433 = vmax.f32 %v2429, 0.0
      %v2434 = vld [vmem:[%s14] sm:$0x7f]
      %vm2435 = vcmask 56320
      %v2437 = vsel %vm2435, %v2430, 0
      %v2440 = vsel %vm2435, %v2431, 0
      %v2443 = vsel %vm2435, %v2432, 0
      %v2446 = vsel %vm2435, %v2433, 0
      %v2449 = vsel %vm1565, %v2434, 0
      %2451 = vmatpush.msra.mxu0 0.0
      %2452 = vmatpush.msra.mxu0 0.0
      %2453 = vmatpush.msra.mxu0 0.0
      %2454 = vmatpush.msra.mxu0 0.0
      %2455 = vmatpush.msra.mxu0 0.0
      %2456 = vmatpush.msra.mxu0 0.0
      %2457 = vmatpush.msra.mxu0 0.0
      %2458 = vmatpush.msra.mxu0 0.0
      %2459 = vmatpush.msra.mxu0 0.0
      %2460 = vmatpush.msra.mxu0 0.0
      %2461 = vmatpush.msra.mxu0 0.0
      %2462 = vmatpush.msra.mxu0 0.0
      %2463 = vmatpush.msra.mxu0 0.0
      %2464 = vmatpush.msra.mxu0 0.0
      %2465 = vmatpush.msra.mxu0 0.0
      %2466 = vmatpush.msra.mxu0 %v2449
      %2467 = vmatmul.f32.gmra.mxu0 %v2437
      %v2468 = vpop.f32.mrf.mxu0
      %v2469 = vadd.f32 0.0, %v2468
      %2470 = vmatmul.f32.gmra.mxu0 %v2440
      %v2471 = vpop.f32.mrf.mxu0
      %v2472 = vadd.f32 0.0, %v2471
      %2473 = vmatmul.f32.gmra.mxu0 %v2443
      %v2474 = vpop.f32.mrf.mxu0
      %v2475 = vadd.f32 0.0, %v2474
      %2476 = vmatmul.f32.gmra.mxu0 %v2446
      %v2477 = vpop.f32.mrf.mxu0
      %v2478 = vadd.f32 0.0, %v2477
      %2479 = vdwg.mxu0
      %2484 = vrot.lane.b32.xlu0 %v2469, 6
      %v2485 = vpop.permute.xlu0 %2484
      %2486 = vrot.lane.b32.xlu0 %v2472, 6
      %v2487 = vpop.permute.xlu0 %2486
      %2488 = vrot.lane.b32.xlu0 %v2475, 6
      %v2489 = vpop.permute.xlu0 %2488
      %2490 = vrot.lane.b32.xlu0 %v2478, 6
      %v2491 = vpop.permute.xlu0 %2490
      %vm2496 = vcmask 97328
      %2497 = vst.msk [vmem:[#allocation3] sm:$0xff] %vm2496, %v2485
      %2498 = vst.msk [vmem:[#allocation3 + $0x8] sm:$0xff] %vm2496, %v2487
      %2499 = vst.msk [vmem:[#allocation3 + $0x10] sm:$0xff] %vm2496, %v2489
      %2500 = vst.msk [vmem:[#allocation3 + $0x18] sm:$0xff] %vm2496, %v2491
      %2501 = vrot.lane.b32.xlu0 %v2430, 108
      %v2502 = vpop.permute.xlu0 %2501
      %2503 = vrot.lane.b32.xlu0 %v2431, 108
      %v2504 = vpop.permute.xlu0 %2503
      %2505 = vrot.lane.b32.xlu0 %v2432, 108
      %v2506 = vpop.permute.xlu0 %2505
      %2507 = vrot.lane.b32.xlu0 %v2433, 108
      %v2508 = vpop.permute.xlu0 %2507
      %v2509 = vsel %vm2435, %v2502, 0
      %v2511 = vsel %vm2435, %v2504, 0
      %v2513 = vsel %vm2435, %v2506, 0
      %v2515 = vsel %vm2435, %v2508, 0
      %2517 = vmatpush.msra.mxu0 0.0
      %2518 = vmatpush.msra.mxu0 0.0
      %2519 = vmatpush.msra.mxu0 0.0
      %2520 = vmatpush.msra.mxu0 0.0
      %2521 = vmatpush.msra.mxu0 0.0
      %2522 = vmatpush.msra.mxu0 0.0
      %2523 = vmatpush.msra.mxu0 0.0
      %2524 = vmatpush.msra.mxu0 0.0
      %2525 = vmatpush.msra.mxu0 0.0
      %2526 = vmatpush.msra.mxu0 0.0
      %2527 = vmatpush.msra.mxu0 0.0
      %2528 = vmatpush.msra.mxu0 0.0
      %2529 = vmatpush.msra.mxu0 0.0
      %2530 = vmatpush.msra.mxu0 0.0
      %2531 = vmatpush.msra.mxu0 0.0
      %2532 = vmatpush.msra.mxu0 %v2449
      %2533 = vmatmul.f32.gmra.mxu0 %v2509
      %v2534 = vpop.f32.mrf.mxu0
      %v2535 = vadd.f32 0.0, %v2534
      %2536 = vmatmul.f32.gmra.mxu0 %v2511
      %v2537 = vpop.f32.mrf.mxu0
      %v2538 = vadd.f32 0.0, %v2537
      %2539 = vmatmul.f32.gmra.mxu0 %v2513
      %v2540 = vpop.f32.mrf.mxu0
      %v2541 = vadd.f32 0.0, %v2540
      %2542 = vmatmul.f32.gmra.mxu0 %v2515
      %v2543 = vpop.f32.mrf.mxu0
      %v2544 = vadd.f32 0.0, %v2543
      %2545 = vdwg.mxu0
      %2550 = vrot.lane.b32.xlu0 %v2535, 12
      %v2551 = vpop.permute.xlu0 %2550
      %2552 = vrot.lane.b32.xlu0 %v2538, 12
      %v2553 = vpop.permute.xlu0 %2552
      %2554 = vrot.lane.b32.xlu0 %v2541, 12
      %v2555 = vpop.permute.xlu0 %2554
      %2556 = vrot.lane.b32.xlu0 %v2544, 12
      %v2557 = vpop.permute.xlu0 %2556
      %vm2562 = vcmask 146528
      %2563 = vst.msk [vmem:[#allocation3] sm:$0xff] %vm2562, %v2551
      %2564 = vst.msk [vmem:[#allocation3 + $0x8] sm:$0xff] %vm2562, %v2553
      %2565 = vst.msk [vmem:[#allocation3 + $0x10] sm:$0xff] %vm2562, %v2555
      %2566 = vst.msk [vmem:[#allocation3 + $0x18] sm:$0xff] %vm2562, %v2557
      %2567 = vrot.lane.b32.xlu0 %v2430, 88
      %v2568 = vpop.permute.xlu0 %2567
      %2569 = vrot.lane.b32.xlu0 %v2431, 88
      %v2570 = vpop.permute.xlu0 %2569
      %2571 = vrot.lane.b32.xlu0 %v2432, 88
      %v2572 = vpop.permute.xlu0 %2571
      %2573 = vrot.lane.b32.xlu0 %v2433, 88
      %v2574 = vpop.permute.xlu0 %2573
      %v2575 = vsel %vm2435, %v2568, 0
      %v2577 = vsel %vm2435, %v2570, 0
      %v2579 = vsel %vm2435, %v2572, 0
      %v2581 = vsel %vm2435, %v2574, 0
      %2583 = vmatpush.msra.mxu0 0.0
      %2584 = vmatpush.msra.mxu0 0.0
      %2585 = vmatpush.msra.mxu0 0.0
      %2586 = vmatpush.msra.mxu0 0.0
      %2587 = vmatpush.msra.mxu0 0.0
      %2588 = vmatpush.msra.mxu0 0.0
      %2589 = vmatpush.msra.mxu0 0.0
      %2590 = vmatpush.msra.mxu0 0.0
      %2591 = vmatpush.msra.mxu0 0.0
      %2592 = vmatpush.msra.mxu0 0.0
      %2593 = vmatpush.msra.mxu0 0.0
      %2594 = vmatpush.msra.mxu0 0.0
      %2595 = vmatpush.msra.mxu0 0.0
      %2596 = vmatpush.msra.mxu0 0.0
      %2597 = vmatpush.msra.mxu0 0.0
      %2598 = vmatpush.msra.mxu0 %v2449
      %2599 = vmatmul.f32.gmra.mxu0 %v2575
      %v2600 = vpop.f32.mrf.mxu0
      %v2601 = vadd.f32 0.0, %v2600
      %2602 = vmatmul.f32.gmra.mxu0 %v2577
      %v2603 = vpop.f32.mrf.mxu0
      %v2604 = vadd.f32 0.0, %v2603
      %2605 = vmatmul.f32.gmra.mxu0 %v2579
      %v2606 = vpop.f32.mrf.mxu0
      %v2607 = vadd.f32 0.0, %v2606
      %2608 = vmatmul.f32.gmra.mxu0 %v2581
      %v2609 = vpop.f32.mrf.mxu0
      %v2610 = vadd.f32 0.0, %v2609
      %2611 = vdwg.mxu0
      %2616 = vrot.lane.b32.xlu0 %v2601, 18
      %v2617 = vpop.permute.xlu0 %2616
      %2618 = vrot.lane.b32.xlu0 %v2604, 18
      %v2619 = vpop.permute.xlu0 %2618
      %2620 = vrot.lane.b32.xlu0 %v2607, 18
      %v2621 = vpop.permute.xlu0 %2620
      %2622 = vrot.lane.b32.xlu0 %v2610, 18
      %v2623 = vpop.permute.xlu0 %2622
      %vm2628 = vcmask 195728
      %2629 = vst.msk [vmem:[#allocation3] sm:$0xff] %vm2628, %v2617
      %2630 = vst.msk [vmem:[#allocation3 + $0x8] sm:$0xff] %vm2628, %v2619
      %2631 = vst.msk [vmem:[#allocation3 + $0x10] sm:$0xff] %vm2628, %v2621
      %2632 = vst.msk [vmem:[#allocation3 + $0x18] sm:$0xff] %vm2628, %v2623
      %2633 = vrot.lane.b32.xlu0 %v2430, 68
      %v2634 = vpop.permute.xlu0 %2633
      %2635 = vrot.lane.b32.xlu0 %v2431, 68
      %v2636 = vpop.permute.xlu0 %2635
      %2637 = vrot.lane.b32.xlu0 %v2432, 68
      %v2638 = vpop.permute.xlu0 %2637
      %2639 = vrot.lane.b32.xlu0 %v2433, 68
      %v2640 = vpop.permute.xlu0 %2639
      %v2641 = vsel %vm2435, %v2634, 0
      %v2643 = vsel %vm2435, %v2636, 0
      %v2645 = vsel %vm2435, %v2638, 0
      %v2647 = vsel %vm2435, %v2640, 0
      %2649 = vmatpush.msra.mxu0 0.0
      %2650 = vmatpush.msra.mxu0 0.0
      %2651 = vmatpush.msra.mxu0 0.0
      %2652 = vmatpush.msra.mxu0 0.0
      %2653 = vmatpush.msra.mxu0 0.0
      %2654 = vmatpush.msra.mxu0 0.0
      %2655 = vmatpush.msra.mxu0 0.0
      %2656 = vmatpush.msra.mxu0 0.0
      %2657 = vmatpush.msra.mxu0 0.0
      %2658 = vmatpush.msra.mxu0 0.0
      %2659 = vmatpush.msra.mxu0 0.0
      %2660 = vmatpush.msra.mxu0 0.0
      %2661 = vmatpush.msra.mxu0 0.0
      %2662 = vmatpush.msra.mxu0 0.0
      %2663 = vmatpush.msra.mxu0 0.0
      %2664 = vmatpush.msra.mxu0 %v2449
      %2665 = vmatmul.f32.gmra.mxu0 %v2641
      %v2666 = vpop.f32.mrf.mxu0
      %v2667 = vadd.f32 0.0, %v2666
      %2668 = vmatmul.f32.gmra.mxu0 %v2643
      %v2669 = vpop.f32.mrf.mxu0
      %v2670 = vadd.f32 0.0, %v2669
      %2671 = vmatmul.f32.gmra.mxu0 %v2645
      %v2672 = vpop.f32.mrf.mxu0
      %v2673 = vadd.f32 0.0, %v2672
      %2674 = vmatmul.f32.gmra.mxu0 %v2647
      %v2675 = vpop.f32.mrf.mxu0
      %v2676 = vadd.f32 0.0, %v2675
      %2677 = vdwg.mxu0
      %2682 = vrot.lane.b32.xlu0 %v2667, 24
      %v2683 = vpop.permute.xlu0 %2682
      %2684 = vrot.lane.b32.xlu0 %v2670, 24
      %v2685 = vpop.permute.xlu0 %2684
      %2686 = vrot.lane.b32.xlu0 %v2673, 24
      %v2687 = vpop.permute.xlu0 %2686
      %2688 = vrot.lane.b32.xlu0 %v2676, 24
      %v2689 = vpop.permute.xlu0 %2688
      %vm2694 = vcmask 244928
      %2695 = vst.msk [vmem:[#allocation3] sm:$0xff] %vm2694, %v2683
      %2696 = vst.msk [vmem:[#allocation3 + $0x8] sm:$0xff] %vm2694, %v2685
      %2697 = vst.msk [vmem:[#allocation3 + $0x10] sm:$0xff] %vm2694, %v2687
      %2698 = vst.msk [vmem:[#allocation3 + $0x18] sm:$0xff] %vm2694, %v2689
      %v2699 = vld [vmem:[#allocation3] sm:$0xff]
      %v2700 = vld [vmem:[#allocation3 + $0x8] sm:$0xff]
      %v2701 = vld [vmem:[#allocation3 + $0x10] sm:$0xff]
      %v2702 = vld [vmem:[#allocation3 + $0x18] sm:$0xff]
      %v2703 = vld [vmem:[%s3] sm:$0xff]
      %v2704 = vld [vmem:[%s3 + $0x8] sm:$0xff]
      %v2705 = vld [vmem:[%s3 + $0x10] sm:$0xff]
      %v2706 = vld [vmem:[%s3 + $0x18] sm:$0xff]
      %v2707 = vld [vmem:[%s3 + $0x20] sm:$0xff]
      %v2708 = vld [vmem:[%s3 + $0x28] sm:$0xff]
      %v2709 = vld [vmem:[%s3 + $0x30] sm:$0xff]
      %v2710 = vld [vmem:[%s3 + $0x38] sm:$0xff]
      %s2711 = scalar_lea.vmem %s3, 64
      %v2712 = vld [vmem:[%s2711] sm:$0xff]
      %v2713 = vld [vmem:[%s2711 + $0x8] sm:$0xff]
      %v2714 = vld [vmem:[%s2711 + $0x10] sm:$0xff]
      %v2715 = vld [vmem:[%s2711 + $0x18] sm:$0xff]
      %v2716 = vld [vmem:[%s2711 + $0x20] sm:$0xff]
      %v2717 = vld [vmem:[%s2711 + $0x28] sm:$0xff]
      %v2718 = vld [vmem:[%s2711 + $0x30] sm:$0xff]
      %v2719 = vld [vmem:[%s2711 + $0x38] sm:$0xff]
      %2724 = vrot.lane.b32.xlu0 %v2699, 127
      %v2725 = vpop.permute.xlu0 %2724
      %2726 = vrot.lane.b32.xlu0 %v2700, 127
      %v2727 = vpop.permute.xlu0 %2726
      %2728 = vrot.lane.b32.xlu0 %v2701, 127
      %v2729 = vpop.permute.xlu0 %2728
      %2730 = vrot.lane.b32.xlu0 %v2702, 127
      %v2731 = vpop.permute.xlu0 %2730
      %vm2736 = vcmask 261120
      %v2738 = vsel %vm2736, %v2712, 0
      %v2741 = vsel %vm2736, %v2713, 0
      %v2744 = vsel %vm2736, %v2714, 0
      %v2747 = vsel %vm2736, %v2715, 0
      %v2750 = vsel %vm2736, %v2716, 0
      %v2753 = vsel %vm2736, %v2717, 0
      %v2756 = vsel %vm2736, %v2718, 0
      %v2759 = vsel %vm2736, %v2719, 0
      %2761 = vmatpush.msra.mxu0 0.0
      %2762 = vmatpush.msra.mxu0 0.0
      %2763 = vmatpush.msra.mxu0 0.0
      %2764 = vmatpush.msra.mxu0 0.0
      %2765 = vmatpush.msra.mxu0 0.0
      %2766 = vmatpush.msra.mxu0 0.0
      %2767 = vmatpush.msra.mxu0 0.0
      %2768 = vmatpush.msra.mxu0 0.0
      %2769 = vmatpush.msra.mxu0 0.0
      %2770 = vmatpush.msra.mxu0 0.0
      %2771 = vmatpush.msra.mxu0 0.0
      %2772 = vmatpush.msra.mxu0 0.0
      %2773 = vmatpush.msra.mxu0 %v2731
      %2774 = vmatpush.msra.mxu0 %v2729
      %2775 = vmatpush.msra.mxu0 %v2727
      %2776 = vmatpush.msra.mxu0 %v2725
      %2777 = vmatmul.f32.gmra.mxu0 %v2738
      %v2778 = vpop.f32.mrf.mxu0
      %v2779 = vadd.f32 0.0, %v2778
      %2780 = vmatmul.f32.gmra.mxu0 %v2741
      %v2781 = vpop.f32.mrf.mxu0
      %v2782 = vadd.f32 0.0, %v2781
      %2783 = vmatmul.f32.gmra.mxu0 %v2744
      %v2784 = vpop.f32.mrf.mxu0
      %v2785 = vadd.f32 0.0, %v2784
      %2786 = vmatmul.f32.gmra.mxu0 %v2747
      %v2787 = vpop.f32.mrf.mxu0
      %v2788 = vadd.f32 0.0, %v2787
      %2789 = vmatmul.f32.gmra.mxu0 %v2750
      %v2790 = vpop.f32.mrf.mxu0
      %v2791 = vadd.f32 0.0, %v2790
      %2792 = vmatmul.f32.gmra.mxu0 %v2753
      %v2793 = vpop.f32.mrf.mxu0
      %v2794 = vadd.f32 0.0, %v2793
      %2795 = vmatmul.f32.gmra.mxu0 %v2756
      %v2796 = vpop.f32.mrf.mxu0
      %v2797 = vadd.f32 0.0, %v2796
      %2798 = vmatmul.f32.gmra.mxu0 %v2759
      %v2799 = vpop.f32.mrf.mxu0
      %v2800 = vadd.f32 0.0, %v2799
      %2801 = vdwg.mxu0
      %v2803 = vsel %vm2736, %v2703, 0
      %v2806 = vsel %vm2736, %v2704, 0
      %v2809 = vsel %vm2736, %v2705, 0
      %v2812 = vsel %vm2736, %v2706, 0
      %v2815 = vsel %vm2736, %v2707, 0
      %v2818 = vsel %vm2736, %v2708, 0
      %v2821 = vsel %vm2736, %v2709, 0
      %v2824 = vsel %vm2736, %v2710, 0
      %2826 = vmatpush.msra.mxu0 0.0
      %2827 = vmatpush.msra.mxu0 0.0
      %2828 = vmatpush.msra.mxu0 0.0
      %2829 = vmatpush.msra.mxu0 0.0
      %2830 = vmatpush.msra.mxu0 0.0
      %2831 = vmatpush.msra.mxu0 0.0
      %2832 = vmatpush.msra.mxu0 0.0
      %2833 = vmatpush.msra.mxu0 0.0
      %2834 = vmatpush.msra.mxu0 0.0
      %2835 = vmatpush.msra.mxu0 0.0
      %2836 = vmatpush.msra.mxu0 0.0
      %2837 = vmatpush.msra.mxu0 0.0
      %2838 = vmatpush.msra.mxu0 %v2702
      %2839 = vmatpush.msra.mxu0 %v2701
      %2840 = vmatpush.msra.mxu0 %v2700
      %2841 = vmatpush.msra.mxu0 %v2699
      %2842 = vmatmul.f32.gmra.mxu0 %v2803
      %v2843 = vpop.f32.mrf.mxu0
      %v2844 = vadd.f32 %v2779, %v2843
      %2845 = vmatmul.f32.gmra.mxu0 %v2806
      %v2846 = vpop.f32.mrf.mxu0
      %v2847 = vadd.f32 %v2782, %v2846
      %2848 = vmatmul.f32.gmra.mxu0 %v2809
      %v2849 = vpop.f32.mrf.mxu0
      %v2850 = vadd.f32 %v2785, %v2849
      %2851 = vmatmul.f32.gmra.mxu0 %v2812
      %v2852 = vpop.f32.mrf.mxu0
      %v2853 = vadd.f32 %v2788, %v2852
      %2854 = vmatmul.f32.gmra.mxu0 %v2815
      %v2855 = vpop.f32.mrf.mxu0
      %v2856 = vadd.f32 %v2791, %v2855
      %2857 = vmatmul.f32.gmra.mxu0 %v2818
      %v2858 = vpop.f32.mrf.mxu0
      %v2859 = vadd.f32 %v2794, %v2858
      %2860 = vmatmul.f32.gmra.mxu0 %v2821
      %v2861 = vpop.f32.mrf.mxu0
      %v2862 = vadd.f32 %v2797, %v2861
      %2863 = vmatmul.f32.gmra.mxu0 %v2824
      %v2864 = vpop.f32.mrf.mxu0
      %v2865 = vadd.f32 %v2800, %v2864
      %2866 = vdwg.mxu0
      %s2867 = scalar_lea.vmem %s3, 128
      %v2868 = vld [vmem:[%s2867] sm:$0xff]
      %v2869 = vld [vmem:[%s2867 + $0x8] sm:$0xff]
      %v2870 = vld [vmem:[%s2867 + $0x10] sm:$0xff]
      %v2871 = vld [vmem:[%s2867 + $0x18] sm:$0xff]
      %v2872 = vld [vmem:[%s2867 + $0x20] sm:$0xff]
      %v2873 = vld [vmem:[%s2867 + $0x28] sm:$0xff]
      %v2874 = vld [vmem:[%s2867 + $0x30] sm:$0xff]
      %v2875 = vld [vmem:[%s2867 + $0x38] sm:$0xff]
      %2876 = vrot.lane.b32.xlu0 %v2699, 126
      %v2877 = vpop.permute.xlu0 %2876
      %2878 = vrot.lane.b32.xlu0 %v2700, 126
      %v2879 = vpop.permute.xlu0 %2878
      %2880 = vrot.lane.b32.xlu0 %v2701, 126
      %v2881 = vpop.permute.xlu0 %2880
      %2882 = vrot.lane.b32.xlu0 %v2702, 126
      %v2883 = vpop.permute.xlu0 %2882
      %v2889 = vsel %vm2736, %v2868, 0
      %v2892 = vsel %vm2736, %v2869, 0
      %v2895 = vsel %vm2736, %v2870, 0
      %v2898 = vsel %vm2736, %v2871, 0
      %v2901 = vsel %vm2736, %v2872, 0
      %v2904 = vsel %vm2736, %v2873, 0
      %v2907 = vsel %vm2736, %v2874, 0
      %v2910 = vsel %vm2736, %v2875, 0
      %2912 = vmatpush.msra.mxu0 0.0
      %2913 = vmatpush.msra.mxu0 0.0
      %2914 = vmatpush.msra.mxu0 0.0
      %2915 = vmatpush.msra.mxu0 0.0
      %2916 = vmatpush.msra.mxu0 0.0
      %2917 = vmatpush.msra.mxu0 0.0
      %2918 = vmatpush.msra.mxu0 0.0
      %2919 = vmatpush.msra.mxu0 0.0
      %2920 = vmatpush.msra.mxu0 0.0
      %2921 = vmatpush.msra.mxu0 0.0
      %2922 = vmatpush.msra.mxu0 0.0
      %2923 = vmatpush.msra.mxu0 0.0
      %2924 = vmatpush.msra.mxu0 %v2883
      %2925 = vmatpush.msra.mxu0 %v2881
      %2926 = vmatpush.msra.mxu0 %v2879
      %2927 = vmatpush.msra.mxu0 %v2877
      %2928 = vmatmul.f32.gmra.mxu0 %v2889
      %v2929 = vpop.f32.mrf.mxu0
      %v2930 = vadd.f32 0.0, %v2929
      %2931 = vmatmul.f32.gmra.mxu0 %v2892
      %v2932 = vpop.f32.mrf.mxu0
      %v2933 = vadd.f32 0.0, %v2932
      %2934 = vmatmul.f32.gmra.mxu0 %v2895
      %v2935 = vpop.f32.mrf.mxu0
      %v2936 = vadd.f32 0.0, %v2935
      %2937 = vmatmul.f32.gmra.mxu0 %v2898
      %v2938 = vpop.f32.mrf.mxu0
      %v2939 = vadd.f32 0.0, %v2938
      %2940 = vmatmul.f32.gmra.mxu0 %v2901
      %v2941 = vpop.f32.mrf.mxu0
      %v2942 = vadd.f32 0.0, %v2941
      %2943 = vmatmul.f32.gmra.mxu0 %v2904
      %v2944 = vpop.f32.mrf.mxu0
      %v2945 = vadd.f32 0.0, %v2944
      %2946 = vmatmul.f32.gmra.mxu0 %v2907
      %v2947 = vpop.f32.mrf.mxu0
      %v2948 = vadd.f32 0.0, %v2947
      %2949 = vmatmul.f32.gmra.mxu0 %v2910
      %v2950 = vpop.f32.mrf.mxu0
      %v2951 = vadd.f32 0.0, %v2950
      %2952 = vdwg.mxu0
      %v2953 = vadd.f32 %v2844, %v2930
      %v2954 = vadd.f32 %v2847, %v2933
      %v2955 = vadd.f32 %v2850, %v2936
      %v2956 = vadd.f32 %v2853, %v2939
      %v2957 = vadd.f32 %v2856, %v2942
      %v2958 = vadd.f32 %v2859, %v2945
      %v2959 = vadd.f32 %v2862, %v2948
      %v2960 = vadd.f32 %v2865, %v2951
      %s2961 = scalar_lea.vmem %s3, 192
      %v2962 = vld [vmem:[%s2961] sm:$0xff]
      %v2963 = vld [vmem:[%s2961 + $0x8] sm:$0xff]
      %v2964 = vld [vmem:[%s2961 + $0x10] sm:$0xff]
      %v2965 = vld [vmem:[%s2961 + $0x18] sm:$0xff]
      %v2966 = vld [vmem:[%s2961 + $0x20] sm:$0xff]
      %v2967 = vld [vmem:[%s2961 + $0x28] sm:$0xff]
      %v2968 = vld [vmem:[%s2961 + $0x30] sm:$0xff]
      %v2969 = vld [vmem:[%s2961 + $0x38] sm:$0xff]
      %2970 = vrot.lane.b32.xlu0 %v2699, 122
      %v2971 = vpop.permute.xlu0 %2970
      %2972 = vrot.lane.b32.xlu0 %v2700, 122
      %v2973 = vpop.permute.xlu0 %2972
      %2974 = vrot.lane.b32.xlu0 %v2701, 122
      %v2975 = vpop.permute.xlu0 %2974
      %2976 = vrot.lane.b32.xlu0 %v2702, 122
      %v2977 = vpop.permute.xlu0 %2976
      %v2983 = vsel %vm2736, %v2962, 0
      %v2986 = vsel %vm2736, %v2963, 0
      %v2989 = vsel %vm2736, %v2964, 0
      %v2992 = vsel %vm2736, %v2965, 0
      %v2995 = vsel %vm2736, %v2966, 0
      %v2998 = vsel %vm2736, %v2967, 0
      %v3001 = vsel %vm2736, %v2968, 0
      %v3004 = vsel %vm2736, %v2969, 0
      %3006 = vmatpush.msra.mxu0 0.0
      %3007 = vmatpush.msra.mxu0 0.0
      %3008 = vmatpush.msra.mxu0 0.0
      %3009 = vmatpush.msra.mxu0 0.0
      %3010 = vmatpush.msra.mxu0 0.0
      %3011 = vmatpush.msra.mxu0 0.0
      %3012 = vmatpush.msra.mxu0 0.0
      %3013 = vmatpush.msra.mxu0 0.0
      %3014 = vmatpush.msra.mxu0 0.0
      %3015 = vmatpush.msra.mxu0 0.0
      %3016 = vmatpush.msra.mxu0 0.0
      %3017 = vmatpush.msra.mxu0 0.0
      %3018 = vmatpush.msra.mxu0 %v2977
      %3019 = vmatpush.msra.mxu0 %v2975
      %3020 = vmatpush.msra.mxu0 %v2973
      %3021 = vmatpush.msra.mxu0 %v2971
      %3022 = vmatmul.f32.gmra.mxu0 %v2983
      %v3023 = vpop.f32.mrf.mxu0
      %v3024 = vadd.f32 0.0, %v3023
      %3025 = vmatmul.f32.gmra.mxu0 %v2986
      %v3026 = vpop.f32.mrf.mxu0
      %v3027 = vadd.f32 0.0, %v3026
      %3028 = vmatmul.f32.gmra.mxu0 %v2989
      %v3029 = vpop.f32.mrf.mxu0
      %v3030 = vadd.f32 0.0, %v3029
      %3031 = vmatmul.f32.gmra.mxu0 %v2992
      %v3032 = vpop.f32.mrf.mxu0
      %v3033 = vadd.f32 0.0, %v3032
      %3034 = vmatmul.f32.gmra.mxu0 %v2995
      %v3035 = vpop.f32.mrf.mxu0
      %v3036 = vadd.f32 0.0, %v3035
      %3037 = vmatmul.f32.gmra.mxu0 %v2998
      %v3038 = vpop.f32.mrf.mxu0
      %v3039 = vadd.f32 0.0, %v3038
      %3040 = vmatmul.f32.gmra.mxu0 %v3001
      %v3041 = vpop.f32.mrf.mxu0
      %v3042 = vadd.f32 0.0, %v3041
      %3043 = vmatmul.f32.gmra.mxu0 %v3004
      %v3044 = vpop.f32.mrf.mxu0
      %v3045 = vadd.f32 0.0, %v3044
      %3046 = vdwg.mxu0
      %v3047 = vadd.f32 %v2953, %v3024
      %v3048 = vadd.f32 %v2954, %v3027
      %v3049 = vadd.f32 %v2955, %v3030
      %v3050 = vadd.f32 %v2956, %v3033
      %v3051 = vadd.f32 %v2957, %v3036
      %v3052 = vadd.f32 %v2958, %v3039
      %v3053 = vadd.f32 %v2959, %v3042
      %v3054 = vadd.f32 %v2960, %v3045
      %s3055 = scalar_lea.vmem %s3, 256
      %v3056 = vld [vmem:[%s3055] sm:$0xff]
      %v3057 = vld [vmem:[%s3055 + $0x8] sm:$0xff]
      %v3058 = vld [vmem:[%s3055 + $0x10] sm:$0xff]
      %v3059 = vld [vmem:[%s3055 + $0x18] sm:$0xff]
      %v3060 = vld [vmem:[%s3055 + $0x20] sm:$0xff]
      %v3061 = vld [vmem:[%s3055 + $0x28] sm:$0xff]
      %v3062 = vld [vmem:[%s3055 + $0x30] sm:$0xff]
      %v3063 = vld [vmem:[%s3055 + $0x38] sm:$0xff]
      %3064 = vrot.lane.b32.xlu0 %v2699, 121
      %v3065 = vpop.permute.xlu0 %3064
      %3066 = vrot.lane.b32.xlu0 %v2700, 121
      %v3067 = vpop.permute.xlu0 %3066
      %3068 = vrot.lane.b32.xlu0 %v2701, 121
      %v3069 = vpop.permute.xlu0 %3068
      %3070 = vrot.lane.b32.xlu0 %v2702, 121
      %v3071 = vpop.permute.xlu0 %3070
      %v3077 = vsel %vm2736, %v3056, 0
      %v3080 = vsel %vm2736, %v3057, 0
      %v3083 = vsel %vm2736, %v3058, 0
      %v3086 = vsel %vm2736, %v3059, 0
      %v3089 = vsel %vm2736, %v3060, 0
      %v3092 = vsel %vm2736, %v3061, 0
      %v3095 = vsel %vm2736, %v3062, 0
      %v3098 = vsel %vm2736, %v3063, 0
      %3100 = vmatpush.msra.mxu0 0.0
      %3101 = vmatpush.msra.mxu0 0.0
      %3102 = vmatpush.msra.mxu0 0.0
      %3103 = vmatpush.msra.mxu0 0.0
      %3104 = vmatpush.msra.mxu0 0.0
      %3105 = vmatpush.msra.mxu0 0.0
      %3106 = vmatpush.msra.mxu0 0.0
      %3107 = vmatpush.msra.mxu0 0.0
      %3108 = vmatpush.msra.mxu0 0.0
      %3109 = vmatpush.msra.mxu0 0.0
      %3110 = vmatpush.msra.mxu0 0.0
      %3111 = vmatpush.msra.mxu0 0.0
      %3112 = vmatpush.msra.mxu0 %v3071
      %3113 = vmatpush.msra.mxu0 %v3069
      %3114 = vmatpush.msra.mxu0 %v3067
      %3115 = vmatpush.msra.mxu0 %v3065
      %3116 = vmatmul.f32.gmra.mxu0 %v3077
      %v3117 = vpop.f32.mrf.mxu0
      %v3118 = vadd.f32 0.0, %v3117
      %3119 = vmatmul.f32.gmra.mxu0 %v3080
      %v3120 = vpop.f32.mrf.mxu0
      %v3121 = vadd.f32 0.0, %v3120
      %3122 = vmatmul.f32.gmra.mxu0 %v3083
      %v3123 = vpop.f32.mrf.mxu0
      %v3124 = vadd.f32 0.0, %v3123
      %3125 = vmatmul.f32.gmra.mxu0 %v3086
      %v3126 = vpop.f32.mrf.mxu0
      %v3127 = vadd.f32 0.0, %v3126
      %3128 = vmatmul.f32.gmra.mxu0 %v3089
      %v3129 = vpop.f32.mrf.mxu0
      %v3130 = vadd.f32 0.0, %v3129
      %3131 = vmatmul.f32.gmra.mxu0 %v3092
      %v3132 = vpop.f32.mrf.mxu0
      %v3133 = vadd.f32 0.0, %v3132
      %3134 = vmatmul.f32.gmra.mxu0 %v3095
      %v3135 = vpop.f32.mrf.mxu0
      %v3136 = vadd.f32 0.0, %v3135
      %3137 = vmatmul.f32.gmra.mxu0 %v3098
      %v3138 = vpop.f32.mrf.mxu0
      %v3139 = vadd.f32 0.0, %v3138
      %3140 = vdwg.mxu0
      %v3141 = vadd.f32 %v3047, %v3118
      %v3142 = vadd.f32 %v3048, %v3121
      %v3143 = vadd.f32 %v3049, %v3124
      %v3144 = vadd.f32 %v3050, %v3127
      %v3145 = vadd.f32 %v3051, %v3130
      %v3146 = vadd.f32 %v3052, %v3133
      %v3147 = vadd.f32 %v3053, %v3136
      %v3148 = vadd.f32 %v3054, %v3139
      %s3149 = scalar_lea.vmem %s3, 320
      %v3150 = vld [vmem:[%s3149] sm:$0xff]
      %v3151 = vld [vmem:[%s3149 + $0x8] sm:$0xff]
      %v3152 = vld [vmem:[%s3149 + $0x10] sm:$0xff]
      %v3153 = vld [vmem:[%s3149 + $0x18] sm:$0xff]
      %v3154 = vld [vmem:[%s3149 + $0x20] sm:$0xff]
      %v3155 = vld [vmem:[%s3149 + $0x28] sm:$0xff]
      %v3156 = vld [vmem:[%s3149 + $0x30] sm:$0xff]
      %v3157 = vld [vmem:[%s3149 + $0x38] sm:$0xff]
      %3158 = vrot.lane.b32.xlu0 %v2699, 120
      %v3159 = vpop.permute.xlu0 %3158
      %3160 = vrot.lane.b32.xlu0 %v2700, 120
      %v3161 = vpop.permute.xlu0 %3160
      %3162 = vrot.lane.b32.xlu0 %v2701, 120
      %v3163 = vpop.permute.xlu0 %3162
      %3164 = vrot.lane.b32.xlu0 %v2702, 120
      %v3165 = vpop.permute.xlu0 %3164
      %v3171 = vsel %vm2736, %v3150, 0
      %v3174 = vsel %vm2736, %v3151, 0
      %v3177 = vsel %vm2736, %v3152, 0
      %v3180 = vsel %vm2736, %v3153, 0
      %v3183 = vsel %vm2736, %v3154, 0
      %v3186 = vsel %vm2736, %v3155, 0
      %v3189 = vsel %vm2736, %v3156, 0
      %v3192 = vsel %vm2736, %v3157, 0
      %3194 = vmatpush.msra.mxu0 0.0
      %3195 = vmatpush.msra.mxu0 0.0
      %3196 = vmatpush.msra.mxu0 0.0
      %3197 = vmatpush.msra.mxu0 0.0
      %3198 = vmatpush.msra.mxu0 0.0
      %3199 = vmatpush.msra.mxu0 0.0
      %3200 = vmatpush.msra.mxu0 0.0
      %3201 = vmatpush.msra.mxu0 0.0
      %3202 = vmatpush.msra.mxu0 0.0
      %3203 = vmatpush.msra.mxu0 0.0
      %3204 = vmatpush.msra.mxu0 0.0
      %3205 = vmatpush.msra.mxu0 0.0
      %3206 = vmatpush.msra.mxu0 %v3165
      %3207 = vmatpush.msra.mxu0 %v3163
      %3208 = vmatpush.msra.mxu0 %v3161
      %3209 = vmatpush.msra.mxu0 %v3159
      %3210 = vmatmul.f32.gmra.mxu0 %v3171
      %v3211 = vpop.f32.mrf.mxu0
      %v3212 = vadd.f32 0.0, %v3211
      %3213 = vmatmul.f32.gmra.mxu0 %v3174
      %v3214 = vpop.f32.mrf.mxu0
      %v3215 = vadd.f32 0.0, %v3214
      %3216 = vmatmul.f32.gmra.mxu0 %v3177
      %v3217 = vpop.f32.mrf.mxu0
      %v3218 = vadd.f32 0.0, %v3217
      %3219 = vmatmul.f32.gmra.mxu0 %v3180
      %v3220 = vpop.f32.mrf.mxu0
      %v3221 = vadd.f32 0.0, %v3220
      %3222 = vmatmul.f32.gmra.mxu0 %v3183
      %v3223 = vpop.f32.mrf.mxu0
      %v3224 = vadd.f32 0.0, %v3223
      %3225 = vmatmul.f32.gmra.mxu0 %v3186
      %v3226 = vpop.f32.mrf.mxu0
      %v3227 = vadd.f32 0.0, %v3226
      %3228 = vmatmul.f32.gmra.mxu0 %v3189
      %v3229 = vpop.f32.mrf.mxu0
      %v3230 = vadd.f32 0.0, %v3229
      %3231 = vmatmul.f32.gmra.mxu0 %v3192
      %v3232 = vpop.f32.mrf.mxu0
      %v3233 = vadd.f32 0.0, %v3232
      %3234 = vdwg.mxu0
      %v3235 = vadd.f32 %v3141, %v3212
      %v3236 = vadd.f32 %v3142, %v3215
      %v3237 = vadd.f32 %v3143, %v3218
      %v3238 = vadd.f32 %v3144, %v3221
      %v3239 = vadd.f32 %v3145, %v3224
      %v3240 = vadd.f32 %v3146, %v3227
      %v3241 = vadd.f32 %v3147, %v3230
      %v3242 = vadd.f32 %v3148, %v3233
      %s3243 = scalar_lea.vmem %s3, 384
      %v3244 = vld [vmem:[%s3243] sm:$0xff]
      %v3245 = vld [vmem:[%s3243 + $0x8] sm:$0xff]
      %v3246 = vld [vmem:[%s3243 + $0x10] sm:$0xff]
      %v3247 = vld [vmem:[%s3243 + $0x18] sm:$0xff]
      %v3248 = vld [vmem:[%s3243 + $0x20] sm:$0xff]
      %v3249 = vld [vmem:[%s3243 + $0x28] sm:$0xff]
      %v3250 = vld [vmem:[%s3243 + $0x30] sm:$0xff]
      %v3251 = vld [vmem:[%s3243 + $0x38] sm:$0xff]
      %3252 = vrot.lane.b32.xlu0 %v2699, 116
      %v3253 = vpop.permute.xlu0 %3252
      %3254 = vrot.lane.b32.xlu0 %v2700, 116
      %v3255 = vpop.permute.xlu0 %3254
      %3256 = vrot.lane.b32.xlu0 %v2701, 116
      %v3257 = vpop.permute.xlu0 %3256
      %3258 = vrot.lane.b32.xlu0 %v2702, 116
      %v3259 = vpop.permute.xlu0 %3258
      %v3265 = vsel %vm2736, %v3244, 0
      %v3268 = vsel %vm2736, %v3245, 0
      %v3271 = vsel %vm2736, %v3246, 0
      %v3274 = vsel %vm2736, %v3247, 0
      %v3277 = vsel %vm2736, %v3248, 0
      %v3280 = vsel %vm2736, %v3249, 0
      %v3283 = vsel %vm2736, %v3250, 0
      %v3286 = vsel %vm2736, %v3251, 0
      %3288 = vmatpush.msra.mxu0 0.0
      %3289 = vmatpush.msra.mxu0 0.0
      %3290 = vmatpush.msra.mxu0 0.0
      %3291 = vmatpush.msra.mxu0 0.0
      %3292 = vmatpush.msra.mxu0 0.0
      %3293 = vmatpush.msra.mxu0 0.0
      %3294 = vmatpush.msra.mxu0 0.0
      %3295 = vmatpush.msra.mxu0 0.0
      %3296 = vmatpush.msra.mxu0 0.0
      %3297 = vmatpush.msra.mxu0 0.0
      %3298 = vmatpush.msra.mxu0 0.0
      %3299 = vmatpush.msra.mxu0 0.0
      %3300 = vmatpush.msra.mxu0 %v3259
      %3301 = vmatpush.msra.mxu0 %v3257
      %3302 = vmatpush.msra.mxu0 %v3255
      %3303 = vmatpush.msra.mxu0 %v3253
      %3304 = vmatmul.f32.gmra.mxu0 %v3265
      %v3305 = vpop.f32.mrf.mxu0
      %v3306 = vadd.f32 0.0, %v3305
      %3307 = vmatmul.f32.gmra.mxu0 %v3268
      %v3308 = vpop.f32.mrf.mxu0
      %v3309 = vadd.f32 0.0, %v3308
      %3310 = vmatmul.f32.gmra.mxu0 %v3271
      %v3311 = vpop.f32.mrf.mxu0
      %v3312 = vadd.f32 0.0, %v3311
      %3313 = vmatmul.f32.gmra.mxu0 %v3274
      %v3314 = vpop.f32.mrf.mxu0
      %v3315 = vadd.f32 0.0, %v3314
      %3316 = vmatmul.f32.gmra.mxu0 %v3277
      %v3317 = vpop.f32.mrf.mxu0
      %v3318 = vadd.f32 0.0, %v3317
      %3319 = vmatmul.f32.gmra.mxu0 %v3280
      %v3320 = vpop.f32.mrf.mxu0
      %v3321 = vadd.f32 0.0, %v3320
      %3322 = vmatmul.f32.gmra.mxu0 %v3283
      %v3323 = vpop.f32.mrf.mxu0
      %v3324 = vadd.f32 0.0, %v3323
      %3325 = vmatmul.f32.gmra.mxu0 %v3286
      %v3326 = vpop.f32.mrf.mxu0
      %v3327 = vadd.f32 0.0, %v3326
      %3328 = vdwg.mxu0
      %v3329 = vadd.f32 %v3235, %v3306
      %v3330 = vadd.f32 %v3236, %v3309
      %v3331 = vadd.f32 %v3237, %v3312
      %v3332 = vadd.f32 %v3238, %v3315
      %v3333 = vadd.f32 %v3239, %v3318
      %v3334 = vadd.f32 %v3240, %v3321
      %v3335 = vadd.f32 %v3241, %v3324
      %v3336 = vadd.f32 %v3242, %v3327
      %s3337 = scalar_lea.vmem %s3, 448
      %v3338 = vld [vmem:[%s3337] sm:$0xff]
      %v3339 = vld [vmem:[%s3337 + $0x8] sm:$0xff]
      %v3340 = vld [vmem:[%s3337 + $0x10] sm:$0xff]
      %v3341 = vld [vmem:[%s3337 + $0x18] sm:$0xff]
      %v3342 = vld [vmem:[%s3337 + $0x20] sm:$0xff]
      %v3343 = vld [vmem:[%s3337 + $0x28] sm:$0xff]
      %v3344 = vld [vmem:[%s3337 + $0x30] sm:$0xff]
      %v3345 = vld [vmem:[%s3337 + $0x38] sm:$0xff]
      %3346 = vrot.lane.b32.xlu0 %v2699, 115
      %v3347 = vpop.permute.xlu0 %3346
      %3348 = vrot.lane.b32.xlu0 %v2700, 115
      %v3349 = vpop.permute.xlu0 %3348
      %3350 = vrot.lane.b32.xlu0 %v2701, 115
      %v3351 = vpop.permute.xlu0 %3350
      %3352 = vrot.lane.b32.xlu0 %v2702, 115
      %v3353 = vpop.permute.xlu0 %3352
      %v3359 = vsel %vm2736, %v3338, 0
      %v3362 = vsel %vm2736, %v3339, 0
      %v3365 = vsel %vm2736, %v3340, 0
      %v3368 = vsel %vm2736, %v3341, 0
      %v3371 = vsel %vm2736, %v3342, 0
      %v3374 = vsel %vm2736, %v3343, 0
      %v3377 = vsel %vm2736, %v3344, 0
      %v3380 = vsel %vm2736, %v3345, 0
      %3382 = vmatpush.msra.mxu0 0.0
      %3383 = vmatpush.msra.mxu0 0.0
      %3384 = vmatpush.msra.mxu0 0.0
      %3385 = vmatpush.msra.mxu0 0.0
      %3386 = vmatpush.msra.mxu0 0.0
      %3387 = vmatpush.msra.mxu0 0.0
      %3388 = vmatpush.msra.mxu0 0.0
      %3389 = vmatpush.msra.mxu0 0.0
      %3390 = vmatpush.msra.mxu0 0.0
      %3391 = vmatpush.msra.mxu0 0.0
      %3392 = vmatpush.msra.mxu0 0.0
      %3393 = vmatpush.msra.mxu0 0.0
      %3394 = vmatpush.msra.mxu0 %v3353
      %3395 = vmatpush.msra.mxu0 %v3351
      %3396 = vmatpush.msra.mxu0 %v3349
      %3397 = vmatpush.msra.mxu0 %v3347
      %3398 = vmatmul.f32.gmra.mxu0 %v3359
      %v3399 = vpop.f32.mrf.mxu0
      %v3400 = vadd.f32 0.0, %v3399
      %3401 = vmatmul.f32.gmra.mxu0 %v3362
      %v3402 = vpop.f32.mrf.mxu0
      %v3403 = vadd.f32 0.0, %v3402
      %3404 = vmatmul.f32.gmra.mxu0 %v3365
      %v3405 = vpop.f32.mrf.mxu0
      %v3406 = vadd.f32 0.0, %v3405
      %3407 = vmatmul.f32.gmra.mxu0 %v3368
      %v3408 = vpop.f32.mrf.mxu0
      %v3409 = vadd.f32 0.0, %v3408
      %3410 = vmatmul.f32.gmra.mxu0 %v3371
      %v3411 = vpop.f32.mrf.mxu0
      %v3412 = vadd.f32 0.0, %v3411
      %3413 = vmatmul.f32.gmra.mxu0 %v3374
      %v3414 = vpop.f32.mrf.mxu0
      %v3415 = vadd.f32 0.0, %v3414
      %3416 = vmatmul.f32.gmra.mxu0 %v3377
      %v3417 = vpop.f32.mrf.mxu0
      %v3418 = vadd.f32 0.0, %v3417
      %3419 = vmatmul.f32.gmra.mxu0 %v3380
      %v3420 = vpop.f32.mrf.mxu0
      %v3421 = vadd.f32 0.0, %v3420
      %3422 = vdwg.mxu0
      %v3423 = vadd.f32 %v3329, %v3400
      %v3424 = vadd.f32 %v3330, %v3403
      %v3425 = vadd.f32 %v3331, %v3406
      %v3426 = vadd.f32 %v3332, %v3409
      %v3427 = vadd.f32 %v3333, %v3412
      %v3428 = vadd.f32 %v3334, %v3415
      %v3429 = vadd.f32 %v3335, %v3418
      %v3430 = vadd.f32 %v3336, %v3421
      %s3431 = scalar_lea.vmem %s3, 512
      %v3432 = vld [vmem:[%s3431] sm:$0xff]
      %v3433 = vld [vmem:[%s3431 + $0x8] sm:$0xff]
      %v3434 = vld [vmem:[%s3431 + $0x10] sm:$0xff]
      %v3435 = vld [vmem:[%s3431 + $0x18] sm:$0xff]
      %v3436 = vld [vmem:[%s3431 + $0x20] sm:$0xff]
      %v3437 = vld [vmem:[%s3431 + $0x28] sm:$0xff]
      %v3438 = vld [vmem:[%s3431 + $0x30] sm:$0xff]
      %v3439 = vld [vmem:[%s3431 + $0x38] sm:$0xff]
      %3440 = vrot.lane.b32.xlu0 %v2699, 114
      %v3441 = vpop.permute.xlu0 %3440
      %3442 = vrot.lane.b32.xlu0 %v2700, 114
      %v3443 = vpop.permute.xlu0 %3442
      %3444 = vrot.lane.b32.xlu0 %v2701, 114
      %v3445 = vpop.permute.xlu0 %3444
      %3446 = vrot.lane.b32.xlu0 %v2702, 114
      %v3447 = vpop.permute.xlu0 %3446
      %v3453 = vsel %vm2736, %v3432, 0
      %v3456 = vsel %vm2736, %v3433, 0
      %v3459 = vsel %vm2736, %v3434, 0
      %v3462 = vsel %vm2736, %v3435, 0
      %v3465 = vsel %vm2736, %v3436, 0
      %v3468 = vsel %vm2736, %v3437, 0
      %v3471 = vsel %vm2736, %v3438, 0
      %v3474 = vsel %vm2736, %v3439, 0
      %3476 = vmatpush.msra.mxu0 0.0
      %3477 = vmatpush.msra.mxu0 0.0
      %3478 = vmatpush.msra.mxu0 0.0
      %3479 = vmatpush.msra.mxu0 0.0
      %3480 = vmatpush.msra.mxu0 0.0
      %3481 = vmatpush.msra.mxu0 0.0
      %3482 = vmatpush.msra.mxu0 0.0
      %3483 = vmatpush.msra.mxu0 0.0
      %3484 = vmatpush.msra.mxu0 0.0
      %3485 = vmatpush.msra.mxu0 0.0
      %3486 = vmatpush.msra.mxu0 0.0
      %3487 = vmatpush.msra.mxu0 0.0
      %3488 = vmatpush.msra.mxu0 %v3447
      %3489 = vmatpush.msra.mxu0 %v3445
      %3490 = vmatpush.msra.mxu0 %v3443
      %3491 = vmatpush.msra.mxu0 %v3441
      %3492 = vmatmul.f32.gmra.mxu0 %v3453
      %v3493 = vpop.f32.mrf.mxu0
      %v3494 = vadd.f32 0.0, %v3493
      %3495 = vmatmul.f32.gmra.mxu0 %v3456
      %v3496 = vpop.f32.mrf.mxu0
      %v3497 = vadd.f32 0.0, %v3496
      %3498 = vmatmul.f32.gmra.mxu0 %v3459
      %v3499 = vpop.f32.mrf.mxu0
      %v3500 = vadd.f32 0.0, %v3499
      %3501 = vmatmul.f32.gmra.mxu0 %v3462
      %v3502 = vpop.f32.mrf.mxu0
      %v3503 = vadd.f32 0.0, %v3502
      %3504 = vmatmul.f32.gmra.mxu0 %v3465
      %v3505 = vpop.f32.mrf.mxu0
      %v3506 = vadd.f32 0.0, %v3505
      %3507 = vmatmul.f32.gmra.mxu0 %v3468
      %v3508 = vpop.f32.mrf.mxu0
      %v3509 = vadd.f32 0.0, %v3508
      %3510 = vmatmul.f32.gmra.mxu0 %v3471
      %v3511 = vpop.f32.mrf.mxu0
      %v3512 = vadd.f32 0.0, %v3511
      %3513 = vmatmul.f32.gmra.mxu0 %v3474
      %v3514 = vpop.f32.mrf.mxu0
      %v3515 = vadd.f32 0.0, %v3514
      %3516 = vdwg.mxu0
      %v3517 = vadd.f32 %v3423, %v3494
      %v3518 = vadd.f32 %v3424, %v3497
      %v3519 = vadd.f32 %v3425, %v3500
      %v3520 = vadd.f32 %v3426, %v3503
      %v3521 = vadd.f32 %v3427, %v3506
      %v3522 = vadd.f32 %v3428, %v3509
      %v3523 = vadd.f32 %v3429, %v3512
      %v3524 = vadd.f32 %v3430, %v3515
      %v3525 = vld [vmem:[%s9] sm:$0xff]
      %v3526 = vld [vmem:[%s9 + $0x8] sm:$0xff]
      %v3527 = vld [vmem:[%s9 + $0x10] sm:$0xff]
      %v3528 = vld [vmem:[%s9 + $0x18] sm:$0xff]
      %v3529 = vld [vmem:[%s9 + $0x20] sm:$0xff]
      %v3530 = vld [vmem:[%s9 + $0x28] sm:$0xff]
      %v3531 = vld [vmem:[%s9 + $0x30] sm:$0xff]
      %v3532 = vld [vmem:[%s9 + $0x38] sm:$0xff]
      %3534 = vset.pattern.permute.xlu0 0
      %3535 = vperm.xlu0 %3534, %v3525
      %v3536 = vpop.permute.xlu0 %3535
      %3539 = vset.pattern.permute.xlu0 0
      %3540 = vperm.xlu0 %3539, %v3526
      %v3541 = vpop.permute.xlu0 %3540
      %3544 = vset.pattern.permute.xlu0 0
      %3545 = vperm.xlu0 %3544, %v3527
      %v3546 = vpop.permute.xlu0 %3545
      %3549 = vset.pattern.permute.xlu0 0
      %3550 = vperm.xlu0 %3549, %v3528
      %v3551 = vpop.permute.xlu0 %3550
      %3554 = vset.pattern.permute.xlu0 0
      %3555 = vperm.xlu0 %3554, %v3529
      %v3556 = vpop.permute.xlu0 %3555
      %3559 = vset.pattern.permute.xlu0 0
      %3560 = vperm.xlu0 %3559, %v3530
      %v3561 = vpop.permute.xlu0 %3560
      %3564 = vset.pattern.permute.xlu0 0
      %3565 = vperm.xlu0 %3564, %v3531
      %v3566 = vpop.permute.xlu0 %3565
      %3569 = vset.pattern.permute.xlu0 0
      %3570 = vperm.xlu0 %3569, %v3532
      %v3571 = vpop.permute.xlu0 %3570
      %v3573 = vadd.f32 %v3517, %v3536
      %v3574 = vadd.f32 %v3518, %v3541
      %v3575 = vadd.f32 %v3519, %v3546
      %v3576 = vadd.f32 %v3520, %v3551
      %v3577 = vadd.f32 %v3521, %v3556
      %v3578 = vadd.f32 %v3522, %v3561
      %v3579 = vadd.f32 %v3523, %v3566
      %v3580 = vadd.f32 %v3524, %v3571
      %v3581 = vmax.f32 %v3573, 0.0
      %v3582 = vmax.f32 %v3574, 0.0
      %v3583 = vmax.f32 %v3575, 0.0
      %v3584 = vmax.f32 %v3576, 0.0
      %v3585 = vmax.f32 %v3577, 0.0
      %v3586 = vmax.f32 %v3578, 0.0
      %v3587 = vmax.f32 %v3579, 0.0
      %v3588 = vmax.f32 %v3580, 0.0
      %v3589 = vld [vmem:[%s15] sm:$0x7]
      %v3591 = vsel %vm627, %v3581, 0
      %v3594 = vsel %vm627, %v3582, 0
      %v3597 = vsel %vm627, %v3583, 0
      %v3600 = vsel %vm627, %v3584, 0
      %v3603 = vsel %vm627, %v3585, 0
      %v3606 = vsel %vm627, %v3586, 0
      %v3609 = vsel %vm627, %v3587, 0
      %v3612 = vsel %vm627, %v3588, 0
      %v3615 = vsel %vm634, %v3589, 0
      %3617 = vmatpush.msra.mxu0 0.0
      %3618 = vmatpush.msra.mxu0 0.0
      %3619 = vmatpush.msra.mxu0 0.0
      %3620 = vmatpush.msra.mxu0 0.0
      %3621 = vmatpush.msra.mxu0 0.0
      %3622 = vmatpush.msra.mxu0 0.0
      %3623 = vmatpush.msra.mxu0 0.0
      %3624 = vmatpush.msra.mxu0 0.0
      %3625 = vmatpush.msra.mxu0 0.0
      %3626 = vmatpush.msra.mxu0 0.0
      %3627 = vmatpush.msra.mxu0 0.0
      %3628 = vmatpush.msra.mxu0 0.0
      %3629 = vmatpush.msra.mxu0 0.0
      %3630 = vmatpush.msra.mxu0 0.0
      %3631 = vmatpush.msra.mxu0 0.0
      %3632 = vmatpush.msra.mxu0 %v3615
      %3633 = vmatmul.f32.gmra.mxu0 %v3591
      %v3634 = vpop.f32.mrf.mxu0
      %v3635 = vadd.f32 0.0, %v3634
      %3636 = vmatmul.f32.gmra.mxu0 %v3594
      %v3637 = vpop.f32.mrf.mxu0
      %v3638 = vadd.f32 0.0, %v3637
      %3639 = vmatmul.f32.gmra.mxu0 %v3597
      %v3640 = vpop.f32.mrf.mxu0
      %v3641 = vadd.f32 0.0, %v3640
      %3642 = vmatmul.f32.gmra.mxu0 %v3600
      %v3643 = vpop.f32.mrf.mxu0
      %v3644 = vadd.f32 0.0, %v3643
      %3645 = vmatmul.f32.gmra.mxu0 %v3603
      %v3646 = vpop.f32.mrf.mxu0
      %v3647 = vadd.f32 0.0, %v3646
      %3648 = vmatmul.f32.gmra.mxu0 %v3606
      %v3649 = vpop.f32.mrf.mxu0
      %v3650 = vadd.f32 0.0, %v3649
      %3651 = vmatmul.f32.gmra.mxu0 %v3609
      %v3652 = vpop.f32.mrf.mxu0
      %v3653 = vadd.f32 0.0, %v3652
      %3654 = vmatmul.f32.gmra.mxu0 %v3612
      %v3655 = vpop.f32.mrf.mxu0
      %v3656 = vadd.f32 0.0, %v3655
      %3657 = vdwg.mxu0
      %3666 = vrot.lane.b32.xlu0 %v3635, 6
      %v3667 = vpop.permute.xlu0 %3666
      %3668 = vrot.lane.b32.xlu0 %v3638, 6
      %v3669 = vpop.permute.xlu0 %3668
      %3670 = vrot.lane.b32.xlu0 %v3641, 6
      %v3671 = vpop.permute.xlu0 %3670
      %3672 = vrot.lane.b32.xlu0 %v3644, 6
      %v3673 = vpop.permute.xlu0 %3672
      %3674 = vrot.lane.b32.xlu0 %v3647, 6
      %v3675 = vpop.permute.xlu0 %3674
      %3676 = vrot.lane.b32.xlu0 %v3650, 6
      %v3677 = vpop.permute.xlu0 %3676
      %3678 = vrot.lane.b32.xlu0 %v3653, 6
      %v3679 = vpop.permute.xlu0 %3678
      %3680 = vrot.lane.b32.xlu0 %v3656, 6
      %v3681 = vpop.permute.xlu0 %3680
      %3690 = vst.msk [vmem:[#allocation4] sm:$0xff] %vm2496, %v3667
      %3691 = vst.msk [vmem:[#allocation4 + $0x8] sm:$0xff] %vm2496, %v3669
      %3692 = vst.msk [vmem:[#allocation4 + $0x10] sm:$0xff] %vm2496, %v3671
      %3693 = vst.msk [vmem:[#allocation4 + $0x18] sm:$0xff] %vm2496, %v3673
      %3694 = vst.msk [vmem:[#allocation4 + $0x20] sm:$0xff] %vm2496, %v3675
      %3695 = vst.msk [vmem:[#allocation4 + $0x28] sm:$0xff] %vm2496, %v3677
      %3696 = vst.msk [vmem:[#allocation4 + $0x30] sm:$0xff] %vm2496, %v3679
      %3697 = vst.msk [vmem:[#allocation4 + $0x38] sm:$0xff] %vm2496, %v3681
      %3698 = vrot.lane.b32.xlu0 %v3581, 116
      %v3699 = vpop.permute.xlu0 %3698
      %3700 = vrot.lane.b32.xlu0 %v3582, 116
      %v3701 = vpop.permute.xlu0 %3700
      %3702 = vrot.lane.b32.xlu0 %v3583, 116
      %v3703 = vpop.permute.xlu0 %3702
      %3704 = vrot.lane.b32.xlu0 %v3584, 116
      %v3705 = vpop.permute.xlu0 %3704
      %3706 = vrot.lane.b32.xlu0 %v3585, 116
      %v3707 = vpop.permute.xlu0 %3706
      %3708 = vrot.lane.b32.xlu0 %v3586, 116
      %v3709 = vpop.permute.xlu0 %3708
      %3710 = vrot.lane.b32.xlu0 %v3587, 116
      %v3711 = vpop.permute.xlu0 %3710
      %3712 = vrot.lane.b32.xlu0 %v3588, 116
      %v3713 = vpop.permute.xlu0 %3712
      %v3714 = vsel %vm627, %v3699, 0
      %v3716 = vsel %vm627, %v3701, 0
      %v3718 = vsel %vm627, %v3703, 0
      %v3720 = vsel %vm627, %v3705, 0
      %v3722 = vsel %vm627, %v3707, 0
      %v3724 = vsel %vm627, %v3709, 0
      %v3726 = vsel %vm627, %v3711, 0
      %v3728 = vsel %vm627, %v3713, 0
      %3730 = vmatpush.msra.mxu0 0.0
      %3731 = vmatpush.msra.mxu0 0.0
      %3732 = vmatpush.msra.mxu0 0.0
      %3733 = vmatpush.msra.mxu0 0.0
      %3734 = vmatpush.msra.mxu0 0.0
      %3735 = vmatpush.msra.mxu0 0.0
      %3736 = vmatpush.msra.mxu0 0.0
      %3737 = vmatpush.msra.mxu0 0.0
      %3738 = vmatpush.msra.mxu0 0.0
      %3739 = vmatpush.msra.mxu0 0.0
      %3740 = vmatpush.msra.mxu0 0.0
      %3741 = vmatpush.msra.mxu0 0.0
      %3742 = vmatpush.msra.mxu0 0.0
      %3743 = vmatpush.msra.mxu0 0.0
      %3744 = vmatpush.msra.mxu0 0.0
      %3745 = vmatpush.msra.mxu0 %v3615
      %3746 = vmatmul.f32.gmra.mxu0 %v3714
      %v3747 = vpop.f32.mrf.mxu0
      %v3748 = vadd.f32 0.0, %v3747
      %3749 = vmatmul.f32.gmra.mxu0 %v3716
      %v3750 = vpop.f32.mrf.mxu0
      %v3751 = vadd.f32 0.0, %v3750
      %3752 = vmatmul.f32.gmra.mxu0 %v3718
      %v3753 = vpop.f32.mrf.mxu0
      %v3754 = vadd.f32 0.0, %v3753
      %3755 = vmatmul.f32.gmra.mxu0 %v3720
      %v3756 = vpop.f32.mrf.mxu0
      %v3757 = vadd.f32 0.0, %v3756
      %3758 = vmatmul.f32.gmra.mxu0 %v3722
      %v3759 = vpop.f32.mrf.mxu0
      %v3760 = vadd.f32 0.0, %v3759
      %3761 = vmatmul.f32.gmra.mxu0 %v3724
      %v3762 = vpop.f32.mrf.mxu0
      %v3763 = vadd.f32 0.0, %v3762
      %3764 = vmatmul.f32.gmra.mxu0 %v3726
      %v3765 = vpop.f32.mrf.mxu0
      %v3766 = vadd.f32 0.0, %v3765
      %3767 = vmatmul.f32.gmra.mxu0 %v3728
      %v3768 = vpop.f32.mrf.mxu0
      %v3769 = vadd.f32 0.0, %v3768
      %3770 = vdwg.mxu0
      %3779 = vrot.lane.b32.xlu0 %v3748, 18
      %v3780 = vpop.permute.xlu0 %3779
      %3781 = vrot.lane.b32.xlu0 %v3751, 18
      %v3782 = vpop.permute.xlu0 %3781
      %3783 = vrot.lane.b32.xlu0 %v3754, 18
      %v3784 = vpop.permute.xlu0 %3783
      %3785 = vrot.lane.b32.xlu0 %v3757, 18
      %v3786 = vpop.permute.xlu0 %3785
      %3787 = vrot.lane.b32.xlu0 %v3760, 18
      %v3788 = vpop.permute.xlu0 %3787
      %3789 = vrot.lane.b32.xlu0 %v3763, 18
      %v3790 = vpop.permute.xlu0 %3789
      %3791 = vrot.lane.b32.xlu0 %v3766, 18
      %v3792 = vpop.permute.xlu0 %3791
      %3793 = vrot.lane.b32.xlu0 %v3769, 18
      %v3794 = vpop.permute.xlu0 %3793
      %3803 = vst.msk [vmem:[#allocation4] sm:$0xff] %vm2628, %v3780
      %3804 = vst.msk [vmem:[#allocation4 + $0x8] sm:$0xff] %vm2628, %v3782
      %3805 = vst.msk [vmem:[#allocation4 + $0x10] sm:$0xff] %vm2628, %v3784
      %3806 = vst.msk [vmem:[#allocation4 + $0x18] sm:$0xff] %vm2628, %v3786
      %3807 = vst.msk [vmem:[#allocation4 + $0x20] sm:$0xff] %vm2628, %v3788
      %3808 = vst.msk [vmem:[#allocation4 + $0x28] sm:$0xff] %vm2628, %v3790
      %3809 = vst.msk [vmem:[#allocation4 + $0x30] sm:$0xff] %vm2628, %v3792
      %3810 = vst.msk [vmem:[#allocation4 + $0x38] sm:$0xff] %vm2628, %v3794
      %v3811 = vld [vmem:[#allocation4] sm:$0xff]
      %v3812 = vld [vmem:[#allocation4 + $0x8] sm:$0xff]
      %v3813 = vld [vmem:[#allocation4 + $0x10] sm:$0xff]
      %v3814 = vld [vmem:[#allocation4 + $0x18] sm:$0xff]
      %v3815 = vld [vmem:[#allocation4 + $0x20] sm:$0xff]
      %v3816 = vld [vmem:[#allocation4 + $0x28] sm:$0xff]
      %v3817 = vld [vmem:[#allocation4 + $0x30] sm:$0xff]
      %v3818 = vld [vmem:[#allocation4 + $0x38] sm:$0xff]
      %v3819 = vld [vmem:[%s4] sm:$0xff]
      %v3820 = vld [vmem:[%s4 + $0x8] sm:$0xff]
      %v3821 = vld [vmem:[%s4 + $0x10] sm:$0xff]
      %v3822 = vld [vmem:[%s4 + $0x18] sm:$0xff]
      %s3823 = scalar_lea.vmem %s4, 32
      %v3824 = vld [vmem:[%s3823] sm:$0xff]
      %v3825 = vld [vmem:[%s3823 + $0x8] sm:$0xff]
      %v3826 = vld [vmem:[%s3823 + $0x10] sm:$0xff]
      %v3827 = vld [vmem:[%s3823 + $0x18] sm:$0xff]
      %3836 = vrot.lane.b32.xlu0 %v3811, 127
      %v3837 = vpop.permute.xlu0 %3836
      %3838 = vrot.lane.b32.xlu0 %v3812, 127
      %v3839 = vpop.permute.xlu0 %3838
      %3840 = vrot.lane.b32.xlu0 %v3813, 127
      %v3841 = vpop.permute.xlu0 %3840
      %3842 = vrot.lane.b32.xlu0 %v3814, 127
      %v3843 = vpop.permute.xlu0 %3842
      %3844 = vrot.lane.b32.xlu0 %v3815, 127
      %v3845 = vpop.permute.xlu0 %3844
      %3846 = vrot.lane.b32.xlu0 %v3816, 127
      %v3847 = vpop.permute.xlu0 %3846
      %3848 = vrot.lane.b32.xlu0 %v3817, 127
      %v3849 = vpop.permute.xlu0 %3848
      %3850 = vrot.lane.b32.xlu0 %v3818, 127
      %v3851 = vpop.permute.xlu0 %3850
      %vm3860 = vcmask 523264
      %v3862 = vsel %vm3860, %v3824, 0
      %v3865 = vsel %vm3860, %v3825, 0
      %v3868 = vsel %vm3860, %v3826, 0
      %v3871 = vsel %vm3860, %v3827, 0
      %3873 = vmatpush.msra.mxu0 0.0
      %3874 = vmatpush.msra.mxu0 0.0
      %3875 = vmatpush.msra.mxu0 0.0
      %3876 = vmatpush.msra.mxu0 0.0
      %3877 = vmatpush.msra.mxu0 0.0
      %3878 = vmatpush.msra.mxu0 0.0
      %3879 = vmatpush.msra.mxu0 0.0
      %3880 = vmatpush.msra.mxu0 0.0
      %3881 = vmatpush.msra.mxu0 %v3851
      %3882 = vmatpush.msra.mxu0 %v3849
      %3883 = vmatpush.msra.mxu0 %v3847
      %3884 = vmatpush.msra.mxu0 %v3845
      %3885 = vmatpush.msra.mxu0 %v3843
      %3886 = vmatpush.msra.mxu0 %v3841
      %3887 = vmatpush.msra.mxu0 %v3839
      %3888 = vmatpush.msra.mxu0 %v3837
      %3889 = vmatmul.f32.gmra.mxu0 %v3862
      %v3890 = vpop.f32.mrf.mxu0
      %v3891 = vadd.f32 0.0, %v3890
      %3892 = vmatmul.f32.gmra.mxu0 %v3865
      %v3893 = vpop.f32.mrf.mxu0
      %v3894 = vadd.f32 0.0, %v3893
      %3895 = vmatmul.f32.gmra.mxu0 %v3868
      %v3896 = vpop.f32.mrf.mxu0
      %v3897 = vadd.f32 0.0, %v3896
      %3898 = vmatmul.f32.gmra.mxu0 %v3871
      %v3899 = vpop.f32.mrf.mxu0
      %v3900 = vadd.f32 0.0, %v3899
      %3901 = vdwg.mxu0
      %v3903 = vsel %vm3860, %v3819, 0
      %v3906 = vsel %vm3860, %v3820, 0
      %v3909 = vsel %vm3860, %v3821, 0
      %v3912 = vsel %vm3860, %v3822, 0
      %3914 = vmatpush.msra.mxu0 0.0
      %3915 = vmatpush.msra.mxu0 0.0
      %3916 = vmatpush.msra.mxu0 0.0
      %3917 = vmatpush.msra.mxu0 0.0
      %3918 = vmatpush.msra.mxu0 0.0
      %3919 = vmatpush.msra.mxu0 0.0
      %3920 = vmatpush.msra.mxu0 0.0
      %3921 = vmatpush.msra.mxu0 0.0
      %3922 = vmatpush.msra.mxu0 %v3818
      %3923 = vmatpush.msra.mxu0 %v3817
      %3924 = vmatpush.msra.mxu0 %v3816
      %3925 = vmatpush.msra.mxu0 %v3815
      %3926 = vmatpush.msra.mxu0 %v3814
      %3927 = vmatpush.msra.mxu0 %v3813
      %3928 = vmatpush.msra.mxu0 %v3812
      %3929 = vmatpush.msra.mxu0 %v3811
      %3930 = vmatmul.f32.gmra.mxu0 %v3903
      %v3931 = vpop.f32.mrf.mxu0
      %v3932 = vadd.f32 %v3891, %v3931
      %3933 = vmatmul.f32.gmra.mxu0 %v3906
      %v3934 = vpop.f32.mrf.mxu0
      %v3935 = vadd.f32 %v3894, %v3934
      %3936 = vmatmul.f32.gmra.mxu0 %v3909
      %v3937 = vpop.f32.mrf.mxu0
      %v3938 = vadd.f32 %v3897, %v3937
      %3939 = vmatmul.f32.gmra.mxu0 %v3912
      %v3940 = vpop.f32.mrf.mxu0
      %v3941 = vadd.f32 %v3900, %v3940
      %3942 = vdwg.mxu0
      %s3943 = scalar_lea.vmem %s4, 64
      %v3944 = vld [vmem:[%s3943] sm:$0xff]
      %v3945 = vld [vmem:[%s3943 + $0x8] sm:$0xff]
      %v3946 = vld [vmem:[%s3943 + $0x10] sm:$0xff]
      %v3947 = vld [vmem:[%s3943 + $0x18] sm:$0xff]
      %3948 = vrot.lane.b32.xlu0 %v3811, 126
      %v3949 = vpop.permute.xlu0 %3948
      %3950 = vrot.lane.b32.xlu0 %v3812, 126
      %v3951 = vpop.permute.xlu0 %3950
      %3952 = vrot.lane.b32.xlu0 %v3813, 126
      %v3953 = vpop.permute.xlu0 %3952
      %3954 = vrot.lane.b32.xlu0 %v3814, 126
      %v3955 = vpop.permute.xlu0 %3954
      %3956 = vrot.lane.b32.xlu0 %v3815, 126
      %v3957 = vpop.permute.xlu0 %3956
      %3958 = vrot.lane.b32.xlu0 %v3816, 126
      %v3959 = vpop.permute.xlu0 %3958
      %3960 = vrot.lane.b32.xlu0 %v3817, 126
      %v3961 = vpop.permute.xlu0 %3960
      %3962 = vrot.lane.b32.xlu0 %v3818, 126
      %v3963 = vpop.permute.xlu0 %3962
      %v3973 = vsel %vm3860, %v3944, 0
      %v3976 = vsel %vm3860, %v3945, 0
      %v3979 = vsel %vm3860, %v3946, 0
      %v3982 = vsel %vm3860, %v3947, 0
      %3984 = vmatpush.msra.mxu0 0.0
      %3985 = vmatpush.msra.mxu0 0.0
      %3986 = vmatpush.msra.mxu0 0.0
      %3987 = vmatpush.msra.mxu0 0.0
      %3988 = vmatpush.msra.mxu0 0.0
      %3989 = vmatpush.msra.mxu0 0.0
      %3990 = vmatpush.msra.mxu0 0.0
      %3991 = vmatpush.msra.mxu0 0.0
      %3992 = vmatpush.msra.mxu0 %v3963
      %3993 = vmatpush.msra.mxu0 %v3961
      %3994 = vmatpush.msra.mxu0 %v3959
      %3995 = vmatpush.msra.mxu0 %v3957
      %3996 = vmatpush.msra.mxu0 %v3955
      %3997 = vmatpush.msra.mxu0 %v3953
      %3998 = vmatpush.msra.mxu0 %v3951
      %3999 = vmatpush.msra.mxu0 %v3949
      %4000 = vmatmul.f32.gmra.mxu0 %v3973
      %v4001 = vpop.f32.mrf.mxu0
      %v4002 = vadd.f32 0.0, %v4001
      %4003 = vmatmul.f32.gmra.mxu0 %v3976
      %v4004 = vpop.f32.mrf.mxu0
      %v4005 = vadd.f32 0.0, %v4004
      %4006 = vmatmul.f32.gmra.mxu0 %v3979
      %v4007 = vpop.f32.mrf.mxu0
      %v4008 = vadd.f32 0.0, %v4007
      %4009 = vmatmul.f32.gmra.mxu0 %v3982
      %v4010 = vpop.f32.mrf.mxu0
      %v4011 = vadd.f32 0.0, %v4010
      %4012 = vdwg.mxu0
      %v4013 = vadd.f32 %v3932, %v4002
      %v4014 = vadd.f32 %v3935, %v4005
      %v4015 = vadd.f32 %v3938, %v4008
      %v4016 = vadd.f32 %v3941, %v4011
      %s4017 = scalar_lea.vmem %s4, 96
      %v4018 = vld [vmem:[%s4017] sm:$0xff]
      %v4019 = vld [vmem:[%s4017 + $0x8] sm:$0xff]
      %v4020 = vld [vmem:[%s4017 + $0x10] sm:$0xff]
      %v4021 = vld [vmem:[%s4017 + $0x18] sm:$0xff]
      %4022 = vrot.lane.b32.xlu0 %v3811, 122
      %v4023 = vpop.permute.xlu0 %4022
      %4024 = vrot.lane.b32.xlu0 %v3812, 122
      %v4025 = vpop.permute.xlu0 %4024
      %4026 = vrot.lane.b32.xlu0 %v3813, 122
      %v4027 = vpop.permute.xlu0 %4026
      %4028 = vrot.lane.b32.xlu0 %v3814, 122
      %v4029 = vpop.permute.xlu0 %4028
      %4030 = vrot.lane.b32.xlu0 %v3815, 122
      %v4031 = vpop.permute.xlu0 %4030
      %4032 = vrot.lane.b32.xlu0 %v3816, 122
      %v4033 = vpop.permute.xlu0 %4032
      %4034 = vrot.lane.b32.xlu0 %v3817, 122
      %v4035 = vpop.permute.xlu0 %4034
      %4036 = vrot.lane.b32.xlu0 %v3818, 122
      %v4037 = vpop.permute.xlu0 %4036
      %v4047 = vsel %vm3860, %v4018, 0
      %v4050 = vsel %vm3860, %v4019, 0
      %v4053 = vsel %vm3860, %v4020, 0
      %v4056 = vsel %vm3860, %v4021, 0
      %4058 = vmatpush.msra.mxu0 0.0
      %4059 = vmatpush.msra.mxu0 0.0
      %4060 = vmatpush.msra.mxu0 0.0
      %4061 = vmatpush.msra.mxu0 0.0
      %4062 = vmatpush.msra.mxu0 0.0
      %4063 = vmatpush.msra.mxu0 0.0
      %4064 = vmatpush.msra.mxu0 0.0
      %4065 = vmatpush.msra.mxu0 0.0
      %4066 = vmatpush.msra.mxu0 %v4037
      %4067 = vmatpush.msra.mxu0 %v4035
      %4068 = vmatpush.msra.mxu0 %v4033
      %4069 = vmatpush.msra.mxu0 %v4031
      %4070 = vmatpush.msra.mxu0 %v4029
      %4071 = vmatpush.msra.mxu0 %v4027
      %4072 = vmatpush.msra.mxu0 %v4025
      %4073 = vmatpush.msra.mxu0 %v4023
      %4074 = vmatmul.f32.gmra.mxu0 %v4047
      %v4075 = vpop.f32.mrf.mxu0
      %v4076 = vadd.f32 0.0, %v4075
      %4077 = vmatmul.f32.gmra.mxu0 %v4050
      %v4078 = vpop.f32.mrf.mxu0
      %v4079 = vadd.f32 0.0, %v4078
      %4080 = vmatmul.f32.gmra.mxu0 %v4053
      %v4081 = vpop.f32.mrf.mxu0
      %v4082 = vadd.f32 0.0, %v4081
      %4083 = vmatmul.f32.gmra.mxu0 %v4056
      %v4084 = vpop.f32.mrf.mxu0
      %v4085 = vadd.f32 0.0, %v4084
      %4086 = vdwg.mxu0
      %v4087 = vadd.f32 %v4013, %v4076
      %v4088 = vadd.f32 %v4014, %v4079
      %v4089 = vadd.f32 %v4015, %v4082
      %v4090 = vadd.f32 %v4016, %v4085
      %s4091 = scalar_lea.vmem %s4, 128
      %v4092 = vld [vmem:[%s4091] sm:$0xff]
      %v4093 = vld [vmem:[%s4091 + $0x8] sm:$0xff]
      %v4094 = vld [vmem:[%s4091 + $0x10] sm:$0xff]
      %v4095 = vld [vmem:[%s4091 + $0x18] sm:$0xff]
      %4096 = vrot.lane.b32.xlu0 %v3811, 121
      %v4097 = vpop.permute.xlu0 %4096
      %4098 = vrot.lane.b32.xlu0 %v3812, 121
      %v4099 = vpop.permute.xlu0 %4098
      %4100 = vrot.lane.b32.xlu0 %v3813, 121
      %v4101 = vpop.permute.xlu0 %4100
      %4102 = vrot.lane.b32.xlu0 %v3814, 121
      %v4103 = vpop.permute.xlu0 %4102
      %4104 = vrot.lane.b32.xlu0 %v3815, 121
      %v4105 = vpop.permute.xlu0 %4104
      %4106 = vrot.lane.b32.xlu0 %v3816, 121
      %v4107 = vpop.permute.xlu0 %4106
      %4108 = vrot.lane.b32.xlu0 %v3817, 121
      %v4109 = vpop.permute.xlu0 %4108
      %4110 = vrot.lane.b32.xlu0 %v3818, 121
      %v4111 = vpop.permute.xlu0 %4110
      %v4121 = vsel %vm3860, %v4092, 0
      %v4124 = vsel %vm3860, %v4093, 0
      %v4127 = vsel %vm3860, %v4094, 0
      %v4130 = vsel %vm3860, %v4095, 0
      %4132 = vmatpush.msra.mxu0 0.0
      %4133 = vmatpush.msra.mxu0 0.0
      %4134 = vmatpush.msra.mxu0 0.0
      %4135 = vmatpush.msra.mxu0 0.0
      %4136 = vmatpush.msra.mxu0 0.0
      %4137 = vmatpush.msra.mxu0 0.0
      %4138 = vmatpush.msra.mxu0 0.0
      %4139 = vmatpush.msra.mxu0 0.0
      %4140 = vmatpush.msra.mxu0 %v4111
      %4141 = vmatpush.msra.mxu0 %v4109
      %4142 = vmatpush.msra.mxu0 %v4107
      %4143 = vmatpush.msra.mxu0 %v4105
      %4144 = vmatpush.msra.mxu0 %v4103
      %4145 = vmatpush.msra.mxu0 %v4101
      %4146 = vmatpush.msra.mxu0 %v4099
      %4147 = vmatpush.msra.mxu0 %v4097
      %4148 = vmatmul.f32.gmra.mxu0 %v4121
      %v4149 = vpop.f32.mrf.mxu0
      %v4150 = vadd.f32 0.0, %v4149
      %4151 = vmatmul.f32.gmra.mxu0 %v4124
      %v4152 = vpop.f32.mrf.mxu0
      %v4153 = vadd.f32 0.0, %v4152
      %4154 = vmatmul.f32.gmra.mxu0 %v4127
      %v4155 = vpop.f32.mrf.mxu0
      %v4156 = vadd.f32 0.0, %v4155
      %4157 = vmatmul.f32.gmra.mxu0 %v4130
      %v4158 = vpop.f32.mrf.mxu0
      %v4159 = vadd.f32 0.0, %v4158
      %4160 = vdwg.mxu0
      %v4161 = vadd.f32 %v4087, %v4150
      %v4162 = vadd.f32 %v4088, %v4153
      %v4163 = vadd.f32 %v4089, %v4156
      %v4164 = vadd.f32 %v4090, %v4159
      %s4165 = scalar_lea.vmem %s4, 160
      %v4166 = vld [vmem:[%s4165] sm:$0xff]
      %v4167 = vld [vmem:[%s4165 + $0x8] sm:$0xff]
      %v4168 = vld [vmem:[%s4165 + $0x10] sm:$0xff]
      %v4169 = vld [vmem:[%s4165 + $0x18] sm:$0xff]
      %4170 = vrot.lane.b32.xlu0 %v3811, 120
      %v4171 = vpop.permute.xlu0 %4170
      %4172 = vrot.lane.b32.xlu0 %v3812, 120
      %v4173 = vpop.permute.xlu0 %4172
      %4174 = vrot.lane.b32.xlu0 %v3813, 120
      %v4175 = vpop.permute.xlu0 %4174
      %4176 = vrot.lane.b32.xlu0 %v3814, 120
      %v4177 = vpop.permute.xlu0 %4176
      %4178 = vrot.lane.b32.xlu0 %v3815, 120
      %v4179 = vpop.permute.xlu0 %4178
      %4180 = vrot.lane.b32.xlu0 %v3816, 120
      %v4181 = vpop.permute.xlu0 %4180
      %4182 = vrot.lane.b32.xlu0 %v3817, 120
      %v4183 = vpop.permute.xlu0 %4182
      %4184 = vrot.lane.b32.xlu0 %v3818, 120
      %v4185 = vpop.permute.xlu0 %4184
      %v4195 = vsel %vm3860, %v4166, 0
      %v4198 = vsel %vm3860, %v4167, 0
      %v4201 = vsel %vm3860, %v4168, 0
      %v4204 = vsel %vm3860, %v4169, 0
      %4206 = vmatpush.msra.mxu0 0.0
      %4207 = vmatpush.msra.mxu0 0.0
      %4208 = vmatpush.msra.mxu0 0.0
      %4209 = vmatpush.msra.mxu0 0.0
      %4210 = vmatpush.msra.mxu0 0.0
      %4211 = vmatpush.msra.mxu0 0.0
      %4212 = vmatpush.msra.mxu0 0.0
      %4213 = vmatpush.msra.mxu0 0.0
      %4214 = vmatpush.msra.mxu0 %v4185
      %4215 = vmatpush.msra.mxu0 %v4183
      %4216 = vmatpush.msra.mxu0 %v4181
      %4217 = vmatpush.msra.mxu0 %v4179
      %4218 = vmatpush.msra.mxu0 %v4177
      %4219 = vmatpush.msra.mxu0 %v4175
      %4220 = vmatpush.msra.mxu0 %v4173
      %4221 = vmatpush.msra.mxu0 %v4171
      %4222 = vmatmul.f32.gmra.mxu0 %v4195
      %v4223 = vpop.f32.mrf.mxu0
      %v4224 = vadd.f32 0.0, %v4223
      %4225 = vmatmul.f32.gmra.mxu0 %v4198
      %v4226 = vpop.f32.mrf.mxu0
      %v4227 = vadd.f32 0.0, %v4226
      %4228 = vmatmul.f32.gmra.mxu0 %v4201
      %v4229 = vpop.f32.mrf.mxu0
      %v4230 = vadd.f32 0.0, %v4229
      %4231 = vmatmul.f32.gmra.mxu0 %v4204
      %v4232 = vpop.f32.mrf.mxu0
      %v4233 = vadd.f32 0.0, %v4232
      %4234 = vdwg.mxu0
      %v4235 = vadd.f32 %v4161, %v4224
      %v4236 = vadd.f32 %v4162, %v4227
      %v4237 = vadd.f32 %v4163, %v4230
      %v4238 = vadd.f32 %v4164, %v4233
      %s4239 = scalar_lea.vmem %s4, 192
      %v4240 = vld [vmem:[%s4239] sm:$0xff]
      %v4241 = vld [vmem:[%s4239 + $0x8] sm:$0xff]
      %v4242 = vld [vmem:[%s4239 + $0x10] sm:$0xff]
      %v4243 = vld [vmem:[%s4239 + $0x18] sm:$0xff]
      %4244 = vrot.lane.b32.xlu0 %v3811, 116
      %v4245 = vpop.permute.xlu0 %4244
      %4246 = vrot.lane.b32.xlu0 %v3812, 116
      %v4247 = vpop.permute.xlu0 %4246
      %4248 = vrot.lane.b32.xlu0 %v3813, 116
      %v4249 = vpop.permute.xlu0 %4248
      %4250 = vrot.lane.b32.xlu0 %v3814, 116
      %v4251 = vpop.permute.xlu0 %4250
      %4252 = vrot.lane.b32.xlu0 %v3815, 116
      %v4253 = vpop.permute.xlu0 %4252
      %4254 = vrot.lane.b32.xlu0 %v3816, 116
      %v4255 = vpop.permute.xlu0 %4254
      %4256 = vrot.lane.b32.xlu0 %v3817, 116
      %v4257 = vpop.permute.xlu0 %4256
      %4258 = vrot.lane.b32.xlu0 %v3818, 116
      %v4259 = vpop.permute.xlu0 %4258
      %v4269 = vsel %vm3860, %v4240, 0
      %v4272 = vsel %vm3860, %v4241, 0
      %v4275 = vsel %vm3860, %v4242, 0
      %v4278 = vsel %vm3860, %v4243, 0
      %4280 = vmatpush.msra.mxu0 0.0
      %4281 = vmatpush.msra.mxu0 0.0
      %4282 = vmatpush.msra.mxu0 0.0
      %4283 = vmatpush.msra.mxu0 0.0
      %4284 = vmatpush.msra.mxu0 0.0
      %4285 = vmatpush.msra.mxu0 0.0
      %4286 = vmatpush.msra.mxu0 0.0
      %4287 = vmatpush.msra.mxu0 0.0
      %4288 = vmatpush.msra.mxu0 %v4259
      %4289 = vmatpush.msra.mxu0 %v4257
      %4290 = vmatpush.msra.mxu0 %v4255
      %4291 = vmatpush.msra.mxu0 %v4253
      %4292 = vmatpush.msra.mxu0 %v4251
      %4293 = vmatpush.msra.mxu0 %v4249
      %4294 = vmatpush.msra.mxu0 %v4247
      %4295 = vmatpush.msra.mxu0 %v4245
      %4296 = vmatmul.f32.gmra.mxu0 %v4269
      %v4297 = vpop.f32.mrf.mxu0
      %v4298 = vadd.f32 0.0, %v4297
      %4299 = vmatmul.f32.gmra.mxu0 %v4272
      %v4300 = vpop.f32.mrf.mxu0
      %v4301 = vadd.f32 0.0, %v4300
      %4302 = vmatmul.f32.gmra.mxu0 %v4275
      %v4303 = vpop.f32.mrf.mxu0
      %v4304 = vadd.f32 0.0, %v4303
      %4305 = vmatmul.f32.gmra.mxu0 %v4278
      %v4306 = vpop.f32.mrf.mxu0
      %v4307 = vadd.f32 0.0, %v4306
      %4308 = vdwg.mxu0
      %v4309 = vadd.f32 %v4235, %v4298
      %v4310 = vadd.f32 %v4236, %v4301
      %v4311 = vadd.f32 %v4237, %v4304
      %v4312 = vadd.f32 %v4238, %v4307
      %s4313 = scalar_lea.vmem %s4, 224
      %v4314 = vld [vmem:[%s4313] sm:$0xff]
      %v4315 = vld [vmem:[%s4313 + $0x8] sm:$0xff]
      %v4316 = vld [vmem:[%s4313 + $0x10] sm:$0xff]
      %v4317 = vld [vmem:[%s4313 + $0x18] sm:$0xff]
      %4318 = vrot.lane.b32.xlu0 %v3811, 115
      %v4319 = vpop.permute.xlu0 %4318
      %4320 = vrot.lane.b32.xlu0 %v3812, 115
      %v4321 = vpop.permute.xlu0 %4320
      %4322 = vrot.lane.b32.xlu0 %v3813, 115
      %v4323 = vpop.permute.xlu0 %4322
      %4324 = vrot.lane.b32.xlu0 %v3814, 115
      %v4325 = vpop.permute.xlu0 %4324
      %4326 = vrot.lane.b32.xlu0 %v3815, 115
      %v4327 = vpop.permute.xlu0 %4326
      %4328 = vrot.lane.b32.xlu0 %v3816, 115
      %v4329 = vpop.permute.xlu0 %4328
      %4330 = vrot.lane.b32.xlu0 %v3817, 115
      %v4331 = vpop.permute.xlu0 %4330
      %4332 = vrot.lane.b32.xlu0 %v3818, 115
      %v4333 = vpop.permute.xlu0 %4332
      %v4343 = vsel %vm3860, %v4314, 0
      %v4346 = vsel %vm3860, %v4315, 0
      %v4349 = vsel %vm3860, %v4316, 0
      %v4352 = vsel %vm3860, %v4317, 0
      %4354 = vmatpush.msra.mxu0 0.0
      %4355 = vmatpush.msra.mxu0 0.0
      %4356 = vmatpush.msra.mxu0 0.0
      %4357 = vmatpush.msra.mxu0 0.0
      %4358 = vmatpush.msra.mxu0 0.0
      %4359 = vmatpush.msra.mxu0 0.0
      %4360 = vmatpush.msra.mxu0 0.0
      %4361 = vmatpush.msra.mxu0 0.0
      %4362 = vmatpush.msra.mxu0 %v4333
      %4363 = vmatpush.msra.mxu0 %v4331
      %4364 = vmatpush.msra.mxu0 %v4329
      %4365 = vmatpush.msra.mxu0 %v4327
      %4366 = vmatpush.msra.mxu0 %v4325
      %4367 = vmatpush.msra.mxu0 %v4323
      %4368 = vmatpush.msra.mxu0 %v4321
      %4369 = vmatpush.msra.mxu0 %v4319
      %4370 = vmatmul.f32.gmra.mxu0 %v4343
      %v4371 = vpop.f32.mrf.mxu0
      %v4372 = vadd.f32 0.0, %v4371
      %4373 = vmatmul.f32.gmra.mxu0 %v4346
      %v4374 = vpop.f32.mrf.mxu0
      %v4375 = vadd.f32 0.0, %v4374
      %4376 = vmatmul.f32.gmra.mxu0 %v4349
      %v4377 = vpop.f32.mrf.mxu0
      %v4378 = vadd.f32 0.0, %v4377
      %4379 = vmatmul.f32.gmra.mxu0 %v4352
      %v4380 = vpop.f32.mrf.mxu0
      %v4381 = vadd.f32 0.0, %v4380
      %4382 = vdwg.mxu0
      %v4383 = vadd.f32 %v4309, %v4372
      %v4384 = vadd.f32 %v4310, %v4375
      %v4385 = vadd.f32 %v4311, %v4378
      %v4386 = vadd.f32 %v4312, %v4381
      %s4387 = scalar_lea.vmem %s4, 256
      %v4388 = vld [vmem:[%s4387] sm:$0xff]
      %v4389 = vld [vmem:[%s4387 + $0x8] sm:$0xff]
      %v4390 = vld [vmem:[%s4387 + $0x10] sm:$0xff]
      %v4391 = vld [vmem:[%s4387 + $0x18] sm:$0xff]
      %4392 = vrot.lane.b32.xlu0 %v3811, 114
      %v4393 = vpop.permute.xlu0 %4392
      %4394 = vrot.lane.b32.xlu0 %v3812, 114
      %v4395 = vpop.permute.xlu0 %4394
      %4396 = vrot.lane.b32.xlu0 %v3813, 114
      %v4397 = vpop.permute.xlu0 %4396
      %4398 = vrot.lane.b32.xlu0 %v3814, 114
      %v4399 = vpop.permute.xlu0 %4398
      %4400 = vrot.lane.b32.xlu0 %v3815, 114
      %v4401 = vpop.permute.xlu0 %4400
      %4402 = vrot.lane.b32.xlu0 %v3816, 114
      %v4403 = vpop.permute.xlu0 %4402
      %4404 = vrot.lane.b32.xlu0 %v3817, 114
      %v4405 = vpop.permute.xlu0 %4404
      %4406 = vrot.lane.b32.xlu0 %v3818, 114
      %v4407 = vpop.permute.xlu0 %4406
      %v4417 = vsel %vm3860, %v4388, 0
      %v4420 = vsel %vm3860, %v4389, 0
      %v4423 = vsel %vm3860, %v4390, 0
      %v4426 = vsel %vm3860, %v4391, 0
      %4428 = vmatpush.msra.mxu0 0.0
      %4429 = vmatpush.msra.mxu0 0.0
      %4430 = vmatpush.msra.mxu0 0.0
      %4431 = vmatpush.msra.mxu0 0.0
      %4432 = vmatpush.msra.mxu0 0.0
      %4433 = vmatpush.msra.mxu0 0.0
      %4434 = vmatpush.msra.mxu0 0.0
      %4435 = vmatpush.msra.mxu0 0.0
      %4436 = vmatpush.msra.mxu0 %v4407
      %4437 = vmatpush.msra.mxu0 %v4405
      %4438 = vmatpush.msra.mxu0 %v4403
      %4439 = vmatpush.msra.mxu0 %v4401
      %4440 = vmatpush.msra.mxu0 %v4399
      %4441 = vmatpush.msra.mxu0 %v4397
      %4442 = vmatpush.msra.mxu0 %v4395
      %4443 = vmatpush.msra.mxu0 %v4393
      %4444 = vmatmul.f32.gmra.mxu0 %v4417
      %v4445 = vpop.f32.mrf.mxu0
      %v4446 = vadd.f32 0.0, %v4445
      %4447 = vmatmul.f32.gmra.mxu0 %v4420
      %v4448 = vpop.f32.mrf.mxu0
      %v4449 = vadd.f32 0.0, %v4448
      %4450 = vmatmul.f32.gmra.mxu0 %v4423
      %v4451 = vpop.f32.mrf.mxu0
      %v4452 = vadd.f32 0.0, %v4451
      %4453 = vmatmul.f32.gmra.mxu0 %v4426
      %v4454 = vpop.f32.mrf.mxu0
      %v4455 = vadd.f32 0.0, %v4454
      %4456 = vdwg.mxu0
      %v4457 = vadd.f32 %v4383, %v4446
      %v4458 = vadd.f32 %v4384, %v4449
      %v4459 = vadd.f32 %v4385, %v4452
      %v4460 = vadd.f32 %v4386, %v4455
      %v4461 = vld [vmem:[%s10] sm:$0xff]
      %v4462 = vld [vmem:[%s10 + $0x8] sm:$0xff]
      %v4463 = vld [vmem:[%s10 + $0x10] sm:$0xff]
      %v4464 = vld [vmem:[%s10 + $0x18] sm:$0xff]
      %4466 = vset.pattern.permute.xlu0 0
      %4467 = vperm.xlu0 %4466, %v4461
      %v4468 = vpop.permute.xlu0 %4467
      %4471 = vset.pattern.permute.xlu0 0
      %4472 = vperm.xlu0 %4471, %v4462
      %v4473 = vpop.permute.xlu0 %4472
      %4476 = vset.pattern.permute.xlu0 0
      %4477 = vperm.xlu0 %4476, %v4463
      %v4478 = vpop.permute.xlu0 %4477
      %4481 = vset.pattern.permute.xlu0 0
      %4482 = vperm.xlu0 %4481, %v4464
      %v4483 = vpop.permute.xlu0 %4482
      %v4485 = vadd.f32 %v4457, %v4468
      %v4486 = vadd.f32 %v4458, %v4473
      %v4487 = vadd.f32 %v4459, %v4478
      %v4488 = vadd.f32 %v4460, %v4483
      %v4489 = vmax.f32 %v4485, 0.0
      %v4490 = vmax.f32 %v4486, 0.0
      %v4491 = vmax.f32 %v4487, 0.0
      %v4492 = vmax.f32 %v4488, 0.0
      %v4493 = vld [vmem:[%s16] sm:$0xf]
      %v4495 = vsel %vm1867, %v4489, 0
      %v4498 = vsel %vm1867, %v4490, 0
      %v4501 = vsel %vm1867, %v4491, 0
      %v4504 = vsel %vm1867, %v4492, 0
      %vm4506 = vcmask 1043456
      %v4508 = vsel %vm4506, %v4493, 0
      %4510 = vmatpush.msra.mxu0 0.0
      %4511 = vmatpush.msra.mxu0 0.0
      %4512 = vmatpush.msra.mxu0 0.0
      %4513 = vmatpush.msra.mxu0 0.0
      %4514 = vmatpush.msra.mxu0 0.0
      %4515 = vmatpush.msra.mxu0 0.0
      %4516 = vmatpush.msra.mxu0 0.0
      %4517 = vmatpush.msra.mxu0 0.0
      %4518 = vmatpush.msra.mxu0 0.0
      %4519 = vmatpush.msra.mxu0 0.0
      %4520 = vmatpush.msra.mxu0 0.0
      %4521 = vmatpush.msra.mxu0 0.0
      %4522 = vmatpush.msra.mxu0 0.0
      %4523 = vmatpush.msra.mxu0 0.0
      %4524 = vmatpush.msra.mxu0 0.0
      %4525 = vmatpush.msra.mxu0 %v4508
      %4526 = vmatmul.f32.gmra.mxu0 %v4495
      %v4527 = vpop.f32.mrf.mxu0
      %v4528 = vadd.f32 0.0, %v4527
      %4529 = vmatmul.f32.gmra.mxu0 %v4498
      %v4530 = vpop.f32.mrf.mxu0
      %v4531 = vadd.f32 0.0, %v4530
      %4532 = vmatmul.f32.gmra.mxu0 %v4501
      %v4533 = vpop.f32.mrf.mxu0
      %v4534 = vadd.f32 0.0, %v4533
      %4535 = vmatmul.f32.gmra.mxu0 %v4504
      %v4536 = vpop.f32.mrf.mxu0
      %v4537 = vadd.f32 0.0, %v4536
      %4538 = vdwg.mxu0
      %4543 = vrot.lane.b32.xlu0 %v4528, 10
      %v4544 = vpop.permute.xlu0 %4543
      %4545 = vrot.lane.b32.xlu0 %v4531, 10
      %v4546 = vpop.permute.xlu0 %4545
      %4547 = vrot.lane.b32.xlu0 %v4534, 10
      %v4548 = vpop.permute.xlu0 %4547
      %4549 = vrot.lane.b32.xlu0 %v4537, 10
      %v4550 = vpop.permute.xlu0 %4549
      %4555 = vst.msk [vmem:[#allocation5] sm:$0xff] %vm1600, %v4544
      %4556 = vst.msk [vmem:[#allocation5 + $0x8] sm:$0xff] %vm1600, %v4546
      %4557 = vst.msk [vmem:[#allocation5 + $0x10] sm:$0xff] %vm1600, %v4548
      %4558 = vst.msk [vmem:[#allocation5 + $0x18] sm:$0xff] %vm1600, %v4550
      %4559 = vrot.lane.b32.xlu0 %v4489, 122
      %v4560 = vpop.permute.xlu0 %4559
      %4561 = vrot.lane.b32.xlu0 %v4490, 122
      %v4562 = vpop.permute.xlu0 %4561
      %4563 = vrot.lane.b32.xlu0 %v4491, 122
      %v4564 = vpop.permute.xlu0 %4563
      %4565 = vrot.lane.b32.xlu0 %v4492, 122
      %v4566 = vpop.permute.xlu0 %4565
      %v4567 = vsel %vm1867, %v4560, 0
      %v4569 = vsel %vm1867, %v4562, 0
      %v4571 = vsel %vm1867, %v4564, 0
      %v4573 = vsel %vm1867, %v4566, 0
      %4575 = vmatpush.msra.mxu0 0.0
      %4576 = vmatpush.msra.mxu0 0.0
      %4577 = vmatpush.msra.mxu0 0.0
      %4578 = vmatpush.msra.mxu0 0.0
      %4579 = vmatpush.msra.mxu0 0.0
      %4580 = vmatpush.msra.mxu0 0.0
      %4581 = vmatpush.msra.mxu0 0.0
      %4582 = vmatpush.msra.mxu0 0.0
      %4583 = vmatpush.msra.mxu0 0.0
      %4584 = vmatpush.msra.mxu0 0.0
      %4585 = vmatpush.msra.mxu0 0.0
      %4586 = vmatpush.msra.mxu0 0.0
      %4587 = vmatpush.msra.mxu0 0.0
      %4588 = vmatpush.msra.mxu0 0.0
      %4589 = vmatpush.msra.mxu0 0.0
      %4590 = vmatpush.msra.mxu0 %v4508
      %4591 = vmatmul.f32.gmra.mxu0 %v4567
      %v4592 = vpop.f32.mrf.mxu0
      %v4593 = vadd.f32 0.0, %v4592
      %4594 = vmatmul.f32.gmra.mxu0 %v4569
      %v4595 = vpop.f32.mrf.mxu0
      %v4596 = vadd.f32 0.0, %v4595
      %4597 = vmatmul.f32.gmra.mxu0 %v4571
      %v4598 = vpop.f32.mrf.mxu0
      %v4599 = vadd.f32 0.0, %v4598
      %4600 = vmatmul.f32.gmra.mxu0 %v4573
      %v4601 = vpop.f32.mrf.mxu0
      %v4602 = vadd.f32 0.0, %v4601
      %4603 = vdwg.mxu0
      %4608 = vrot.lane.b32.xlu0 %v4593, 30
      %v4609 = vpop.permute.xlu0 %4608
      %4610 = vrot.lane.b32.xlu0 %v4596, 30
      %v4611 = vpop.permute.xlu0 %4610
      %4612 = vrot.lane.b32.xlu0 %v4599, 30
      %v4613 = vpop.permute.xlu0 %4612
      %4614 = vrot.lane.b32.xlu0 %v4602, 30
      %v4615 = vpop.permute.xlu0 %4614
      %4620 = vst.msk [vmem:[#allocation5] sm:$0xff] %vm1684, %v4609
      %4621 = vst.msk [vmem:[#allocation5 + $0x8] sm:$0xff] %vm1684, %v4611
      %4622 = vst.msk [vmem:[#allocation5 + $0x10] sm:$0xff] %vm1684, %v4613
      %4623 = vst.msk [vmem:[#allocation5 + $0x18] sm:$0xff] %vm1684, %v4615
      %4624 = vrot.lane.b32.xlu0 %v4489, 116
      %v4625 = vpop.permute.xlu0 %4624
      %4626 = vrot.lane.b32.xlu0 %v4490, 116
      %v4627 = vpop.permute.xlu0 %4626
      %4628 = vrot.lane.b32.xlu0 %v4491, 116
      %v4629 = vpop.permute.xlu0 %4628
      %4630 = vrot.lane.b32.xlu0 %v4492, 116
      %v4631 = vpop.permute.xlu0 %4630
      %v4632 = vsel %vm1867, %v4625, 0
      %v4634 = vsel %vm1867, %v4627, 0
      %v4636 = vsel %vm1867, %v4629, 0
      %v4638 = vsel %vm1867, %v4631, 0
      %4640 = vmatpush.msra.mxu0 0.0
      %4641 = vmatpush.msra.mxu0 0.0
      %4642 = vmatpush.msra.mxu0 0.0
      %4643 = vmatpush.msra.mxu0 0.0
      %4644 = vmatpush.msra.mxu0 0.0
      %4645 = vmatpush.msra.mxu0 0.0
      %4646 = vmatpush.msra.mxu0 0.0
      %4647 = vmatpush.msra.mxu0 0.0
      %4648 = vmatpush.msra.mxu0 0.0
      %4649 = vmatpush.msra.mxu0 0.0
      %4650 = vmatpush.msra.mxu0 0.0
      %4651 = vmatpush.msra.mxu0 0.0
      %4652 = vmatpush.msra.mxu0 0.0
      %4653 = vmatpush.msra.mxu0 0.0
      %4654 = vmatpush.msra.mxu0 0.0
      %4655 = vmatpush.msra.mxu0 %v4508
      %4656 = vmatmul.f32.gmra.mxu0 %v4632
      %v4657 = vpop.f32.mrf.mxu0
      %v4658 = vadd.f32 0.0, %v4657
      %4659 = vmatmul.f32.gmra.mxu0 %v4634
      %v4660 = vpop.f32.mrf.mxu0
      %v4661 = vadd.f32 0.0, %v4660
      %4662 = vmatmul.f32.gmra.mxu0 %v4636
      %v4663 = vpop.f32.mrf.mxu0
      %v4664 = vadd.f32 0.0, %v4663
      %4665 = vmatmul.f32.gmra.mxu0 %v4638
      %v4666 = vpop.f32.mrf.mxu0
      %v4667 = vadd.f32 0.0, %v4666
      %4668 = vdwg.mxu0
      %4673 = vrot.lane.b32.xlu0 %v4658, 50
      %v4674 = vpop.permute.xlu0 %4673
      %4675 = vrot.lane.b32.xlu0 %v4661, 50
      %v4676 = vpop.permute.xlu0 %4675
      %4677 = vrot.lane.b32.xlu0 %v4664, 50
      %v4678 = vpop.permute.xlu0 %4677
      %4679 = vrot.lane.b32.xlu0 %v4667, 50
      %v4680 = vpop.permute.xlu0 %4679
      %4685 = vst.msk [vmem:[#allocation5] sm:$0xff] %vm1770, %v4674
      %4686 = vst.msk [vmem:[#allocation5 + $0x8] sm:$0xff] %vm1770, %v4676
      %4687 = vst.msk [vmem:[#allocation5 + $0x10] sm:$0xff] %vm1770, %v4678
      %4688 = vst.msk [vmem:[#allocation5 + $0x18] sm:$0xff] %vm1770, %v4680
      %4689 = vrot.lane.b32.xlu0 %v4489, 110
      %v4690 = vpop.permute.xlu0 %4689
      %4691 = vrot.lane.b32.xlu0 %v4490, 110
      %v4692 = vpop.permute.xlu0 %4691
      %4693 = vrot.lane.b32.xlu0 %v4491, 110
      %v4694 = vpop.permute.xlu0 %4693
      %4695 = vrot.lane.b32.xlu0 %v4492, 110
      %v4696 = vpop.permute.xlu0 %4695
      %v4697 = vsel %vm1867, %v4690, 0
      %v4699 = vsel %vm1867, %v4692, 0
      %v4701 = vsel %vm1867, %v4694, 0
      %v4703 = vsel %vm1867, %v4696, 0
      %4705 = vmatpush.msra.mxu0 0.0
      %4706 = vmatpush.msra.mxu0 0.0
      %4707 = vmatpush.msra.mxu0 0.0
      %4708 = vmatpush.msra.mxu0 0.0
      %4709 = vmatpush.msra.mxu0 0.0
      %4710 = vmatpush.msra.mxu0 0.0
      %4711 = vmatpush.msra.mxu0 0.0
      %4712 = vmatpush.msra.mxu0 0.0
      %4713 = vmatpush.msra.mxu0 0.0
      %4714 = vmatpush.msra.mxu0 0.0
      %4715 = vmatpush.msra.mxu0 0.0
      %4716 = vmatpush.msra.mxu0 0.0
      %4717 = vmatpush.msra.mxu0 0.0
      %4718 = vmatpush.msra.mxu0 0.0
      %4719 = vmatpush.msra.mxu0 0.0
      %4720 = vmatpush.msra.mxu0 %v4508
      %4721 = vmatmul.f32.gmra.mxu0 %v4697
      %v4722 = vpop.f32.mrf.mxu0
      %v4723 = vadd.f32 0.0, %v4722
      %4724 = vmatmul.f32.gmra.mxu0 %v4699
      %v4725 = vpop.f32.mrf.mxu0
      %v4726 = vadd.f32 0.0, %v4725
      %4727 = vmatmul.f32.gmra.mxu0 %v4701
      %v4728 = vpop.f32.mrf.mxu0
      %v4729 = vadd.f32 0.0, %v4728
      %4730 = vmatmul.f32.gmra.mxu0 %v4703
      %v4731 = vpop.f32.mrf.mxu0
      %v4732 = vadd.f32 0.0, %v4731
      %4733 = vdwg.mxu0
      %4738 = vrot.lane.b32.xlu0 %v4723, 70
      %v4739 = vpop.permute.xlu0 %4738
      %4740 = vrot.lane.b32.xlu0 %v4726, 70
      %v4741 = vpop.permute.xlu0 %4740
      %4742 = vrot.lane.b32.xlu0 %v4729, 70
      %v4743 = vpop.permute.xlu0 %4742
      %4744 = vrot.lane.b32.xlu0 %v4732, 70
      %v4745 = vpop.permute.xlu0 %4744
      %4750 = vst.msk [vmem:[#allocation5] sm:$0xff] %vm1854, %v4739
      %4751 = vst.msk [vmem:[#allocation5 + $0x8] sm:$0xff] %vm1854, %v4741
      %4752 = vst.msk [vmem:[#allocation5 + $0x10] sm:$0xff] %vm1854, %v4743
      %4753 = vst.msk [vmem:[#allocation5 + $0x18] sm:$0xff] %vm1854, %v4745
      %v4754 = vld [vmem:[#allocation5] sm:$0xff]
      %v4755 = vld [vmem:[#allocation5 + $0x8] sm:$0xff]
      %v4756 = vld [vmem:[#allocation5 + $0x10] sm:$0xff]
      %v4757 = vld [vmem:[#allocation5 + $0x18] sm:$0xff]
      %v4758 = vld [vmem:[%s5] sm:$0xff]
      %v4759 = vld [vmem:[%s5 + $0x8] sm:$0xff]
      %s4760 = scalar_lea.vmem %s5, 16
      %v4761 = vld [vmem:[%s4760] sm:$0xff]
      %v4762 = vld [vmem:[%s4760 + $0x8] sm:$0xff]
      %4767 = vrot.lane.b32.xlu0 %v4754, 127
      %v4768 = vpop.permute.xlu0 %4767
      %4769 = vrot.lane.b32.xlu0 %v4755, 127
      %v4770 = vpop.permute.xlu0 %4769
      %4771 = vrot.lane.b32.xlu0 %v4756, 127
      %v4772 = vpop.permute.xlu0 %4771
      %4773 = vrot.lane.b32.xlu0 %v4757, 127
      %v4774 = vpop.permute.xlu0 %4773
      %v4780 = vsel %vm2736, %v4761, 0
      %v4783 = vsel %vm2736, %v4762, 0
      %4785 = vmatpush.msra.mxu0 0.0
      %4786 = vmatpush.msra.mxu0 0.0
      %4787 = vmatpush.msra.mxu0 0.0
      %4788 = vmatpush.msra.mxu0 0.0
      %4789 = vmatpush.msra.mxu0 0.0
      %4790 = vmatpush.msra.mxu0 0.0
      %4791 = vmatpush.msra.mxu0 0.0
      %4792 = vmatpush.msra.mxu0 0.0
      %4793 = vmatpush.msra.mxu0 0.0
      %4794 = vmatpush.msra.mxu0 0.0
      %4795 = vmatpush.msra.mxu0 0.0
      %4796 = vmatpush.msra.mxu0 0.0
      %4797 = vmatpush.msra.mxu0 %v4774
      %4798 = vmatpush.msra.mxu0 %v4772
      %4799 = vmatpush.msra.mxu0 %v4770
      %4800 = vmatpush.msra.mxu0 %v4768
      %4801 = vmatmul.f32.gmra.mxu0 %v4780
      %v4802 = vpop.f32.mrf.mxu0
      %v4803 = vadd.f32 0.0, %v4802
      %4804 = vmatmul.f32.gmra.mxu0 %v4783
      %v4805 = vpop.f32.mrf.mxu0
      %v4806 = vadd.f32 0.0, %v4805
      %4807 = vdwg.mxu0
      %v4809 = vsel %vm2736, %v4758, 0
      %v4812 = vsel %vm2736, %v4759, 0
      %4814 = vmatpush.msra.mxu0 0.0
      %4815 = vmatpush.msra.mxu0 0.0
      %4816 = vmatpush.msra.mxu0 0.0
      %4817 = vmatpush.msra.mxu0 0.0
      %4818 = vmatpush.msra.mxu0 0.0
      %4819 = vmatpush.msra.mxu0 0.0
      %4820 = vmatpush.msra.mxu0 0.0
      %4821 = vmatpush.msra.mxu0 0.0
      %4822 = vmatpush.msra.mxu0 0.0
      %4823 = vmatpush.msra.mxu0 0.0
      %4824 = vmatpush.msra.mxu0 0.0
      %4825 = vmatpush.msra.mxu0 0.0
      %4826 = vmatpush.msra.mxu0 %v4757
      %4827 = vmatpush.msra.mxu0 %v4756
      %4828 = vmatpush.msra.mxu0 %v4755
      %4829 = vmatpush.msra.mxu0 %v4754
      %4830 = vmatmul.f32.gmra.mxu0 %v4809
      %v4831 = vpop.f32.mrf.mxu0
      %v4832 = vadd.f32 %v4803, %v4831
      %4833 = vmatmul.f32.gmra.mxu0 %v4812
      %v4834 = vpop.f32.mrf.mxu0
      %v4835 = vadd.f32 %v4806, %v4834
      %4836 = vdwg.mxu0
      %s4837 = scalar_lea.vmem %s5, 32
      %v4838 = vld [vmem:[%s4837] sm:$0xff]
      %v4839 = vld [vmem:[%s4837 + $0x8] sm:$0xff]
      %4840 = vrot.lane.b32.xlu0 %v4754, 126
      %v4841 = vpop.permute.xlu0 %4840
      %4842 = vrot.lane.b32.xlu0 %v4755, 126
      %v4843 = vpop.permute.xlu0 %4842
      %4844 = vrot.lane.b32.xlu0 %v4756, 126
      %v4845 = vpop.permute.xlu0 %4844
      %4846 = vrot.lane.b32.xlu0 %v4757, 126
      %v4847 = vpop.permute.xlu0 %4846
      %v4853 = vsel %vm2736, %v4838, 0
      %v4856 = vsel %vm2736, %v4839, 0
      %4858 = vmatpush.msra.mxu0 0.0
      %4859 = vmatpush.msra.mxu0 0.0
      %4860 = vmatpush.msra.mxu0 0.0
      %4861 = vmatpush.msra.mxu0 0.0
      %4862 = vmatpush.msra.mxu0 0.0
      %4863 = vmatpush.msra.mxu0 0.0
      %4864 = vmatpush.msra.mxu0 0.0
      %4865 = vmatpush.msra.mxu0 0.0
      %4866 = vmatpush.msra.mxu0 0.0
      %4867 = vmatpush.msra.mxu0 0.0
      %4868 = vmatpush.msra.mxu0 0.0
      %4869 = vmatpush.msra.mxu0 0.0
      %4870 = vmatpush.msra.mxu0 %v4847
      %4871 = vmatpush.msra.mxu0 %v4845
      %4872 = vmatpush.msra.mxu0 %v4843
      %4873 = vmatpush.msra.mxu0 %v4841
      %4874 = vmatmul.f32.gmra.mxu0 %v4853
      %v4875 = vpop.f32.mrf.mxu0
      %v4876 = vadd.f32 0.0, %v4875
      %4877 = vmatmul.f32.gmra.mxu0 %v4856
      %v4878 = vpop.f32.mrf.mxu0
      %v4879 = vadd.f32 0.0, %v4878
      %4880 = vdwg.mxu0
      %v4881 = vadd.f32 %v4832, %v4876
      %v4882 = vadd.f32 %v4835, %v4879
      %s4883 = scalar_lea.vmem %s5, 48
      %v4884 = vld [vmem:[%s4883] sm:$0xff]
      %v4885 = vld [vmem:[%s4883 + $0x8] sm:$0xff]
      %4886 = vrot.lane.b32.xlu0 %v4754, 118
      %v4887 = vpop.permute.xlu0 %4886
      %4888 = vrot.lane.b32.xlu0 %v4755, 118
      %v4889 = vpop.permute.xlu0 %4888
      %4890 = vrot.lane.b32.xlu0 %v4756, 118
      %v4891 = vpop.permute.xlu0 %4890
      %4892 = vrot.lane.b32.xlu0 %v4757, 118
      %v4893 = vpop.permute.xlu0 %4892
      %v4899 = vsel %vm2736, %v4884, 0
      %v4902 = vsel %vm2736, %v4885, 0
      %4904 = vmatpush.msra.mxu0 0.0
      %4905 = vmatpush.msra.mxu0 0.0
      %4906 = vmatpush.msra.mxu0 0.0
      %4907 = vmatpush.msra.mxu0 0.0
      %4908 = vmatpush.msra.mxu0 0.0
      %4909 = vmatpush.msra.mxu0 0.0
      %4910 = vmatpush.msra.mxu0 0.0
      %4911 = vmatpush.msra.mxu0 0.0
      %4912 = vmatpush.msra.mxu0 0.0
      %4913 = vmatpush.msra.mxu0 0.0
      %4914 = vmatpush.msra.mxu0 0.0
      %4915 = vmatpush.msra.mxu0 0.0
      %4916 = vmatpush.msra.mxu0 %v4893
      %4917 = vmatpush.msra.mxu0 %v4891
      %4918 = vmatpush.msra.mxu0 %v4889
      %4919 = vmatpush.msra.mxu0 %v4887
      %4920 = vmatmul.f32.gmra.mxu0 %v4899
      %v4921 = vpop.f32.mrf.mxu0
      %v4922 = vadd.f32 0.0, %v4921
      %4923 = vmatmul.f32.gmra.mxu0 %v4902
      %v4924 = vpop.f32.mrf.mxu0
      %v4925 = vadd.f32 0.0, %v4924
      %4926 = vdwg.mxu0
      %v4927 = vadd.f32 %v4881, %v4922
      %v4928 = vadd.f32 %v4882, %v4925
      %s4929 = scalar_lea.vmem %s5, 64
      %v4930 = vld [vmem:[%s4929] sm:$0xff]
      %v4931 = vld [vmem:[%s4929 + $0x8] sm:$0xff]
      %4932 = vrot.lane.b32.xlu0 %v4754, 117
      %v4933 = vpop.permute.xlu0 %4932
      %4934 = vrot.lane.b32.xlu0 %v4755, 117
      %v4935 = vpop.permute.xlu0 %4934
      %4936 = vrot.lane.b32.xlu0 %v4756, 117
      %v4937 = vpop.permute.xlu0 %4936
      %4938 = vrot.lane.b32.xlu0 %v4757, 117
      %v4939 = vpop.permute.xlu0 %4938
      %v4945 = vsel %vm2736, %v4930, 0
      %v4948 = vsel %vm2736, %v4931, 0
      %4950 = vmatpush.msra.mxu0 0.0
      %4951 = vmatpush.msra.mxu0 0.0
      %4952 = vmatpush.msra.mxu0 0.0
      %4953 = vmatpush.msra.mxu0 0.0
      %4954 = vmatpush.msra.mxu0 0.0
      %4955 = vmatpush.msra.mxu0 0.0
      %4956 = vmatpush.msra.mxu0 0.0
      %4957 = vmatpush.msra.mxu0 0.0
      %4958 = vmatpush.msra.mxu0 0.0
      %4959 = vmatpush.msra.mxu0 0.0
      %4960 = vmatpush.msra.mxu0 0.0
      %4961 = vmatpush.msra.mxu0 0.0
      %4962 = vmatpush.msra.mxu0 %v4939
      %4963 = vmatpush.msra.mxu0 %v4937
      %4964 = vmatpush.msra.mxu0 %v4935
      %4965 = vmatpush.msra.mxu0 %v4933
      %4966 = vmatmul.f32.gmra.mxu0 %v4945
      %v4967 = vpop.f32.mrf.mxu0
      %v4968 = vadd.f32 0.0, %v4967
      %4969 = vmatmul.f32.gmra.mxu0 %v4948
      %v4970 = vpop.f32.mrf.mxu0
      %v4971 = vadd.f32 0.0, %v4970
      %4972 = vdwg.mxu0
      %v4973 = vadd.f32 %v4927, %v4968
      %v4974 = vadd.f32 %v4928, %v4971
      %s4975 = scalar_lea.vmem %s5, 80
      %v4976 = vld [vmem:[%s4975] sm:$0xff]
      %v4977 = vld [vmem:[%s4975 + $0x8] sm:$0xff]
      %4978 = vrot.lane.b32.xlu0 %v4754, 116
      %v4979 = vpop.permute.xlu0 %4978
      %4980 = vrot.lane.b32.xlu0 %v4755, 116
      %v4981 = vpop.permute.xlu0 %4980
      %4982 = vrot.lane.b32.xlu0 %v4756, 116
      %v4983 = vpop.permute.xlu0 %4982
      %4984 = vrot.lane.b32.xlu0 %v4757, 116
      %v4985 = vpop.permute.xlu0 %4984
      %v4991 = vsel %vm2736, %v4976, 0
      %v4994 = vsel %vm2736, %v4977, 0
      %4996 = vmatpush.msra.mxu0 0.0
      %4997 = vmatpush.msra.mxu0 0.0
      %4998 = vmatpush.msra.mxu0 0.0
      %4999 = vmatpush.msra.mxu0 0.0
      %5000 = vmatpush.msra.mxu0 0.0
      %5001 = vmatpush.msra.mxu0 0.0
      %5002 = vmatpush.msra.mxu0 0.0
      %5003 = vmatpush.msra.mxu0 0.0
      %5004 = vmatpush.msra.mxu0 0.0
      %5005 = vmatpush.msra.mxu0 0.0
      %5006 = vmatpush.msra.mxu0 0.0
      %5007 = vmatpush.msra.mxu0 0.0
      %5008 = vmatpush.msra.mxu0 %v4985
      %5009 = vmatpush.msra.mxu0 %v4983
      %5010 = vmatpush.msra.mxu0 %v4981
      %5011 = vmatpush.msra.mxu0 %v4979
      %5012 = vmatmul.f32.gmra.mxu0 %v4991
      %v5013 = vpop.f32.mrf.mxu0
      %v5014 = vadd.f32 0.0, %v5013
      %5015 = vmatmul.f32.gmra.mxu0 %v4994
      %v5016 = vpop.f32.mrf.mxu0
      %v5017 = vadd.f32 0.0, %v5016
      %5018 = vdwg.mxu0
      %v5019 = vadd.f32 %v4973, %v5014
      %v5020 = vadd.f32 %v4974, %v5017
      %s5021 = scalar_lea.vmem %s5, 96
      %v5022 = vld [vmem:[%s5021] sm:$0xff]
      %v5023 = vld [vmem:[%s5021 + $0x8] sm:$0xff]
      %5024 = vrot.lane.b32.xlu0 %v4754, 108
      %v5025 = vpop.permute.xlu0 %5024
      %5026 = vrot.lane.b32.xlu0 %v4755, 108
      %v5027 = vpop.permute.xlu0 %5026
      %5028 = vrot.lane.b32.xlu0 %v4756, 108
      %v5029 = vpop.permute.xlu0 %5028
      %5030 = vrot.lane.b32.xlu0 %v4757, 108
      %v5031 = vpop.permute.xlu0 %5030
      %v5037 = vsel %vm2736, %v5022, 0
      %v5040 = vsel %vm2736, %v5023, 0
      %5042 = vmatpush.msra.mxu0 0.0
      %5043 = vmatpush.msra.mxu0 0.0
      %5044 = vmatpush.msra.mxu0 0.0
      %5045 = vmatpush.msra.mxu0 0.0
      %5046 = vmatpush.msra.mxu0 0.0
      %5047 = vmatpush.msra.mxu0 0.0
      %5048 = vmatpush.msra.mxu0 0.0
      %5049 = vmatpush.msra.mxu0 0.0
      %5050 = vmatpush.msra.mxu0 0.0
      %5051 = vmatpush.msra.mxu0 0.0
      %5052 = vmatpush.msra.mxu0 0.0
      %5053 = vmatpush.msra.mxu0 0.0
      %5054 = vmatpush.msra.mxu0 %v5031
      %5055 = vmatpush.msra.mxu0 %v5029
      %5056 = vmatpush.msra.mxu0 %v5027
      %5057 = vmatpush.msra.mxu0 %v5025
      %5058 = vmatmul.f32.gmra.mxu0 %v5037
      %v5059 = vpop.f32.mrf.mxu0
      %v5060 = vadd.f32 0.0, %v5059
      %5061 = vmatmul.f32.gmra.mxu0 %v5040
      %v5062 = vpop.f32.mrf.mxu0
      %v5063 = vadd.f32 0.0, %v5062
      %5064 = vdwg.mxu0
      %v5065 = vadd.f32 %v5019, %v5060
      %v5066 = vadd.f32 %v5020, %v5063
      %s5067 = scalar_lea.vmem %s5, 112
      %v5068 = vld [vmem:[%s5067] sm:$0xff]
      %v5069 = vld [vmem:[%s5067 + $0x8] sm:$0xff]
      %5070 = vrot.lane.b32.xlu0 %v4754, 107
      %v5071 = vpop.permute.xlu0 %5070
      %5072 = vrot.lane.b32.xlu0 %v4755, 107
      %v5073 = vpop.permute.xlu0 %5072
      %5074 = vrot.lane.b32.xlu0 %v4756, 107
      %v5075 = vpop.permute.xlu0 %5074
      %5076 = vrot.lane.b32.xlu0 %v4757, 107
      %v5077 = vpop.permute.xlu0 %5076
      %v5083 = vsel %vm2736, %v5068, 0
      %v5086 = vsel %vm2736, %v5069, 0
      %5088 = vmatpush.msra.mxu0 0.0
      %5089 = vmatpush.msra.mxu0 0.0
      %5090 = vmatpush.msra.mxu0 0.0
      %5091 = vmatpush.msra.mxu0 0.0
      %5092 = vmatpush.msra.mxu0 0.0
      %5093 = vmatpush.msra.mxu0 0.0
      %5094 = vmatpush.msra.mxu0 0.0
      %5095 = vmatpush.msra.mxu0 0.0
      %5096 = vmatpush.msra.mxu0 0.0
      %5097 = vmatpush.msra.mxu0 0.0
      %5098 = vmatpush.msra.mxu0 0.0
      %5099 = vmatpush.msra.mxu0 0.0
      %5100 = vmatpush.msra.mxu0 %v5077
      %5101 = vmatpush.msra.mxu0 %v5075
      %5102 = vmatpush.msra.mxu0 %v5073
      %5103 = vmatpush.msra.mxu0 %v5071
      %5104 = vmatmul.f32.gmra.mxu0 %v5083
      %v5105 = vpop.f32.mrf.mxu0
      %v5106 = vadd.f32 0.0, %v5105
      %5107 = vmatmul.f32.gmra.mxu0 %v5086
      %v5108 = vpop.f32.mrf.mxu0
      %v5109 = vadd.f32 0.0, %v5108
      %5110 = vdwg.mxu0
      %v5111 = vadd.f32 %v5065, %v5106
      %v5112 = vadd.f32 %v5066, %v5109
      %s5113 = scalar_lea.vmem %s5, 128
      %v5114 = vld [vmem:[%s5113] sm:$0xff]
      %v5115 = vld [vmem:[%s5113 + $0x8] sm:$0xff]
      %5116 = vrot.lane.b32.xlu0 %v4754, 106
      %v5117 = vpop.permute.xlu0 %5116
      %5118 = vrot.lane.b32.xlu0 %v4755, 106
      %v5119 = vpop.permute.xlu0 %5118
      %5120 = vrot.lane.b32.xlu0 %v4756, 106
      %v5121 = vpop.permute.xlu0 %5120
      %5122 = vrot.lane.b32.xlu0 %v4757, 106
      %v5123 = vpop.permute.xlu0 %5122
      %v5129 = vsel %vm2736, %v5114, 0
      %v5132 = vsel %vm2736, %v5115, 0
      %5134 = vmatpush.msra.mxu0 0.0
      %5135 = vmatpush.msra.mxu0 0.0
      %5136 = vmatpush.msra.mxu0 0.0
      %5137 = vmatpush.msra.mxu0 0.0
      %5138 = vmatpush.msra.mxu0 0.0
      %5139 = vmatpush.msra.mxu0 0.0
      %5140 = vmatpush.msra.mxu0 0.0
      %5141 = vmatpush.msra.mxu0 0.0
      %5142 = vmatpush.msra.mxu0 0.0
      %5143 = vmatpush.msra.mxu0 0.0
      %5144 = vmatpush.msra.mxu0 0.0
      %5145 = vmatpush.msra.mxu0 0.0
      %5146 = vmatpush.msra.mxu0 %v5123
      %5147 = vmatpush.msra.mxu0 %v5121
      %5148 = vmatpush.msra.mxu0 %v5119
      %5149 = vmatpush.msra.mxu0 %v5117
      %5150 = vmatmul.f32.gmra.mxu0 %v5129
      %v5151 = vpop.f32.mrf.mxu0
      %v5152 = vadd.f32 0.0, %v5151
      %5153 = vmatmul.f32.gmra.mxu0 %v5132
      %v5154 = vpop.f32.mrf.mxu0
      %v5155 = vadd.f32 0.0, %v5154
      %5156 = vdwg.mxu0
      %v5157 = vadd.f32 %v5111, %v5152
      %v5158 = vadd.f32 %v5112, %v5155
      %v5159 = vld [vmem:[%s11] sm:$0xff]
      %v5160 = vld [vmem:[%s11 + $0x8] sm:$0xff]
      %5162 = vset.pattern.permute.xlu0 0
      %5163 = vperm.xlu0 %5162, %v5159
      %v5164 = vpop.permute.xlu0 %5163
      %5167 = vset.pattern.permute.xlu0 0
      %5168 = vperm.xlu0 %5167, %v5160
      %v5169 = vpop.permute.xlu0 %5168
      %v5171 = vadd.f32 %v5157, %v5164
      %v5172 = vadd.f32 %v5158, %v5169
      %v5173 = vmax.f32 %v5171, 0.0
      %v5174 = vmax.f32 %v5172, 0.0
      %v5175 = vld [vmem:[%s17] sm:$0xff]
      %vm5176 = vcmask 64512
      %v5178 = vsel %vm5176, %v5173, 0
      %v5181 = vsel %vm5176, %v5174, 0
      %5183 = vmatpush.msra.mxu0 0.0
      %5184 = vmatpush.msra.mxu0 0.0
      %5185 = vmatpush.msra.mxu0 0.0
      %5186 = vmatpush.msra.mxu0 0.0
      %5187 = vmatpush.msra.mxu0 0.0
      %5188 = vmatpush.msra.mxu0 0.0
      %5189 = vmatpush.msra.mxu0 0.0
      %5190 = vmatpush.msra.mxu0 0.0
      %5191 = vmatpush.msra.mxu0 0.0
      %5192 = vmatpush.msra.mxu0 0.0
      %5193 = vmatpush.msra.mxu0 0.0
      %5194 = vmatpush.msra.mxu0 0.0
      %5195 = vmatpush.msra.mxu0 0.0
      %5196 = vmatpush.msra.mxu0 0.0
      %5197 = vmatpush.msra.mxu0 0.0
      %5198 = vmatpush.msra.mxu0 %v5175
      %5199 = vmatmul.f32.gmra.mxu0 %v5178
      %v5200 = vpop.f32.mrf.mxu0
      %v5201 = vadd.f32 0.0, %v5200
      %5202 = vmatmul.f32.gmra.mxu0 %v5181
      %v5203 = vpop.f32.mrf.mxu0
      %v5204 = vadd.f32 0.0, %v5203
      %5205 = vdwg.mxu0
      %5208 = vrot.lane.b32.xlu0 %v5201, 18
      %v5209 = vpop.permute.xlu0 %5208
      %5210 = vrot.lane.b32.xlu0 %v5204, 18
      %v5211 = vpop.permute.xlu0 %5210
      %vm5214 = vcmask 294032
      %5215 = vst.msk [vmem:[#allocation6] sm:$0xff] %vm5214, %v5209
      %5216 = vst.msk [vmem:[#allocation6 + $0x18] sm:$0xff] %vm5214, %v5211
      %5217 = vrot.lane.b32.xlu0 %v5173, 118
      %v5218 = vpop.permute.xlu0 %5217
      %5219 = vrot.lane.b32.xlu0 %v5174, 118
      %v5220 = vpop.permute.xlu0 %5219
      %v5221 = vsel %vm5176, %v5218, 0
      %v5223 = vsel %vm5176, %v5220, 0
      %5225 = vmatpush.msra.mxu0 0.0
      %5226 = vmatpush.msra.mxu0 0.0
      %5227 = vmatpush.msra.mxu0 0.0
      %5228 = vmatpush.msra.mxu0 0.0
      %5229 = vmatpush.msra.mxu0 0.0
      %5230 = vmatpush.msra.mxu0 0.0
      %5231 = vmatpush.msra.mxu0 0.0
      %5232 = vmatpush.msra.mxu0 0.0
      %5233 = vmatpush.msra.mxu0 0.0
      %5234 = vmatpush.msra.mxu0 0.0
      %5235 = vmatpush.msra.mxu0 0.0
      %5236 = vmatpush.msra.mxu0 0.0
      %5237 = vmatpush.msra.mxu0 0.0
      %5238 = vmatpush.msra.mxu0 0.0
      %5239 = vmatpush.msra.mxu0 0.0
      %5240 = vmatpush.msra.mxu0 %v5175
      %5241 = vmatmul.f32.gmra.mxu0 %v5221
      %v5242 = vpop.f32.mrf.mxu0
      %v5243 = vadd.f32 0.0, %v5242
      %5244 = vmatmul.f32.gmra.mxu0 %v5223
      %v5245 = vpop.f32.mrf.mxu0
      %v5246 = vadd.f32 0.0, %v5245
      %5247 = vdwg.mxu0
      %5250 = vrot.lane.b32.xlu0 %v5243, 54
      %v5251 = vpop.permute.xlu0 %5250
      %5252 = vrot.lane.b32.xlu0 %v5246, 54
      %v5253 = vpop.permute.xlu0 %5252
      %vm5256 = vcmask 589232
      %5257 = vst.msk [vmem:[#allocation6] sm:$0xff] %vm5256, %v5251
      %5258 = vst.msk [vmem:[#allocation6 + $0x18] sm:$0xff] %vm5256, %v5253
      %5259 = vrot.lane.b32.xlu0 %v5173, 108
      %v5260 = vpop.permute.xlu0 %5259
      %5261 = vrot.lane.b32.xlu0 %v5174, 108
      %v5262 = vpop.permute.xlu0 %5261
      %v5263 = vsel %vm5176, %v5260, 0
      %v5265 = vsel %vm5176, %v5262, 0
      %5267 = vmatpush.msra.mxu0 0.0
      %5268 = vmatpush.msra.mxu0 0.0
      %5269 = vmatpush.msra.mxu0 0.0
      %5270 = vmatpush.msra.mxu0 0.0
      %5271 = vmatpush.msra.mxu0 0.0
      %5272 = vmatpush.msra.mxu0 0.0
      %5273 = vmatpush.msra.mxu0 0.0
      %5274 = vmatpush.msra.mxu0 0.0
      %5275 = vmatpush.msra.mxu0 0.0
      %5276 = vmatpush.msra.mxu0 0.0
      %5277 = vmatpush.msra.mxu0 0.0
      %5278 = vmatpush.msra.mxu0 0.0
      %5279 = vmatpush.msra.mxu0 0.0
      %5280 = vmatpush.msra.mxu0 0.0
      %5281 = vmatpush.msra.mxu0 0.0
      %5282 = vmatpush.msra.mxu0 %v5175
      %5283 = vmatmul.f32.gmra.mxu0 %v5263
      %v5284 = vpop.f32.mrf.mxu0
      %v5285 = vadd.f32 0.0, %v5284
      %5286 = vmatmul.f32.gmra.mxu0 %v5265
      %v5287 = vpop.f32.mrf.mxu0
      %v5288 = vadd.f32 0.0, %v5287
      %5289 = vdwg.mxu0
      %5292 = vrot.lane.b32.xlu0 %v5285, 90
      %v5293 = vpop.permute.xlu0 %5292
      %5294 = vrot.lane.b32.xlu0 %v5288, 90
      %v5295 = vpop.permute.xlu0 %5294
      %vm5298 = vcmask 884432
      %5299 = vst.msk [vmem:[#allocation6] sm:$0xff] %vm5298, %v5293
      %5300 = vst.msk [vmem:[#allocation6 + $0x18] sm:$0xff] %vm5298, %v5295
      %5301 = vrot.lane.b32.xlu0 %v5173, 98
      %v5302 = vpop.permute.xlu0 %5301
      %5303 = vrot.lane.b32.xlu0 %v5174, 98
      %v5304 = vpop.permute.xlu0 %5303
      %v5305 = vsel %vm5176, %v5302, 0
      %v5307 = vsel %vm5176, %v5304, 0
      %5309 = vmatpush.msra.mxu0 0.0
      %5310 = vmatpush.msra.mxu0 0.0
      %5311 = vmatpush.msra.mxu0 0.0
      %5312 = vmatpush.msra.mxu0 0.0
      %5313 = vmatpush.msra.mxu0 0.0
      %5314 = vmatpush.msra.mxu0 0.0
      %5315 = vmatpush.msra.mxu0 0.0
      %5316 = vmatpush.msra.mxu0 0.0
      %5317 = vmatpush.msra.mxu0 0.0
      %5318 = vmatpush.msra.mxu0 0.0
      %5319 = vmatpush.msra.mxu0 0.0
      %5320 = vmatpush.msra.mxu0 0.0
      %5321 = vmatpush.msra.mxu0 0.0
      %5322 = vmatpush.msra.mxu0 0.0
      %5323 = vmatpush.msra.mxu0 0.0
      %5324 = vmatpush.msra.mxu0 %v5175
      %5325 = vmatmul.f32.gmra.mxu0 %v5305
      %v5326 = vpop.f32.mrf.mxu0
      %v5327 = vadd.f32 0.0, %v5326
      %5328 = vmatmul.f32.gmra.mxu0 %v5307
      %v5329 = vpop.f32.mrf.mxu0
      %v5330 = vadd.f32 0.0, %v5329
      %5331 = vdwg.mxu0
      %5334 = vrot.lane.b32.xlu0 %v5327, 126
      %v5335 = vpop.permute.xlu0 %5334
      %5336 = vrot.lane.b32.xlu0 %v5330, 126
      %v5337 = vpop.permute.xlu0 %5336
      %vm5340 = vcmask 1048560
      %5341 = vst.msk [vmem:[#allocation6] sm:$0xff] %vm5340, %v5335
      %5342 = vst.msk [vmem:[#allocation6 + $0x8] sm:$0xff] %vm1927, %v5335
      %5343 = vst.msk [vmem:[#allocation6 + $0x18] sm:$0xff] %vm5340, %v5337
      %5344 = vst.msk [vmem:[#allocation6 + $0x20] sm:$0xff] %vm1927, %v5337
      %5345 = vrot.lane.b32.xlu0 %v5173, 88
      %v5346 = vpop.permute.xlu0 %5345
      %5347 = vrot.lane.b32.xlu0 %v5174, 88
      %v5348 = vpop.permute.xlu0 %5347
      %v5349 = vsel %vm5176, %v5346, 0
      %v5351 = vsel %vm5176, %v5348, 0
      %5353 = vmatpush.msra.mxu0 0.0
      %5354 = vmatpush.msra.mxu0 0.0
      %5355 = vmatpush.msra.mxu0 0.0
      %5356 = vmatpush.msra.mxu0 0.0
      %5357 = vmatpush.msra.mxu0 0.0
      %5358 = vmatpush.msra.mxu0 0.0
      %5359 = vmatpush.msra.mxu0 0.0
      %5360 = vmatpush.msra.mxu0 0.0
      %5361 = vmatpush.msra.mxu0 0.0
      %5362 = vmatpush.msra.mxu0 0.0
      %5363 = vmatpush.msra.mxu0 0.0
      %5364 = vmatpush.msra.mxu0 0.0
      %5365 = vmatpush.msra.mxu0 0.0
      %5366 = vmatpush.msra.mxu0 0.0
      %5367 = vmatpush.msra.mxu0 0.0
      %5368 = vmatpush.msra.mxu0 %v5175
      %5369 = vmatmul.f32.gmra.mxu0 %v5349
      %v5370 = vpop.f32.mrf.mxu0
      %v5371 = vadd.f32 0.0, %v5370
      %5372 = vmatmul.f32.gmra.mxu0 %v5351
      %v5373 = vpop.f32.mrf.mxu0
      %v5374 = vadd.f32 0.0, %v5373
      %5375 = vdwg.mxu0
      %5378 = vrot.lane.b32.xlu0 %v5371, 34
      %v5379 = vpop.permute.xlu0 %5378
      %5380 = vrot.lane.b32.xlu0 %v5374, 34
      %v5381 = vpop.permute.xlu0 %5380
      %vm5384 = vcmask 425232
      %5385 = vst.msk [vmem:[#allocation6 + $0x8] sm:$0xff] %vm5384, %v5379
      %5386 = vst.msk [vmem:[#allocation6 + $0x20] sm:$0xff] %vm5384, %v5381
      %5387 = vrot.lane.b32.xlu0 %v5173, 78
      %v5388 = vpop.permute.xlu0 %5387
      %5389 = vrot.lane.b32.xlu0 %v5174, 78
      %v5390 = vpop.permute.xlu0 %5389
      %v5391 = vsel %vm5176, %v5388, 0
      %v5393 = vsel %vm5176, %v5390, 0
      %5395 = vmatpush.msra.mxu0 0.0
      %5396 = vmatpush.msra.mxu0 0.0
      %5397 = vmatpush.msra.mxu0 0.0
      %5398 = vmatpush.msra.mxu0 0.0
      %5399 = vmatpush.msra.mxu0 0.0
      %5400 = vmatpush.msra.mxu0 0.0
      %5401 = vmatpush.msra.mxu0 0.0
      %5402 = vmatpush.msra.mxu0 0.0
      %5403 = vmatpush.msra.mxu0 0.0
      %5404 = vmatpush.msra.mxu0 0.0
      %5405 = vmatpush.msra.mxu0 0.0
      %5406 = vmatpush.msra.mxu0 0.0
      %5407 = vmatpush.msra.mxu0 0.0
      %5408 = vmatpush.msra.mxu0 0.0
      %5409 = vmatpush.msra.mxu0 0.0
      %5410 = vmatpush.msra.mxu0 %v5175
      %5411 = vmatmul.f32.gmra.mxu0 %v5391
      %v5412 = vpop.f32.mrf.mxu0
      %v5413 = vadd.f32 0.0, %v5412
      %5414 = vmatmul.f32.gmra.mxu0 %v5393
      %v5415 = vpop.f32.mrf.mxu0
      %v5416 = vadd.f32 0.0, %v5415
      %5417 = vdwg.mxu0
      %5420 = vrot.lane.b32.xlu0 %v5413, 70
      %v5421 = vpop.permute.xlu0 %5420
      %5422 = vrot.lane.b32.xlu0 %v5416, 70
      %v5423 = vpop.permute.xlu0 %5422
      %vm5426 = vcmask 720432
      %5427 = vst.msk [vmem:[#allocation6 + $0x8] sm:$0xff] %vm5426, %v5421
      %5428 = vst.msk [vmem:[#allocation6 + $0x20] sm:$0xff] %vm5426, %v5423
      %5429 = vrot.lane.b32.xlu0 %v5173, 68
      %v5430 = vpop.permute.xlu0 %5429
      %5431 = vrot.lane.b32.xlu0 %v5174, 68
      %v5432 = vpop.permute.xlu0 %5431
      %v5433 = vsel %vm5176, %v5430, 0
      %v5435 = vsel %vm5176, %v5432, 0
      %5437 = vmatpush.msra.mxu0 0.0
      %5438 = vmatpush.msra.mxu0 0.0
      %5439 = vmatpush.msra.mxu0 0.0
      %5440 = vmatpush.msra.mxu0 0.0
      %5441 = vmatpush.msra.mxu0 0.0
      %5442 = vmatpush.msra.mxu0 0.0
      %5443 = vmatpush.msra.mxu0 0.0
      %5444 = vmatpush.msra.mxu0 0.0
      %5445 = vmatpush.msra.mxu0 0.0
      %5446 = vmatpush.msra.mxu0 0.0
      %5447 = vmatpush.msra.mxu0 0.0
      %5448 = vmatpush.msra.mxu0 0.0
      %5449 = vmatpush.msra.mxu0 0.0
      %5450 = vmatpush.msra.mxu0 0.0
      %5451 = vmatpush.msra.mxu0 0.0
      %5452 = vmatpush.msra.mxu0 %v5175
      %5453 = vmatmul.f32.gmra.mxu0 %v5433
      %v5454 = vpop.f32.mrf.mxu0
      %v5455 = vadd.f32 0.0, %v5454
      %5456 = vmatmul.f32.gmra.mxu0 %v5435
      %v5457 = vpop.f32.mrf.mxu0
      %v5458 = vadd.f32 0.0, %v5457
      %5459 = vdwg.mxu0
      %5462 = vrot.lane.b32.xlu0 %v5455, 106
      %v5463 = vpop.permute.xlu0 %5462
      %5464 = vrot.lane.b32.xlu0 %v5458, 106
      %v5465 = vpop.permute.xlu0 %5464
      %vm5468 = vcmask 1015632
      %5469 = vst.msk [vmem:[#allocation6 + $0x8] sm:$0xff] %vm5468, %v5463
      %5470 = vst.msk [vmem:[#allocation6 + $0x20] sm:$0xff] %vm5468, %v5465
      %5471 = vrot.lane.b32.xlu0 %v5173, 58
      %v5472 = vpop.permute.xlu0 %5471
      %5473 = vrot.lane.b32.xlu0 %v5174, 58
      %v5474 = vpop.permute.xlu0 %5473
      %v5475 = vsel %vm5176, %v5472, 0
      %v5477 = vsel %vm5176, %v5474, 0
      %5479 = vmatpush.msra.mxu0 0.0
      %5480 = vmatpush.msra.mxu0 0.0
      %5481 = vmatpush.msra.mxu0 0.0
      %5482 = vmatpush.msra.mxu0 0.0
      %5483 = vmatpush.msra.mxu0 0.0
      %5484 = vmatpush.msra.mxu0 0.0
      %5485 = vmatpush.msra.mxu0 0.0
      %5486 = vmatpush.msra.mxu0 0.0
      %5487 = vmatpush.msra.mxu0 0.0
      %5488 = vmatpush.msra.mxu0 0.0
      %5489 = vmatpush.msra.mxu0 0.0
      %5490 = vmatpush.msra.mxu0 0.0
      %5491 = vmatpush.msra.mxu0 0.0
      %5492 = vmatpush.msra.mxu0 0.0
      %5493 = vmatpush.msra.mxu0 0.0
      %5494 = vmatpush.msra.mxu0 %v5175
      %5495 = vmatmul.f32.gmra.mxu0 %v5475
      %v5496 = vpop.f32.mrf.mxu0
      %v5497 = vadd.f32 0.0, %v5496
      %5498 = vmatmul.f32.gmra.mxu0 %v5477
      %v5499 = vpop.f32.mrf.mxu0
      %v5500 = vadd.f32 0.0, %v5499
      %5501 = vdwg.mxu0
      %5504 = vrot.lane.b32.xlu0 %v5497, 14
      %v5505 = vpop.permute.xlu0 %5504
      %5506 = vrot.lane.b32.xlu0 %v5500, 14
      %v5507 = vpop.permute.xlu0 %5506
      %vm5510 = vcmask 261232
      %5511 = vst.msk [vmem:[#allocation6 + $0x10] sm:$0xff] %vm5510, %v5505
      %5512 = vst.msk [vmem:[#allocation6 + $0x28] sm:$0xff] %vm5510, %v5507
      %v5513 = vld [vmem:[#allocation6] sm:$0xff]
      %v5514 = vld [vmem:[#allocation6 + $0x8] sm:$0xff]
      %v5515 = vld [vmem:[#allocation6 + $0x10] sm:$0xff]
      %v5516 = vld [vmem:[#allocation6 + $0x18] sm:$0xff]
      %v5517 = vld [vmem:[#allocation6 + $0x20] sm:$0xff]
      %v5518 = vld [vmem:[#allocation6 + $0x28] sm:$0xff]
      %v5519 = vld [vmem:[%s6] sm:$0x7]
      %s5520 = scalar_lea.vmem %s6, 4
      %v5521 = vld [vmem:[%s5520] sm:$0x7]
      %5528 = vrot.lane.b32.xlu0 %v5513, 127
      %v5529 = vpop.permute.xlu0 %5528
      %5530 = vrot.lane.b32.xlu0 %v5514, 127
      %v5531 = vpop.permute.xlu0 %5530
      %5532 = vrot.lane.b32.xlu0 %v5515, 127
      %v5533 = vpop.permute.xlu0 %5532
      %5534 = vrot.lane.b32.xlu0 %v5516, 127
      %v5535 = vpop.permute.xlu0 %5534
      %5536 = vrot.lane.b32.xlu0 %v5517, 127
      %v5537 = vpop.permute.xlu0 %5536
      %5538 = vrot.lane.b32.xlu0 %v5518, 127
      %v5539 = vpop.permute.xlu0 %5538
      %v5540 = vsel %vm624, %v5529, %v5531
      %v5541 = vsel %vm624, %v5531, %v5533
      %v5542 = vsel %vm624, %v5535, %v5537
      %v5543 = vsel %vm624, %v5537, %v5539
      %v5551 = vsel %vm1927, %v5521, 0
      %5553 = vmatpush.msra.mxu0 0.0
      %5554 = vmatpush.msra.mxu0 0.0
      %5555 = vmatpush.msra.mxu0 0.0
      %5556 = vmatpush.msra.mxu0 0.0
      %5557 = vmatpush.msra.mxu0 0.0
      %5558 = vmatpush.msra.mxu0 0.0
      %5559 = vmatpush.msra.mxu0 0.0
      %5560 = vmatpush.msra.mxu0 0.0
      %5561 = vmatpush.msra.mxu0 0.0
      %5562 = vmatpush.msra.mxu0 0.0
      %5563 = vmatpush.msra.mxu0 0.0
      %5564 = vmatpush.msra.mxu0 0.0
      %5565 = vmatpush.msra.mxu0 0.0
      %5566 = vmatpush.msra.mxu0 0.0
      %5567 = vmatpush.msra.mxu0 %v5542
      %5568 = vmatpush.msra.mxu0 %v5540
      %5569 = vmatmul.f32.gmra.mxu0 %v5551
      %v5570 = vpop.f32.mrf.mxu0
      %v5571 = vadd.f32 0.0, %v5570
      %5572 = vdwg.mxu0
      %5573 = vmatpush.msra.mxu0 0.0
      %5574 = vmatpush.msra.mxu0 0.0
      %5575 = vmatpush.msra.mxu0 0.0
      %5576 = vmatpush.msra.mxu0 0.0
      %5577 = vmatpush.msra.mxu0 0.0
      %5578 = vmatpush.msra.mxu0 0.0
      %5579 = vmatpush.msra.mxu0 0.0
      %5580 = vmatpush.msra.mxu0 0.0
      %5581 = vmatpush.msra.mxu0 0.0
      %5582 = vmatpush.msra.mxu0 0.0
      %5583 = vmatpush.msra.mxu0 0.0
      %5584 = vmatpush.msra.mxu0 0.0
      %5585 = vmatpush.msra.mxu0 0.0
      %5586 = vmatpush.msra.mxu0 0.0
      %5587 = vmatpush.msra.mxu0 %v5543
      %5588 = vmatpush.msra.mxu0 %v5541
      %5589 = vmatmul.f32.gmra.mxu0 %v5551
      %v5590 = vpop.f32.mrf.mxu0
      %v5591 = vadd.f32 0.0, %v5590
      %5592 = vdwg.mxu0
      %5593 = vmatpush.msra.mxu0 0.0
      %5594 = vmatpush.msra.mxu0 0.0
      %5595 = vmatpush.msra.mxu0 0.0
      %5596 = vmatpush.msra.mxu0 0.0
      %5597 = vmatpush.msra.mxu0 0.0
      %5598 = vmatpush.msra.mxu0 0.0
      %5599 = vmatpush.msra.mxu0 0.0
      %5600 = vmatpush.msra.mxu0 0.0
      %5601 = vmatpush.msra.mxu0 0.0
      %5602 = vmatpush.msra.mxu0 0.0
      %5603 = vmatpush.msra.mxu0 0.0
      %5604 = vmatpush.msra.mxu0 0.0
      %5605 = vmatpush.msra.mxu0 0.0
      %5606 = vmatpush.msra.mxu0 0.0
      %5607 = vmatpush.msra.mxu0 %v5539
      %5608 = vmatpush.msra.mxu0 %v5533
      %5609 = vmatmul.f32.gmra.mxu0 %v5551
      %v5610 = vpop.f32.mrf.mxu0
      %v5611 = vadd.f32 0.0, %v5610
      %5612 = vdwg.mxu0
      %v5614 = vsel %vm1927, %v5519, 0
      %5616 = vmatpush.msra.mxu0 0.0
      %5617 = vmatpush.msra.mxu0 0.0
      %5618 = vmatpush.msra.mxu0 0.0
      %5619 = vmatpush.msra.mxu0 0.0
      %5620 = vmatpush.msra.mxu0 0.0
      %5621 = vmatpush.msra.mxu0 0.0
      %5622 = vmatpush.msra.mxu0 0.0
      %5623 = vmatpush.msra.mxu0 0.0
      %5624 = vmatpush.msra.mxu0 0.0
      %5625 = vmatpush.msra.mxu0 0.0
      %5626 = vmatpush.msra.mxu0 0.0
      %5627 = vmatpush.msra.mxu0 0.0
      %5628 = vmatpush.msra.mxu0 0.0
      %5629 = vmatpush.msra.mxu0 0.0
      %5630 = vmatpush.msra.mxu0 %v5516
      %5631 = vmatpush.msra.mxu0 %v5513
      %5632 = vmatmul.f32.gmra.mxu0 %v5614
      %v5633 = vpop.f32.mrf.mxu0
      %v5634 = vadd.f32 %v5571, %v5633
      %5635 = vdwg.mxu0
      %5636 = vmatpush.msra.mxu0 0.0
      %5637 = vmatpush.msra.mxu0 0.0
      %5638 = vmatpush.msra.mxu0 0.0
      %5639 = vmatpush.msra.mxu0 0.0
      %5640 = vmatpush.msra.mxu0 0.0
      %5641 = vmatpush.msra.mxu0 0.0
      %5642 = vmatpush.msra.mxu0 0.0
      %5643 = vmatpush.msra.mxu0 0.0
      %5644 = vmatpush.msra.mxu0 0.0
      %5645 = vmatpush.msra.mxu0 0.0
      %5646 = vmatpush.msra.mxu0 0.0
      %5647 = vmatpush.msra.mxu0 0.0
      %5648 = vmatpush.msra.mxu0 0.0
      %5649 = vmatpush.msra.mxu0 0.0
      %5650 = vmatpush.msra.mxu0 %v5517
      %5651 = vmatpush.msra.mxu0 %v5514
      %5652 = vmatmul.f32.gmra.mxu0 %v5614
      %v5653 = vpop.f32.mrf.mxu0
      %v5654 = vadd.f32 %v5591, %v5653
      %5655 = vdwg.mxu0
      %5656 = vmatpush.msra.mxu0 0.0
      %5657 = vmatpush.msra.mxu0 0.0
      %5658 = vmatpush.msra.mxu0 0.0
      %5659 = vmatpush.msra.mxu0 0.0
      %5660 = vmatpush.msra.mxu0 0.0
      %5661 = vmatpush.msra.mxu0 0.0
      %5662 = vmatpush.msra.mxu0 0.0
      %5663 = vmatpush.msra.mxu0 0.0
      %5664 = vmatpush.msra.mxu0 0.0
      %5665 = vmatpush.msra.mxu0 0.0
      %5666 = vmatpush.msra.mxu0 0.0
      %5667 = vmatpush.msra.mxu0 0.0
      %5668 = vmatpush.msra.mxu0 0.0
      %5669 = vmatpush.msra.mxu0 0.0
      %5670 = vmatpush.msra.mxu0 %v5518
      %5671 = vmatpush.msra.mxu0 %v5515
      %5672 = vmatmul.f32.gmra.mxu0 %v5614
      %v5673 = vpop.f32.mrf.mxu0
      %v5674 = vadd.f32 %v5611, %v5673
      %5675 = vdwg.mxu0
      %s5676 = scalar_lea.vmem %s6, 8
      %v5677 = vld [vmem:[%s5676] sm:$0x7]
      %5678 = vrot.lane.b32.xlu0 %v5513, 126
      %v5679 = vpop.permute.xlu0 %5678
      %5680 = vrot.lane.b32.xlu0 %v5514, 126
      %v5681 = vpop.permute.xlu0 %5680
      %5682 = vrot.lane.b32.xlu0 %v5515, 126
      %v5683 = vpop.permute.xlu0 %5682
      %5684 = vrot.lane.b32.xlu0 %v5516, 126
      %v5685 = vpop.permute.xlu0 %5684
      %5686 = vrot.lane.b32.xlu0 %v5517, 126
      %v5687 = vpop.permute.xlu0 %5686
      %5688 = vrot.lane.b32.xlu0 %v5518, 126
      %v5689 = vpop.permute.xlu0 %5688
      %v5690 = vsel %vm812, %v5679, %v5681
      %v5691 = vsel %vm812, %v5681, %v5683
      %v5692 = vsel %vm812, %v5685, %v5687
      %v5693 = vsel %vm812, %v5687, %v5689
      %v5701 = vsel %vm1927, %v5677, 0
      %5703 = vmatpush.msra.mxu0 0.0
      %5704 = vmatpush.msra.mxu0 0.0
      %5705 = vmatpush.msra.mxu0 0.0
      %5706 = vmatpush.msra.mxu0 0.0
      %5707 = vmatpush.msra.mxu0 0.0
      %5708 = vmatpush.msra.mxu0 0.0
      %5709 = vmatpush.msra.mxu0 0.0
      %5710 = vmatpush.msra.mxu0 0.0
      %5711 = vmatpush.msra.mxu0 0.0
      %5712 = vmatpush.msra.mxu0 0.0
      %5713 = vmatpush.msra.mxu0 0.0
      %5714 = vmatpush.msra.mxu0 0.0
      %5715 = vmatpush.msra.mxu0 0.0
      %5716 = vmatpush.msra.mxu0 0.0
      %5717 = vmatpush.msra.mxu0 %v5692
      %5718 = vmatpush.msra.mxu0 %v5690
      %5719 = vmatmul.f32.gmra.mxu0 %v5701
      %v5720 = vpop.f32.mrf.mxu0
      %v5721 = vadd.f32 0.0, %v5720
      %5722 = vdwg.mxu0
      %5723 = vmatpush.msra.mxu0 0.0
      %5724 = vmatpush.msra.mxu0 0.0
      %5725 = vmatpush.msra.mxu0 0.0
      %5726 = vmatpush.msra.mxu0 0.0
      %5727 = vmatpush.msra.mxu0 0.0
      %5728 = vmatpush.msra.mxu0 0.0
      %5729 = vmatpush.msra.mxu0 0.0
      %5730 = vmatpush.msra.mxu0 0.0
      %5731 = vmatpush.msra.mxu0 0.0
      %5732 = vmatpush.msra.mxu0 0.0
      %5733 = vmatpush.msra.mxu0 0.0
      %5734 = vmatpush.msra.mxu0 0.0
      %5735 = vmatpush.msra.mxu0 0.0
      %5736 = vmatpush.msra.mxu0 0.0
      %5737 = vmatpush.msra.mxu0 %v5693
      %5738 = vmatpush.msra.mxu0 %v5691
      %5739 = vmatmul.f32.gmra.mxu0 %v5701
      %v5740 = vpop.f32.mrf.mxu0
      %v5741 = vadd.f32 0.0, %v5740
      %5742 = vdwg.mxu0
      %5743 = vmatpush.msra.mxu0 0.0
      %5744 = vmatpush.msra.mxu0 0.0
      %5745 = vmatpush.msra.mxu0 0.0
      %5746 = vmatpush.msra.mxu0 0.0
      %5747 = vmatpush.msra.mxu0 0.0
      %5748 = vmatpush.msra.mxu0 0.0
      %5749 = vmatpush.msra.mxu0 0.0
      %5750 = vmatpush.msra.mxu0 0.0
      %5751 = vmatpush.msra.mxu0 0.0
      %5752 = vmatpush.msra.mxu0 0.0
      %5753 = vmatpush.msra.mxu0 0.0
      %5754 = vmatpush.msra.mxu0 0.0
      %5755 = vmatpush.msra.mxu0 0.0
      %5756 = vmatpush.msra.mxu0 0.0
      %5757 = vmatpush.msra.mxu0 %v5689
      %5758 = vmatpush.msra.mxu0 %v5683
      %5759 = vmatmul.f32.gmra.mxu0 %v5701
      %v5760 = vpop.f32.mrf.mxu0
      %v5761 = vadd.f32 0.0, %v5760
      %5762 = vdwg.mxu0
      %v5763 = vadd.f32 %v5634, %v5721
      %v5764 = vadd.f32 %v5654, %v5741
      %v5765 = vadd.f32 %v5674, %v5761
      %s5766 = scalar_lea.vmem %s6, 12
      %v5767 = vld [vmem:[%s5766] sm:$0x7]
      %5768 = vrot.lane.b32.xlu0 %v5513, 110
      %v5769 = vpop.permute.xlu0 %5768
      %5770 = vrot.lane.b32.xlu0 %v5514, 110
      %v5771 = vpop.permute.xlu0 %5770
      %5772 = vrot.lane.b32.xlu0 %v5515, 110
      %v5773 = vpop.permute.xlu0 %5772
      %5774 = vrot.lane.b32.xlu0 %v5516, 110
      %v5775 = vpop.permute.xlu0 %5774
      %5776 = vrot.lane.b32.xlu0 %v5517, 110
      %v5777 = vpop.permute.xlu0 %5776
      %5778 = vrot.lane.b32.xlu0 %v5518, 110
      %v5779 = vpop.permute.xlu0 %5778
      %v5780 = vsel %vm917, %v5769, %v5771
      %v5781 = vsel %vm917, %v5771, %v5773
      %v5782 = vsel %vm917, %v5775, %v5777
      %v5783 = vsel %vm917, %v5777, %v5779
      %v5791 = vsel %vm1927, %v5767, 0
      %5793 = vmatpush.msra.mxu0 0.0
      %5794 = vmatpush.msra.mxu0 0.0
      %5795 = vmatpush.msra.mxu0 0.0
      %5796 = vmatpush.msra.mxu0 0.0
      %5797 = vmatpush.msra.mxu0 0.0
      %5798 = vmatpush.msra.mxu0 0.0
      %5799 = vmatpush.msra.mxu0 0.0
      %5800 = vmatpush.msra.mxu0 0.0
      %5801 = vmatpush.msra.mxu0 0.0
      %5802 = vmatpush.msra.mxu0 0.0
      %5803 = vmatpush.msra.mxu0 0.0
      %5804 = vmatpush.msra.mxu0 0.0
      %5805 = vmatpush.msra.mxu0 0.0
      %5806 = vmatpush.msra.mxu0 0.0
      %5807 = vmatpush.msra.mxu0 %v5782
      %5808 = vmatpush.msra.mxu0 %v5780
      %5809 = vmatmul.f32.gmra.mxu0 %v5791
      %v5810 = vpop.f32.mrf.mxu0
      %v5811 = vadd.f32 0.0, %v5810
      %5812 = vdwg.mxu0
      %5813 = vmatpush.msra.mxu0 0.0
      %5814 = vmatpush.msra.mxu0 0.0
      %5815 = vmatpush.msra.mxu0 0.0
      %5816 = vmatpush.msra.mxu0 0.0
      %5817 = vmatpush.msra.mxu0 0.0
      %5818 = vmatpush.msra.mxu0 0.0
      %5819 = vmatpush.msra.mxu0 0.0
      %5820 = vmatpush.msra.mxu0 0.0
      %5821 = vmatpush.msra.mxu0 0.0
      %5822 = vmatpush.msra.mxu0 0.0
      %5823 = vmatpush.msra.mxu0 0.0
      %5824 = vmatpush.msra.mxu0 0.0
      %5825 = vmatpush.msra.mxu0 0.0
      %5826 = vmatpush.msra.mxu0 0.0
      %5827 = vmatpush.msra.mxu0 %v5783
      %5828 = vmatpush.msra.mxu0 %v5781
      %5829 = vmatmul.f32.gmra.mxu0 %v5791
      %v5830 = vpop.f32.mrf.mxu0
      %v5831 = vadd.f32 0.0, %v5830
      %5832 = vdwg.mxu0
      %5833 = vmatpush.msra.mxu0 0.0
      %5834 = vmatpush.msra.mxu0 0.0
      %5835 = vmatpush.msra.mxu0 0.0
      %5836 = vmatpush.msra.mxu0 0.0
      %5837 = vmatpush.msra.mxu0 0.0
      %5838 = vmatpush.msra.mxu0 0.0
      %5839 = vmatpush.msra.mxu0 0.0
      %5840 = vmatpush.msra.mxu0 0.0
      %5841 = vmatpush.msra.mxu0 0.0
      %5842 = vmatpush.msra.mxu0 0.0
      %5843 = vmatpush.msra.mxu0 0.0
      %5844 = vmatpush.msra.mxu0 0.0
      %5845 = vmatpush.msra.mxu0 0.0
      %5846 = vmatpush.msra.mxu0 0.0
      %5847 = vmatpush.msra.mxu0 %v5779
      %5848 = vmatpush.msra.mxu0 %v5773
      %5849 = vmatmul.f32.gmra.mxu0 %v5791
      %v5850 = vpop.f32.mrf.mxu0
      %v5851 = vadd.f32 0.0, %v5850
      %5852 = vdwg.mxu0
      %v5853 = vadd.f32 %v5763, %v5811
      %v5854 = vadd.f32 %v5764, %v5831
      %v5855 = vadd.f32 %v5765, %v5851
      %s5856 = scalar_lea.vmem %s6, 16
      %v5857 = vld [vmem:[%s5856] sm:$0x7]
      %5858 = vrot.lane.b32.xlu0 %v5513, 109
      %v5859 = vpop.permute.xlu0 %5858
      %5860 = vrot.lane.b32.xlu0 %v5514, 109
      %v5861 = vpop.permute.xlu0 %5860
      %5862 = vrot.lane.b32.xlu0 %v5515, 109
      %v5863 = vpop.permute.xlu0 %5862
      %5864 = vrot.lane.b32.xlu0 %v5516, 109
      %v5865 = vpop.permute.xlu0 %5864
      %5866 = vrot.lane.b32.xlu0 %v5517, 109
      %v5867 = vpop.permute.xlu0 %5866
      %5868 = vrot.lane.b32.xlu0 %v5518, 109
      %v5869 = vpop.permute.xlu0 %5868
      %v5870 = vsel %vm1022, %v5859, %v5861
      %v5871 = vsel %vm1022, %v5861, %v5863
      %v5872 = vsel %vm1022, %v5865, %v5867
      %v5873 = vsel %vm1022, %v5867, %v5869
      %v5881 = vsel %vm1927, %v5857, 0
      %5883 = vmatpush.msra.mxu0 0.0
      %5884 = vmatpush.msra.mxu0 0.0
      %5885 = vmatpush.msra.mxu0 0.0
      %5886 = vmatpush.msra.mxu0 0.0
      %5887 = vmatpush.msra.mxu0 0.0
      %5888 = vmatpush.msra.mxu0 0.0
      %5889 = vmatpush.msra.mxu0 0.0
      %5890 = vmatpush.msra.mxu0 0.0
      %5891 = vmatpush.msra.mxu0 0.0
      %5892 = vmatpush.msra.mxu0 0.0
      %5893 = vmatpush.msra.mxu0 0.0
      %5894 = vmatpush.msra.mxu0 0.0
      %5895 = vmatpush.msra.mxu0 0.0
      %5896 = vmatpush.msra.mxu0 0.0
      %5897 = vmatpush.msra.mxu0 %v5872
      %5898 = vmatpush.msra.mxu0 %v5870
      %5899 = vmatmul.f32.gmra.mxu0 %v5881
      %v5900 = vpop.f32.mrf.mxu0
      %v5901 = vadd.f32 0.0, %v5900
      %5902 = vdwg.mxu0
      %5903 = vmatpush.msra.mxu0 0.0
      %5904 = vmatpush.msra.mxu0 0.0
      %5905 = vmatpush.msra.mxu0 0.0
      %5906 = vmatpush.msra.mxu0 0.0
      %5907 = vmatpush.msra.mxu0 0.0
      %5908 = vmatpush.msra.mxu0 0.0
      %5909 = vmatpush.msra.mxu0 0.0
      %5910 = vmatpush.msra.mxu0 0.0
      %5911 = vmatpush.msra.mxu0 0.0
      %5912 = vmatpush.msra.mxu0 0.0
      %5913 = vmatpush.msra.mxu0 0.0
      %5914 = vmatpush.msra.mxu0 0.0
      %5915 = vmatpush.msra.mxu0 0.0
      %5916 = vmatpush.msra.mxu0 0.0
      %5917 = vmatpush.msra.mxu0 %v5873
      %5918 = vmatpush.msra.mxu0 %v5871
      %5919 = vmatmul.f32.gmra.mxu0 %v5881
      %v5920 = vpop.f32.mrf.mxu0
      %v5921 = vadd.f32 0.0, %v5920
      %5922 = vdwg.mxu0
      %5923 = vmatpush.msra.mxu0 0.0
      %5924 = vmatpush.msra.mxu0 0.0
      %5925 = vmatpush.msra.mxu0 0.0
      %5926 = vmatpush.msra.mxu0 0.0
      %5927 = vmatpush.msra.mxu0 0.0
      %5928 = vmatpush.msra.mxu0 0.0
      %5929 = vmatpush.msra.mxu0 0.0
      %5930 = vmatpush.msra.mxu0 0.0
      %5931 = vmatpush.msra.mxu0 0.0
      %5932 = vmatpush.msra.mxu0 0.0
      %5933 = vmatpush.msra.mxu0 0.0
      %5934 = vmatpush.msra.mxu0 0.0
      %5935 = vmatpush.msra.mxu0 0.0
      %5936 = vmatpush.msra.mxu0 0.0
      %5937 = vmatpush.msra.mxu0 %v5869
      %5938 = vmatpush.msra.mxu0 %v5863
      %5939 = vmatmul.f32.gmra.mxu0 %v5881
      %v5940 = vpop.f32.mrf.mxu0
      %v5941 = vadd.f32 0.0, %v5940
      %5942 = vdwg.mxu0
      %v5943 = vadd.f32 %v5853, %v5901
      %v5944 = vadd.f32 %v5854, %v5921
      %v5945 = vadd.f32 %v5855, %v5941
      %s5946 = scalar_lea.vmem %s6, 20
      %v5947 = vld [vmem:[%s5946] sm:$0x7]
      %5948 = vrot.lane.b32.xlu0 %v5513, 108
      %v5949 = vpop.permute.xlu0 %5948
      %5950 = vrot.lane.b32.xlu0 %v5514, 108
      %v5951 = vpop.permute.xlu0 %5950
      %5952 = vrot.lane.b32.xlu0 %v5515, 108
      %v5953 = vpop.permute.xlu0 %5952
      %5954 = vrot.lane.b32.xlu0 %v5516, 108
      %v5955 = vpop.permute.xlu0 %5954
      %5956 = vrot.lane.b32.xlu0 %v5517, 108
      %v5957 = vpop.permute.xlu0 %5956
      %5958 = vrot.lane.b32.xlu0 %v5518, 108
      %v5959 = vpop.permute.xlu0 %5958
      %v5960 = vsel %vm1127, %v5949, %v5951
      %v5961 = vsel %vm1127, %v5951, %v5953
      %v5962 = vsel %vm1127, %v5955, %v5957
      %v5963 = vsel %vm1127, %v5957, %v5959
      %v5971 = vsel %vm1927, %v5947, 0
      %5973 = vmatpush.msra.mxu0 0.0
      %5974 = vmatpush.msra.mxu0 0.0
      %5975 = vmatpush.msra.mxu0 0.0
      %5976 = vmatpush.msra.mxu0 0.0
      %5977 = vmatpush.msra.mxu0 0.0
      %5978 = vmatpush.msra.mxu0 0.0
      %5979 = vmatpush.msra.mxu0 0.0
      %5980 = vmatpush.msra.mxu0 0.0
      %5981 = vmatpush.msra.mxu0 0.0
      %5982 = vmatpush.msra.mxu0 0.0
      %5983 = vmatpush.msra.mxu0 0.0
      %5984 = vmatpush.msra.mxu0 0.0
      %5985 = vmatpush.msra.mxu0 0.0
      %5986 = vmatpush.msra.mxu0 0.0
      %5987 = vmatpush.msra.mxu0 %v5962
      %5988 = vmatpush.msra.mxu0 %v5960
      %5989 = vmatmul.f32.gmra.mxu0 %v5971
      %v5990 = vpop.f32.mrf.mxu0
      %v5991 = vadd.f32 0.0, %v5990
      %5992 = vdwg.mxu0
      %5993 = vmatpush.msra.mxu0 0.0
      %5994 = vmatpush.msra.mxu0 0.0
      %5995 = vmatpush.msra.mxu0 0.0
      %5996 = vmatpush.msra.mxu0 0.0
      %5997 = vmatpush.msra.mxu0 0.0
      %5998 = vmatpush.msra.mxu0 0.0
      %5999 = vmatpush.msra.mxu0 0.0
      %6000 = vmatpush.msra.mxu0 0.0
      %6001 = vmatpush.msra.mxu0 0.0
      %6002 = vmatpush.msra.mxu0 0.0
      %6003 = vmatpush.msra.mxu0 0.0
      %6004 = vmatpush.msra.mxu0 0.0
      %6005 = vmatpush.msra.mxu0 0.0
      %6006 = vmatpush.msra.mxu0 0.0
      %6007 = vmatpush.msra.mxu0 %v5963
      %6008 = vmatpush.msra.mxu0 %v5961
      %6009 = vmatmul.f32.gmra.mxu0 %v5971
      %v6010 = vpop.f32.mrf.mxu0
      %v6011 = vadd.f32 0.0, %v6010
      %6012 = vdwg.mxu0
      %6013 = vmatpush.msra.mxu0 0.0
      %6014 = vmatpush.msra.mxu0 0.0
      %6015 = vmatpush.msra.mxu0 0.0
      %6016 = vmatpush.msra.mxu0 0.0
      %6017 = vmatpush.msra.mxu0 0.0
      %6018 = vmatpush.msra.mxu0 0.0
      %6019 = vmatpush.msra.mxu0 0.0
      %6020 = vmatpush.msra.mxu0 0.0
      %6021 = vmatpush.msra.mxu0 0.0
      %6022 = vmatpush.msra.mxu0 0.0
      %6023 = vmatpush.msra.mxu0 0.0
      %6024 = vmatpush.msra.mxu0 0.0
      %6025 = vmatpush.msra.mxu0 0.0
      %6026 = vmatpush.msra.mxu0 0.0
      %6027 = vmatpush.msra.mxu0 %v5959
      %6028 = vmatpush.msra.mxu0 %v5953
      %6029 = vmatmul.f32.gmra.mxu0 %v5971
      %v6030 = vpop.f32.mrf.mxu0
      %v6031 = vadd.f32 0.0, %v6030
      %6032 = vdwg.mxu0
      %v6033 = vadd.f32 %v5943, %v5991
      %v6034 = vadd.f32 %v5944, %v6011
      %v6035 = vadd.f32 %v5945, %v6031
      %s6036 = scalar_lea.vmem %s6, 24
      %v6037 = vld [vmem:[%s6036] sm:$0x7]
      %6038 = vrot.lane.b32.xlu0 %v5513, 92
      %v6039 = vpop.permute.xlu0 %6038
      %6040 = vrot.lane.b32.xlu0 %v5514, 92
      %v6041 = vpop.permute.xlu0 %6040
      %6042 = vrot.lane.b32.xlu0 %v5515, 92
      %v6043 = vpop.permute.xlu0 %6042
      %6044 = vrot.lane.b32.xlu0 %v5516, 92
      %v6045 = vpop.permute.xlu0 %6044
      %6046 = vrot.lane.b32.xlu0 %v5517, 92
      %v6047 = vpop.permute.xlu0 %6046
      %6048 = vrot.lane.b32.xlu0 %v5518, 92
      %v6049 = vpop.permute.xlu0 %6048
      %v6050 = vsel %vm1232, %v6039, %v6041
      %v6051 = vsel %vm1232, %v6041, %v6043
      %v6052 = vsel %vm1232, %v6045, %v6047
      %v6053 = vsel %vm1232, %v6047, %v6049
      %v6061 = vsel %vm1927, %v6037, 0
      %6063 = vmatpush.msra.mxu0 0.0
      %6064 = vmatpush.msra.mxu0 0.0
      %6065 = vmatpush.msra.mxu0 0.0
      %6066 = vmatpush.msra.mxu0 0.0
      %6067 = vmatpush.msra.mxu0 0.0
      %6068 = vmatpush.msra.mxu0 0.0
      %6069 = vmatpush.msra.mxu0 0.0
      %6070 = vmatpush.msra.mxu0 0.0
      %6071 = vmatpush.msra.mxu0 0.0
      %6072 = vmatpush.msra.mxu0 0.0
      %6073 = vmatpush.msra.mxu0 0.0
      %6074 = vmatpush.msra.mxu0 0.0
      %6075 = vmatpush.msra.mxu0 0.0
      %6076 = vmatpush.msra.mxu0 0.0
      %6077 = vmatpush.msra.mxu0 %v6052
      %6078 = vmatpush.msra.mxu0 %v6050
      %6079 = vmatmul.f32.gmra.mxu0 %v6061
      %v6080 = vpop.f32.mrf.mxu0
      %v6081 = vadd.f32 0.0, %v6080
      %6082 = vdwg.mxu0
      %6083 = vmatpush.msra.mxu0 0.0
      %6084 = vmatpush.msra.mxu0 0.0
      %6085 = vmatpush.msra.mxu0 0.0
      %6086 = vmatpush.msra.mxu0 0.0
      %6087 = vmatpush.msra.mxu0 0.0
      %6088 = vmatpush.msra.mxu0 0.0
      %6089 = vmatpush.msra.mxu0 0.0
      %6090 = vmatpush.msra.mxu0 0.0
      %6091 = vmatpush.msra.mxu0 0.0
      %6092 = vmatpush.msra.mxu0 0.0
      %6093 = vmatpush.msra.mxu0 0.0
      %6094 = vmatpush.msra.mxu0 0.0
      %6095 = vmatpush.msra.mxu0 0.0
      %6096 = vmatpush.msra.mxu0 0.0
      %6097 = vmatpush.msra.mxu0 %v6053
      %6098 = vmatpush.msra.mxu0 %v6051
      %6099 = vmatmul.f32.gmra.mxu0 %v6061
      %v6100 = vpop.f32.mrf.mxu0
      %v6101 = vadd.f32 0.0, %v6100
      %6102 = vdwg.mxu0
      %6103 = vmatpush.msra.mxu0 0.0
      %6104 = vmatpush.msra.mxu0 0.0
      %6105 = vmatpush.msra.mxu0 0.0
      %6106 = vmatpush.msra.mxu0 0.0
      %6107 = vmatpush.msra.mxu0 0.0
      %6108 = vmatpush.msra.mxu0 0.0
      %6109 = vmatpush.msra.mxu0 0.0
      %6110 = vmatpush.msra.mxu0 0.0
      %6111 = vmatpush.msra.mxu0 0.0
      %6112 = vmatpush.msra.mxu0 0.0
      %6113 = vmatpush.msra.mxu0 0.0
      %6114 = vmatpush.msra.mxu0 0.0
      %6115 = vmatpush.msra.mxu0 0.0
      %6116 = vmatpush.msra.mxu0 0.0
      %6117 = vmatpush.msra.mxu0 %v6049
      %6118 = vmatpush.msra.mxu0 %v6043
      %6119 = vmatmul.f32.gmra.mxu0 %v6061
      %v6120 = vpop.f32.mrf.mxu0
      %v6121 = vadd.f32 0.0, %v6120
      %6122 = vdwg.mxu0
      %v6123 = vadd.f32 %v6033, %v6081
      %v6124 = vadd.f32 %v6034, %v6101
      %v6125 = vadd.f32 %v6035, %v6121
      %s6126 = scalar_lea.vmem %s6, 28
      %v6127 = vld [vmem:[%s6126] sm:$0x7]
      %6128 = vrot.lane.b32.xlu0 %v5513, 91
      %v6129 = vpop.permute.xlu0 %6128
      %6130 = vrot.lane.b32.xlu0 %v5514, 91
      %v6131 = vpop.permute.xlu0 %6130
      %6132 = vrot.lane.b32.xlu0 %v5515, 91
      %v6133 = vpop.permute.xlu0 %6132
      %6134 = vrot.lane.b32.xlu0 %v5516, 91
      %v6135 = vpop.permute.xlu0 %6134
      %6136 = vrot.lane.b32.xlu0 %v5517, 91
      %v6137 = vpop.permute.xlu0 %6136
      %6138 = vrot.lane.b32.xlu0 %v5518, 91
      %v6139 = vpop.permute.xlu0 %6138
      %v6140 = vsel %vm1337, %v6129, %v6131
      %v6141 = vsel %vm1337, %v6131, %v6133
      %v6142 = vsel %vm1337, %v6135, %v6137
      %v6143 = vsel %vm1337, %v6137, %v6139
      %v6151 = vsel %vm1927, %v6127, 0
      %6153 = vmatpush.msra.mxu0 0.0
      %6154 = vmatpush.msra.mxu0 0.0
      %6155 = vmatpush.msra.mxu0 0.0
      %6156 = vmatpush.msra.mxu0 0.0
      %6157 = vmatpush.msra.mxu0 0.0
      %6158 = vmatpush.msra.mxu0 0.0
      %6159 = vmatpush.msra.mxu0 0.0
      %6160 = vmatpush.msra.mxu0 0.0
      %6161 = vmatpush.msra.mxu0 0.0
      %6162 = vmatpush.msra.mxu0 0.0
      %6163 = vmatpush.msra.mxu0 0.0
      %6164 = vmatpush.msra.mxu0 0.0
      %6165 = vmatpush.msra.mxu0 0.0
      %6166 = vmatpush.msra.mxu0 0.0
      %6167 = vmatpush.msra.mxu0 %v6142
      %6168 = vmatpush.msra.mxu0 %v6140
      %6169 = vmatmul.f32.gmra.mxu0 %v6151
      %v6170 = vpop.f32.mrf.mxu0
      %v6171 = vadd.f32 0.0, %v6170
      %6172 = vdwg.mxu0
      %6173 = vmatpush.msra.mxu0 0.0
      %6174 = vmatpush.msra.mxu0 0.0
      %6175 = vmatpush.msra.mxu0 0.0
      %6176 = vmatpush.msra.mxu0 0.0
      %6177 = vmatpush.msra.mxu0 0.0
      %6178 = vmatpush.msra.mxu0 0.0
      %6179 = vmatpush.msra.mxu0 0.0
      %6180 = vmatpush.msra.mxu0 0.0
      %6181 = vmatpush.msra.mxu0 0.0
      %6182 = vmatpush.msra.mxu0 0.0
      %6183 = vmatpush.msra.mxu0 0.0
      %6184 = vmatpush.msra.mxu0 0.0
      %6185 = vmatpush.msra.mxu0 0.0
      %6186 = vmatpush.msra.mxu0 0.0
      %6187 = vmatpush.msra.mxu0 %v6143
      %6188 = vmatpush.msra.mxu0 %v6141
      %6189 = vmatmul.f32.gmra.mxu0 %v6151
      %v6190 = vpop.f32.mrf.mxu0
      %v6191 = vadd.f32 0.0, %v6190
      %6192 = vdwg.mxu0
      %6193 = vmatpush.msra.mxu0 0.0
      %6194 = vmatpush.msra.mxu0 0.0
      %6195 = vmatpush.msra.mxu0 0.0
      %6196 = vmatpush.msra.mxu0 0.0
      %6197 = vmatpush.msra.mxu0 0.0
      %6198 = vmatpush.msra.mxu0 0.0
      %6199 = vmatpush.msra.mxu0 0.0
      %6200 = vmatpush.msra.mxu0 0.0
      %6201 = vmatpush.msra.mxu0 0.0
      %6202 = vmatpush.msra.mxu0 0.0
      %6203 = vmatpush.msra.mxu0 0.0
      %6204 = vmatpush.msra.mxu0 0.0
      %6205 = vmatpush.msra.mxu0 0.0
      %6206 = vmatpush.msra.mxu0 0.0
      %6207 = vmatpush.msra.mxu0 %v6139
      %6208 = vmatpush.msra.mxu0 %v6133
      %6209 = vmatmul.f32.gmra.mxu0 %v6151
      %v6210 = vpop.f32.mrf.mxu0
      %v6211 = vadd.f32 0.0, %v6210
      %6212 = vdwg.mxu0
      %v6213 = vadd.f32 %v6123, %v6171
      %v6214 = vadd.f32 %v6124, %v6191
      %v6215 = vadd.f32 %v6125, %v6211
      %s6216 = scalar_lea.vmem %s6, 32
      %v6217 = vld [vmem:[%s6216] sm:$0x7]
      %6218 = vrot.lane.b32.xlu0 %v5513, 90
      %v6219 = vpop.permute.xlu0 %6218
      %6220 = vrot.lane.b32.xlu0 %v5514, 90
      %v6221 = vpop.permute.xlu0 %6220
      %6222 = vrot.lane.b32.xlu0 %v5515, 90
      %v6223 = vpop.permute.xlu0 %6222
      %6224 = vrot.lane.b32.xlu0 %v5516, 90
      %v6225 = vpop.permute.xlu0 %6224
      %6226 = vrot.lane.b32.xlu0 %v5517, 90
      %v6227 = vpop.permute.xlu0 %6226
      %6228 = vrot.lane.b32.xlu0 %v5518, 90
      %v6229 = vpop.permute.xlu0 %6228
      %v6230 = vsel %vm1442, %v6219, %v6221
      %v6231 = vsel %vm1442, %v6221, %v6223
      %v6232 = vsel %vm1442, %v6225, %v6227
      %v6233 = vsel %vm1442, %v6227, %v6229
      %v6241 = vsel %vm1927, %v6217, 0
      %6243 = vmatpush.msra.mxu0 0.0
      %6244 = vmatpush.msra.mxu0 0.0
      %6245 = vmatpush.msra.mxu0 0.0
      %6246 = vmatpush.msra.mxu0 0.0
      %6247 = vmatpush.msra.mxu0 0.0
      %6248 = vmatpush.msra.mxu0 0.0
      %6249 = vmatpush.msra.mxu0 0.0
      %6250 = vmatpush.msra.mxu0 0.0
      %6251 = vmatpush.msra.mxu0 0.0
      %6252 = vmatpush.msra.mxu0 0.0
      %6253 = vmatpush.msra.mxu0 0.0
      %6254 = vmatpush.msra.mxu0 0.0
      %6255 = vmatpush.msra.mxu0 0.0
      %6256 = vmatpush.msra.mxu0 0.0
      %6257 = vmatpush.msra.mxu0 %v6232
      %6258 = vmatpush.msra.mxu0 %v6230
      %6259 = vmatmul.f32.gmra.mxu0 %v6241
      %v6260 = vpop.f32.mrf.mxu0
      %v6261 = vadd.f32 0.0, %v6260
      %6262 = vdwg.mxu0
      %6263 = vmatpush.msra.mxu0 0.0
      %6264 = vmatpush.msra.mxu0 0.0
      %6265 = vmatpush.msra.mxu0 0.0
      %6266 = vmatpush.msra.mxu0 0.0
      %6267 = vmatpush.msra.mxu0 0.0
      %6268 = vmatpush.msra.mxu0 0.0
      %6269 = vmatpush.msra.mxu0 0.0
      %6270 = vmatpush.msra.mxu0 0.0
      %6271 = vmatpush.msra.mxu0 0.0
      %6272 = vmatpush.msra.mxu0 0.0
      %6273 = vmatpush.msra.mxu0 0.0
      %6274 = vmatpush.msra.mxu0 0.0
      %6275 = vmatpush.msra.mxu0 0.0
      %6276 = vmatpush.msra.mxu0 0.0
      %6277 = vmatpush.msra.mxu0 %v6233
      %6278 = vmatpush.msra.mxu0 %v6231
      %6279 = vmatmul.f32.gmra.mxu0 %v6241
      %v6280 = vpop.f32.mrf.mxu0
      %v6281 = vadd.f32 0.0, %v6280
      %6282 = vdwg.mxu0
      %6283 = vmatpush.msra.mxu0 0.0
      %6284 = vmatpush.msra.mxu0 0.0
      %6285 = vmatpush.msra.mxu0 0.0
      %6286 = vmatpush.msra.mxu0 0.0
      %6287 = vmatpush.msra.mxu0 0.0
      %6288 = vmatpush.msra.mxu0 0.0
      %6289 = vmatpush.msra.mxu0 0.0
      %6290 = vmatpush.msra.mxu0 0.0
      %6291 = vmatpush.msra.mxu0 0.0
      %6292 = vmatpush.msra.mxu0 0.0
      %6293 = vmatpush.msra.mxu0 0.0
      %6294 = vmatpush.msra.mxu0 0.0
      %6295 = vmatpush.msra.mxu0 0.0
      %6296 = vmatpush.msra.mxu0 0.0
      %6297 = vmatpush.msra.mxu0 %v6229
      %6298 = vmatpush.msra.mxu0 %v6223
      %6299 = vmatmul.f32.gmra.mxu0 %v6241
      %v6300 = vpop.f32.mrf.mxu0
      %v6301 = vadd.f32 0.0, %v6300
      %6302 = vdwg.mxu0
      %v6303 = vadd.f32 %v6213, %v6261
      %v6304 = vadd.f32 %v6214, %v6281
      %v6305 = vadd.f32 %v6215, %v6301
      %v6306 = vld [vmem:[%s12] sm:$0x7]
      %6308 = vset.pattern.permute.xlu0 0
      %6309 = vperm.xlu0 %6308, %v6306
      %v6310 = vpop.permute.xlu0 %6309
      %v6312 = vadd.f32 %v6303, %v6310
      %v6313 = vadd.f32 %v6304, %v6310
      %v6314 = vadd.f32 %v6305, %v6310
      %v6315 = vsub.f32 0.0, %v6312
      %v6316 = vsub.f32 0.0, %v6313
      %v6317 = vsub.f32 0.0, %v6314
      %v6318 = vmul.f32 %v6315, 1.442695
      %v6319 = vpow.pop %v6318
      %v6320 = vmul.f32 %v6316, 1.442695
      %v6321 = vpow.pop %v6320
      %v6322 = vmul.f32 %v6317, 1.442695
      %v6323 = vpow.pop %v6322
      %v6324 = vadd.f32 %v6319, 1.0
      %v6325 = vadd.f32 %v6321, 1.0
      %v6326 = vadd.f32 %v6323, 1.0
      %v6327 = vrcp.pop %v6324
      %v6328 = vmul.f32 %v6324, %v6327
      %v6329 = vsub.f32 1.0, %v6328
      %v6330 = vmul.f32 %v6327, %v6329
      %v6331 = vadd.f32 %v6327, %v6330
      %vm6332 = vweird.f32 %v6324
      %vm6333 = vweird.f32 %v6327
      %vm6334 = vmor %vm6332, %vm6333
      %v6335 = vsel %vm6334, %v6327, %v6331
      %v6336 = vand.u32 2147483647, %v6324
      %vm6337 = vcmp.eq.f32.partialorder %v6336, 8.507059e+37
      %v6338 = vand.u32 %v6324, 2147483648
      %v6339 = vor.u32 1.1754944e-38, %v6338
      %v6340 = vsel %vm6337, %v6339, %v6335
      %v6341 = vmul.f32 1.0, %v6340
      %v6342 = vrcp.pop %v6325
      %v6343 = vmul.f32 %v6325, %v6342
      %v6344 = vsub.f32 1.0, %v6343
      %v6345 = vmul.f32 %v6342, %v6344
      %v6346 = vadd.f32 %v6342, %v6345
      %vm6347 = vweird.f32 %v6325
      %vm6348 = vweird.f32 %v6342
      %vm6349 = vmor %vm6347, %vm6348
      %v6350 = vsel %vm6349, %v6342, %v6346
      %v6351 = vand.u32 2147483647, %v6325
      %vm6352 = vcmp.eq.f32.partialorder %v6351, 8.507059e+37
      %v6353 = vand.u32 %v6325, 2147483648
      %v6354 = vor.u32 1.1754944e-38, %v6353
      %v6355 = vsel %vm6352, %v6354, %v6350
      %v6356 = vmul.f32 1.0, %v6355
      %v6357 = vrcp.pop %v6326
      %v6358 = vmul.f32 %v6326, %v6357
      %v6359 = vsub.f32 1.0, %v6358
      %v6360 = vmul.f32 %v6357, %v6359
      %v6361 = vadd.f32 %v6357, %v6360
      %vm6362 = vweird.f32 %v6326
      %vm6363 = vweird.f32 %v6357
      %vm6364 = vmor %vm6362, %vm6363
      %v6365 = vsel %vm6364, %v6357, %v6361
      %v6366 = vand.u32 2147483647, %v6326
      %vm6367 = vcmp.eq.f32.partialorder %v6366, 8.507059e+37
      %v6368 = vand.u32 %v6326, 2147483648
      %v6369 = vor.u32 1.1754944e-38, %v6368
      %v6370 = vsel %vm6367, %v6369, %v6365
      %v6371 = vmul.f32 1.0, %v6370
      %v6374 = vrot.slane %v6356, 4
      %v6375 = vsel %vm4506, %v6341, %v6374
      %6377 = vst [vmem:[%s575] sm:$0x77] %v6375
      %vm6378 = vcmask 256000
      %6379 = vst.msk [vmem:[%s575 + $0x8] sm:$0x7] %vm6378, %v6371
      %p6380 = scmp.lt.s32.totalorder %s29, 1
      %s6381 = scalar_select %p6380, %s29, 1
      %s6382 = smul.addr %s6381, 3
      %s6383 = smul.addr %s6382, 4
      %s6384 = scalar_lea.vmem %s18, %s6383
      // Predicated region
      $region93: #{forward.1} parent=91 // pred_check
        %p6385 = pneg %p430
      $region94: #{forward.1} parent=91 // pred_check_branch
        %6387 = sbr.rel (%p6385) target = $region96
      $region95: #{forward.1} parent=91 // pred_region
        _
      $region96: #{forward.1} parent=91 // pred_fallthru
        _
    $region92: #{forward.1} parent=5 // pred_fallthru
      _
    %p6388 = scmp.le.s32.totalorder 2, %s24
    // Predicated region
    $region97: #{forward.1} parent=5 // pred_check
      %p6389 = pneg %p6388
    $region98: #{forward.1} parent=5 // pred_check_branch
      %6391 = sbr.rel (%p6389) target = $region100
    $region99: #{forward.1} parent=5 // pred_region
      %s6392 = ssub.s32 %s24, 2
      // Predicated region
      $region101: #{forward.1} parent=99 // pred_check
        %p6393 = pneg %p436
      $region102: #{forward.1} parent=99 // pred_check_branch
        %6395 = sbr.rel (%p6393) target = $region104
      $region103: #{forward.1} parent=99 // pred_region
        %p6396 = scmp.lt.s32.totalorder %s30, 1
        %s6397 = scalar_select %p6396, %s30, 1
        %s6398 = smul.addr %s6397, 3
        %s6399 = smul.addr %s6398, 4
        %s6400 = scalar_lea.vmem %s18, %s6399
      $region104: #{forward.1} parent=99 // pred_fallthru
        _
    $region100: #{forward.1} parent=5 // pred_fallthru
      _
  $region6: #{forward.1} parent=0 // loop_footer
    %s28 = sadd.s32 1, %s24
  $region7: #{forward.1} parent=0 // loop_footer_branch
    %23 = sbr.rel target = $region3
  $region8: #{forward.1} parent=0 // loop_exit
    _

</llo_original>
